<compile_context>
chip_gen: v7x
topology: tpu7x:2x2x1
jax: 0.10.0
libtpu: 0.0.40
codegen_flags: <defaults>
</compile_context>

<pallas_src>
import functools

import jax
import jax.numpy as jnp
from jax import lax
from jax.experimental import pallas as pl
from jax.experimental.pallas import tpu as pltpu

LEAKY_SLOPE = 0.01  # F.leaky_relu default negative_slope


def _leaky(v):
    return jnp.where(v >= 0, v, LEAKY_SLOPE * v)


def _halo_segments(n_imgs, stride, Wp, pad, H_out, W_out, total_rows):
    """Static (trace-time) list of merged (start, length) row segments of the
    flat padded buffer that never receive valid data and must stay zero."""
    valid = set()
    for b in range(n_imgs):
        for i in range(H_out):
            base = b * stride + (i + pad) * Wp + pad
            valid.update(range(base, base + W_out))
    segs = []
    r = 0
    while r < total_rows:
        if r in valid:
            r += 1
            continue
        s = r
        while r < total_rows and r not in valid:
            r += 1
        segs.append((s, r - s))
    return segs


def _shift_conv(p_ref, w_ref, K, Wp, rows):
    """Per-tap shift-trick conv: each KxK tap is one contiguous slice + matmul."""
    acc = None
    for ky in range(K):
        for kx in range(K):
            t = jnp.dot(p_ref[pl.ds(ky * Wp + kx, rows), :],
                        w_ref[ky * K + kx],
                        preferred_element_type=jnp.float32)
            acc = t if acc is None else acc + t
    return acc


def _moe_fused_kernel(x_ref, w1_ref, b1_ref, w2_ref, b2_ref, w3_ref, b3_ref,
                      wr_ref, br_ref,
                      a3_ref, logits_ref, idx_ref,
                      a1_ref, hx1_ref, p2_ref, a2_ref, hx2_ref, p3_ref,
                      *, B, H, W, C1, C2, C3, K2, K3, E):
    # Static geometry ---------------------------------------------------------
    pad2, pad3 = K2 // 2, K3 // 2
    H2, W2 = H // 2, W // 2
    H3, W3 = H2 // 2, W2 // 2
    Wp2 = W2 + 2 * pad2
    Wp3 = W3 + 2 * pad3
    S2 = (H2 + 2 * pad2) * Wp2          # per-image row stride in conv2 padded buffer
    S3 = (H3 + 2 * pad3) * Wp3          # per-image row stride in conv3 padded buffer
    HW = H * W
    A2 = B * S2                         # conv2 accumulator rows (batch stacked on M)
    A3 = B * S3

    # ---- conv1: single im2col matmul, chunked along M for vreg pressure -------
    rows1 = B * HW
    CH = next(c for c in (128, 64, 32, 16, 8, rows1) if rows1 % c == 0)
    for c in range(rows1 // CH):
        r0 = c * CH
        a1_ref[pl.ds(r0, CH), :] = _leaky(
            jnp.dot(x_ref[pl.ds(r0, CH), :], w1_ref[...],
                    preferred_element_type=jnp.float32) + b1_ref[...])

    # ---- zero only halo / slop rows of the padded conv inputs (megacore-safe) -
    for s, l in _halo_segments(B, S2, Wp2, pad2, H2, W2, p2_ref.shape[0]):
        p2_ref[pl.ds(s, l), :] = jnp.zeros((l, C1), jnp.float32)
    for s, l in _halo_segments(B, S3, Wp3, pad3, H3, W3, p3_ref.shape[0]):
        p3_ref[pl.ds(s, l), :] = jnp.zeros((l, C2), jnp.float32)

    # ---- pool1 (2x2/2): width pairs via stride-2 ref reads, then row pairs -----
    n1 = rows1 // 2
    hx1_ref[...] = jnp.maximum(a1_ref[pl.ds(0, n1, stride=2), :],
                               a1_ref[pl.ds(1, n1, stride=2), :])
    Wh1 = W // 2
    for b in range(B):
        for i in range(H2):
            r0 = hx1_ref[pl.ds(b * (HW // 2) + (2 * i) * Wh1, W2), :]
            r1 = hx1_ref[pl.ds(b * (HW // 2) + (2 * i + 1) * Wh1, W2), :]
            p2_ref[pl.ds(b * S2 + (i + pad2) * Wp2 + pad2, W2), :] = jnp.maximum(r0, r1)

    # ---- conv2 (all B images in one set of tap matmuls) ------------------------
    a2_ref[...] = _leaky(_shift_conv(p2_ref, w2_ref, K2, Wp2, A2) + b2_ref[...])

    # ---- pool2 ------------------------------------------------------------------
    n2 = A2 // 2
    hx2_ref[...] = jnp.maximum(a2_ref[pl.ds(0, n2, stride=2), :],
                               a2_ref[pl.ds(1, n2, stride=2), :])
    Wh2 = Wp2 // 2
    for b in range(B):
        for i in range(H3):
            r0 = hx2_ref[pl.ds(b * (S2 // 2) + (2 * i) * Wh2, W3), :]
            r1 = hx2_ref[pl.ds(b * (S2 // 2) + (2 * i + 1) * Wh2, W3), :]
            p3_ref[pl.ds(b * S3 + (i + pad3) * Wp3 + pad3, W3), :] = jnp.maximum(r0, r1)

    # ---- conv3: one aligned full-tile store; wrapper slices valid rows ---------
    a3_ref[...] = _leaky(_shift_conv(p3_ref, w3_ref, K3, Wp3, A3) + b3_ref[...])

    # ---- router: VPU multiply + reduce against zero-masked weights (E tiny) ----
    ids = lax.broadcasted_iota(jnp.int32, (E, 1), 0)
    for b in range(B):
        reg = a3_ref[pl.ds(b * S3, S3), :]                     # (S3, C3)
        lvec = br_ref[...]                                     # (E, 1)
        for e in range(E):
            pc = jnp.sum(reg * wr_ref[e], axis=0, keepdims=True)   # (1, C3)
            s_e = jnp.sum(pc, axis=1, keepdims=True)                # (1, 1)
            lvec = lvec + jnp.where(ids == e, s_e, 0.0)
        logits_ref[b] = lvec
        mx = jnp.max(lvec, axis=0, keepdims=True)
        # first index achieving the max (torch.argmax tie convention)
        idx_ref[b] = jnp.min(jnp.where(lvec == mx, ids, E), axis=0, keepdims=True)


def mixture_of_experts_forward(x_nchw, params, *, batch_block=2):
    p = params
    N, Cin, H, W = x_nchw.shape
    K1, C1 = p["w1"].shape[0], p["w1"].shape[-1]
    K2, C2 = p["w2"].shape[0], p["w2"].shape[-1]
    K3, C3 = p["w3"].shape[0], p["w3"].shape[-1]
    E = p["wr"].shape[-1]
    assert H % 4 == 0 and W % 4 == 0, "pool parity trick needs H, W divisible by 4"

    B = batch_block if (batch_block >= 1 and N % batch_block == 0) else 1
    NB = N // B

    pad1, pad2, pad3 = K1 // 2, K2 // 2, K3 // 2
    H2, W2, H3, W3 = H // 2, W // 2, H // 4, W // 4
    Wp2, Wp3 = W2 + 2 * pad2, W3 + 2 * pad3
    assert Wp2 % 2 == 0, "pool2 parity trick needs an even padded width"
    S2 = (H2 + 2 * pad2) * Wp2
    S3 = (H3 + 2 * pad3) * Wp3
    slop2 = (K2 - 1) * Wp2 + (K2 - 1)     # extra rows read by garbage acc rows
    slop3 = (K3 - 1) * Wp3 + (K3 - 1)
    HW = H * W
    P = H3 * W3
    F = C3 * P
    assert p["wr"].shape[0] == F
    KKC = K1 * K1 * Cin

    # ---- tiny one-time host-side layout prep (cheap XLA work) ------------------
    x_nhwc = jnp.transpose(x_nchw, (0, 2, 3, 1))
    xpad = jnp.pad(x_nhwc, ((0, 0), (pad1, pad1), (pad1, pad1), (0, 0)))
    # im2col columns ordered (ky, kx, cin) to match w1.reshape(KKC, C1)
    cols = [xpad[:, ky:ky + H, kx:kx + W, :] for ky in range(K1) for kx in range(K1)]
    x_col = jnp.concatenate(cols, axis=-1).reshape(N * HW, KKC)

    w1c = p["w1"].reshape(KKC, C1)
    w2f = p["w2"].reshape(K2 * K2, C1, C2)
    w3f = p["w3"].reshape(K3 * K3, C2, C3)
    b1 = p["b1"].reshape(1, C1)
    b2 = p["b2"].reshape(1, C2)
    b3 = p["b3"].reshape(1, C3)
    # Router weight expanded onto conv3's flat padded-row layout (zeros on the
    # pad / garbage rows) so logits are a VPU multiply+reduce against a3.
    wr_r = jnp.transpose(p["wr"].reshape(C3, H3, W3, E), (3, 1, 2, 0))   # (E,H3,W3,C3)
    wr_exp = jnp.zeros((E, H3 + 2 * pad3, Wp3, C3), jnp.float32)
    wr_exp = wr_exp.at[:, :H3, :W3, :].set(wr_r).reshape(E, S3, C3)
    br = p["br"].reshape(E, 1)

    kernel = functools.partial(_moe_fused_kernel, B=B, H=H, W=W,
                               C1=C1, C2=C2, C3=C3, K2=K2, K3=K3, E=E)
    a3_raw, logits, idx = pl.pallas_call(
        kernel,
        grid=(NB,),
        in_specs=[
            pl.BlockSpec((B * HW, KKC), lambda n: (n, 0)),
            pl.BlockSpec((KKC, C1), lambda n: (0, 0)),
            pl.BlockSpec((1, C1), lambda n: (0, 0)),
            pl.BlockSpec((K2 * K2, C1, C2), lambda n: (0, 0, 0)),
            pl.BlockSpec((1, C2), lambda n: (0, 0)),
            pl.BlockSpec((K3 * K3, C2, C3), lambda n: (0, 0, 0)),
            pl.BlockSpec((1, C3), lambda n: (0, 0)),
            pl.BlockSpec((E, S3, C3), lambda n: (0, 0, 0)),
            pl.BlockSpec((E, 1), lambda n: (0, 0)),
        ],
        out_specs=(
            pl.BlockSpec((B * S3, C3), lambda n: (n, 0)),
            pl.BlockSpec((B, E, 1), lambda n: (n, 0, 0)),
            pl.BlockSpec((B, 1, 1), lambda n: (n, 0, 0)),
        ),
        out_shape=(
            jax.ShapeDtypeStruct((N * S3, C3), jnp.float32),
            jax.ShapeDtypeStruct((N, E, 1), jnp.float32),
            # TODO(synk): torch.argmax returns int64; int32 kept for TPU friendliness.
            jax.ShapeDtypeStruct((N, 1, 1), jnp.int32),
        ),
        scratch_shapes=[
            pltpu.VMEM((B * HW, C1), jnp.float32),           # conv1 activation
            pltpu.VMEM((B * HW // 2, C1), jnp.float32),      # pool1 width-pair max
            pltpu.VMEM((B * S2 + slop2, C1), jnp.float32),   # conv2 padded input
            pltpu.VMEM((B * S2, C2), jnp.float32),           # conv2 activation
            pltpu.VMEM((B * S2 // 2, C2), jnp.float32),      # pool2 width-pair max
            pltpu.VMEM((B * S3 + slop3, C2), jnp.float32),   # conv3 padded input
        ],
        compiler_params=pltpu.CompilerParams(dimension_semantics=("parallel",)),
    )(x_col, w1c, b1, w2f, b2, w3f, b3, wr_exp, br)

    # Slice the valid rows of the raw conv3 slab and reorder to torch's
    # NCHW .view(N, -1) flatten order (tiny XLA reshape/transpose).
    feats = a3_raw.reshape(N, H3 + 2 * pad3, Wp3, C3)[:, :H3, :W3, :]
    features = jnp.transpose(feats, (0, 3, 1, 2)).reshape(N, F)
    return features, logits.reshape(N, E), idx.reshape(N)


def init_params(key, num_experts=3, feature_dim=1024):
    # Deterministic synthetic init; shapes follow the nn.Module __init__
    # (conv weights in HWIO; a torch checkpoint would need OIHW->HWIO and the
    #  router weight transposed).  Experts in nn.ModuleList are unused in
    #  forward, so they are not materialized.
    ks = jax.random.split(key, 8)
    return {
        "w1": jax.random.normal(ks[0], (5, 5, 3, 32), jnp.float32) * 0.10,
        "b1": jax.random.normal(ks[1], (32,), jnp.float32) * 0.10,
        "w2": jax.random.normal(ks[2], (3, 3, 32, 64), jnp.float32) * 0.05,
        "b2": jax.random.normal(ks[3], (64,), jnp.float32) * 0.05,
        "w3": jax.random.normal(ks[4], (3, 3, 64, 64), jnp.float32) * 0.05,
        "b3": jax.random.normal(ks[5], (64,), jnp.float32) * 0.05,
        "wr": jax.random.normal(ks[6], (feature_dim, num_experts), jnp.float32) * 0.02,
        "br": jax.random.normal(ks[7], (num_experts,), jnp.float32) * 0.02,
    }


# ---------------------------------------------------------------------------
# Pure-JAX (XLA) reference for correctness checking.
# ---------------------------------------------------------------------------
def reference_forward(x_nchw, p):
    x = jnp.transpose(x_nchw, (0, 2, 3, 1))

    def conv(h, w, b, pad):
        y = lax.conv_general_dilated(h, w, (1, 1), [(pad, pad), (pad, pad)],
                                     dimension_numbers=("NHWC", "HWIO", "NHWC"))
        y = y + b
        return jnp.where(y >= 0, y, LEAKY_SLOPE * y)

    def pool(h):
        return lax.reduce_window(h, -jnp.inf, lax.max,
                                 (1, 2, 2, 1), (1, 2, 2, 1), "VALID")

    h = pool(conv(x, p["w1"], p["b1"], 2))
    h = pool(conv(h, p["w2"], p["b2"], 1))
    h = conv(h, p["w3"], p["b3"], 1)
    feats = jnp.transpose(h, (0, 3, 1, 2)).reshape(h.shape[0], -1)
    logits = feats @ p["wr"] + p["br"]
    return feats, logits, jnp.argmax(logits, axis=1).astype(jnp.int32)


if __name__ == "__main__":
    key = jax.random.PRNGKey(0)
    kx, kp = jax.random.split(key)
    # NCHW input: batch=4 (2 images per grid step -> grid of 2 for megacore),
    # channels=3, 16x16 spatial -> feature_dim = 64*4*4 = 1024, 3 experts.
    N, Cin, H, W = 4, 3, 16, 16
    x = jax.random.normal(kx, (N, Cin, H, W), jnp.float32)
    params = init_params(kp, num_experts=3, feature_dim=64 * (H // 4) * (W // 4))

    fwd = jax.jit(mixture_of_experts_forward)
    feats, logits, idx = fwd(x, params)
    jax.block_until_ready((feats, logits, idx))

    rf, rl, ri = reference_forward(x, params)
    assert feats.shape == (N, 1024) and logits.shape == (N, 3) and idx.shape == (N,)
    assert jnp.allclose(feats, rf, rtol=1e-4, atol=1e-4), "features mismatch"
    assert jnp.allclose(logits, rl, rtol=1e-4, atol=1e-4), "router logits mismatch"
    assert jnp.array_equal(idx, ri), "argmax mismatch"
    print("KERNEL_OK")
</pallas_src>

<mosaic_0001>
module attributes {stable_mosaic.version = 11 : i64} {
  func.func @_moe_fused_kernel(%arg0: i32, %arg1: memref<512x75xf32, #tpu.memory_space<vmem>>, %arg2: memref<75x32xf32, #tpu.memory_space<vmem>>, %arg3: memref<1x32xf32, #tpu.memory_space<vmem>>, %arg4: memref<9x32x64xf32, #tpu.memory_space<vmem>>, %arg5: memref<1x64xf32, #tpu.memory_space<vmem>>, %arg6: memref<9x64x64xf32, #tpu.memory_space<vmem>>, %arg7: memref<1x64xf32, #tpu.memory_space<vmem>>, %arg8: memref<3x36x64xf32, #tpu.memory_space<vmem>>, %arg9: memref<3x1xf32, #tpu.memory_space<vmem>>, %arg10: memref<72x64xf32, #tpu.memory_space<vmem>>, %arg11: memref<2x3x1xf32, #tpu.memory_space<vmem>>, %arg12: memref<2x1x1xi32, #tpu.memory_space<vmem>>, %arg13: memref<512x32xf32, #tpu.memory_space<vmem>>, %arg14: memref<256x32xf32, #tpu.memory_space<vmem>>, %arg15: memref<222x32xf32, #tpu.memory_space<vmem>>, %arg16: memref<200x64xf32, #tpu.memory_space<vmem>>, %arg17: memref<100x64xf32, #tpu.memory_space<vmem>>, %arg18: memref<86x64xf32, #tpu.memory_space<vmem>>) attributes {dimension_semantics = [#tpu.dimension_semantics<parallel>], iteration_bounds = array<i64: 2>, scalar_prefetch = 0 : i64, scratch_operands = 6 : i64, tpu.core_type = #tpu.core_type<tc>, window_params = [{transform_indices = @transform_0, window_bounds = array<i64: 512, 75>}, {pipeline_mode = #tpu.pipeline_mode<synchronous>, transform_indices = @transform_1, window_bounds = array<i64: 75, 32>}, {pipeline_mode = #tpu.pipeline_mode<synchronous>, transform_indices = @transform_2, window_bounds = array<i64: 1, 32>}, {pipeline_mode = #tpu.pipeline_mode<synchronous>, transform_indices = @transform_3, window_bounds = array<i64: 9, 32, 64>}, {pipeline_mode = #tpu.pipeline_mode<synchronous>, transform_indices = @transform_4, window_bounds = array<i64: 1, 64>}, {pipeline_mode = #tpu.pipeline_mode<synchronous>, transform_indices = @transform_5, window_bounds = array<i64: 9, 64, 64>}, {pipeline_mode = #tpu.pipeline_mode<synchronous>, transform_indices = @transform_6, window_bounds = array<i64: 1, 64>}, {pipeline_mode = #tpu.pipeline_mode<synchronous>, transform_indices = @transform_7, window_bounds = array<i64: 3, 36, 64>}, {pipeline_mode = #tpu.pipeline_mode<synchronous>, transform_indices = @transform_8, window_bounds = array<i64: 3, 1>}, {transform_indices = @transform_9, window_bounds = array<i64: 72, 64>}, {transform_indices = @transform_10, window_bounds = array<i64: 2, 3, 1>}, {transform_indices = @transform_11, window_bounds = array<i64: 2, 1, 1>}]} {
    %c0 = arith.constant 0 : index
    %c0_0 = arith.constant 0 : index
    %0 = vector.load %arg1[%c0, %c0_0] : memref<512x75xf32, #tpu.memory_space<vmem>>, vector<128x75xf32>
    %c0_1 = arith.constant 0 : index
    %c0_2 = arith.constant 0 : index
    %1 = vector.load %arg2[%c0_1, %c0_2] : memref<75x32xf32, #tpu.memory_space<vmem>>, vector<75x32xf32>
    %cst = arith.constant dense<0.000000e+00> : vector<128x32xf32>
    %2 = tpu.matmul %0, %1, %cst {dimension_numbers = #tpu.dot_dimension_numbers<[1], [0], [0], [1], [0, 0, 1, 1], [], []>} : vector<128x75xf32>, vector<75x32xf32>, vector<128x32xf32> -> vector<128x32xf32>
    %c0_3 = arith.constant 0 : index
    %c0_4 = arith.constant 0 : index
    %3 = vector.load %arg3[%c0_3, %c0_4] : memref<1x32xf32, #tpu.memory_space<vmem>>, vector<1x32xf32>
    %4 = vector.broadcast %3 : vector<1x32xf32> to vector<128x32xf32>
    %5 = arith.addf %2, %4 : vector<128x32xf32>
    %cst_5 = arith.constant 0.000000e+00 : f32
    %6 = vector.broadcast %cst_5 : f32 to vector<128x32xf32>
    %7 = arith.cmpf oge, %5, %6 : vector<128x32xf32>
    %cst_6 = arith.constant 0.00999999977 : f32
    %8 = vector.broadcast %cst_6 : f32 to vector<128x32xf32>
    %9 = arith.mulf %8, %5 : vector<128x32xf32>
    %10 = arith.select %7, %5, %9 : vector<128x32xi1>, vector<128x32xf32>
    %c0_7 = arith.constant 0 : index
    %c0_8 = arith.constant 0 : index
    %11 = vector.load %arg13[%c0_7, %c0_8] : memref<512x32xf32, #tpu.memory_space<vmem>>, vector<128x32xf32>
    tpu.vector_store %arg13[%c0_7, %c0_8], %10 {strides = array<i32>} : memref<512x32xf32, #tpu.memory_space<vmem>>, vector<128x32xf32>,
    %c128 = arith.constant 128 : index
    %c0_9 = arith.constant 0 : index
    %12 = vector.load %arg1[%c128, %c0_9] : memref<512x75xf32, #tpu.memory_space<vmem>>, vector<128x75xf32>
    %c0_10 = arith.constant 0 : index
    %c0_11 = arith.constant 0 : index
    %13 = vector.load %arg2[%c0_10, %c0_11] : memref<75x32xf32, #tpu.memory_space<vmem>>, vector<75x32xf32>
    %cst_12 = arith.constant dense<0.000000e+00> : vector<128x32xf32>
    %14 = tpu.matmul %12, %13, %cst_12 {dimension_numbers = #tpu.dot_dimension_numbers<[1], [0], [0], [1], [0, 0, 1, 1], [], []>} : vector<128x75xf32>, vector<75x32xf32>, vector<128x32xf32> -> vector<128x32xf32>
    %c0_13 = arith.constant 0 : index
    %c0_14 = arith.constant 0 : index
    %15 = vector.load %arg3[%c0_13, %c0_14] : memref<1x32xf32, #tpu.memory_space<vmem>>, vector<1x32xf32>
    %16 = vector.broadcast %15 : vector<1x32xf32> to vector<128x32xf32>
    %17 = arith.addf %14, %16 : vector<128x32xf32>
    %cst_15 = arith.constant 0.000000e+00 : f32
    %18 = vector.broadcast %cst_15 : f32 to vector<128x32xf32>
    %19 = arith.cmpf oge, %17, %18 : vector<128x32xf32>
    %cst_16 = arith.constant 0.00999999977 : f32
    %20 = vector.broadcast %cst_16 : f32 to vector<128x32xf32>
    %21 = arith.mulf %20, %17 : vector<128x32xf32>
    %22 = arith.select %19, %17, %21 : vector<128x32xi1>, vector<128x32xf32>
    %c128_17 = arith.constant 128 : index
    %c0_18 = arith.constant 0 : index
    %23 = vector.load %arg13[%c128_17, %c0_18] : memref<512x32xf32, #tpu.memory_space<vmem>>, vector<128x32xf32>
    tpu.vector_store %arg13[%c128_17, %c0_18], %22 {strides = array<i32>} : memref<512x32xf32, #tpu.memory_space<vmem>>, vector<128x32xf32>,
    %c256 = arith.constant 256 : index
    %c0_19 = arith.constant 0 : index
    %24 = vector.load %arg1[%c256, %c0_19] : memref<512x75xf32, #tpu.memory_space<vmem>>, vector<128x75xf32>
    %c0_20 = arith.constant 0 : index
    %c0_21 = arith.constant 0 : index
    %25 = vector.load %arg2[%c0_20, %c0_21] : memref<75x32xf32, #tpu.memory_space<vmem>>, vector<75x32xf32>
    %cst_22 = arith.constant dense<0.000000e+00> : vector<128x32xf32>
    %26 = tpu.matmul %24, %25, %cst_22 {dimension_numbers = #tpu.dot_dimension_numbers<[1], [0], [0], [1], [0, 0, 1, 1], [], []>} : vector<128x75xf32>, vector<75x32xf32>, vector<128x32xf32> -> vector<128x32xf32>
    %c0_23 = arith.constant 0 : index
    %c0_24 = arith.constant 0 : index
    %27 = vector.load %arg3[%c0_23, %c0_24] : memref<1x32xf32, #tpu.memory_space<vmem>>, vector<1x32xf32>
    %28 = vector.broadcast %27 : vector<1x32xf32> to vector<128x32xf32>
    %29 = arith.addf %26, %28 : vector<128x32xf32>
    %cst_25 = arith.constant 0.000000e+00 : f32
    %30 = vector.broadcast %cst_25 : f32 to vector<128x32xf32>
    %31 = arith.cmpf oge, %29, %30 : vector<128x32xf32>
    %cst_26 = arith.constant 0.00999999977 : f32
    %32 = vector.broadcast %cst_26 : f32 to vector<128x32xf32>
    %33 = arith.mulf %32, %29 : vector<128x32xf32>
    %34 = arith.select %31, %29, %33 : vector<128x32xi1>, vector<128x32xf32>
    %c256_27 = arith.constant 256 : index
    %c0_28 = arith.constant 0 : index
    %35 = vector.load %arg13[%c256_27, %c0_28] : memref<512x32xf32, #tpu.memory_space<vmem>>, vector<128x32xf32>
    tpu.vector_store %arg13[%c256_27, %c0_28], %34 {strides = array<i32>} : memref<512x32xf32, #tpu.memory_space<vmem>>, vector<128x32xf32>,
    %c384 = arith.constant 384 : index
    %c0_29 = arith.constant 0 : index
    %36 = vector.load %arg1[%c384, %c0_29] : memref<512x75xf32, #tpu.memory_space<vmem>>, vector<128x75xf32>
    %c0_30 = arith.constant 0 : index
    %c0_31 = arith.constant 0 : index
    %37 = vector.load %arg2[%c0_30, %c0_31] : memref<75x32xf32, #tpu.memory_space<vmem>>, vector<75x32xf32>
    %cst_32 = arith.constant dense<0.000000e+00> : vector<128x32xf32>
    %38 = tpu.matmul %36, %37, %cst_32 {dimension_numbers = #tpu.dot_dimension_numbers<[1], [0], [0], [1], [0, 0, 1, 1], [], []>} : vector<128x75xf32>, vector<75x32xf32>, vector<128x32xf32> -> vector<128x32xf32>
    %c0_33 = arith.constant 0 : index
    %c0_34 = arith.constant 0 : index
    %39 = vector.load %arg3[%c0_33, %c0_34] : memref<1x32xf32, #tpu.memory_space<vmem>>, vector<1x32xf32>
    %40 = vector.broadcast %39 : vector<1x32xf32> to vector<128x32xf32>
    %41 = arith.addf %38, %40 : vector<128x32xf32>
    %cst_35 = arith.constant 0.000000e+00 : f32
    %42 = vector.broadcast %cst_35 : f32 to vector<128x32xf32>
    %43 = arith.cmpf oge, %41, %42 : vector<128x32xf32>
    %cst_36 = arith.constant 0.00999999977 : f32
    %44 = vector.broadcast %cst_36 : f32 to vector<128x32xf32>
    %45 = arith.mulf %44, %41 : vector<128x32xf32>
    %46 = arith.select %43, %41, %45 : vector<128x32xi1>, vector<128x32xf32>
    %c384_37 = arith.constant 384 : index
    %c0_38 = arith.constant 0 : index
    %47 = vector.load %arg13[%c384_37, %c0_38] : memref<512x32xf32, #tpu.memory_space<vmem>>, vector<128x32xf32>
    tpu.vector_store %arg13[%c384_37, %c0_38], %46 {strides = array<i32>} : memref<512x32xf32, #tpu.memory_space<vmem>>, vector<128x32xf32>,
    %cst_39 = arith.constant 0.000000e+00 : f32
    %48 = vector.broadcast %cst_39 : f32 to vector<11x32xf32>
    %c0_40 = arith.constant 0 : index
    %c0_41 = arith.constant 0 : index
    %49 = vector.load %arg15[%c0_40, %c0_41] : memref<222x32xf32, #tpu.memory_space<vmem>>, vector<11x32xf32>
    tpu.vector_store %arg15[%c0_40, %c0_41], %48 {strides = array<i32>} : memref<222x32xf32, #tpu.memory_space<vmem>>, vector<11x32xf32>,
    %cst_42 = arith.constant 0.000000e+00 : f32
    %50 = vector.broadcast %cst_42 : f32 to vector<2x32xf32>
    %c19 = arith.constant 19 : index
    %c0_43 = arith.constant 0 : index
    %51 = vector.load %arg15[%c19, %c0_43] : memref<222x32xf32, #tpu.memory_space<vmem>>, vector<2x32xf32>
    tpu.vector_store %arg15[%c19, %c0_43], %50 {strides = array<i32>} : memref<222x32xf32, #tpu.memory_space<vmem>>, vector<2x32xf32>,
    %cst_44 = arith.constant 0.000000e+00 : f32
    %52 = vector.broadcast %cst_44 : f32 to vector<2x32xf32>
    %c29 = arith.constant 29 : index
    %c0_45 = arith.constant 0 : index
    %53 = vector.load %arg15[%c29, %c0_45] : memref<222x32xf32, #tpu.memory_space<vmem>>, vector<2x32xf32>
    tpu.vector_store %arg15[%c29, %c0_45], %52 {strides = array<i32>} : memref<222x32xf32, #tpu.memory_space<vmem>>, vector<2x32xf32>,
    %cst_46 = arith.constant 0.000000e+00 : f32
    %54 = vector.broadcast %cst_46 : f32 to vector<2x32xf32>
    %c39 = arith.constant 39 : index
    %c0_47 = arith.constant 0 : index
    %55 = vector.load %arg15[%c39, %c0_47] : memref<222x32xf32, #tpu.memory_space<vmem>>, vector<2x32xf32>
    tpu.vector_store %arg15[%c39, %c0_47], %54 {strides = array<i32>} : memref<222x32xf32, #tpu.memory_space<vmem>>, vector<2x32xf32>,
    %cst_48 = arith.constant 0.000000e+00 : f32
    %56 = vector.broadcast %cst_48 : f32 to vector<2x32xf32>
    %c49 = arith.constant 49 : index
    %c0_49 = arith.constant 0 : index
    %57 = vector.load %arg15[%c49, %c0_49] : memref<222x32xf32, #tpu.memory_space<vmem>>, vector<2x32xf32>
    tpu.vector_store %arg15[%c49, %c0_49], %56 {strides = array<i32>} : memref<222x32xf32, #tpu.memory_space<vmem>>, vector<2x32xf32>,
    %cst_50 = arith.constant 0.000000e+00 : f32
    %58 = vector.broadcast %cst_50 : f32 to vector<2x32xf32>
    %c59 = arith.constant 59 : index
    %c0_51 = arith.constant 0 : index
    %59 = vector.load %arg15[%c59, %c0_51] : memref<222x32xf32, #tpu.memory_space<vmem>>, vector<2x32xf32>
    tpu.vector_store %arg15[%c59, %c0_51], %58 {strides = array<i32>} : memref<222x32xf32, #tpu.memory_space<vmem>>, vector<2x32xf32>,
    %cst_52 = arith.constant 0.000000e+00 : f32
    %60 = vector.broadcast %cst_52 : f32 to vector<2x32xf32>
    %c69 = arith.constant 69 : index
    %c0_53 = arith.constant 0 : index
    %61 = vector.load %arg15[%c69, %c0_53] : memref<222x32xf32, #tpu.memory_space<vmem>>, vector<2x32xf32>
    tpu.vector_store %arg15[%c69, %c0_53], %60 {strides = array<i32>} : memref<222x32xf32, #tpu.memory_space<vmem>>, vector<2x32xf32>,
    %cst_54 = arith.constant 0.000000e+00 : f32
    %62 = vector.broadcast %cst_54 : f32 to vector<2x32xf32>
    %c79 = arith.constant 79 : index
    %c0_55 = arith.constant 0 : index
    %63 = vector.load %arg15[%c79, %c0_55] : memref<222x32xf32, #tpu.memory_space<vmem>>, vector<2x32xf32>
    tpu.vector_store %arg15[%c79, %c0_55], %62 {strides = array<i32>} : memref<222x32xf32, #tpu.memory_space<vmem>>, vector<2x32xf32>,
    %cst_56 = arith.constant 0.000000e+00 : f32
    %64 = vector.broadcast %cst_56 : f32 to vector<22x32xf32>
    %c89 = arith.constant 89 : index
    %c0_57 = arith.constant 0 : index
    %65 = vector.load %arg15[%c89, %c0_57] : memref<222x32xf32, #tpu.memory_space<vmem>>, vector<22x32xf32>
    tpu.vector_store %arg15[%c89, %c0_57], %64 {strides = array<i32>} : memref<222x32xf32, #tpu.memory_space<vmem>>, vector<22x32xf32>,
    %cst_58 = arith.constant 0.000000e+00 : f32
    %66 = vector.broadcast %cst_58 : f32 to vector<2x32xf32>
    %c119 = arith.constant 119 : index
    %c0_59 = arith.constant 0 : index
    %67 = vector.load %arg15[%c119, %c0_59] : memref<222x32xf32, #tpu.memory_space<vmem>>, vector<2x32xf32>
    tpu.vector_store %arg15[%c119, %c0_59], %66 {strides = array<i32>} : memref<222x32xf32, #tpu.memory_space<vmem>>, vector<2x32xf32>,
    %cst_60 = arith.constant 0.000000e+00 : f32
    %68 = vector.broadcast %cst_60 : f32 to vector<2x32xf32>
    %c129 = arith.constant 129 : index
    %c0_61 = arith.constant 0 : index
    %69 = vector.load %arg15[%c129, %c0_61] : memref<222x32xf32, #tpu.memory_space<vmem>>, vector<2x32xf32>
    tpu.vector_store %arg15[%c129, %c0_61], %68 {strides = array<i32>} : memref<222x32xf32, #tpu.memory_space<vmem>>, vector<2x32xf32>,
    %cst_62 = arith.constant 0.000000e+00 : f32
    %70 = vector.broadcast %cst_62 : f32 to vector<2x32xf32>
    %c139 = arith.constant 139 : index
    %c0_63 = arith.constant 0 : index
    %71 = vector.load %arg15[%c139, %c0_63] : memref<222x32xf32, #tpu.memory_space<vmem>>, vector<2x32xf32>
    tpu.vector_store %arg15[%c139, %c0_63], %70 {strides = array<i32>} : memref<222x32xf32, #tpu.memory_space<vmem>>, vector<2x32xf32>,
    %cst_64 = arith.constant 0.000000e+00 : f32
    %72 = vector.broadcast %cst_64 : f32 to vector<2x32xf32>
    %c149 = arith.constant 149 : index
    %c0_65 = arith.constant 0 : index
    %73 = vector.load %arg15[%c149, %c0_65] : memref<222x32xf32, #tpu.memory_space<vmem>>, vector<2x32xf32>
    tpu.vector_store %arg15[%c149, %c0_65], %72 {strides = array<i32>} : memref<222x32xf32, #tpu.memory_space<vmem>>, vector<2x32xf32>,
    %cst_66 = arith.constant 0.000000e+00 : f32
    %74 = vector.broadcast %cst_66 : f32 to vector<2x32xf32>
    %c159 = arith.constant 159 : index
    %c0_67 = arith.constant 0 : index
    %75 = vector.load %arg15[%c159, %c0_67] : memref<222x32xf32, #tpu.memory_space<vmem>>, vector<2x32xf32>
    tpu.vector_store %arg15[%c159, %c0_67], %74 {strides = array<i32>} : memref<222x32xf32, #tpu.memory_space<vmem>>, vector<2x32xf32>,
    %cst_68 = arith.constant 0.000000e+00 : f32
    %76 = vector.broadcast %cst_68 : f32 to vector<2x32xf32>
    %c169 = arith.constant 169 : index
    %c0_69 = arith.constant 0 : index
    %77 = vector.load %arg15[%c169, %c0_69] : memref<222x32xf32, #tpu.memory_space<vmem>>, vector<2x32xf32>
    tpu.vector_store %arg15[%c169, %c0_69], %76 {strides = array<i32>} : memref<222x32xf32, #tpu.memory_space<vmem>>, vector<2x32xf32>,
    %cst_70 = arith.constant 0.000000e+00 : f32
    %78 = vector.broadcast %cst_70 : f32 to vector<2x32xf32>
    %c179 = arith.constant 179 : index
    %c0_71 = arith.constant 0 : index
    %79 = vector.load %arg15[%c179, %c0_71] : memref<222x32xf32, #tpu.memory_space<vmem>>, vector<2x32xf32>
    tpu.vector_store %arg15[%c179, %c0_71], %78 {strides = array<i32>} : memref<222x32xf32, #tpu.memory_space<vmem>>, vector<2x32xf32>,
    %cst_72 = arith.constant 0.000000e+00 : f32
    %80 = vector.broadcast %cst_72 : f32 to vector<33x32xf32>
    %c189 = arith.constant 189 : index
    %c0_73 = arith.constant 0 : index
    %81 = vector.load %arg15[%c189, %c0_73] : memref<222x32xf32, #tpu.memory_space<vmem>>, vector<33x32xf32>
    tpu.vector_store %arg15[%c189, %c0_73], %80 {strides = array<i32>} : memref<222x32xf32, #tpu.memory_space<vmem>>, vector<33x32xf32>,
    %cst_74 = arith.constant 0.000000e+00 : f32
    %82 = vector.broadcast %cst_74 : f32 to vector<7x64xf32>
    %c0_75 = arith.constant 0 : index
    %c0_76 = arith.constant 0 : index
    %83 = vector.load %arg18[%c0_75, %c0_76] : memref<86x64xf32, #tpu.memory_space<vmem>>, vector<7x64xf32>
    tpu.vector_store %arg18[%c0_75, %c0_76], %82 {strides = array<i32>} : memref<86x64xf32, #tpu.memory_space<vmem>>, vector<7x64xf32>,
    %cst_77 = arith.constant 0.000000e+00 : f32
    %84 = vector.broadcast %cst_77 : f32 to vector<2x64xf32>
    %c11 = arith.constant 11 : index
    %c0_78 = arith.constant 0 : index
    %85 = vector.load %arg18[%c11, %c0_78] : memref<86x64xf32, #tpu.memory_space<vmem>>, vector<2x64xf32>
    tpu.vector_store %arg18[%c11, %c0_78], %84 {strides = array<i32>} : memref<86x64xf32, #tpu.memory_space<vmem>>, vector<2x64xf32>,
    %cst_79 = arith.constant 0.000000e+00 : f32
    %86 = vector.broadcast %cst_79 : f32 to vector<2x64xf32>
    %c17 = arith.constant 17 : index
    %c0_80 = arith.constant 0 : index
    %87 = vector.load %arg18[%c17, %c0_80] : memref<86x64xf32, #tpu.memory_space<vmem>>, vector<2x64xf32>
    tpu.vector_store %arg18[%c17, %c0_80], %86 {strides = array<i32>} : memref<86x64xf32, #tpu.memory_space<vmem>>, vector<2x64xf32>,
    %cst_81 = arith.constant 0.000000e+00 : f32
    %88 = vector.broadcast %cst_81 : f32 to vector<2x64xf32>
    %c23 = arith.constant 23 : index
    %c0_82 = arith.constant 0 : index
    %89 = vector.load %arg18[%c23, %c0_82] : memref<86x64xf32, #tpu.memory_space<vmem>>, vector<2x64xf32>
    tpu.vector_store %arg18[%c23, %c0_82], %88 {strides = array<i32>} : memref<86x64xf32, #tpu.memory_space<vmem>>, vector<2x64xf32>,
    %cst_83 = arith.constant 0.000000e+00 : f32
    %90 = vector.broadcast %cst_83 : f32 to vector<14x64xf32>
    %c29_84 = arith.constant 29 : index
    %c0_85 = arith.constant 0 : index
    %91 = vector.load %arg18[%c29_84, %c0_85] : memref<86x64xf32, #tpu.memory_space<vmem>>, vector<14x64xf32>
    tpu.vector_store %arg18[%c29_84, %c0_85], %90 {strides = array<i32>} : memref<86x64xf32, #tpu.memory_space<vmem>>, vector<14x64xf32>,
    %cst_86 = arith.constant 0.000000e+00 : f32
    %92 = vector.broadcast %cst_86 : f32 to vector<2x64xf32>
    %c47 = arith.constant 47 : index
    %c0_87 = arith.constant 0 : index
    %93 = vector.load %arg18[%c47, %c0_87] : memref<86x64xf32, #tpu.memory_space<vmem>>, vector<2x64xf32>
    tpu.vector_store %arg18[%c47, %c0_87], %92 {strides = array<i32>} : memref<86x64xf32, #tpu.memory_space<vmem>>, vector<2x64xf32>,
    %cst_88 = arith.constant 0.000000e+00 : f32
    %94 = vector.broadcast %cst_88 : f32 to vector<2x64xf32>
    %c53 = arith.constant 53 : index
    %c0_89 = arith.constant 0 : index
    %95 = vector.load %arg18[%c53, %c0_89] : memref<86x64xf32, #tpu.memory_space<vmem>>, vector<2x64xf32>
    tpu.vector_store %arg18[%c53, %c0_89], %94 {strides = array<i32>} : memref<86x64xf32, #tpu.memory_space<vmem>>, vector<2x64xf32>,
    %cst_90 = arith.constant 0.000000e+00 : f32
    %96 = vector.broadcast %cst_90 : f32 to vector<2x64xf32>
    %c59_91 = arith.constant 59 : index
    %c0_92 = arith.constant 0 : index
    %97 = vector.load %arg18[%c59_91, %c0_92] : memref<86x64xf32, #tpu.memory_space<vmem>>, vector<2x64xf32>
    tpu.vector_store %arg18[%c59_91, %c0_92], %96 {strides = array<i32>} : memref<86x64xf32, #tpu.memory_space<vmem>>, vector<2x64xf32>,
    %cst_93 = arith.constant 0.000000e+00 : f32
    %98 = vector.broadcast %cst_93 : f32 to vector<21x64xf32>
    %c65 = arith.constant 65 : index
    %c0_94 = arith.constant 0 : index
    %99 = vector.load %arg18[%c65, %c0_94] : memref<86x64xf32, #tpu.memory_space<vmem>>, vector<21x64xf32>
    tpu.vector_store %arg18[%c65, %c0_94], %98 {strides = array<i32>} : memref<86x64xf32, #tpu.memory_space<vmem>>, vector<21x64xf32>,
    %c0_95 = arith.constant 0 : index
    %c0_96 = arith.constant 0 : index
    %100 = tpu.strided_load %arg13[%c0_95, %c0_96] {strides = array<i32: 2, 1>} : memref<512x32xf32, #tpu.memory_space<vmem>>, vector<256x32xf32>
    %c1 = arith.constant 1 : index
    %c0_97 = arith.constant 0 : index
    %101 = tpu.strided_load %arg13[%c1, %c0_97] {strides = array<i32: 2, 1>} : memref<512x32xf32, #tpu.memory_space<vmem>>, vector<256x32xf32>
    %102 = arith.maximumf %100, %101 : vector<256x32xf32>
    %c0_98 = arith.constant 0 : index
    %c0_99 = arith.constant 0 : index
    %103 = vector.load %arg14[%c0_98, %c0_99] : memref<256x32xf32, #tpu.memory_space<vmem>>, vector<256x32xf32>
    tpu.vector_store %arg14[%c0_98, %c0_99], %102 {strides = array<i32>} : memref<256x32xf32, #tpu.memory_space<vmem>>, vector<256x32xf32>,
    %c0_100 = arith.constant 0 : index
    %c0_101 = arith.constant 0 : index
    %104 = vector.load %arg14[%c0_100, %c0_101] : memref<256x32xf32, #tpu.memory_space<vmem>>, vector<8x32xf32>
    %c8 = arith.constant 8 : index
    %c0_102 = arith.constant 0 : index
    %105 = vector.load %arg14[%c8, %c0_102] : memref<256x32xf32, #tpu.memory_space<vmem>>, vector<8x32xf32>
    %106 = arith.maximumf %104, %105 : vector<8x32xf32>
    %c11_103 = arith.constant 11 : index
    %c0_104 = arith.constant 0 : index
    %107 = vector.load %arg15[%c11_103, %c0_104] : memref<222x32xf32, #tpu.memory_space<vmem>>, vector<8x32xf32>
    tpu.vector_store %arg15[%c11_103, %c0_104], %106 {strides = array<i32>} : memref<222x32xf32, #tpu.memory_space<vmem>>, vector<8x32xf32>,
    %c16 = arith.constant 16 : index
    %c0_105 = arith.constant 0 : index
    %108 = vector.load %arg14[%c16, %c0_105] : memref<256x32xf32, #tpu.memory_space<vmem>>, vector<8x32xf32>
    %c24 = arith.constant 24 : index
    %c0_106 = arith.constant 0 : index
    %109 = vector.load %arg14[%c24, %c0_106] : memref<256x32xf32, #tpu.memory_space<vmem>>, vector<8x32xf32>
    %110 = arith.maximumf %108, %109 : vector<8x32xf32>
    %c21 = arith.constant 21 : index
    %c0_107 = arith.constant 0 : index
    %111 = vector.load %arg15[%c21, %c0_107] : memref<222x32xf32, #tpu.memory_space<vmem>>, vector<8x32xf32>
    tpu.vector_store %arg15[%c21, %c0_107], %110 {strides = array<i32>} : memref<222x32xf32, #tpu.memory_space<vmem>>, vector<8x32xf32>,
    %c32 = arith.constant 32 : index
    %c0_108 = arith.constant 0 : index
    %112 = vector.load %arg14[%c32, %c0_108] : memref<256x32xf32, #tpu.memory_space<vmem>>, vector<8x32xf32>
    %c40 = arith.constant 40 : index
    %c0_109 = arith.constant 0 : index
    %113 = vector.load %arg14[%c40, %c0_109] : memref<256x32xf32, #tpu.memory_space<vmem>>, vector<8x32xf32>
    %114 = arith.maximumf %112, %113 : vector<8x32xf32>
    %c31 = arith.constant 31 : index
    %c0_110 = arith.constant 0 : index
    %115 = vector.load %arg15[%c31, %c0_110] : memref<222x32xf32, #tpu.memory_space<vmem>>, vector<8x32xf32>
    tpu.vector_store %arg15[%c31, %c0_110], %114 {strides = array<i32>} : memref<222x32xf32, #tpu.memory_space<vmem>>, vector<8x32xf32>,
    %c48 = arith.constant 48 : index
    %c0_111 = arith.constant 0 : index
    %116 = vector.load %arg14[%c48, %c0_111] : memref<256x32xf32, #tpu.memory_space<vmem>>, vector<8x32xf32>
    %c56 = arith.constant 56 : index
    %c0_112 = arith.constant 0 : index
    %117 = vector.load %arg14[%c56, %c0_112] : memref<256x32xf32, #tpu.memory_space<vmem>>, vector<8x32xf32>
    %118 = arith.maximumf %116, %117 : vector<8x32xf32>
    %c41 = arith.constant 41 : index
    %c0_113 = arith.constant 0 : index
    %119 = vector.load %arg15[%c41, %c0_113] : memref<222x32xf32, #tpu.memory_space<vmem>>, vector<8x32xf32>
    tpu.vector_store %arg15[%c41, %c0_113], %118 {strides = array<i32>} : memref<222x32xf32, #tpu.memory_space<vmem>>, vector<8x32xf32>,
    %c64 = arith.constant 64 : index
    %c0_114 = arith.constant 0 : index
    %120 = vector.load %arg14[%c64, %c0_114] : memref<256x32xf32, #tpu.memory_space<vmem>>, vector<8x32xf32>
    %c72 = arith.constant 72 : index
    %c0_115 = arith.constant 0 : index
    %121 = vector.load %arg14[%c72, %c0_115] : memref<256x32xf32, #tpu.memory_space<vmem>>, vector<8x32xf32>
    %122 = arith.maximumf %120, %121 : vector<8x32xf32>
    %c51 = arith.constant 51 : index
    %c0_116 = arith.constant 0 : index
    %123 = vector.load %arg15[%c51, %c0_116] : memref<222x32xf32, #tpu.memory_space<vmem>>, vector<8x32xf32>
    tpu.vector_store %arg15[%c51, %c0_116], %122 {strides = array<i32>} : memref<222x32xf32, #tpu.memory_space<vmem>>, vector<8x32xf32>,
    %c80 = arith.constant 80 : index
    %c0_117 = arith.constant 0 : index
    %124 = vector.load %arg14[%c80, %c0_117] : memref<256x32xf32, #tpu.memory_space<vmem>>, vector<8x32xf32>
    %c88 = arith.constant 88 : index
    %c0_118 = arith.constant 0 : index
    %125 = vector.load %arg14[%c88, %c0_118] : memref<256x32xf32, #tpu.memory_space<vmem>>, vector<8x32xf32>
    %126 = arith.maximumf %124, %125 : vector<8x32xf32>
    %c61 = arith.constant 61 : index
    %c0_119 = arith.constant 0 : index
    %127 = vector.load %arg15[%c61, %c0_119] : memref<222x32xf32, #tpu.memory_space<vmem>>, vector<8x32xf32>
    tpu.vector_store %arg15[%c61, %c0_119], %126 {strides = array<i32>} : memref<222x32xf32, #tpu.memory_space<vmem>>, vector<8x32xf32>,
    %c96 = arith.constant 96 : index
    %c0_120 = arith.constant 0 : index
    %128 = vector.load %arg14[%c96, %c0_120] : memref<256x32xf32, #tpu.memory_space<vmem>>, vector<8x32xf32>
    %c104 = arith.constant 104 : index
    %c0_121 = arith.constant 0 : index
    %129 = vector.load %arg14[%c104, %c0_121] : memref<256x32xf32, #tpu.memory_space<vmem>>, vector<8x32xf32>
    %130 = arith.maximumf %128, %129 : vector<8x32xf32>
    %c71 = arith.constant 71 : index
    %c0_122 = arith.constant 0 : index
    %131 = vector.load %arg15[%c71, %c0_122] : memref<222x32xf32, #tpu.memory_space<vmem>>, vector<8x32xf32>
    tpu.vector_store %arg15[%c71, %c0_122], %130 {strides = array<i32>} : memref<222x32xf32, #tpu.memory_space<vmem>>, vector<8x32xf32>,
    %c112 = arith.constant 112 : index
    %c0_123 = arith.constant 0 : index
    %132 = vector.load %arg14[%c112, %c0_123] : memref<256x32xf32, #tpu.memory_space<vmem>>, vector<8x32xf32>
    %c120 = arith.constant 120 : index
    %c0_124 = arith.constant 0 : index
    %133 = vector.load %arg14[%c120, %c0_124] : memref<256x32xf32, #tpu.memory_space<vmem>>, vector<8x32xf32>
    %134 = arith.maximumf %132, %133 : vector<8x32xf32>
    %c81 = arith.constant 81 : index
    %c0_125 = arith.constant 0 : index
    %135 = vector.load %arg15[%c81, %c0_125] : memref<222x32xf32, #tpu.memory_space<vmem>>, vector<8x32xf32>
    tpu.vector_store %arg15[%c81, %c0_125], %134 {strides = array<i32>} : memref<222x32xf32, #tpu.memory_space<vmem>>, vector<8x32xf32>,
    %c128_126 = arith.constant 128 : index
    %c0_127 = arith.constant 0 : index
    %136 = vector.load %arg14[%c128_126, %c0_127] : memref<256x32xf32, #tpu.memory_space<vmem>>, vector<8x32xf32>
    %c136 = arith.constant 136 : index
    %c0_128 = arith.constant 0 : index
    %137 = vector.load %arg14[%c136, %c0_128] : memref<256x32xf32, #tpu.memory_space<vmem>>, vector<8x32xf32>
    %138 = arith.maximumf %136, %137 : vector<8x32xf32>
    %c111 = arith.constant 111 : index
    %c0_129 = arith.constant 0 : index
    %139 = vector.load %arg15[%c111, %c0_129] : memref<222x32xf32, #tpu.memory_space<vmem>>, vector<8x32xf32>
    tpu.vector_store %arg15[%c111, %c0_129], %138 {strides = array<i32>} : memref<222x32xf32, #tpu.memory_space<vmem>>, vector<8x32xf32>,
    %c144 = arith.constant 144 : index
    %c0_130 = arith.constant 0 : index
    %140 = vector.load %arg14[%c144, %c0_130] : memref<256x32xf32, #tpu.memory_space<vmem>>, vector<8x32xf32>
    %c152 = arith.constant 152 : index
    %c0_131 = arith.constant 0 : index
    %141 = vector.load %arg14[%c152, %c0_131] : memref<256x32xf32, #tpu.memory_space<vmem>>, vector<8x32xf32>
    %142 = arith.maximumf %140, %141 : vector<8x32xf32>
    %c121 = arith.constant 121 : index
    %c0_132 = arith.constant 0 : index
    %143 = vector.load %arg15[%c121, %c0_132] : memref<222x32xf32, #tpu.memory_space<vmem>>, vector<8x32xf32>
    tpu.vector_store %arg15[%c121, %c0_132], %142 {strides = array<i32>} : memref<222x32xf32, #tpu.memory_space<vmem>>, vector<8x32xf32>,
    %c160 = arith.constant 160 : index
    %c0_133 = arith.constant 0 : index
    %144 = vector.load %arg14[%c160, %c0_133] : memref<256x32xf32, #tpu.memory_space<vmem>>, vector<8x32xf32>
    %c168 = arith.constant 168 : index
    %c0_134 = arith.constant 0 : index
    %145 = vector.load %arg14[%c168, %c0_134] : memref<256x32xf32, #tpu.memory_space<vmem>>, vector<8x32xf32>
    %146 = arith.maximumf %144, %145 : vector<8x32xf32>
    %c131 = arith.constant 131 : index
    %c0_135 = arith.constant 0 : index
    %147 = vector.load %arg15[%c131, %c0_135] : memref<222x32xf32, #tpu.memory_space<vmem>>, vector<8x32xf32>
    tpu.vector_store %arg15[%c131, %c0_135], %146 {strides = array<i32>} : memref<222x32xf32, #tpu.memory_space<vmem>>, vector<8x32xf32>,
    %c176 = arith.constant 176 : index
    %c0_136 = arith.constant 0 : index
    %148 = vector.load %arg14[%c176, %c0_136] : memref<256x32xf32, #tpu.memory_space<vmem>>, vector<8x32xf32>
    %c184 = arith.constant 184 : index
    %c0_137 = arith.constant 0 : index
    %149 = vector.load %arg14[%c184, %c0_137] : memref<256x32xf32, #tpu.memory_space<vmem>>, vector<8x32xf32>
    %150 = arith.maximumf %148, %149 : vector<8x32xf32>
    %c141 = arith.constant 141 : index
    %c0_138 = arith.constant 0 : index
    %151 = vector.load %arg15[%c141, %c0_138] : memref<222x32xf32, #tpu.memory_space<vmem>>, vector<8x32xf32>
    tpu.vector_store %arg15[%c141, %c0_138], %150 {strides = array<i32>} : memref<222x32xf32, #tpu.memory_space<vmem>>, vector<8x32xf32>,
    %c192 = arith.constant 192 : index
    %c0_139 = arith.constant 0 : index
    %152 = vector.load %arg14[%c192, %c0_139] : memref<256x32xf32, #tpu.memory_space<vmem>>, vector<8x32xf32>
    %c200 = arith.constant 200 : index
    %c0_140 = arith.constant 0 : index
    %153 = vector.load %arg14[%c200, %c0_140] : memref<256x32xf32, #tpu.memory_space<vmem>>, vector<8x32xf32>
    %154 = arith.maximumf %152, %153 : vector<8x32xf32>
    %c151 = arith.constant 151 : index
    %c0_141 = arith.constant 0 : index
    %155 = vector.load %arg15[%c151, %c0_141] : memref<222x32xf32, #tpu.memory_space<vmem>>, vector<8x32xf32>
    tpu.vector_store %arg15[%c151, %c0_141], %154 {strides = array<i32>} : memref<222x32xf32, #tpu.memory_space<vmem>>, vector<8x32xf32>,
    %c208 = arith.constant 208 : index
    %c0_142 = arith.constant 0 : index
    %156 = vector.load %arg14[%c208, %c0_142] : memref<256x32xf32, #tpu.memory_space<vmem>>, vector<8x32xf32>
    %c216 = arith.constant 216 : index
    %c0_143 = arith.constant 0 : index
    %157 = vector.load %arg14[%c216, %c0_143] : memref<256x32xf32, #tpu.memory_space<vmem>>, vector<8x32xf32>
    %158 = arith.maximumf %156, %157 : vector<8x32xf32>
    %c161 = arith.constant 161 : index
    %c0_144 = arith.constant 0 : index
    %159 = vector.load %arg15[%c161, %c0_144] : memref<222x32xf32, #tpu.memory_space<vmem>>, vector<8x32xf32>
    tpu.vector_store %arg15[%c161, %c0_144], %158 {strides = array<i32>} : memref<222x32xf32, #tpu.memory_space<vmem>>, vector<8x32xf32>,
    %c224 = arith.constant 224 : index
    %c0_145 = arith.constant 0 : index
    %160 = vector.load %arg14[%c224, %c0_145] : memref<256x32xf32, #tpu.memory_space<vmem>>, vector<8x32xf32>
    %c232 = arith.constant 232 : index
    %c0_146 = arith.constant 0 : index
    %161 = vector.load %arg14[%c232, %c0_146] : memref<256x32xf32, #tpu.memory_space<vmem>>, vector<8x32xf32>
    %162 = arith.maximumf %160, %161 : vector<8x32xf32>
    %c171 = arith.constant 171 : index
    %c0_147 = arith.constant 0 : index
    %163 = vector.load %arg15[%c171, %c0_147] : memref<222x32xf32, #tpu.memory_space<vmem>>, vector<8x32xf32>
    tpu.vector_store %arg15[%c171, %c0_147], %162 {strides = array<i32>} : memref<222x32xf32, #tpu.memory_space<vmem>>, vector<8x32xf32>,
    %c240 = arith.constant 240 : index
    %c0_148 = arith.constant 0 : index
    %164 = vector.load %arg14[%c240, %c0_148] : memref<256x32xf32, #tpu.memory_space<vmem>>, vector<8x32xf32>
    %c248 = arith.constant 248 : index
    %c0_149 = arith.constant 0 : index
    %165 = vector.load %arg14[%c248, %c0_149] : memref<256x32xf32, #tpu.memory_space<vmem>>, vector<8x32xf32>
    %166 = arith.maximumf %164, %165 : vector<8x32xf32>
    %c181 = arith.constant 181 : index
    %c0_150 = arith.constant 0 : index
    %167 = vector.load %arg15[%c181, %c0_150] : memref<222x32xf32, #tpu.memory_space<vmem>>, vector<8x32xf32>
    tpu.vector_store %arg15[%c181, %c0_150], %166 {strides = array<i32>} : memref<222x32xf32, #tpu.memory_space<vmem>>, vector<8x32xf32>,
    %c0_151 = arith.constant 0 : index
    %c0_152 = arith.constant 0 : index
    %168 = vector.load %arg15[%c0_151, %c0_152] : memref<222x32xf32, #tpu.memory_space<vmem>>, vector<200x32xf32>
    %c0_153 = arith.constant 0 : index
    %c0_154 = arith.constant 0 : index
    %c0_155 = arith.constant 0 : index
    %169 = vector.load %arg4[%c0_153, %c0_154, %c0_155] : memref<9x32x64xf32, #tpu.memory_space<vmem>>, vector<1x32x64xf32>
    %170 = vector.shape_cast %169 : vector<1x32x64xf32> to vector<32x64xf32>
    %cst_156 = arith.constant dense<0.000000e+00> : vector<200x64xf32>
    %171 = tpu.matmul %168, %170, %cst_156 {dimension_numbers = #tpu.dot_dimension_numbers<[1], [0], [0], [1], [0, 0, 1, 1], [], []>} : vector<200x32xf32>, vector<32x64xf32>, vector<200x64xf32> -> vector<200x64xf32>
    %c1_157 = arith.constant 1 : index
    %c0_158 = arith.constant 0 : index
    %172 = vector.load %arg15[%c1_157, %c0_158] : memref<222x32xf32, #tpu.memory_space<vmem>>, vector<200x32xf32>
    %c1_159 = arith.constant 1 : index
    %c0_160 = arith.constant 0 : index
    %c0_161 = arith.constant 0 : index
    %173 = vector.load %arg4[%c1_159, %c0_160, %c0_161] : memref<9x32x64xf32, #tpu.memory_space<vmem>>, vector<1x32x64xf32>
    %174 = vector.shape_cast %173 : vector<1x32x64xf32> to vector<32x64xf32>
    %cst_162 = arith.constant dense<0.000000e+00> : vector<200x64xf32>
    %175 = tpu.matmul %172, %174, %cst_162 {dimension_numbers = #tpu.dot_dimension_numbers<[1], [0], [0], [1], [0, 0, 1, 1], [], []>} : vector<200x32xf32>, vector<32x64xf32>, vector<200x64xf32> -> vector<200x64xf32>
    %176 = arith.addf %171, %175 : vector<200x64xf32>
    %c2 = arith.constant 2 : index
    %c0_163 = arith.constant 0 : index
    %177 = vector.load %arg15[%c2, %c0_163] : memref<222x32xf32, #tpu.memory_space<vmem>>, vector<200x32xf32>
    %c2_164 = arith.constant 2 : index
    %c0_165 = arith.constant 0 : index
    %c0_166 = arith.constant 0 : index
    %178 = vector.load %arg4[%c2_164, %c0_165, %c0_166] : memref<9x32x64xf32, #tpu.memory_space<vmem>>, vector<1x32x64xf32>
    %179 = vector.shape_cast %178 : vector<1x32x64xf32> to vector<32x64xf32>
    %cst_167 = arith.constant dense<0.000000e+00> : vector<200x64xf32>
    %180 = tpu.matmul %177, %179, %cst_167 {dimension_numbers = #tpu.dot_dimension_numbers<[1], [0], [0], [1], [0, 0, 1, 1], [], []>} : vector<200x32xf32>, vector<32x64xf32>, vector<200x64xf32> -> vector<200x64xf32>
    %181 = arith.addf %176, %180 : vector<200x64xf32>
    %c10 = arith.constant 10 : index
    %c0_168 = arith.constant 0 : index
    %182 = vector.load %arg15[%c10, %c0_168] : memref<222x32xf32, #tpu.memory_space<vmem>>, vector<200x32xf32>
    %c3 = arith.constant 3 : index
    %c0_169 = arith.constant 0 : index
    %c0_170 = arith.constant 0 : index
    %183 = vector.load %arg4[%c3, %c0_169, %c0_170] : memref<9x32x64xf32, #tpu.memory_space<vmem>>, vector<1x32x64xf32>
    %184 = vector.shape_cast %183 : vector<1x32x64xf32> to vector<32x64xf32>
    %cst_171 = arith.constant dense<0.000000e+00> : vector<200x64xf32>
    %185 = tpu.matmul %182, %184, %cst_171 {dimension_numbers = #tpu.dot_dimension_numbers<[1], [0], [0], [1], [0, 0, 1, 1], [], []>} : vector<200x32xf32>, vector<32x64xf32>, vector<200x64xf32> -> vector<200x64xf32>
    %186 = arith.addf %181, %185 : vector<200x64xf32>
    %c11_172 = arith.constant 11 : index
    %c0_173 = arith.constant 0 : index
    %187 = vector.load %arg15[%c11_172, %c0_173] : memref<222x32xf32, #tpu.memory_space<vmem>>, vector<200x32xf32>
    %c4 = arith.constant 4 : index
    %c0_174 = arith.constant 0 : index
    %c0_175 = arith.constant 0 : index
    %188 = vector.load %arg4[%c4, %c0_174, %c0_175] : memref<9x32x64xf32, #tpu.memory_space<vmem>>, vector<1x32x64xf32>
    %189 = vector.shape_cast %188 : vector<1x32x64xf32> to vector<32x64xf32>
    %cst_176 = arith.constant dense<0.000000e+00> : vector<200x64xf32>
    %190 = tpu.matmul %187, %189, %cst_176 {dimension_numbers = #tpu.dot_dimension_numbers<[1], [0], [0], [1], [0, 0, 1, 1], [], []>} : vector<200x32xf32>, vector<32x64xf32>, vector<200x64xf32> -> vector<200x64xf32>
    %191 = arith.addf %186, %190 : vector<200x64xf32>
    %c12 = arith.constant 12 : index
    %c0_177 = arith.constant 0 : index
    %192 = vector.load %arg15[%c12, %c0_177] : memref<222x32xf32, #tpu.memory_space<vmem>>, vector<200x32xf32>
    %c5 = arith.constant 5 : index
    %c0_178 = arith.constant 0 : index
    %c0_179 = arith.constant 0 : index
    %193 = vector.load %arg4[%c5, %c0_178, %c0_179] : memref<9x32x64xf32, #tpu.memory_space<vmem>>, vector<1x32x64xf32>
    %194 = vector.shape_cast %193 : vector<1x32x64xf32> to vector<32x64xf32>
    %cst_180 = arith.constant dense<0.000000e+00> : vector<200x64xf32>
    %195 = tpu.matmul %192, %194, %cst_180 {dimension_numbers = #tpu.dot_dimension_numbers<[1], [0], [0], [1], [0, 0, 1, 1], [], []>} : vector<200x32xf32>, vector<32x64xf32>, vector<200x64xf32> -> vector<200x64xf32>
    %196 = arith.addf %191, %195 : vector<200x64xf32>
    %c20 = arith.constant 20 : index
    %c0_181 = arith.constant 0 : index
    %197 = vector.load %arg15[%c20, %c0_181] : memref<222x32xf32, #tpu.memory_space<vmem>>, vector<200x32xf32>
    %c6 = arith.constant 6 : index
    %c0_182 = arith.constant 0 : index
    %c0_183 = arith.constant 0 : index
    %198 = vector.load %arg4[%c6, %c0_182, %c0_183] : memref<9x32x64xf32, #tpu.memory_space<vmem>>, vector<1x32x64xf32>
    %199 = vector.shape_cast %198 : vector<1x32x64xf32> to vector<32x64xf32>
    %cst_184 = arith.constant dense<0.000000e+00> : vector<200x64xf32>
    %200 = tpu.matmul %197, %199, %cst_184 {dimension_numbers = #tpu.dot_dimension_numbers<[1], [0], [0], [1], [0, 0, 1, 1], [], []>} : vector<200x32xf32>, vector<32x64xf32>, vector<200x64xf32> -> vector<200x64xf32>
    %201 = arith.addf %196, %200 : vector<200x64xf32>
    %c21_185 = arith.constant 21 : index
    %c0_186 = arith.constant 0 : index
    %202 = vector.load %arg15[%c21_185, %c0_186] : memref<222x32xf32, #tpu.memory_space<vmem>>, vector<200x32xf32>
    %c7 = arith.constant 7 : index
    %c0_187 = arith.constant 0 : index
    %c0_188 = arith.constant 0 : index
    %203 = vector.load %arg4[%c7, %c0_187, %c0_188] : memref<9x32x64xf32, #tpu.memory_space<vmem>>, vector<1x32x64xf32>
    %204 = vector.shape_cast %203 : vector<1x32x64xf32> to vector<32x64xf32>
    %cst_189 = arith.constant dense<0.000000e+00> : vector<200x64xf32>
    %205 = tpu.matmul %202, %204, %cst_189 {dimension_numbers = #tpu.dot_dimension_numbers<[1], [0], [0], [1], [0, 0, 1, 1], [], []>} : vector<200x32xf32>, vector<32x64xf32>, vector<200x64xf32> -> vector<200x64xf32>
    %206 = arith.addf %201, %205 : vector<200x64xf32>
    %c22 = arith.constant 22 : index
    %c0_190 = arith.constant 0 : index
    %207 = vector.load %arg15[%c22, %c0_190] : memref<222x32xf32, #tpu.memory_space<vmem>>, vector<200x32xf32>
    %c8_191 = arith.constant 8 : index
    %c0_192 = arith.constant 0 : index
    %c0_193 = arith.constant 0 : index
    %208 = vector.load %arg4[%c8_191, %c0_192, %c0_193] : memref<9x32x64xf32, #tpu.memory_space<vmem>>, vector<1x32x64xf32>
    %209 = vector.shape_cast %208 : vector<1x32x64xf32> to vector<32x64xf32>
    %cst_194 = arith.constant dense<0.000000e+00> : vector<200x64xf32>
    %210 = tpu.matmul %207, %209, %cst_194 {dimension_numbers = #tpu.dot_dimension_numbers<[1], [0], [0], [1], [0, 0, 1, 1], [], []>} : vector<200x32xf32>, vector<32x64xf32>, vector<200x64xf32> -> vector<200x64xf32>
    %211 = arith.addf %206, %210 : vector<200x64xf32>
    %c0_195 = arith.constant 0 : index
    %c0_196 = arith.constant 0 : index
    %212 = vector.load %arg5[%c0_195, %c0_196] : memref<1x64xf32, #tpu.memory_space<vmem>>, vector<1x64xf32>
    %213 = vector.broadcast %212 : vector<1x64xf32> to vector<200x64xf32>
    %214 = arith.addf %211, %213 : vector<200x64xf32>
    %cst_197 = arith.constant 0.000000e+00 : f32
    %215 = vector.broadcast %cst_197 : f32 to vector<200x64xf32>
    %216 = arith.cmpf oge, %214, %215 : vector<200x64xf32>
    %cst_198 = arith.constant 0.00999999977 : f32
    %217 = vector.broadcast %cst_198 : f32 to vector<200x64xf32>
    %218 = arith.mulf %217, %214 : vector<200x64xf32>
    %219 = arith.select %216, %214, %218 : vector<200x64xi1>, vector<200x64xf32>
    %c0_199 = arith.constant 0 : index
    %c0_200 = arith.constant 0 : index
    %220 = vector.load %arg16[%c0_199, %c0_200] : memref<200x64xf32, #tpu.memory_space<vmem>>, vector<200x64xf32>
    tpu.vector_store %arg16[%c0_199, %c0_200], %219 {strides = array<i32>} : memref<200x64xf32, #tpu.memory_space<vmem>>, vector<200x64xf32>,
    %c0_201 = arith.constant 0 : index
    %c0_202 = arith.constant 0 : index
    %221 = tpu.strided_load %arg16[%c0_201, %c0_202] {strides = array<i32: 2, 1>} : memref<200x64xf32, #tpu.memory_space<vmem>>, vector<100x64xf32>
    %c1_203 = arith.constant 1 : index
    %c0_204 = arith.constant 0 : index
    %222 = tpu.strided_load %arg16[%c1_203, %c0_204] {strides = array<i32: 2, 1>} : memref<200x64xf32, #tpu.memory_space<vmem>>, vector<100x64xf32>
    %223 = arith.maximumf %221, %222 : vector<100x64xf32>
    %c0_205 = arith.constant 0 : index
    %c0_206 = arith.constant 0 : index
    %224 = vector.load %arg17[%c0_205, %c0_206] : memref<100x64xf32, #tpu.memory_space<vmem>>, vector<100x64xf32>
    tpu.vector_store %arg17[%c0_205, %c0_206], %223 {strides = array<i32>} : memref<100x64xf32, #tpu.memory_space<vmem>>, vector<100x64xf32>,
    %c0_207 = arith.constant 0 : index
    %c0_208 = arith.constant 0 : index
    %225 = vector.load %arg17[%c0_207, %c0_208] : memref<100x64xf32, #tpu.memory_space<vmem>>, vector<4x64xf32>
    %c5_209 = arith.constant 5 : index
    %c0_210 = arith.constant 0 : index
    %226 = vector.load %arg17[%c5_209, %c0_210] : memref<100x64xf32, #tpu.memory_space<vmem>>, vector<4x64xf32>
    %227 = arith.maximumf %225, %226 : vector<4x64xf32>
    %c7_211 = arith.constant 7 : index
    %c0_212 = arith.constant 0 : index
    %228 = vector.load %arg18[%c7_211, %c0_212] : memref<86x64xf32, #tpu.memory_space<vmem>>, vector<4x64xf32>
    tpu.vector_store %arg18[%c7_211, %c0_212], %227 {strides = array<i32>} : memref<86x64xf32, #tpu.memory_space<vmem>>, vector<4x64xf32>,
    %c10_213 = arith.constant 10 : index
    %c0_214 = arith.constant 0 : index
    %229 = vector.load %arg17[%c10_213, %c0_214] : memref<100x64xf32, #tpu.memory_space<vmem>>, vector<4x64xf32>
    %c15 = arith.constant 15 : index
    %c0_215 = arith.constant 0 : index
    %230 = vector.load %arg17[%c15, %c0_215] : memref<100x64xf32, #tpu.memory_space<vmem>>, vector<4x64xf32>
    %231 = arith.maximumf %229, %230 : vector<4x64xf32>
    %c13 = arith.constant 13 : index
    %c0_216 = arith.constant 0 : index
    %232 = vector.load %arg18[%c13, %c0_216] : memref<86x64xf32, #tpu.memory_space<vmem>>, vector<4x64xf32>
    tpu.vector_store %arg18[%c13, %c0_216], %231 {strides = array<i32>} : memref<86x64xf32, #tpu.memory_space<vmem>>, vector<4x64xf32>,
    %c20_217 = arith.constant 20 : index
    %c0_218 = arith.constant 0 : index
    %233 = vector.load %arg17[%c20_217, %c0_218] : memref<100x64xf32, #tpu.memory_space<vmem>>, vector<4x64xf32>
    %c25 = arith.constant 25 : index
    %c0_219 = arith.constant 0 : index
    %234 = vector.load %arg17[%c25, %c0_219] : memref<100x64xf32, #tpu.memory_space<vmem>>, vector<4x64xf32>
    %235 = arith.maximumf %233, %234 : vector<4x64xf32>
    %c19_220 = arith.constant 19 : index
    %c0_221 = arith.constant 0 : index
    %236 = vector.load %arg18[%c19_220, %c0_221] : memref<86x64xf32, #tpu.memory_space<vmem>>, vector<4x64xf32>
    tpu.vector_store %arg18[%c19_220, %c0_221], %235 {strides = array<i32>} : memref<86x64xf32, #tpu.memory_space<vmem>>, vector<4x64xf32>,
    %c30 = arith.constant 30 : index
    %c0_222 = arith.constant 0 : index
    %237 = vector.load %arg17[%c30, %c0_222] : memref<100x64xf32, #tpu.memory_space<vmem>>, vector<4x64xf32>
    %c35 = arith.constant 35 : index
    %c0_223 = arith.constant 0 : index
    %238 = vector.load %arg17[%c35, %c0_223] : memref<100x64xf32, #tpu.memory_space<vmem>>, vector<4x64xf32>
    %239 = arith.maximumf %237, %238 : vector<4x64xf32>
    %c25_224 = arith.constant 25 : index
    %c0_225 = arith.constant 0 : index
    %240 = vector.load %arg18[%c25_224, %c0_225] : memref<86x64xf32, #tpu.memory_space<vmem>>, vector<4x64xf32>
    tpu.vector_store %arg18[%c25_224, %c0_225], %239 {strides = array<i32>} : memref<86x64xf32, #tpu.memory_space<vmem>>, vector<4x64xf32>,
    %c50 = arith.constant 50 : index
    %c0_226 = arith.constant 0 : index
    %241 = vector.load %arg17[%c50, %c0_226] : memref<100x64xf32, #tpu.memory_space<vmem>>, vector<4x64xf32>
    %c55 = arith.constant 55 : index
    %c0_227 = arith.constant 0 : index
    %242 = vector.load %arg17[%c55, %c0_227] : memref<100x64xf32, #tpu.memory_space<vmem>>, vector<4x64xf32>
    %243 = arith.maximumf %241, %242 : vector<4x64xf32>
    %c43 = arith.constant 43 : index
    %c0_228 = arith.constant 0 : index
    %244 = vector.load %arg18[%c43, %c0_228] : memref<86x64xf32, #tpu.memory_space<vmem>>, vector<4x64xf32>
    tpu.vector_store %arg18[%c43, %c0_228], %243 {strides = array<i32>} : memref<86x64xf32, #tpu.memory_space<vmem>>, vector<4x64xf32>,
    %c60 = arith.constant 60 : index
    %c0_229 = arith.constant 0 : index
    %245 = vector.load %arg17[%c60, %c0_229] : memref<100x64xf32, #tpu.memory_space<vmem>>, vector<4x64xf32>
    %c65_230 = arith.constant 65 : index
    %c0_231 = arith.constant 0 : index
    %246 = vector.load %arg17[%c65_230, %c0_231] : memref<100x64xf32, #tpu.memory_space<vmem>>, vector<4x64xf32>
    %247 = arith.maximumf %245, %246 : vector<4x64xf32>
    %c49_232 = arith.constant 49 : index
    %c0_233 = arith.constant 0 : index
    %248 = vector.load %arg18[%c49_232, %c0_233] : memref<86x64xf32, #tpu.memory_space<vmem>>, vector<4x64xf32>
    tpu.vector_store %arg18[%c49_232, %c0_233], %247 {strides = array<i32>} : memref<86x64xf32, #tpu.memory_space<vmem>>, vector<4x64xf32>,
    %c70 = arith.constant 70 : index
    %c0_234 = arith.constant 0 : index
    %249 = vector.load %arg17[%c70, %c0_234] : memref<100x64xf32, #tpu.memory_space<vmem>>, vector<4x64xf32>
    %c75 = arith.constant 75 : index
    %c0_235 = arith.constant 0 : index
    %250 = vector.load %arg17[%c75, %c0_235] : memref<100x64xf32, #tpu.memory_space<vmem>>, vector<4x64xf32>
    %251 = arith.maximumf %249, %250 : vector<4x64xf32>
    %c55_236 = arith.constant 55 : index
    %c0_237 = arith.constant 0 : index
    %252 = vector.load %arg18[%c55_236, %c0_237] : memref<86x64xf32, #tpu.memory_space<vmem>>, vector<4x64xf32>
    tpu.vector_store %arg18[%c55_236, %c0_237], %251 {strides = array<i32>} : memref<86x64xf32, #tpu.memory_space<vmem>>, vector<4x64xf32>,
    %c80_238 = arith.constant 80 : index
    %c0_239 = arith.constant 0 : index
    %253 = vector.load %arg17[%c80_238, %c0_239] : memref<100x64xf32, #tpu.memory_space<vmem>>, vector<4x64xf32>
    %c85 = arith.constant 85 : index
    %c0_240 = arith.constant 0 : index
    %254 = vector.load %arg17[%c85, %c0_240] : memref<100x64xf32, #tpu.memory_space<vmem>>, vector<4x64xf32>
    %255 = arith.maximumf %253, %254 : vector<4x64xf32>
    %c61_241 = arith.constant 61 : index
    %c0_242 = arith.constant 0 : index
    %256 = vector.load %arg18[%c61_241, %c0_242] : memref<86x64xf32, #tpu.memory_space<vmem>>, vector<4x64xf32>
    tpu.vector_store %arg18[%c61_241, %c0_242], %255 {strides = array<i32>} : memref<86x64xf32, #tpu.memory_space<vmem>>, vector<4x64xf32>,
    %c0_243 = arith.constant 0 : index
    %c0_244 = arith.constant 0 : index
    %257 = vector.load %arg18[%c0_243, %c0_244] : memref<86x64xf32, #tpu.memory_space<vmem>>, vector<72x64xf32>
    %c0_245 = arith.constant 0 : index
    %c0_246 = arith.constant 0 : index
    %c0_247 = arith.constant 0 : index
    %258 = vector.load %arg6[%c0_245, %c0_246, %c0_247] : memref<9x64x64xf32, #tpu.memory_space<vmem>>, vector<1x64x64xf32>
    %259 = vector.shape_cast %258 : vector<1x64x64xf32> to vector<64x64xf32>
    %cst_248 = arith.constant dense<0.000000e+00> : vector<72x64xf32>
    %260 = tpu.matmul %257, %259, %cst_248 {dimension_numbers = #tpu.dot_dimension_numbers<[1], [0], [0], [1], [0, 0, 1, 1], [], []>} : vector<72x64xf32>, vector<64x64xf32>, vector<72x64xf32> -> vector<72x64xf32>
    %c1_249 = arith.constant 1 : index
    %c0_250 = arith.constant 0 : index
    %261 = vector.load %arg18[%c1_249, %c0_250] : memref<86x64xf32, #tpu.memory_space<vmem>>, vector<72x64xf32>
    %c1_251 = arith.constant 1 : index
    %c0_252 = arith.constant 0 : index
    %c0_253 = arith.constant 0 : index
    %262 = vector.load %arg6[%c1_251, %c0_252, %c0_253] : memref<9x64x64xf32, #tpu.memory_space<vmem>>, vector<1x64x64xf32>
    %263 = vector.shape_cast %262 : vector<1x64x64xf32> to vector<64x64xf32>
    %cst_254 = arith.constant dense<0.000000e+00> : vector<72x64xf32>
    %264 = tpu.matmul %261, %263, %cst_254 {dimension_numbers = #tpu.dot_dimension_numbers<[1], [0], [0], [1], [0, 0, 1, 1], [], []>} : vector<72x64xf32>, vector<64x64xf32>, vector<72x64xf32> -> vector<72x64xf32>
    %265 = arith.addf %260, %264 : vector<72x64xf32>
    %c2_255 = arith.constant 2 : index
    %c0_256 = arith.constant 0 : index
    %266 = vector.load %arg18[%c2_255, %c0_256] : memref<86x64xf32, #tpu.memory_space<vmem>>, vector<72x64xf32>
    %c2_257 = arith.constant 2 : index
    %c0_258 = arith.constant 0 : index
    %c0_259 = arith.constant 0 : index
    %267 = vector.load %arg6[%c2_257, %c0_258, %c0_259] : memref<9x64x64xf32, #tpu.memory_space<vmem>>, vector<1x64x64xf32>
    %268 = vector.shape_cast %267 : vector<1x64x64xf32> to vector<64x64xf32>
    %cst_260 = arith.constant dense<0.000000e+00> : vector<72x64xf32>
    %269 = tpu.matmul %266, %268, %cst_260 {dimension_numbers = #tpu.dot_dimension_numbers<[1], [0], [0], [1], [0, 0, 1, 1], [], []>} : vector<72x64xf32>, vector<64x64xf32>, vector<72x64xf32> -> vector<72x64xf32>
    %270 = arith.addf %265, %269 : vector<72x64xf32>
    %c6_261 = arith.constant 6 : index
    %c0_262 = arith.constant 0 : index
    %271 = vector.load %arg18[%c6_261, %c0_262] : memref<86x64xf32, #tpu.memory_space<vmem>>, vector<72x64xf32>
    %c3_263 = arith.constant 3 : index
    %c0_264 = arith.constant 0 : index
    %c0_265 = arith.constant 0 : index
    %272 = vector.load %arg6[%c3_263, %c0_264, %c0_265] : memref<9x64x64xf32, #tpu.memory_space<vmem>>, vector<1x64x64xf32>
    %273 = vector.shape_cast %272 : vector<1x64x64xf32> to vector<64x64xf32>
    %cst_266 = arith.constant dense<0.000000e+00> : vector<72x64xf32>
    %274 = tpu.matmul %271, %273, %cst_266 {dimension_numbers = #tpu.dot_dimension_numbers<[1], [0], [0], [1], [0, 0, 1, 1], [], []>} : vector<72x64xf32>, vector<64x64xf32>, vector<72x64xf32> -> vector<72x64xf32>
    %275 = arith.addf %270, %274 : vector<72x64xf32>
    %c7_267 = arith.constant 7 : index
    %c0_268 = arith.constant 0 : index
    %276 = vector.load %arg18[%c7_267, %c0_268] : memref<86x64xf32, #tpu.memory_space<vmem>>, vector<72x64xf32>
    %c4_269 = arith.constant 4 : index
    %c0_270 = arith.constant 0 : index
    %c0_271 = arith.constant 0 : index
    %277 = vector.load %arg6[%c4_269, %c0_270, %c0_271] : memref<9x64x64xf32, #tpu.memory_space<vmem>>, vector<1x64x64xf32>
    %278 = vector.shape_cast %277 : vector<1x64x64xf32> to vector<64x64xf32>
    %cst_272 = arith.constant dense<0.000000e+00> : vector<72x64xf32>
    %279 = tpu.matmul %276, %278, %cst_272 {dimension_numbers = #tpu.dot_dimension_numbers<[1], [0], [0], [1], [0, 0, 1, 1], [], []>} : vector<72x64xf32>, vector<64x64xf32>, vector<72x64xf32> -> vector<72x64xf32>
    %280 = arith.addf %275, %279 : vector<72x64xf32>
    %c8_273 = arith.constant 8 : index
    %c0_274 = arith.constant 0 : index
    %281 = vector.load %arg18[%c8_273, %c0_274] : memref<86x64xf32, #tpu.memory_space<vmem>>, vector<72x64xf32>
    %c5_275 = arith.constant 5 : index
    %c0_276 = arith.constant 0 : index
    %c0_277 = arith.constant 0 : index
    %282 = vector.load %arg6[%c5_275, %c0_276, %c0_277] : memref<9x64x64xf32, #tpu.memory_space<vmem>>, vector<1x64x64xf32>
    %283 = vector.shape_cast %282 : vector<1x64x64xf32> to vector<64x64xf32>
    %cst_278 = arith.constant dense<0.000000e+00> : vector<72x64xf32>
    %284 = tpu.matmul %281, %283, %cst_278 {dimension_numbers = #tpu.dot_dimension_numbers<[1], [0], [0], [1], [0, 0, 1, 1], [], []>} : vector<72x64xf32>, vector<64x64xf32>, vector<72x64xf32> -> vector<72x64xf32>
    %285 = arith.addf %280, %284 : vector<72x64xf32>
    %c12_279 = arith.constant 12 : index
    %c0_280 = arith.constant 0 : index
    %286 = vector.load %arg18[%c12_279, %c0_280] : memref<86x64xf32, #tpu.memory_space<vmem>>, vector<72x64xf32>
    %c6_281 = arith.constant 6 : index
    %c0_282 = arith.constant 0 : index
    %c0_283 = arith.constant 0 : index
    %287 = vector.load %arg6[%c6_281, %c0_282, %c0_283] : memref<9x64x64xf32, #tpu.memory_space<vmem>>, vector<1x64x64xf32>
    %288 = vector.shape_cast %287 : vector<1x64x64xf32> to vector<64x64xf32>
    %cst_284 = arith.constant dense<0.000000e+00> : vector<72x64xf32>
    %289 = tpu.matmul %286, %288, %cst_284 {dimension_numbers = #tpu.dot_dimension_numbers<[1], [0], [0], [1], [0, 0, 1, 1], [], []>} : vector<72x64xf32>, vector<64x64xf32>, vector<72x64xf32> -> vector<72x64xf32>
    %290 = arith.addf %285, %289 : vector<72x64xf32>
    %c13_285 = arith.constant 13 : index
    %c0_286 = arith.constant 0 : index
    %291 = vector.load %arg18[%c13_285, %c0_286] : memref<86x64xf32, #tpu.memory_space<vmem>>, vector<72x64xf32>
    %c7_287 = arith.constant 7 : index
    %c0_288 = arith.constant 0 : index
    %c0_289 = arith.constant 0 : index
    %292 = vector.load %arg6[%c7_287, %c0_288, %c0_289] : memref<9x64x64xf32, #tpu.memory_space<vmem>>, vector<1x64x64xf32>
    %293 = vector.shape_cast %292 : vector<1x64x64xf32> to vector<64x64xf32>
    %cst_290 = arith.constant dense<0.000000e+00> : vector<72x64xf32>
    %294 = tpu.matmul %291, %293, %cst_290 {dimension_numbers = #tpu.dot_dimension_numbers<[1], [0], [0], [1], [0, 0, 1, 1], [], []>} : vector<72x64xf32>, vector<64x64xf32>, vector<72x64xf32> -> vector<72x64xf32>
    %295 = arith.addf %290, %294 : vector<72x64xf32>
    %c14 = arith.constant 14 : index
    %c0_291 = arith.constant 0 : index
    %296 = vector.load %arg18[%c14, %c0_291] : memref<86x64xf32, #tpu.memory_space<vmem>>, vector<72x64xf32>
    %c8_292 = arith.constant 8 : index
    %c0_293 = arith.constant 0 : index
    %c0_294 = arith.constant 0 : index
    %297 = vector.load %arg6[%c8_292, %c0_293, %c0_294] : memref<9x64x64xf32, #tpu.memory_space<vmem>>, vector<1x64x64xf32>
    %298 = vector.shape_cast %297 : vector<1x64x64xf32> to vector<64x64xf32>
    %cst_295 = arith.constant dense<0.000000e+00> : vector<72x64xf32>
    %299 = tpu.matmul %296, %298, %cst_295 {dimension_numbers = #tpu.dot_dimension_numbers<[1], [0], [0], [1], [0, 0, 1, 1], [], []>} : vector<72x64xf32>, vector<64x64xf32>, vector<72x64xf32> -> vector<72x64xf32>
    %300 = arith.addf %295, %299 : vector<72x64xf32>
    %c0_296 = arith.constant 0 : index
    %c0_297 = arith.constant 0 : index
    %301 = vector.load %arg7[%c0_296, %c0_297] : memref<1x64xf32, #tpu.memory_space<vmem>>, vector<1x64xf32>
    %302 = vector.broadcast %301 : vector<1x64xf32> to vector<72x64xf32>
    %303 = arith.addf %300, %302 : vector<72x64xf32>
    %cst_298 = arith.constant 0.000000e+00 : f32
    %304 = vector.broadcast %cst_298 : f32 to vector<72x64xf32>
    %305 = arith.cmpf oge, %303, %304 : vector<72x64xf32>
    %cst_299 = arith.constant 0.00999999977 : f32
    %306 = vector.broadcast %cst_299 : f32 to vector<72x64xf32>
    %307 = arith.mulf %306, %303 : vector<72x64xf32>
    %308 = arith.select %305, %303, %307 : vector<72x64xi1>, vector<72x64xf32>
    %c0_300 = arith.constant 0 : index
    %c0_301 = arith.constant 0 : index
    %309 = vector.load %arg10[%c0_300, %c0_301] : memref<72x64xf32, #tpu.memory_space<vmem>>, vector<72x64xf32>
    tpu.vector_store %arg10[%c0_300, %c0_301], %308 {strides = array<i32>} : memref<72x64xf32, #tpu.memory_space<vmem>>, vector<72x64xf32>,
    %310 = tpu.iota {dimensions = array<i32: 0>} : vector<3x1xi32>
    %c0_302 = arith.constant 0 : index
    %c0_303 = arith.constant 0 : index
    %311 = vector.load %arg10[%c0_302, %c0_303] : memref<72x64xf32, #tpu.memory_space<vmem>>, vector<36x64xf32>
    %c0_304 = arith.constant 0 : index
    %c0_305 = arith.constant 0 : index
    %312 = vector.load %arg9[%c0_304, %c0_305] : memref<3x1xf32, #tpu.memory_space<vmem>>, vector<3x1xf32>
    %c0_306 = arith.constant 0 : index
    %c0_307 = arith.constant 0 : index
    %c0_308 = arith.constant 0 : index
    %313 = vector.load %arg8[%c0_306, %c0_307, %c0_308] : memref<3x36x64xf32, #tpu.memory_space<vmem>>, vector<1x36x64xf32>
    %314 = vector.shape_cast %313 : vector<1x36x64xf32> to vector<36x64xf32>
    %315 = arith.mulf %311, %314 : vector<36x64xf32>
    %cst_309 = arith.constant dense<0.000000e+00> : vector<64xf32>
    %316 = vector.multi_reduction <add>, %315, %cst_309 [0] : vector<36x64xf32> to vector<64xf32>
    %317 = vector.shape_cast %316 : vector<64xf32> to vector<1x64xf32>
    %cst_310 = arith.constant dense<0.000000e+00> : vector<1xf32>
    %318 = vector.multi_reduction <add>, %317, %cst_310 [1] : vector<1x64xf32> to vector<1xf32>
    %319 = vector.shape_cast %318 : vector<1xf32> to vector<1x1xf32>
    %c0_i32 = arith.constant 0 : i32
    %320 = vector.broadcast %c0_i32 : i32 to vector<3x1xi32>
    %321 = arith.cmpi eq, %310, %320 : vector<3x1xi32>
    %cst_311 = arith.constant 0.000000e+00 : f32
    %322 = vector.shape_cast %319 : vector<1x1xf32> to vector<1x1xf32>
    %323 = vector.broadcast %322 : vector<1x1xf32> to vector<3x1xf32>
    %324 = vector.broadcast %cst_311 : f32 to vector<3x1xf32>
    %325 = arith.select %321, %323, %324 : vector<3x1xi1>, vector<3x1xf32>
    %326 = arith.addf %312, %325 : vector<3x1xf32>
    %c1_312 = arith.constant 1 : index
    %c0_313 = arith.constant 0 : index
    %c0_314 = arith.constant 0 : index
    %327 = vector.load %arg8[%c1_312, %c0_313, %c0_314] : memref<3x36x64xf32, #tpu.memory_space<vmem>>, vector<1x36x64xf32>
    %328 = vector.shape_cast %327 : vector<1x36x64xf32> to vector<36x64xf32>
    %329 = arith.mulf %311, %328 : vector<36x64xf32>
    %cst_315 = arith.constant dense<0.000000e+00> : vector<64xf32>
    %330 = vector.multi_reduction <add>, %329, %cst_315 [0] : vector<36x64xf32> to vector<64xf32>
    %331 = vector.shape_cast %330 : vector<64xf32> to vector<1x64xf32>
    %cst_316 = arith.constant dense<0.000000e+00> : vector<1xf32>
    %332 = vector.multi_reduction <add>, %331, %cst_316 [1] : vector<1x64xf32> to vector<1xf32>
    %333 = vector.shape_cast %332 : vector<1xf32> to vector<1x1xf32>
    %c1_i32 = arith.constant 1 : i32
    %334 = vector.broadcast %c1_i32 : i32 to vector<3x1xi32>
    %335 = arith.cmpi eq, %310, %334 : vector<3x1xi32>
    %cst_317 = arith.constant 0.000000e+00 : f32
    %336 = vector.shape_cast %333 : vector<1x1xf32> to vector<1x1xf32>
    %337 = vector.broadcast %336 : vector<1x1xf32> to vector<3x1xf32>
    %338 = vector.broadcast %cst_317 : f32 to vector<3x1xf32>
    %339 = arith.select %335, %337, %338 : vector<3x1xi1>, vector<3x1xf32>
    %340 = arith.addf %326, %339 : vector<3x1xf32>
    %c2_318 = arith.constant 2 : index
    %c0_319 = arith.constant 0 : index
    %c0_320 = arith.constant 0 : index
    %341 = vector.load %arg8[%c2_318, %c0_319, %c0_320] : memref<3x36x64xf32, #tpu.memory_space<vmem>>, vector<1x36x64xf32>
    %342 = vector.shape_cast %341 : vector<1x36x64xf32> to vector<36x64xf32>
    %343 = arith.mulf %311, %342 : vector<36x64xf32>
    %cst_321 = arith.constant dense<0.000000e+00> : vector<64xf32>
    %344 = vector.multi_reduction <add>, %343, %cst_321 [0] : vector<36x64xf32> to vector<64xf32>
    %345 = vector.shape_cast %344 : vector<64xf32> to vector<1x64xf32>
    %cst_322 = arith.constant dense<0.000000e+00> : vector<1xf32>
    %346 = vector.multi_reduction <add>, %345, %cst_322 [1] : vector<1x64xf32> to vector<1xf32>
    %347 = vector.shape_cast %346 : vector<1xf32> to vector<1x1xf32>
    %c2_i32 = arith.constant 2 : i32
    %348 = vector.broadcast %c2_i32 : i32 to vector<3x1xi32>
    %349 = arith.cmpi eq, %310, %348 : vector<3x1xi32>
    %cst_323 = arith.constant 0.000000e+00 : f32
    %350 = vector.shape_cast %347 : vector<1x1xf32> to vector<1x1xf32>
    %351 = vector.broadcast %350 : vector<1x1xf32> to vector<3x1xf32>
    %352 = vector.broadcast %cst_323 : f32 to vector<3x1xf32>
    %353 = arith.select %349, %351, %352 : vector<3x1xi1>, vector<3x1xf32>
    %354 = arith.addf %340, %353 : vector<3x1xf32>
    %c0_324 = arith.constant 0 : index
    %c0_325 = arith.constant 0 : index
    %c0_326 = arith.constant 0 : index
    %355 = vector.load %arg11[%c0_324, %c0_325, %c0_326] : memref<2x3x1xf32, #tpu.memory_space<vmem>>, vector<1x3x1xf32>
    %356 = vector.shape_cast %355 : vector<1x3x1xf32> to vector<3x1xf32>
    %357 = vector.shape_cast %354 : vector<3x1xf32> to vector<1x3x1xf32>
    tpu.vector_store %arg11[%c0_324, %c0_325, %c0_326], %357 {strides = array<i32>} : memref<2x3x1xf32, #tpu.memory_space<vmem>>, vector<1x3x1xf32>,
    %cst_327 = arith.constant dense<0xFF800000> : vector<1xf32>
    %358 = vector.multi_reduction <maximumf>, %354, %cst_327 [0] : vector<3x1xf32> to vector<1xf32>
    %359 = vector.shape_cast %358 : vector<1xf32> to vector<1x1xf32>
    %360 = vector.broadcast %359 : vector<1x1xf32> to vector<3x1xf32>
    %361 = arith.cmpf oeq, %354, %360 : vector<3x1xf32>
    %c3_i32 = arith.constant 3 : i32
    %362 = vector.broadcast %c3_i32 : i32 to vector<3x1xi32>
    %363 = arith.select %361, %310, %362 : vector<3x1xi1>, vector<3x1xi32>
    %cst_328 = arith.constant dense<2147483647> : vector<1xi32>
    %364 = vector.multi_reduction <minsi>, %363, %cst_328 [0] : vector<3x1xi32> to vector<1xi32>
    %365 = vector.shape_cast %364 : vector<1xi32> to vector<1x1xi32>
    %c0_329 = arith.constant 0 : index
    %c0_330 = arith.constant 0 : index
    %c0_331 = arith.constant 0 : index
    %366 = vector.load %arg12[%c0_329, %c0_330, %c0_331] : memref<2x1x1xi32, #tpu.memory_space<vmem>>, vector<1x1x1xi32>
    %367 = vector.shape_cast %366 : vector<1x1x1xi32> to vector<1x1xi32>
    %368 = vector.shape_cast %365 : vector<1x1xi32> to vector<1x1x1xi32>
    tpu.vector_store %arg12[%c0_329, %c0_330, %c0_331], %368 {strides = array<i32>} : memref<2x1x1xi32, #tpu.memory_space<vmem>>, vector<1x1x1xi32>,
    %c36 = arith.constant 36 : index
    %c0_332 = arith.constant 0 : index
    %369 = vector.load %arg10[%c36, %c0_332] : memref<72x64xf32, #tpu.memory_space<vmem>>, vector<36x64xf32>
    %c0_333 = arith.constant 0 : index
    %c0_334 = arith.constant 0 : index
    %370 = vector.load %arg9[%c0_333, %c0_334] : memref<3x1xf32, #tpu.memory_space<vmem>>, vector<3x1xf32>
    %c0_335 = arith.constant 0 : index
    %c0_336 = arith.constant 0 : index
    %c0_337 = arith.constant 0 : index
    %371 = vector.load %arg8[%c0_335, %c0_336, %c0_337] : memref<3x36x64xf32, #tpu.memory_space<vmem>>, vector<1x36x64xf32>
    %372 = vector.shape_cast %371 : vector<1x36x64xf32> to vector<36x64xf32>
    %373 = arith.mulf %369, %372 : vector<36x64xf32>
    %cst_338 = arith.constant dense<0.000000e+00> : vector<64xf32>
    %374 = vector.multi_reduction <add>, %373, %cst_338 [0] : vector<36x64xf32> to vector<64xf32>
    %375 = vector.shape_cast %374 : vector<64xf32> to vector<1x64xf32>
    %cst_339 = arith.constant dense<0.000000e+00> : vector<1xf32>
    %376 = vector.multi_reduction <add>, %375, %cst_339 [1] : vector<1x64xf32> to vector<1xf32>
    %377 = vector.shape_cast %376 : vector<1xf32> to vector<1x1xf32>
    %c0_i32_340 = arith.constant 0 : i32
    %378 = vector.broadcast %c0_i32_340 : i32 to vector<3x1xi32>
    %379 = arith.cmpi eq, %310, %378 : vector<3x1xi32>
    %cst_341 = arith.constant 0.000000e+00 : f32
    %380 = vector.shape_cast %377 : vector<1x1xf32> to vector<1x1xf32>
    %381 = vector.broadcast %380 : vector<1x1xf32> to vector<3x1xf32>
    %382 = vector.broadcast %cst_341 : f32 to vector<3x1xf32>
    %383 = arith.select %379, %381, %382 : vector<3x1xi1>, vector<3x1xf32>
    %384 = arith.addf %370, %383 : vector<3x1xf32>
    %c1_342 = arith.constant 1 : index
    %c0_343 = arith.constant 0 : index
    %c0_344 = arith.constant 0 : index
    %385 = vector.load %arg8[%c1_342, %c0_343, %c0_344] : memref<3x36x64xf32, #tpu.memory_space<vmem>>, vector<1x36x64xf32>
    %386 = vector.shape_cast %385 : vector<1x36x64xf32> to vector<36x64xf32>
    %387 = arith.mulf %369, %386 : vector<36x64xf32>
    %cst_345 = arith.constant dense<0.000000e+00> : vector<64xf32>
    %388 = vector.multi_reduction <add>, %387, %cst_345 [0] : vector<36x64xf32> to vector<64xf32>
    %389 = vector.shape_cast %388 : vector<64xf32> to vector<1x64xf32>
    %cst_346 = arith.constant dense<0.000000e+00> : vector<1xf32>
    %390 = vector.multi_reduction <add>, %389, %cst_346 [1] : vector<1x64xf32> to vector<1xf32>
    %391 = vector.shape_cast %390 : vector<1xf32> to vector<1x1xf32>
    %c1_i32_347 = arith.constant 1 : i32
    %392 = vector.broadcast %c1_i32_347 : i32 to vector<3x1xi32>
    %393 = arith.cmpi eq, %310, %392 : vector<3x1xi32>
    %cst_348 = arith.constant 0.000000e+00 : f32
    %394 = vector.shape_cast %391 : vector<1x1xf32> to vector<1x1xf32>
    %395 = vector.broadcast %394 : vector<1x1xf32> to vector<3x1xf32>
    %396 = vector.broadcast %cst_348 : f32 to vector<3x1xf32>
    %397 = arith.select %393, %395, %396 : vector<3x1xi1>, vector<3x1xf32>
    %398 = arith.addf %384, %397 : vector<3x1xf32>
    %c2_349 = arith.constant 2 : index
    %c0_350 = arith.constant 0 : index
    %c0_351 = arith.constant 0 : index
    %399 = vector.load %arg8[%c2_349, %c0_350, %c0_351] : memref<3x36x64xf32, #tpu.memory_space<vmem>>, vector<1x36x64xf32>
    %400 = vector.shape_cast %399 : vector<1x36x64xf32> to vector<36x64xf32>
    %401 = arith.mulf %369, %400 : vector<36x64xf32>
    %cst_352 = arith.constant dense<0.000000e+00> : vector<64xf32>
    %402 = vector.multi_reduction <add>, %401, %cst_352 [0] : vector<36x64xf32> to vector<64xf32>
    %403 = vector.shape_cast %402 : vector<64xf32> to vector<1x64xf32>
    %cst_353 = arith.constant dense<0.000000e+00> : vector<1xf32>
    %404 = vector.multi_reduction <add>, %403, %cst_353 [1] : vector<1x64xf32> to vector<1xf32>
    %405 = vector.shape_cast %404 : vector<1xf32> to vector<1x1xf32>
    %c2_i32_354 = arith.constant 2 : i32
    %406 = vector.broadcast %c2_i32_354 : i32 to vector<3x1xi32>
    %407 = arith.cmpi eq, %310, %406 : vector<3x1xi32>
    %cst_355 = arith.constant 0.000000e+00 : f32
    %408 = vector.shape_cast %405 : vector<1x1xf32> to vector<1x1xf32>
    %409 = vector.broadcast %408 : vector<1x1xf32> to vector<3x1xf32>
    %410 = vector.broadcast %cst_355 : f32 to vector<3x1xf32>
    %411 = arith.select %407, %409, %410 : vector<3x1xi1>, vector<3x1xf32>
    %412 = arith.addf %398, %411 : vector<3x1xf32>
    %c1_356 = arith.constant 1 : index
    %c0_357 = arith.constant 0 : index
    %c0_358 = arith.constant 0 : index
    %413 = vector.load %arg11[%c1_356, %c0_357, %c0_358] : memref<2x3x1xf32, #tpu.memory_space<vmem>>, vector<1x3x1xf32>
    %414 = vector.shape_cast %413 : vector<1x3x1xf32> to vector<3x1xf32>
    %415 = vector.shape_cast %412 : vector<3x1xf32> to vector<1x3x1xf32>
    tpu.vector_store %arg11[%c1_356, %c0_357, %c0_358], %415 {strides = array<i32>} : memref<2x3x1xf32, #tpu.memory_space<vmem>>, vector<1x3x1xf32>,
    %cst_359 = arith.constant dense<0xFF800000> : vector<1xf32>
    %416 = vector.multi_reduction <maximumf>, %412, %cst_359 [0] : vector<3x1xf32> to vector<1xf32>
    %417 = vector.shape_cast %416 : vector<1xf32> to vector<1x1xf32>
    %418 = vector.broadcast %417 : vector<1x1xf32> to vector<3x1xf32>
    %419 = arith.cmpf oeq, %412, %418 : vector<3x1xf32>
    %c3_i32_360 = arith.constant 3 : i32
    %420 = vector.broadcast %c3_i32_360 : i32 to vector<3x1xi32>
    %421 = arith.select %419, %310, %420 : vector<3x1xi1>, vector<3x1xi32>
    %cst_361 = arith.constant dense<2147483647> : vector<1xi32>
    %422 = vector.multi_reduction <minsi>, %421, %cst_361 [0] : vector<3x1xi32> to vector<1xi32>
    %423 = vector.shape_cast %422 : vector<1xi32> to vector<1x1xi32>
    %c1_362 = arith.constant 1 : index
    %c0_363 = arith.constant 0 : index
    %c0_364 = arith.constant 0 : index
    %424 = vector.load %arg12[%c1_362, %c0_363, %c0_364] : memref<2x1x1xi32, #tpu.memory_space<vmem>>, vector<1x1x1xi32>
    %425 = vector.shape_cast %424 : vector<1x1x1xi32> to vector<1x1xi32>
    %426 = vector.shape_cast %423 : vector<1x1xi32> to vector<1x1x1xi32>
    tpu.vector_store %arg12[%c1_362, %c0_363, %c0_364], %426 {strides = array<i32>} : memref<2x1x1xi32, #tpu.memory_space<vmem>>, vector<1x1x1xi32>,
    return
  }
  func.func @transform_0(%arg0: i32) -> (i32, i32) {
    %c0_i32 = arith.constant 0 : i32
    %c0_i32_0 = arith.constant 0 : i32
    return %arg0, %c0_i32 : i32, i32
  }
  func.func @transform_1(%arg0: i32) -> (i32, i32) {
    %c0_i32 = arith.constant 0 : i32
    %c0_i32_0 = arith.constant 0 : i32
    %c0_i32_1 = arith.constant 0 : i32
    return %c0_i32, %c0_i32_0 : i32, i32
  }
  func.func @transform_2(%arg0: i32) -> (i32, i32) {
    %c0_i32 = arith.constant 0 : i32
    %c0_i32_0 = arith.constant 0 : i32
    %c0_i32_1 = arith.constant 0 : i32
    return %c0_i32, %c0_i32_0 : i32, i32
  }
  func.func @transform_3(%arg0: i32) -> (i32, i32, i32) {
    %c0_i32 = arith.constant 0 : i32
    %c0_i32_0 = arith.constant 0 : i32
    %c0_i32_1 = arith.constant 0 : i32
    %c0_i32_2 = arith.constant 0 : i32
    return %c0_i32, %c0_i32_0, %c0_i32_1 : i32, i32, i32
  }
  func.func @transform_4(%arg0: i32) -> (i32, i32) {
    %c0_i32 = arith.constant 0 : i32
    %c0_i32_0 = arith.constant 0 : i32
    %c0_i32_1 = arith.constant 0 : i32
    return %c0_i32, %c0_i32_0 : i32, i32
  }
  func.func @transform_5(%arg0: i32) -> (i32, i32, i32) {
    %c0_i32 = arith.constant 0 : i32
    %c0_i32_0 = arith.constant 0 : i32
    %c0_i32_1 = arith.constant 0 : i32
    %c0_i32_2 = arith.constant 0 : i32
    return %c0_i32, %c0_i32_0, %c0_i32_1 : i32, i32, i32
  }
  func.func @transform_6(%arg0: i32) -> (i32, i32) {
    %c0_i32 = arith.constant 0 : i32
    %c0_i32_0 = arith.constant 0 : i32
    %c0_i32_1 = arith.constant 0 : i32
    return %c0_i32, %c0_i32_0 : i32, i32
  }
  func.func @transform_7(%arg0: i32) -> (i32, i32, i32) {
    %c0_i32 = arith.constant 0 : i32
    %c0_i32_0 = arith.constant 0 : i32
    %c0_i32_1 = arith.constant 0 : i32
    %c0_i32_2 = arith.constant 0 : i32
    return %c0_i32, %c0_i32_0, %c0_i32_1 : i32, i32, i32
  }
  func.func @transform_8(%arg0: i32) -> (i32, i32) {
    %c0_i32 = arith.constant 0 : i32
    %c0_i32_0 = arith.constant 0 : i32
    %c0_i32_1 = arith.constant 0 : i32
    return %c0_i32, %c0_i32_0 : i32, i32
  }
  func.func @transform_9(%arg0: i32) -> (i32, i32) {
    %c0_i32 = arith.constant 0 : i32
    %c0_i32_0 = arith.constant 0 : i32
    return %arg0, %c0_i32 : i32, i32
  }
  func.func @transform_10(%arg0: i32) -> (i32, i32, i32) {
    %c0_i32 = arith.constant 0 : i32
    %c0_i32_0 = arith.constant 0 : i32
    %c0_i32_1 = arith.constant 0 : i32
    return %arg0, %c0_i32, %c0_i32_0 : i32, i32, i32
  }
  func.func @transform_11(%arg0: i32) -> (i32, i32, i32) {
    %c0_i32 = arith.constant 0 : i32
    %c0_i32_0 = arith.constant 0 : i32
    %c0_i32_1 = arith.constant 0 : i32
    return %arg0, %c0_i32, %c0_i32_0 : i32, i32, i32
  }
}

</mosaic_0001>

<llo_original>
// kernel: mixture_of_experts_forward.1
$region0: #{mixture_of_experts_forward.1}
  #allocation0 [shape = 'u32[]', space=smem, size = 0x4, offset = 0x4, fixed_abs, tag = 'smem constant byte address 0x4 - core index']
  #allocation1 [shape = 'u32[144,128]{1,0:T(1,128)}', space=vmem, size = 0x12000, scoped, tag = 'internal scratch']
  #allocation2 [shape = 'f32[512,32]{1,0:T(8,128)}', space=vmem, size = 0x40000, scoped, tag = 'scratch operand']
  #allocation3 [shape = 'f32[256,32]{1,0:T(8,128)}', space=vmem, size = 0x20000, scoped, tag = 'scratch operand']
  #allocation4 [shape = 'f32[222,32]{1,0:T(8,128)}', space=vmem, size = 0x1c000, scoped, tag = 'scratch operand']
  #allocation5 [shape = 'f32[200,64]{1,0:T(8,128)}', space=vmem, size = 0x19000, scoped, tag = 'scratch operand']
  #allocation6 [shape = 'f32[100,64]{1,0:T(8,128)}', space=vmem, size = 0xd000, scoped, tag = 'scratch operand']
  #allocation7 [shape = 'f32[86,64]{1,0:T(8,128)}', space=vmem, size = 0xb000, scoped, tag = 'scratch operand']
  %s0 = inlined_call_operand.vmem [shape: f32[1024,75], index: 0, kind: input, shape index: {}]
  %s1 = inlined_call_operand.vmem [shape: f32[75,32], index: 1, kind: input, shape index: {}]
  %s2 = inlined_call_operand.vmem [shape: f32[1,32], index: 2, kind: input, shape index: {}]
  %s3 = inlined_call_operand.vmem [shape: f32[9,32,64], index: 3, kind: input, shape index: {}]
  %s4 = inlined_call_operand.vmem [shape: f32[1,64], index: 4, kind: input, shape index: {}]
  %s5 = inlined_call_operand.vmem [shape: f32[9,64,64], index: 5, kind: input, shape index: {}]
  %s6 = inlined_call_operand.vmem [shape: f32[1,64], index: 6, kind: input, shape index: {}]
  %s7 = inlined_call_operand.vmem [shape: f32[3,36,64], index: 7, kind: input, shape index: {}]
  %s8 = inlined_call_operand.vmem [shape: f32[3,1], index: 8, kind: input, shape index: {}]
  %s9 = inlined_call_operand.vmem [shape: f32[144,64], index: 9, kind: output, shape index: {0}]
  %s10 = inlined_call_operand.vmem [shape: f32[4,3,1], index: 10, kind: output, shape index: {1}]
  %s11 = inlined_call_operand.vmem [shape: s32[4,1,1], index: 11, kind: output, shape index: {2}]
  %12 = xla_tuple %s9, %s10, %s11
  %s13 = sld [smem:[#allocation0]]
  $region85: #{mixture_of_experts_forward.1} parent=0
    _
  %s15 = ssub.s32 1, %s13
  %s16 = scalar_select 0, %s15, %s13
  loop: start=0, step=1, limit=4
  $region2: #{mixture_of_experts_forward.1} parent=0 // loop_pre_header
    _
  $region3: #{mixture_of_experts_forward.1} parent=0 // loop_header
    %s18 = sphi 0, %s22
    %p19 = scmp.ge.s32.totalorder %s18, 4
    %s28 = sphi 0, %s30
    %s31 = sphi 0, %s28
    %s32 = sphi 0, %s31
    %s48 = sphi 0, %s32
    %s52 = sphi 0, %s52
    %s54 = sphi 0, %s52
    %s55 = sphi 0, %s54
    %s69 = sphi 0, %s55
    %s73 = sphi 0, %s73
    %s75 = sphi 0, %s73
    %s76 = sphi 0, %s75
    %s90 = sphi 0, %s76
    %s94 = sphi 0, %s94
    %s96 = sphi 0, %s94
    %s97 = sphi 0, %s96
    %s111 = sphi 0, %s97
    %s115 = sphi 0, %s115
    %s117 = sphi 0, %s115
    %s118 = sphi 0, %s117
    %s132 = sphi 0, %s118
    %s136 = sphi 0, %s136
    %s138 = sphi 0, %s136
    %s139 = sphi 0, %s138
    %s153 = sphi 0, %s139
    %s157 = sphi 0, %s157
    %s159 = sphi 0, %s157
    %s160 = sphi 0, %s159
    %s174 = sphi 0, %s160
    %s178 = sphi 0, %s178
    %s180 = sphi 0, %s178
    %s181 = sphi 0, %s180
    %s195 = sphi 0, %s181
    %s199 = sphi 0, %s199
    %s201 = sphi 0, %s199
    %s202 = sphi 0, %s201
    %s216 = sphi 0, %s202
    %s222 = sphi 0, %s224
    %s225 = sphi 0, %s222
    %s226 = sphi 0, %s225
    %s242 = sphi 0, %s226
    %s248 = sphi 0, %s250
    %s251 = sphi 0, %s248
    %s252 = sphi 0, %s251
    %s268 = sphi 0, %s252
    %s274 = sphi 0, %s276
    %s277 = sphi 0, %s274
    %s278 = sphi 0, %s277
    %s294 = sphi 0, %s278
  $region4: #{mixture_of_experts_forward.1} parent=0 // loop_header_branch
    %21 = sbr.rel (%p19) target = $region8
  $region5: #{mixture_of_experts_forward.1} parent=0 // loop_body
    %s23 = ssub.s32 %s18, 1
    %s24 = ssub.s32 %s18, 2
    %s25 = sadd.s32 %s18, 1
    %s26 = ssub.s32 %s18, %s25
    %p27 = scmp.eq.s32.totalorder %s26, 0
    %s29 = sadd.s32 %s28, 1
    %s30 = scalar_select %p27, %s28, %s29
    %p33 = pneg %p27
    %p34 = scmp.eq.s32.totalorder %s18, 1
    %p35 = por %p33, %p34
    %p36 = scmp.ne.s32.totalorder %s28, %s31
    %p37 = scmp.eq.s32.totalorder %s18, 0
    %p38 = por %p36, %p37
    %p39 = scmp.ne.s32.totalorder %s28, %s31
    %p40 = scmp.eq.s32.totalorder %s23, 1
    %p41 = por %p39, %p40
    %p42 = scmp.ne.s32.totalorder %s31, %s32
    %p43 = scmp.eq.s32.totalorder %s23, 0
    %p44 = por %p42, %p43
    %p45 = scmp.ne.s32.totalorder %s31, %s32
    %p46 = scmp.eq.s32.totalorder %s24, 1
    %p47 = por %p45, %p46
    %p49 = scmp.ne.s32.totalorder %s32, %s48
    %p50 = scmp.eq.s32.totalorder %s24, 0
    %p51 = por %p49, %p50
    %s53 = sadd.s32 %s52, 1
    %p56 = scmp.eq.s32.totalorder %s18, 1
    %p57 = scmp.ne.s32.totalorder %s52, %s54
    %p58 = scmp.eq.s32.totalorder %s18, 0
    %p59 = por %p57, %p58
    %p60 = scmp.ne.s32.totalorder %s52, %s54
    %p61 = scmp.eq.s32.totalorder %s23, 1
    %p62 = por %p60, %p61
    %p63 = scmp.ne.s32.totalorder %s54, %s55
    %p64 = scmp.eq.s32.totalorder %s23, 0
    %p65 = por %p63, %p64
    %p66 = scmp.ne.s32.totalorder %s54, %s55
    %p67 = scmp.eq.s32.totalorder %s24, 1
    %p68 = por %p66, %p67
    %p70 = scmp.ne.s32.totalorder %s55, %s69
    %p71 = scmp.eq.s32.totalorder %s24, 0
    %p72 = por %p70, %p71
    %s74 = sadd.s32 %s73, 1
    %p77 = scmp.eq.s32.totalorder %s18, 1
    %p78 = scmp.ne.s32.totalorder %s73, %s75
    %p79 = scmp.eq.s32.totalorder %s18, 0
    %p80 = por %p78, %p79
    %p81 = scmp.ne.s32.totalorder %s73, %s75
    %p82 = scmp.eq.s32.totalorder %s23, 1
    %p83 = por %p81, %p82
    %p84 = scmp.ne.s32.totalorder %s75, %s76
    %p85 = scmp.eq.s32.totalorder %s23, 0
    %p86 = por %p84, %p85
    %p87 = scmp.ne.s32.totalorder %s75, %s76
    %p88 = scmp.eq.s32.totalorder %s24, 1
    %p89 = por %p87, %p88
    %p91 = scmp.ne.s32.totalorder %s76, %s90
    %p92 = scmp.eq.s32.totalorder %s24, 0
    %p93 = por %p91, %p92
    %s95 = sadd.s32 %s94, 1
    %p98 = scmp.eq.s32.totalorder %s18, 1
    %p99 = scmp.ne.s32.totalorder %s94, %s96
    %p100 = scmp.eq.s32.totalorder %s18, 0
    %p101 = por %p99, %p100
    %p102 = scmp.ne.s32.totalorder %s94, %s96
    %p103 = scmp.eq.s32.totalorder %s23, 1
    %p104 = por %p102, %p103
    %p105 = scmp.ne.s32.totalorder %s96, %s97
    %p106 = scmp.eq.s32.totalorder %s23, 0
    %p107 = por %p105, %p106
    %p108 = scmp.ne.s32.totalorder %s96, %s97
    %p109 = scmp.eq.s32.totalorder %s24, 1
    %p110 = por %p108, %p109
    %p112 = scmp.ne.s32.totalorder %s97, %s111
    %p113 = scmp.eq.s32.totalorder %s24, 0
    %p114 = por %p112, %p113
    %s116 = sadd.s32 %s115, 1
    %p119 = scmp.eq.s32.totalorder %s18, 1
    %p120 = scmp.ne.s32.totalorder %s115, %s117
    %p121 = scmp.eq.s32.totalorder %s18, 0
    %p122 = por %p120, %p121
    %p123 = scmp.ne.s32.totalorder %s115, %s117
    %p124 = scmp.eq.s32.totalorder %s23, 1
    %p125 = por %p123, %p124
    %p126 = scmp.ne.s32.totalorder %s117, %s118
    %p127 = scmp.eq.s32.totalorder %s23, 0
    %p128 = por %p126, %p127
    %p129 = scmp.ne.s32.totalorder %s117, %s118
    %p130 = scmp.eq.s32.totalorder %s24, 1
    %p131 = por %p129, %p130
    %p133 = scmp.ne.s32.totalorder %s118, %s132
    %p134 = scmp.eq.s32.totalorder %s24, 0
    %p135 = por %p133, %p134
    %s137 = sadd.s32 %s136, 1
    %p140 = scmp.eq.s32.totalorder %s18, 1
    %p141 = scmp.ne.s32.totalorder %s136, %s138
    %p142 = scmp.eq.s32.totalorder %s18, 0
    %p143 = por %p141, %p142
    %p144 = scmp.ne.s32.totalorder %s136, %s138
    %p145 = scmp.eq.s32.totalorder %s23, 1
    %p146 = por %p144, %p145
    %p147 = scmp.ne.s32.totalorder %s138, %s139
    %p148 = scmp.eq.s32.totalorder %s23, 0
    %p149 = por %p147, %p148
    %p150 = scmp.ne.s32.totalorder %s138, %s139
    %p151 = scmp.eq.s32.totalorder %s24, 1
    %p152 = por %p150, %p151
    %p154 = scmp.ne.s32.totalorder %s139, %s153
    %p155 = scmp.eq.s32.totalorder %s24, 0
    %p156 = por %p154, %p155
    %s158 = sadd.s32 %s157, 1
    %p161 = scmp.eq.s32.totalorder %s18, 1
    %p162 = scmp.ne.s32.totalorder %s157, %s159
    %p163 = scmp.eq.s32.totalorder %s18, 0
    %p164 = por %p162, %p163
    %p165 = scmp.ne.s32.totalorder %s157, %s159
    %p166 = scmp.eq.s32.totalorder %s23, 1
    %p167 = por %p165, %p166
    %p168 = scmp.ne.s32.totalorder %s159, %s160
    %p169 = scmp.eq.s32.totalorder %s23, 0
    %p170 = por %p168, %p169
    %p171 = scmp.ne.s32.totalorder %s159, %s160
    %p172 = scmp.eq.s32.totalorder %s24, 1
    %p173 = por %p171, %p172
    %p175 = scmp.ne.s32.totalorder %s160, %s174
    %p176 = scmp.eq.s32.totalorder %s24, 0
    %p177 = por %p175, %p176
    %s179 = sadd.s32 %s178, 1
    %p182 = scmp.eq.s32.totalorder %s18, 1
    %p183 = scmp.ne.s32.totalorder %s178, %s180
    %p184 = scmp.eq.s32.totalorder %s18, 0
    %p185 = por %p183, %p184
    %p186 = scmp.ne.s32.totalorder %s178, %s180
    %p187 = scmp.eq.s32.totalorder %s23, 1
    %p188 = por %p186, %p187
    %p189 = scmp.ne.s32.totalorder %s180, %s181
    %p190 = scmp.eq.s32.totalorder %s23, 0
    %p191 = por %p189, %p190
    %p192 = scmp.ne.s32.totalorder %s180, %s181
    %p193 = scmp.eq.s32.totalorder %s24, 1
    %p194 = por %p192, %p193
    %p196 = scmp.ne.s32.totalorder %s181, %s195
    %p197 = scmp.eq.s32.totalorder %s24, 0
    %p198 = por %p196, %p197
    %s200 = sadd.s32 %s199, 1
    %p203 = scmp.eq.s32.totalorder %s18, 1
    %p204 = scmp.ne.s32.totalorder %s199, %s201
    %p205 = scmp.eq.s32.totalorder %s18, 0
    %p206 = por %p204, %p205
    %p207 = scmp.ne.s32.totalorder %s199, %s201
    %p208 = scmp.eq.s32.totalorder %s23, 1
    %p209 = por %p207, %p208
    %p210 = scmp.ne.s32.totalorder %s201, %s202
    %p211 = scmp.eq.s32.totalorder %s23, 0
    %p212 = por %p210, %p211
    %p213 = scmp.ne.s32.totalorder %s201, %s202
    %p214 = scmp.eq.s32.totalorder %s24, 1
    %p215 = por %p213, %p214
    %p217 = scmp.ne.s32.totalorder %s202, %s216
    %p218 = scmp.eq.s32.totalorder %s24, 0
    %p219 = por %p217, %p218
    %s220 = ssub.s32 %s18, %s25
    %p221 = scmp.eq.s32.totalorder %s220, 0
    %s223 = sadd.s32 %s222, 1
    %s224 = scalar_select %p221, %s222, %s223
    %p227 = pneg %p221
    %p228 = scmp.eq.s32.totalorder %s18, 1
    %p229 = por %p227, %p228
    %p230 = scmp.ne.s32.totalorder %s222, %s225
    %p231 = scmp.eq.s32.totalorder %s18, 0
    %p232 = por %p230, %p231
    %p233 = scmp.ne.s32.totalorder %s222, %s225
    %p234 = scmp.eq.s32.totalorder %s23, 1
    %p235 = por %p233, %p234
    %p236 = scmp.ne.s32.totalorder %s225, %s226
    %p237 = scmp.eq.s32.totalorder %s23, 0
    %p238 = por %p236, %p237
    %p239 = scmp.ne.s32.totalorder %s225, %s226
    %p240 = scmp.eq.s32.totalorder %s24, 1
    %p241 = por %p239, %p240
    %p243 = scmp.ne.s32.totalorder %s226, %s242
    %p244 = scmp.eq.s32.totalorder %s24, 0
    %p245 = por %p243, %p244
    %s246 = ssub.s32 %s18, %s25
    %p247 = scmp.eq.s32.totalorder %s246, 0
    %s249 = sadd.s32 %s248, 1
    %s250 = scalar_select %p247, %s248, %s249
    %p253 = pneg %p247
    %p254 = scmp.eq.s32.totalorder %s18, 1
    %p255 = por %p253, %p254
    %p256 = scmp.ne.s32.totalorder %s248, %s251
    %p257 = scmp.eq.s32.totalorder %s18, 0
    %p258 = por %p256, %p257
    %p259 = scmp.ne.s32.totalorder %s248, %s251
    %p260 = scmp.eq.s32.totalorder %s23, 1
    %p261 = por %p259, %p260
    %p262 = scmp.ne.s32.totalorder %s251, %s252
    %p263 = scmp.eq.s32.totalorder %s23, 0
    %p264 = por %p262, %p263
    %p265 = scmp.ne.s32.totalorder %s251, %s252
    %p266 = scmp.eq.s32.totalorder %s24, 1
    %p267 = por %p265, %p266
    %p269 = scmp.ne.s32.totalorder %s252, %s268
    %p270 = scmp.eq.s32.totalorder %s24, 0
    %p271 = por %p269, %p270
    %s272 = ssub.s32 %s18, %s25
    %p273 = scmp.eq.s32.totalorder %s272, 0
    %s275 = sadd.s32 %s274, 1
    %s276 = scalar_select %p273, %s274, %s275
    %p279 = pneg %p273
    %p280 = scmp.eq.s32.totalorder %s18, 1
    %p281 = por %p279, %p280
    %p282 = scmp.ne.s32.totalorder %s274, %s277
    %p283 = scmp.eq.s32.totalorder %s18, 0
    %p284 = por %p282, %p283
    %p285 = scmp.ne.s32.totalorder %s274, %s277
    %p286 = scmp.eq.s32.totalorder %s23, 1
    %p287 = por %p285, %p286
    %p288 = scmp.ne.s32.totalorder %s277, %s278
    %p289 = scmp.eq.s32.totalorder %s23, 0
    %p290 = por %p288, %p289
    %p291 = scmp.ne.s32.totalorder %s277, %s278
    %p292 = scmp.eq.s32.totalorder %s24, 1
    %p293 = por %p291, %p292
    %p295 = scmp.ne.s32.totalorder %s278, %s294
    %p296 = scmp.eq.s32.totalorder %s24, 0
    %p297 = por %p295, %p296
    %p298 = scmp.le.s32.totalorder 1, %s18
    %p299 = scmp.lt.s32.totalorder %s18, 3
    %p300 = pnand %p298, %p299
    %p301 = pneg %p300
    // Predicated region
    $region9: #{mixture_of_experts_forward.1} parent=5 // pred_check
      _
    $region10: #{mixture_of_experts_forward.1} parent=5 // pred_check_branch
      %303 = sbr.rel (%p300) target = $region12
    $region11: #{mixture_of_experts_forward.1} parent=5 // pred_region
      %s304 = ssub.s32 %s18, 1
      // Predicated region
      $region13: #{mixture_of_experts_forward.1} parent=11 // pred_check
        %p305 = pneg %p65
      $region14: #{mixture_of_experts_forward.1} parent=11 // pred_check_branch
        %307 = sbr.rel (%p305) target = $region16
      $region15: #{mixture_of_experts_forward.1} parent=11 // pred_region
        _
      $region16: #{mixture_of_experts_forward.1} parent=11 // pred_fallthru
        _
      // Predicated region
      $region17: #{mixture_of_experts_forward.1} parent=11 // pred_check
        %p308 = pneg %p86
      $region18: #{mixture_of_experts_forward.1} parent=11 // pred_check_branch
        %310 = sbr.rel (%p308) target = $region20
      $region19: #{mixture_of_experts_forward.1} parent=11 // pred_region
        _
      $region20: #{mixture_of_experts_forward.1} parent=11 // pred_fallthru
        _
      // Predicated region
      $region21: #{mixture_of_experts_forward.1} parent=11 // pred_check
        %p311 = pneg %p107
      $region22: #{mixture_of_experts_forward.1} parent=11 // pred_check_branch
        %313 = sbr.rel (%p311) target = $region24
      $region23: #{mixture_of_experts_forward.1} parent=11 // pred_region
        _
      $region24: #{mixture_of_experts_forward.1} parent=11 // pred_fallthru
        _
      // Predicated region
      $region25: #{mixture_of_experts_forward.1} parent=11 // pred_check
        %p314 = pneg %p128
      $region26: #{mixture_of_experts_forward.1} parent=11 // pred_check_branch
        %316 = sbr.rel (%p314) target = $region28
      $region27: #{mixture_of_experts_forward.1} parent=11 // pred_region
        _
      $region28: #{mixture_of_experts_forward.1} parent=11 // pred_fallthru
        _
      // Predicated region
      $region29: #{mixture_of_experts_forward.1} parent=11 // pred_check
        %p317 = pneg %p149
      $region30: #{mixture_of_experts_forward.1} parent=11 // pred_check_branch
        %319 = sbr.rel (%p317) target = $region32
      $region31: #{mixture_of_experts_forward.1} parent=11 // pred_region
        _
      $region32: #{mixture_of_experts_forward.1} parent=11 // pred_fallthru
        _
      // Predicated region
      $region33: #{mixture_of_experts_forward.1} parent=11 // pred_check
        %p320 = pneg %p170
      $region34: #{mixture_of_experts_forward.1} parent=11 // pred_check_branch
        %322 = sbr.rel (%p320) target = $region36
      $region35: #{mixture_of_experts_forward.1} parent=11 // pred_region
        _
      $region36: #{mixture_of_experts_forward.1} parent=11 // pred_fallthru
        _
      // Predicated region
      $region37: #{mixture_of_experts_forward.1} parent=11 // pred_check
        %p323 = pneg %p191
      $region38: #{mixture_of_experts_forward.1} parent=11 // pred_check_branch
        %325 = sbr.rel (%p323) target = $region40
      $region39: #{mixture_of_experts_forward.1} parent=11 // pred_region
        _
      $region40: #{mixture_of_experts_forward.1} parent=11 // pred_fallthru
        _
      // Predicated region
      $region41: #{mixture_of_experts_forward.1} parent=11 // pred_check
        %p326 = pneg %p212
      $region42: #{mixture_of_experts_forward.1} parent=11 // pred_check_branch
        %328 = sbr.rel (%p326) target = $region44
      $region43: #{mixture_of_experts_forward.1} parent=11 // pred_region
        _
      $region44: #{mixture_of_experts_forward.1} parent=11 // pred_fallthru
        _
    $region12: #{mixture_of_experts_forward.1} parent=5 // pred_fallthru
      _
    %p329 = scmp.lt.s32.totalorder %s18, 2
    // Predicated region
    $region45: #{mixture_of_experts_forward.1} parent=5 // pred_check
      %p330 = pneg %p329
    $region46: #{mixture_of_experts_forward.1} parent=5 // pred_check_branch
      %332 = sbr.rel (%p330) target = $region48
    $region47: #{mixture_of_experts_forward.1} parent=5 // pred_region
      // Predicated region
      $region49: #{mixture_of_experts_forward.1} parent=47 // pred_check
        %p333 = pneg %p38
      $region50: #{mixture_of_experts_forward.1} parent=47 // pred_check_branch
        %335 = sbr.rel (%p333) target = $region52
      $region51: #{mixture_of_experts_forward.1} parent=47 // pred_region
        %s336 = smul.u32 64, %s18
        %p337 = scmp.lt.s32.totalorder %s336, 127
        %s338 = scalar_select %p337, %s336, 127
        %s339 = smul.addr %s338, 8
        %s340 = scalar_lea.vmem %s0, %s339
        %s341 = smul.u32 64, %s18
      $region52: #{mixture_of_experts_forward.1} parent=47 // pred_fallthru
        _
    $region48: #{mixture_of_experts_forward.1} parent=5 // pred_fallthru
      _
    %p342 = scmp.le.s32.totalorder 1, %s18
    %p343 = scmp.lt.s32.totalorder %s18, 3
    %p344 = pnand %p342, %p343
    %p345 = pneg %p344
    // Predicated region
    $region53: #{mixture_of_experts_forward.1} parent=5 // pred_check
      _
    $region54: #{mixture_of_experts_forward.1} parent=5 // pred_check_branch
      %347 = sbr.rel (%p344) target = $region56
    $region55: #{mixture_of_experts_forward.1} parent=5 // pred_region
      %s348 = ssub.s32 %s18, 1
      %s349 = smul.u32 64, %s23
      %p350 = scmp.lt.s32.totalorder %s349, 127
      %s351 = scalar_select %p350, %s349, 127
      %s352 = smul.addr %s351, 8
      %s353 = scalar_lea.vmem %s0, %s352
      %p354 = pneg %p44
      %p355 = pneg %p41
      %p356 = pneg %p65
      %p357 = pneg %p62
      %p358 = pneg %p86
      %p359 = pneg %p83
      %p360 = pneg %p107
      %p361 = pneg %p104
      %p362 = pneg %p128
      %p363 = pneg %p125
      %p364 = pneg %p149
      %p365 = pneg %p146
      %p366 = pneg %p170
      %p367 = pneg %p167
      %p368 = pneg %p191
      %p369 = pneg %p188
      %p370 = pneg %p212
      %p371 = pneg %p209
      %p372 = pneg %p238
      %p373 = pneg %p235
      %s374 = smul.u32 9, %s23
      %p375 = scmp.lt.s32.totalorder %s374, 17
      %s376 = scalar_select %p375, %s374, 17
      %s377 = smul.addr %s376, 8
      %s378 = scalar_lea.vmem %s9, %s377
      %p379 = pneg %p264
      %p380 = pneg %p261
      %s381 = smul.u32 2, %s23
      %p382 = scmp.lt.s32.totalorder %s381, 3
      %s383 = scalar_select %p382, %s381, 3
      %s384 = smul.addr %s383, 4
      %s385 = scalar_lea.vmem %s10, %s384
      %p386 = pneg %p290
      %p387 = pneg %p287
      %s388 = smul.u32 2, %s23
      %p389 = scmp.lt.s32.totalorder %s388, 3
      %s390 = scalar_select %p389, %s388, 3
      %s391 = scalar_lea.vmem %s11, %s390
      %s392 = smul.u32 64, %s23
      %p393 = scmp.lt.s32.totalorder %s392, 127
      %s394 = scalar_select %p393, %s392, 127
      %s395 = smul.addr %s394, 8
      %s396 = scalar_lea.vmem %s0, %s395
      %s397 = smul.u32 64, %s23
      %s398 = smul.u32 9, %s23
      %p399 = scmp.lt.s32.totalorder %s398, 17
      %s400 = scalar_select %p399, %s398, 17
      %s401 = smul.addr %s400, 8
      %s402 = scalar_lea.vmem %s9, %s401
      %s403 = smul.u32 9, %s23
      %s404 = smul.u32 2, %s23
      %p405 = scmp.lt.s32.totalorder %s404, 3
      %s406 = scalar_select %p405, %s404, 3
      %s407 = smul.addr %s406, 4
      %s408 = scalar_lea.vmem %s10, %s407
      %s409 = smul.u32 2, %s23
      %s410 = smul.u32 2, %s23
      %p411 = scmp.lt.s32.totalorder %s410, 3
      %s412 = scalar_select %p411, %s410, 3
      %s413 = scalar_lea.vmem %s11, %s412
      %s414 = smul.u32 2, %s23
      %v415 = vld [vmem:[%s396] sm:$0xff]
      %v416 = vld [vmem:[%s396 + $0x8] sm:$0xff]
      %v417 = vld [vmem:[%s396 + $0x10] sm:$0xff]
      %v418 = vld [vmem:[%s396 + $0x18] sm:$0xff]
      %v419 = vld [vmem:[%s396 + $0x20] sm:$0xff]
      %v420 = vld [vmem:[%s396 + $0x28] sm:$0xff]
      %v421 = vld [vmem:[%s396 + $0x30] sm:$0xff]
      %v422 = vld [vmem:[%s396 + $0x38] sm:$0xff]
      %v423 = vld [vmem:[%s396 + $0x40] sm:$0xff]
      %v424 = vld [vmem:[%s396 + $0x48] sm:$0xff]
      %v425 = vld [vmem:[%s396 + $0x50] sm:$0xff]
      %v426 = vld [vmem:[%s396 + $0x58] sm:$0xff]
      %v427 = vld [vmem:[%s396 + $0x60] sm:$0xff]
      %v428 = vld [vmem:[%s396 + $0x68] sm:$0xff]
      %v429 = vld [vmem:[%s396 + $0x70] sm:$0xff]
      %v430 = vld [vmem:[%s396 + $0x78] sm:$0xff]
      %v431 = vld [vmem:[%s1] sm:$0xff]
      %v432 = vld [vmem:[%s1 + $0x8] sm:$0xff]
      %v433 = vld [vmem:[%s1 + $0x10] sm:$0xff]
      %v434 = vld [vmem:[%s1 + $0x18] sm:$0xff]
      %v435 = vld [vmem:[%s1 + $0x20] sm:$0xff]
      %v436 = vld [vmem:[%s1 + $0x28] sm:$0xff]
      %v437 = vld [vmem:[%s1 + $0x30] sm:$0xff]
      %v438 = vld [vmem:[%s1 + $0x38] sm:$0xff]
      %v439 = vld [vmem:[%s1 + $0x40] sm:$0xff]
      %v440 = vld [vmem:[%s1 + $0x48] sm:$0x7]
      %v441 = vld [vmem:[%s2] sm:$0x1]
      %v443 = vlaneseq
      %v444 = vshrl.u32 %v443, 7
      %v445 = vsub.s32 0, %v444
      %v446 = vrot.slane %v441, %v445
      %vm448 = vcmask 613376
      %v450 = vsel %vm448, %v415, 0
      %v453 = vsel %vm448, %v416, 0
      %v456 = vsel %vm448, %v417, 0
      %v459 = vsel %vm448, %v418, 0
      %v462 = vsel %vm448, %v419, 0
      %v465 = vsel %vm448, %v420, 0
      %v468 = vsel %vm448, %v421, 0
      %v471 = vsel %vm448, %v422, 0
      %v474 = vsel %vm448, %v423, 0
      %v477 = vsel %vm448, %v424, 0
      %v480 = vsel %vm448, %v425, 0
      %v483 = vsel %vm448, %v426, 0
      %v486 = vsel %vm448, %v427, 0
      %v489 = vsel %vm448, %v428, 0
      %v492 = vsel %vm448, %v429, 0
      %v495 = vsel %vm448, %v430, 0
      %vm497 = vcmask 1042432
      %v499 = vsel %vm497, %v440, 0
      %501 = vmatprep.subr.mxu0 0.0
      %502 = vmatpush1.msra.mxu0 %v431
      %503 = vmatprep.subr.mxu0 0.0
      %504 = vmatpush1.msra.mxu0 %v432
      %505 = vmatprep.subr.mxu0 0.0
      %506 = vmatpush1.msra.mxu0 %v433
      %507 = vmatprep.subr.mxu0 0.0
      %508 = vmatpush1.msra.mxu0 %v434
      %509 = vmatprep.subr.mxu0 0.0
      %510 = vmatpush1.msra.mxu0 %v435
      %511 = vmatprep.subr.mxu0 0.0
      %512 = vmatpush1.msra.mxu0 %v436
      %513 = vmatprep.subr.mxu0 0.0
      %514 = vmatpush1.msra.mxu0 %v437
      %515 = vmatprep.subr.mxu0 0.0
      %516 = vmatpush1.msra.mxu0 %v438
      %517 = vmatprep.subr.mxu0 0.0
      %518 = vmatpush1.msra.mxu0 %v439
      %519 = vmatprep.subr.mxu0 0.0
      %520 = vmatpush1.msra.mxu0 %v499
      %521 = vmatprep.subr.mxu0 0.0
      %522 = vmatpush1.msra.mxu0 0.0
      %523 = vmatprep.subr.mxu0 0.0
      %524 = vmatpush1.msra.mxu0 0.0
      %525 = vmatprep.subr.mxu0 0.0
      %526 = vmatpush1.msra.mxu0 0.0
      %527 = vmatprep.subr.mxu0 0.0
      %528 = vmatpush1.msra.mxu0 0.0
      %529 = vmatprep.subr.mxu0 0.0
      %530 = vmatpush1.msra.mxu0 0.0
      %531 = vmatprep.subr.mxu0 0.0
      %532 = vmatpush1.msra.mxu0 0.0
      %533 = vmatprep.subr.mxu0 0.0
      %534 = vmatpush1.msra.mxu0 0.0
      %535 = vmatprep.subr.mxu0 0.0
      %536 = vmatpush1.msra.mxu0 0.0
      %537 = vmatprep.subr.mxu0 0.0
      %538 = vmatpush1.msra.mxu0 0.0
      %539 = vmatprep.subr.mxu0 0.0
      %540 = vmatpush1.msra.mxu0 0.0
      %541 = vmatprep.subr.mxu0 0.0
      %542 = vmatpush1.msra.mxu0 0.0
      %543 = vmatprep.subr.mxu0 0.0
      %544 = vmatpush1.msra.mxu0 0.0
      %545 = vmatprep.subr.mxu0 0.0
      %546 = vmatpush1.msra.mxu0 0.0
      %547 = vmatprep.subr.mxu0 0.0
      %548 = vmatpush1.msra.mxu0 0.0
      %549 = vmatprep.subr.mxu0 0.0
      %550 = vmatpush1.msra.mxu0 0.0
      %551 = vmatprep.subr.mxu0 0.0
      %552 = vmatpush1.msra.mxu0 0.0
      %553 = vmatprep.subr.mxu0 0.0
      %554 = vmatpush1.msra.mxu0 0.0
      %555 = vmatprep.subr.mxu0 0.0
      %556 = vmatpush1.msra.mxu0 0.0
      %557 = vmatprep.subr.mxu0 0.0
      %558 = vmatpush1.msra.mxu0 0.0
      %559 = vmatprep.subr.mxu0 0.0
      %560 = vmatpush1.msra.mxu0 0.0
      %561 = vmatprep.subr.mxu0 0.0
      %562 = vmatpush1.msra.mxu0 0.0
      %563 = vmatprep.subr.mxu0 0.0
      %564 = vmatpush1.msra.mxu0 0.0
      %565 = vmatprep.mubr.f32.mxu0 0.0
      %566 = vmatmul.mubr.f32.gmra.mrb[0].mxu0 %v450
      %v567 = vpop.f32.mrb[0].mxu0
      %v568 = vadd.f32 %v446, %v567
      %v569 = vpop.f32.mrb[0].mxu0
      %570 = vmatprep.mubr.f32.mxu0 0.0
      %571 = vmatmul.mubr.f32.gmra.mrb[0].mxu0 %v453
      %v572 = vpop.f32.mrb[0].mxu0
      %v573 = vadd.f32 %v446, %v572
      %v574 = vpop.f32.mrb[0].mxu0
      %575 = vmatprep.mubr.f32.mxu0 0.0
      %576 = vmatmul.mubr.f32.gmra.mrb[0].mxu0 %v456
      %v577 = vpop.f32.mrb[0].mxu0
      %v578 = vadd.f32 %v446, %v577
      %v579 = vpop.f32.mrb[0].mxu0
      %580 = vmatprep.mubr.f32.mxu0 0.0
      %581 = vmatmul.mubr.f32.gmra.mrb[0].mxu0 %v459
      %v582 = vpop.f32.mrb[0].mxu0
      %v583 = vadd.f32 %v446, %v582
      %v584 = vpop.f32.mrb[0].mxu0
      %585 = vmatprep.mubr.f32.mxu0 0.0
      %586 = vmatmul.mubr.f32.gmra.mrb[0].mxu0 %v462
      %v587 = vpop.f32.mrb[0].mxu0
      %v588 = vadd.f32 %v446, %v587
      %v589 = vpop.f32.mrb[0].mxu0
      %590 = vmatprep.mubr.f32.mxu0 0.0
      %591 = vmatmul.mubr.f32.gmra.mrb[0].mxu0 %v465
      %v592 = vpop.f32.mrb[0].mxu0
      %v593 = vadd.f32 %v446, %v592
      %v594 = vpop.f32.mrb[0].mxu0
      %595 = vmatprep.mubr.f32.mxu0 0.0
      %596 = vmatmul.mubr.f32.gmra.mrb[0].mxu0 %v468
      %v597 = vpop.f32.mrb[0].mxu0
      %v598 = vadd.f32 %v446, %v597
      %v599 = vpop.f32.mrb[0].mxu0
      %600 = vmatprep.mubr.f32.mxu0 0.0
      %601 = vmatmul.mubr.f32.gmra.mrb[0].mxu0 %v471
      %v602 = vpop.f32.mrb[0].mxu0
      %v603 = vadd.f32 %v446, %v602
      %v604 = vpop.f32.mrb[0].mxu0
      %605 = vmatprep.mubr.f32.mxu0 0.0
      %606 = vmatmul.mubr.f32.gmra.mrb[0].mxu0 %v474
      %v607 = vpop.f32.mrb[0].mxu0
      %v608 = vadd.f32 %v446, %v607
      %v609 = vpop.f32.mrb[0].mxu0
      %610 = vmatprep.mubr.f32.mxu0 0.0
      %611 = vmatmul.mubr.f32.gmra.mrb[0].mxu0 %v477
      %v612 = vpop.f32.mrb[0].mxu0
      %v613 = vadd.f32 %v446, %v612
      %v614 = vpop.f32.mrb[0].mxu0
      %615 = vmatprep.mubr.f32.mxu0 0.0
      %616 = vmatmul.mubr.f32.gmra.mrb[0].mxu0 %v480
      %v617 = vpop.f32.mrb[0].mxu0
      %v618 = vadd.f32 %v446, %v617
      %v619 = vpop.f32.mrb[0].mxu0
      %620 = vmatprep.mubr.f32.mxu0 0.0
      %621 = vmatmul.mubr.f32.gmra.mrb[0].mxu0 %v483
      %v622 = vpop.f32.mrb[0].mxu0
      %v623 = vadd.f32 %v446, %v622
      %v624 = vpop.f32.mrb[0].mxu0
      %625 = vmatprep.mubr.f32.mxu0 0.0
      %626 = vmatmul.mubr.f32.gmra.mrb[0].mxu0 %v486
      %v627 = vpop.f32.mrb[0].mxu0
      %v628 = vadd.f32 %v446, %v627
      %v629 = vpop.f32.mrb[0].mxu0
      %630 = vmatprep.mubr.f32.mxu0 0.0
      %631 = vmatmul.mubr.f32.gmra.mrb[0].mxu0 %v489
      %v632 = vpop.f32.mrb[0].mxu0
      %v633 = vadd.f32 %v446, %v632
      %v634 = vpop.f32.mrb[0].mxu0
      %635 = vmatprep.mubr.f32.mxu0 0.0
      %636 = vmatmul.mubr.f32.gmra.mrb[0].mxu0 %v492
      %v637 = vpop.f32.mrb[0].mxu0
      %v638 = vadd.f32 %v446, %v637
      %v639 = vpop.f32.mrb[0].mxu0
      %640 = vmatprep.mubr.f32.mxu0 0.0
      %641 = vmatmul.mubr.f32.gmra.mrb[0].mxu0 %v495
      %v642 = vpop.f32.mrb[0].mxu0
      %v643 = vadd.f32 %v446, %v642
      %v644 = vpop.f32.mrb[0].mxu0
      %645 = vdwg.mxu0
      %vm646 = vcmp.ge.f32.partialorder %v568, 0.0
      %vm647 = vcmp.ge.f32.partialorder %v573, 0.0
      %vm648 = vcmp.ge.f32.partialorder %v578, 0.0
      %vm649 = vcmp.ge.f32.partialorder %v583, 0.0
      %vm650 = vcmp.ge.f32.partialorder %v588, 0.0
      %vm651 = vcmp.ge.f32.partialorder %v593, 0.0
      %vm652 = vcmp.ge.f32.partialorder %v598, 0.0
      %vm653 = vcmp.ge.f32.partialorder %v603, 0.0
      %vm654 = vcmp.ge.f32.partialorder %v608, 0.0
      %vm655 = vcmp.ge.f32.partialorder %v613, 0.0
      %vm656 = vcmp.ge.f32.partialorder %v618, 0.0
      %vm657 = vcmp.ge.f32.partialorder %v623, 0.0
      %vm658 = vcmp.ge.f32.partialorder %v628, 0.0
      %vm659 = vcmp.ge.f32.partialorder %v633, 0.0
      %vm660 = vcmp.ge.f32.partialorder %v638, 0.0
      %vm661 = vcmp.ge.f32.partialorder %v643, 0.0
      %v662 = vmul.f32 %v568, 0.01
      %v663 = vmul.f32 %v573, 0.01
      %v664 = vmul.f32 %v578, 0.01
      %v665 = vmul.f32 %v583, 0.01
      %v666 = vmul.f32 %v588, 0.01
      %v667 = vmul.f32 %v593, 0.01
      %v668 = vmul.f32 %v598, 0.01
      %v669 = vmul.f32 %v603, 0.01
      %v670 = vmul.f32 %v608, 0.01
      %v671 = vmul.f32 %v613, 0.01
      %v672 = vmul.f32 %v618, 0.01
      %v673 = vmul.f32 %v623, 0.01
      %v674 = vmul.f32 %v628, 0.01
      %v675 = vmul.f32 %v633, 0.01
      %v676 = vmul.f32 %v638, 0.01
      %v677 = vmul.f32 %v643, 0.01
      %v678 = vsel %vm646, %v568, %v662
      %v679 = vsel %vm647, %v573, %v663
      %v680 = vsel %vm648, %v578, %v664
      %v681 = vsel %vm649, %v583, %v665
      %v682 = vsel %vm650, %v588, %v666
      %v683 = vsel %vm651, %v593, %v667
      %v684 = vsel %vm652, %v598, %v668
      %v685 = vsel %vm653, %v603, %v669
      %v686 = vsel %vm654, %v608, %v670
      %v687 = vsel %vm655, %v613, %v671
      %v688 = vsel %vm656, %v618, %v672
      %v689 = vsel %vm657, %v623, %v673
      %v690 = vsel %vm658, %v628, %v674
      %v691 = vsel %vm659, %v633, %v675
      %v692 = vsel %vm660, %v638, %v676
      %v693 = vsel %vm661, %v643, %v677
      %vm694 = vcmask 261120
      %695 = vst.msk [vmem:[#allocation2] sm:$0xff] %vm694, %v678
      %696 = vst.msk [vmem:[#allocation2 + $0x8] sm:$0xff] %vm694, %v679
      %697 = vst.msk [vmem:[#allocation2 + $0x10] sm:$0xff] %vm694, %v680
      %698 = vst.msk [vmem:[#allocation2 + $0x18] sm:$0xff] %vm694, %v681
      %699 = vst.msk [vmem:[#allocation2 + $0x20] sm:$0xff] %vm694, %v682
      %700 = vst.msk [vmem:[#allocation2 + $0x28] sm:$0xff] %vm694, %v683
      %701 = vst.msk [vmem:[#allocation2 + $0x30] sm:$0xff] %vm694, %v684
      %702 = vst.msk [vmem:[#allocation2 + $0x38] sm:$0xff] %vm694, %v685
      %703 = vst.msk [vmem:[#allocation2 + $0x40] sm:$0xff] %vm694, %v686
      %704 = vst.msk [vmem:[#allocation2 + $0x48] sm:$0xff] %vm694, %v687
      %705 = vst.msk [vmem:[#allocation2 + $0x50] sm:$0xff] %vm694, %v688
      %706 = vst.msk [vmem:[#allocation2 + $0x58] sm:$0xff] %vm694, %v689
      %707 = vst.msk [vmem:[#allocation2 + $0x60] sm:$0xff] %vm694, %v690
      %708 = vst.msk [vmem:[#allocation2 + $0x68] sm:$0xff] %vm694, %v691
      %709 = vst.msk [vmem:[#allocation2 + $0x70] sm:$0xff] %vm694, %v692
      %710 = vst.msk [vmem:[#allocation2 + $0x78] sm:$0xff] %vm694, %v693
      %v711 = vld [vmem:[%s396 + $0x80] sm:$0xff]
      %v712 = vld [vmem:[%s396 + $0x88] sm:$0xff]
      %v713 = vld [vmem:[%s396 + $0x90] sm:$0xff]
      %v714 = vld [vmem:[%s396 + $0x98] sm:$0xff]
      %v715 = vld [vmem:[%s396 + $0xa0] sm:$0xff]
      %v716 = vld [vmem:[%s396 + $0xa8] sm:$0xff]
      %v717 = vld [vmem:[%s396 + $0xb0] sm:$0xff]
      %v718 = vld [vmem:[%s396 + $0xb8] sm:$0xff]
      %v719 = vld [vmem:[%s396 + $0xc0] sm:$0xff]
      %v720 = vld [vmem:[%s396 + $0xc8] sm:$0xff]
      %v721 = vld [vmem:[%s396 + $0xd0] sm:$0xff]
      %v722 = vld [vmem:[%s396 + $0xd8] sm:$0xff]
      %v723 = vld [vmem:[%s396 + $0xe0] sm:$0xff]
      %v724 = vld [vmem:[%s396 + $0xe8] sm:$0xff]
      %v725 = vld [vmem:[%s396 + $0xf0] sm:$0xff]
      %v726 = vld [vmem:[%s396 + $0xf8] sm:$0xff]
      %v727 = vld [vmem:[%s1] sm:$0xff]
      %v728 = vld [vmem:[%s1 + $0x8] sm:$0xff]
      %v729 = vld [vmem:[%s1 + $0x10] sm:$0xff]
      %v730 = vld [vmem:[%s1 + $0x18] sm:$0xff]
      %v731 = vld [vmem:[%s1 + $0x20] sm:$0xff]
      %v732 = vld [vmem:[%s1 + $0x28] sm:$0xff]
      %v733 = vld [vmem:[%s1 + $0x30] sm:$0xff]
      %v734 = vld [vmem:[%s1 + $0x38] sm:$0xff]
      %v735 = vld [vmem:[%s1 + $0x40] sm:$0xff]
      %v736 = vld [vmem:[%s1 + $0x48] sm:$0x7]
      %v737 = vld [vmem:[%s2] sm:$0x1]
      %v739 = vlaneseq
      %v740 = vshrl.u32 %v739, 7
      %v741 = vsub.s32 0, %v740
      %v742 = vrot.slane %v737, %v741
      %v745 = vsel %vm448, %v711, 0
      %v748 = vsel %vm448, %v712, 0
      %v751 = vsel %vm448, %v713, 0
      %v754 = vsel %vm448, %v714, 0
      %v757 = vsel %vm448, %v715, 0
      %v760 = vsel %vm448, %v716, 0
      %v763 = vsel %vm448, %v717, 0
      %v766 = vsel %vm448, %v718, 0
      %v769 = vsel %vm448, %v719, 0
      %v772 = vsel %vm448, %v720, 0
      %v775 = vsel %vm448, %v721, 0
      %v778 = vsel %vm448, %v722, 0
      %v781 = vsel %vm448, %v723, 0
      %v784 = vsel %vm448, %v724, 0
      %v787 = vsel %vm448, %v725, 0
      %v790 = vsel %vm448, %v726, 0
      %v793 = vsel %vm497, %v736, 0
      %795 = vmatprep.subr.mxu0 0.0
      %796 = vmatpush1.msra.mxu0 %v727
      %797 = vmatprep.subr.mxu0 0.0
      %798 = vmatpush1.msra.mxu0 %v728
      %799 = vmatprep.subr.mxu0 0.0
      %800 = vmatpush1.msra.mxu0 %v729
      %801 = vmatprep.subr.mxu0 0.0
      %802 = vmatpush1.msra.mxu0 %v730
      %803 = vmatprep.subr.mxu0 0.0
      %804 = vmatpush1.msra.mxu0 %v731
      %805 = vmatprep.subr.mxu0 0.0
      %806 = vmatpush1.msra.mxu0 %v732
      %807 = vmatprep.subr.mxu0 0.0
      %808 = vmatpush1.msra.mxu0 %v733
      %809 = vmatprep.subr.mxu0 0.0
      %810 = vmatpush1.msra.mxu0 %v734
      %811 = vmatprep.subr.mxu0 0.0
      %812 = vmatpush1.msra.mxu0 %v735
      %813 = vmatprep.subr.mxu0 0.0
      %814 = vmatpush1.msra.mxu0 %v793
      %815 = vmatprep.subr.mxu0 0.0
      %816 = vmatpush1.msra.mxu0 0.0
      %817 = vmatprep.subr.mxu0 0.0
      %818 = vmatpush1.msra.mxu0 0.0
      %819 = vmatprep.subr.mxu0 0.0
      %820 = vmatpush1.msra.mxu0 0.0
      %821 = vmatprep.subr.mxu0 0.0
      %822 = vmatpush1.msra.mxu0 0.0
      %823 = vmatprep.subr.mxu0 0.0
      %824 = vmatpush1.msra.mxu0 0.0
      %825 = vmatprep.subr.mxu0 0.0
      %826 = vmatpush1.msra.mxu0 0.0
      %827 = vmatprep.subr.mxu0 0.0
      %828 = vmatpush1.msra.mxu0 0.0
      %829 = vmatprep.subr.mxu0 0.0
      %830 = vmatpush1.msra.mxu0 0.0
      %831 = vmatprep.subr.mxu0 0.0
      %832 = vmatpush1.msra.mxu0 0.0
      %833 = vmatprep.subr.mxu0 0.0
      %834 = vmatpush1.msra.mxu0 0.0
      %835 = vmatprep.subr.mxu0 0.0
      %836 = vmatpush1.msra.mxu0 0.0
      %837 = vmatprep.subr.mxu0 0.0
      %838 = vmatpush1.msra.mxu0 0.0
      %839 = vmatprep.subr.mxu0 0.0
      %840 = vmatpush1.msra.mxu0 0.0
      %841 = vmatprep.subr.mxu0 0.0
      %842 = vmatpush1.msra.mxu0 0.0
      %843 = vmatprep.subr.mxu0 0.0
      %844 = vmatpush1.msra.mxu0 0.0
      %845 = vmatprep.subr.mxu0 0.0
      %846 = vmatpush1.msra.mxu0 0.0
      %847 = vmatprep.subr.mxu0 0.0
      %848 = vmatpush1.msra.mxu0 0.0
      %849 = vmatprep.subr.mxu0 0.0
      %850 = vmatpush1.msra.mxu0 0.0
      %851 = vmatprep.subr.mxu0 0.0
      %852 = vmatpush1.msra.mxu0 0.0
      %853 = vmatprep.subr.mxu0 0.0
      %854 = vmatpush1.msra.mxu0 0.0
      %855 = vmatprep.subr.mxu0 0.0
      %856 = vmatpush1.msra.mxu0 0.0
      %857 = vmatprep.subr.mxu0 0.0
      %858 = vmatpush1.msra.mxu0 0.0
      %859 = vmatprep.mubr.f32.mxu0 0.0
      %860 = vmatmul.mubr.f32.gmra.mrb[0].mxu0 %v745
      %v861 = vpop.f32.mrb[0].mxu0
      %v862 = vadd.f32 %v742, %v861
      %v863 = vpop.f32.mrb[0].mxu0
      %864 = vmatprep.mubr.f32.mxu0 0.0
      %865 = vmatmul.mubr.f32.gmra.mrb[0].mxu0 %v748
      %v866 = vpop.f32.mrb[0].mxu0
      %v867 = vadd.f32 %v742, %v866
      %v868 = vpop.f32.mrb[0].mxu0
      %869 = vmatprep.mubr.f32.mxu0 0.0
      %870 = vmatmul.mubr.f32.gmra.mrb[0].mxu0 %v751
      %v871 = vpop.f32.mrb[0].mxu0
      %v872 = vadd.f32 %v742, %v871
      %v873 = vpop.f32.mrb[0].mxu0
      %874 = vmatprep.mubr.f32.mxu0 0.0
      %875 = vmatmul.mubr.f32.gmra.mrb[0].mxu0 %v754
      %v876 = vpop.f32.mrb[0].mxu0
      %v877 = vadd.f32 %v742, %v876
      %v878 = vpop.f32.mrb[0].mxu0
      %879 = vmatprep.mubr.f32.mxu0 0.0
      %880 = vmatmul.mubr.f32.gmra.mrb[0].mxu0 %v757
      %v881 = vpop.f32.mrb[0].mxu0
      %v882 = vadd.f32 %v742, %v881
      %v883 = vpop.f32.mrb[0].mxu0
      %884 = vmatprep.mubr.f32.mxu0 0.0
      %885 = vmatmul.mubr.f32.gmra.mrb[0].mxu0 %v760
      %v886 = vpop.f32.mrb[0].mxu0
      %v887 = vadd.f32 %v742, %v886
      %v888 = vpop.f32.mrb[0].mxu0
      %889 = vmatprep.mubr.f32.mxu0 0.0
      %890 = vmatmul.mubr.f32.gmra.mrb[0].mxu0 %v763
      %v891 = vpop.f32.mrb[0].mxu0
      %v892 = vadd.f32 %v742, %v891
      %v893 = vpop.f32.mrb[0].mxu0
      %894 = vmatprep.mubr.f32.mxu0 0.0
      %895 = vmatmul.mubr.f32.gmra.mrb[0].mxu0 %v766
      %v896 = vpop.f32.mrb[0].mxu0
      %v897 = vadd.f32 %v742, %v896
      %v898 = vpop.f32.mrb[0].mxu0
      %899 = vmatprep.mubr.f32.mxu0 0.0
      %900 = vmatmul.mubr.f32.gmra.mrb[0].mxu0 %v769
      %v901 = vpop.f32.mrb[0].mxu0
      %v902 = vadd.f32 %v742, %v901
      %v903 = vpop.f32.mrb[0].mxu0
      %904 = vmatprep.mubr.f32.mxu0 0.0
      %905 = vmatmul.mubr.f32.gmra.mrb[0].mxu0 %v772
      %v906 = vpop.f32.mrb[0].mxu0
      %v907 = vadd.f32 %v742, %v906
      %v908 = vpop.f32.mrb[0].mxu0
      %909 = vmatprep.mubr.f32.mxu0 0.0
      %910 = vmatmul.mubr.f32.gmra.mrb[0].mxu0 %v775
      %v911 = vpop.f32.mrb[0].mxu0
      %v912 = vadd.f32 %v742, %v911
      %v913 = vpop.f32.mrb[0].mxu0
      %914 = vmatprep.mubr.f32.mxu0 0.0
      %915 = vmatmul.mubr.f32.gmra.mrb[0].mxu0 %v778
      %v916 = vpop.f32.mrb[0].mxu0
      %v917 = vadd.f32 %v742, %v916
      %v918 = vpop.f32.mrb[0].mxu0
      %919 = vmatprep.mubr.f32.mxu0 0.0
      %920 = vmatmul.mubr.f32.gmra.mrb[0].mxu0 %v781
      %v921 = vpop.f32.mrb[0].mxu0
      %v922 = vadd.f32 %v742, %v921
      %v923 = vpop.f32.mrb[0].mxu0
      %924 = vmatprep.mubr.f32.mxu0 0.0
      %925 = vmatmul.mubr.f32.gmra.mrb[0].mxu0 %v784
      %v926 = vpop.f32.mrb[0].mxu0
      %v927 = vadd.f32 %v742, %v926
      %v928 = vpop.f32.mrb[0].mxu0
      %929 = vmatprep.mubr.f32.mxu0 0.0
      %930 = vmatmul.mubr.f32.gmra.mrb[0].mxu0 %v787
      %v931 = vpop.f32.mrb[0].mxu0
      %v932 = vadd.f32 %v742, %v931
      %v933 = vpop.f32.mrb[0].mxu0
      %934 = vmatprep.mubr.f32.mxu0 0.0
      %935 = vmatmul.mubr.f32.gmra.mrb[0].mxu0 %v790
      %v936 = vpop.f32.mrb[0].mxu0
      %v937 = vadd.f32 %v742, %v936
      %v938 = vpop.f32.mrb[0].mxu0
      %939 = vdwg.mxu0
      %vm940 = vcmp.ge.f32.partialorder %v862, 0.0
      %vm941 = vcmp.ge.f32.partialorder %v867, 0.0
      %vm942 = vcmp.ge.f32.partialorder %v872, 0.0
      %vm943 = vcmp.ge.f32.partialorder %v877, 0.0
      %vm944 = vcmp.ge.f32.partialorder %v882, 0.0
      %vm945 = vcmp.ge.f32.partialorder %v887, 0.0
      %vm946 = vcmp.ge.f32.partialorder %v892, 0.0
      %vm947 = vcmp.ge.f32.partialorder %v897, 0.0
      %vm948 = vcmp.ge.f32.partialorder %v902, 0.0
      %vm949 = vcmp.ge.f32.partialorder %v907, 0.0
      %vm950 = vcmp.ge.f32.partialorder %v912, 0.0
      %vm951 = vcmp.ge.f32.partialorder %v917, 0.0
      %vm952 = vcmp.ge.f32.partialorder %v922, 0.0
      %vm953 = vcmp.ge.f32.partialorder %v927, 0.0
      %vm954 = vcmp.ge.f32.partialorder %v932, 0.0
      %vm955 = vcmp.ge.f32.partialorder %v937, 0.0
      %v956 = vmul.f32 %v862, 0.01
      %v957 = vmul.f32 %v867, 0.01
      %v958 = vmul.f32 %v872, 0.01
      %v959 = vmul.f32 %v877, 0.01
      %v960 = vmul.f32 %v882, 0.01
      %v961 = vmul.f32 %v887, 0.01
      %v962 = vmul.f32 %v892, 0.01
      %v963 = vmul.f32 %v897, 0.01
      %v964 = vmul.f32 %v902, 0.01
      %v965 = vmul.f32 %v907, 0.01
      %v966 = vmul.f32 %v912, 0.01
      %v967 = vmul.f32 %v917, 0.01
      %v968 = vmul.f32 %v922, 0.01
      %v969 = vmul.f32 %v927, 0.01
      %v970 = vmul.f32 %v932, 0.01
      %v971 = vmul.f32 %v937, 0.01
      %v972 = vsel %vm940, %v862, %v956
      %v973 = vsel %vm941, %v867, %v957
      %v974 = vsel %vm942, %v872, %v958
      %v975 = vsel %vm943, %v877, %v959
      %v976 = vsel %vm944, %v882, %v960
      %v977 = vsel %vm945, %v887, %v961
      %v978 = vsel %vm946, %v892, %v962
      %v979 = vsel %vm947, %v897, %v963
      %v980 = vsel %vm948, %v902, %v964
      %v981 = vsel %vm949, %v907, %v965
      %v982 = vsel %vm950, %v912, %v966
      %v983 = vsel %vm951, %v917, %v967
      %v984 = vsel %vm952, %v922, %v968
      %v985 = vsel %vm953, %v927, %v969
      %v986 = vsel %vm954, %v932, %v970
      %v987 = vsel %vm955, %v937, %v971
      %988 = vst.msk [vmem:[#allocation2 + $0x80] sm:$0xff] %vm694, %v972
      %989 = vst.msk [vmem:[#allocation2 + $0x88] sm:$0xff] %vm694, %v973
      %990 = vst.msk [vmem:[#allocation2 + $0x90] sm:$0xff] %vm694, %v974
      %991 = vst.msk [vmem:[#allocation2 + $0x98] sm:$0xff] %vm694, %v975
      %992 = vst.msk [vmem:[#allocation2 + $0xa0] sm:$0xff] %vm694, %v976
      %993 = vst.msk [vmem:[#allocation2 + $0xa8] sm:$0xff] %vm694, %v977
      %994 = vst.msk [vmem:[#allocation2 + $0xb0] sm:$0xff] %vm694, %v978
      %995 = vst.msk [vmem:[#allocation2 + $0xb8] sm:$0xff] %vm694, %v979
      %996 = vst.msk [vmem:[#allocation2 + $0xc0] sm:$0xff] %vm694, %v980
      %997 = vst.msk [vmem:[#allocation2 + $0xc8] sm:$0xff] %vm694, %v981
      %998 = vst.msk [vmem:[#allocation2 + $0xd0] sm:$0xff] %vm694, %v982
      %999 = vst.msk [vmem:[#allocation2 + $0xd8] sm:$0xff] %vm694, %v983
      %1000 = vst.msk [vmem:[#allocation2 + $0xe0] sm:$0xff] %vm694, %v984
      %1001 = vst.msk [vmem:[#allocation2 + $0xe8] sm:$0xff] %vm694, %v985
      %1002 = vst.msk [vmem:[#allocation2 + $0xf0] sm:$0xff] %vm694, %v986
      %1003 = vst.msk [vmem:[#allocation2 + $0xf8] sm:$0xff] %vm694, %v987
      %v1004 = vld [vmem:[%s396 + $0x100] sm:$0xff]
      %v1005 = vld [vmem:[%s396 + $0x108] sm:$0xff]
      %v1006 = vld [vmem:[%s396 + $0x110] sm:$0xff]
      %v1007 = vld [vmem:[%s396 + $0x118] sm:$0xff]
      %v1008 = vld [vmem:[%s396 + $0x120] sm:$0xff]
      %v1009 = vld [vmem:[%s396 + $0x128] sm:$0xff]
      %v1010 = vld [vmem:[%s396 + $0x130] sm:$0xff]
      %v1011 = vld [vmem:[%s396 + $0x138] sm:$0xff]
      %v1012 = vld [vmem:[%s396 + $0x140] sm:$0xff]
      %v1013 = vld [vmem:[%s396 + $0x148] sm:$0xff]
      %v1014 = vld [vmem:[%s396 + $0x150] sm:$0xff]
      %v1015 = vld [vmem:[%s396 + $0x158] sm:$0xff]
      %v1016 = vld [vmem:[%s396 + $0x160] sm:$0xff]
      %v1017 = vld [vmem:[%s396 + $0x168] sm:$0xff]
      %v1018 = vld [vmem:[%s396 + $0x170] sm:$0xff]
      %v1019 = vld [vmem:[%s396 + $0x178] sm:$0xff]
      %v1020 = vld [vmem:[%s1] sm:$0xff]
      %v1021 = vld [vmem:[%s1 + $0x8] sm:$0xff]
      %v1022 = vld [vmem:[%s1 + $0x10] sm:$0xff]
      %v1023 = vld [vmem:[%s1 + $0x18] sm:$0xff]
      %v1024 = vld [vmem:[%s1 + $0x20] sm:$0xff]
      %v1025 = vld [vmem:[%s1 + $0x28] sm:$0xff]
      %v1026 = vld [vmem:[%s1 + $0x30] sm:$0xff]
      %v1027 = vld [vmem:[%s1 + $0x38] sm:$0xff]
      %v1028 = vld [vmem:[%s1 + $0x40] sm:$0xff]
      %v1029 = vld [vmem:[%s1 + $0x48] sm:$0x7]
      %v1030 = vld [vmem:[%s2] sm:$0x1]
      %v1032 = vlaneseq
      %v1033 = vshrl.u32 %v1032, 7
      %v1034 = vsub.s32 0, %v1033
      %v1035 = vrot.slane %v1030, %v1034
      %v1038 = vsel %vm448, %v1004, 0
      %v1041 = vsel %vm448, %v1005, 0
      %v1044 = vsel %vm448, %v1006, 0
      %v1047 = vsel %vm448, %v1007, 0
      %v1050 = vsel %vm448, %v1008, 0
      %v1053 = vsel %vm448, %v1009, 0
      %v1056 = vsel %vm448, %v1010, 0
      %v1059 = vsel %vm448, %v1011, 0
      %v1062 = vsel %vm448, %v1012, 0
      %v1065 = vsel %vm448, %v1013, 0
      %v1068 = vsel %vm448, %v1014, 0
      %v1071 = vsel %vm448, %v1015, 0
      %v1074 = vsel %vm448, %v1016, 0
      %v1077 = vsel %vm448, %v1017, 0
      %v1080 = vsel %vm448, %v1018, 0
      %v1083 = vsel %vm448, %v1019, 0
      %v1086 = vsel %vm497, %v1029, 0
      %1088 = vmatprep.subr.mxu0 0.0
      %1089 = vmatpush1.msra.mxu0 %v1020
      %1090 = vmatprep.subr.mxu0 0.0
      %1091 = vmatpush1.msra.mxu0 %v1021
      %1092 = vmatprep.subr.mxu0 0.0
      %1093 = vmatpush1.msra.mxu0 %v1022
      %1094 = vmatprep.subr.mxu0 0.0
      %1095 = vmatpush1.msra.mxu0 %v1023
      %1096 = vmatprep.subr.mxu0 0.0
      %1097 = vmatpush1.msra.mxu0 %v1024
      %1098 = vmatprep.subr.mxu0 0.0
      %1099 = vmatpush1.msra.mxu0 %v1025
      %1100 = vmatprep.subr.mxu0 0.0
      %1101 = vmatpush1.msra.mxu0 %v1026
      %1102 = vmatprep.subr.mxu0 0.0
      %1103 = vmatpush1.msra.mxu0 %v1027
      %1104 = vmatprep.subr.mxu0 0.0
      %1105 = vmatpush1.msra.mxu0 %v1028
      %1106 = vmatprep.subr.mxu0 0.0
      %1107 = vmatpush1.msra.mxu0 %v1086
      %1108 = vmatprep.subr.mxu0 0.0
      %1109 = vmatpush1.msra.mxu0 0.0
      %1110 = vmatprep.subr.mxu0 0.0
      %1111 = vmatpush1.msra.mxu0 0.0
      %1112 = vmatprep.subr.mxu0 0.0
      %1113 = vmatpush1.msra.mxu0 0.0
      %1114 = vmatprep.subr.mxu0 0.0
      %1115 = vmatpush1.msra.mxu0 0.0
      %1116 = vmatprep.subr.mxu0 0.0
      %1117 = vmatpush1.msra.mxu0 0.0
      %1118 = vmatprep.subr.mxu0 0.0
      %1119 = vmatpush1.msra.mxu0 0.0
      %1120 = vmatprep.subr.mxu0 0.0
      %1121 = vmatpush1.msra.mxu0 0.0
      %1122 = vmatprep.subr.mxu0 0.0
      %1123 = vmatpush1.msra.mxu0 0.0
      %1124 = vmatprep.subr.mxu0 0.0
      %1125 = vmatpush1.msra.mxu0 0.0
      %1126 = vmatprep.subr.mxu0 0.0
      %1127 = vmatpush1.msra.mxu0 0.0
      %1128 = vmatprep.subr.mxu0 0.0
      %1129 = vmatpush1.msra.mxu0 0.0
      %1130 = vmatprep.subr.mxu0 0.0
      %1131 = vmatpush1.msra.mxu0 0.0
      %1132 = vmatprep.subr.mxu0 0.0
      %1133 = vmatpush1.msra.mxu0 0.0
      %1134 = vmatprep.subr.mxu0 0.0
      %1135 = vmatpush1.msra.mxu0 0.0
      %1136 = vmatprep.subr.mxu0 0.0
      %1137 = vmatpush1.msra.mxu0 0.0
      %1138 = vmatprep.subr.mxu0 0.0
      %1139 = vmatpush1.msra.mxu0 0.0
      %1140 = vmatprep.subr.mxu0 0.0
      %1141 = vmatpush1.msra.mxu0 0.0
      %1142 = vmatprep.subr.mxu0 0.0
      %1143 = vmatpush1.msra.mxu0 0.0
      %1144 = vmatprep.subr.mxu0 0.0
      %1145 = vmatpush1.msra.mxu0 0.0
      %1146 = vmatprep.subr.mxu0 0.0
      %1147 = vmatpush1.msra.mxu0 0.0
      %1148 = vmatprep.subr.mxu0 0.0
      %1149 = vmatpush1.msra.mxu0 0.0
      %1150 = vmatprep.subr.mxu0 0.0
      %1151 = vmatpush1.msra.mxu0 0.0
      %1152 = vmatprep.mubr.f32.mxu0 0.0
      %1153 = vmatmul.mubr.f32.gmra.mrb[0].mxu0 %v1038
      %v1154 = vpop.f32.mrb[0].mxu0
      %v1155 = vadd.f32 %v1035, %v1154
      %v1156 = vpop.f32.mrb[0].mxu0
      %1157 = vmatprep.mubr.f32.mxu0 0.0
      %1158 = vmatmul.mubr.f32.gmra.mrb[0].mxu0 %v1041
      %v1159 = vpop.f32.mrb[0].mxu0
      %v1160 = vadd.f32 %v1035, %v1159
      %v1161 = vpop.f32.mrb[0].mxu0
      %1162 = vmatprep.mubr.f32.mxu0 0.0
      %1163 = vmatmul.mubr.f32.gmra.mrb[0].mxu0 %v1044
      %v1164 = vpop.f32.mrb[0].mxu0
      %v1165 = vadd.f32 %v1035, %v1164
      %v1166 = vpop.f32.mrb[0].mxu0
      %1167 = vmatprep.mubr.f32.mxu0 0.0
      %1168 = vmatmul.mubr.f32.gmra.mrb[0].mxu0 %v1047
      %v1169 = vpop.f32.mrb[0].mxu0
      %v1170 = vadd.f32 %v1035, %v1169
      %v1171 = vpop.f32.mrb[0].mxu0
      %1172 = vmatprep.mubr.f32.mxu0 0.0
      %1173 = vmatmul.mubr.f32.gmra.mrb[0].mxu0 %v1050
      %v1174 = vpop.f32.mrb[0].mxu0
      %v1175 = vadd.f32 %v1035, %v1174
      %v1176 = vpop.f32.mrb[0].mxu0
      %1177 = vmatprep.mubr.f32.mxu0 0.0
      %1178 = vmatmul.mubr.f32.gmra.mrb[0].mxu0 %v1053
      %v1179 = vpop.f32.mrb[0].mxu0
      %v1180 = vadd.f32 %v1035, %v1179
      %v1181 = vpop.f32.mrb[0].mxu0
      %1182 = vmatprep.mubr.f32.mxu0 0.0
      %1183 = vmatmul.mubr.f32.gmra.mrb[0].mxu0 %v1056
      %v1184 = vpop.f32.mrb[0].mxu0
      %v1185 = vadd.f32 %v1035, %v1184
      %v1186 = vpop.f32.mrb[0].mxu0
      %1187 = vmatprep.mubr.f32.mxu0 0.0
      %1188 = vmatmul.mubr.f32.gmra.mrb[0].mxu0 %v1059
      %v1189 = vpop.f32.mrb[0].mxu0
      %v1190 = vadd.f32 %v1035, %v1189
      %v1191 = vpop.f32.mrb[0].mxu0
      %1192 = vmatprep.mubr.f32.mxu0 0.0
      %1193 = vmatmul.mubr.f32.gmra.mrb[0].mxu0 %v1062
      %v1194 = vpop.f32.mrb[0].mxu0
      %v1195 = vadd.f32 %v1035, %v1194
      %v1196 = vpop.f32.mrb[0].mxu0
      %1197 = vmatprep.mubr.f32.mxu0 0.0
      %1198 = vmatmul.mubr.f32.gmra.mrb[0].mxu0 %v1065
      %v1199 = vpop.f32.mrb[0].mxu0
      %v1200 = vadd.f32 %v1035, %v1199
      %v1201 = vpop.f32.mrb[0].mxu0
      %1202 = vmatprep.mubr.f32.mxu0 0.0
      %1203 = vmatmul.mubr.f32.gmra.mrb[0].mxu0 %v1068
      %v1204 = vpop.f32.mrb[0].mxu0
      %v1205 = vadd.f32 %v1035, %v1204
      %v1206 = vpop.f32.mrb[0].mxu0
      %1207 = vmatprep.mubr.f32.mxu0 0.0
      %1208 = vmatmul.mubr.f32.gmra.mrb[0].mxu0 %v1071
      %v1209 = vpop.f32.mrb[0].mxu0
      %v1210 = vadd.f32 %v1035, %v1209
      %v1211 = vpop.f32.mrb[0].mxu0
      %1212 = vmatprep.mubr.f32.mxu0 0.0
      %1213 = vmatmul.mubr.f32.gmra.mrb[0].mxu0 %v1074
      %v1214 = vpop.f32.mrb[0].mxu0
      %v1215 = vadd.f32 %v1035, %v1214
      %v1216 = vpop.f32.mrb[0].mxu0
      %1217 = vmatprep.mubr.f32.mxu0 0.0
      %1218 = vmatmul.mubr.f32.gmra.mrb[0].mxu0 %v1077
      %v1219 = vpop.f32.mrb[0].mxu0
      %v1220 = vadd.f32 %v1035, %v1219
      %v1221 = vpop.f32.mrb[0].mxu0
      %1222 = vmatprep.mubr.f32.mxu0 0.0
      %1223 = vmatmul.mubr.f32.gmra.mrb[0].mxu0 %v1080
      %v1224 = vpop.f32.mrb[0].mxu0
      %v1225 = vadd.f32 %v1035, %v1224
      %v1226 = vpop.f32.mrb[0].mxu0
      %1227 = vmatprep.mubr.f32.mxu0 0.0
      %1228 = vmatmul.mubr.f32.gmra.mrb[0].mxu0 %v1083
      %v1229 = vpop.f32.mrb[0].mxu0
      %v1230 = vadd.f32 %v1035, %v1229
      %v1231 = vpop.f32.mrb[0].mxu0
      %1232 = vdwg.mxu0
      %vm1233 = vcmp.ge.f32.partialorder %v1155, 0.0
      %vm1234 = vcmp.ge.f32.partialorder %v1160, 0.0
      %vm1235 = vcmp.ge.f32.partialorder %v1165, 0.0
      %vm1236 = vcmp.ge.f32.partialorder %v1170, 0.0
      %vm1237 = vcmp.ge.f32.partialorder %v1175, 0.0
      %vm1238 = vcmp.ge.f32.partialorder %v1180, 0.0
      %vm1239 = vcmp.ge.f32.partialorder %v1185, 0.0
      %vm1240 = vcmp.ge.f32.partialorder %v1190, 0.0
      %vm1241 = vcmp.ge.f32.partialorder %v1195, 0.0
      %vm1242 = vcmp.ge.f32.partialorder %v1200, 0.0
      %vm1243 = vcmp.ge.f32.partialorder %v1205, 0.0
      %vm1244 = vcmp.ge.f32.partialorder %v1210, 0.0
      %vm1245 = vcmp.ge.f32.partialorder %v1215, 0.0
      %vm1246 = vcmp.ge.f32.partialorder %v1220, 0.0
      %vm1247 = vcmp.ge.f32.partialorder %v1225, 0.0
      %vm1248 = vcmp.ge.f32.partialorder %v1230, 0.0
      %v1249 = vmul.f32 %v1155, 0.01
      %v1250 = vmul.f32 %v1160, 0.01
      %v1251 = vmul.f32 %v1165, 0.01
      %v1252 = vmul.f32 %v1170, 0.01
      %v1253 = vmul.f32 %v1175, 0.01
      %v1254 = vmul.f32 %v1180, 0.01
      %v1255 = vmul.f32 %v1185, 0.01
      %v1256 = vmul.f32 %v1190, 0.01
      %v1257 = vmul.f32 %v1195, 0.01
      %v1258 = vmul.f32 %v1200, 0.01
      %v1259 = vmul.f32 %v1205, 0.01
      %v1260 = vmul.f32 %v1210, 0.01
      %v1261 = vmul.f32 %v1215, 0.01
      %v1262 = vmul.f32 %v1220, 0.01
      %v1263 = vmul.f32 %v1225, 0.01
      %v1264 = vmul.f32 %v1230, 0.01
      %v1265 = vsel %vm1233, %v1155, %v1249
      %v1266 = vsel %vm1234, %v1160, %v1250
      %v1267 = vsel %vm1235, %v1165, %v1251
      %v1268 = vsel %vm1236, %v1170, %v1252
      %v1269 = vsel %vm1237, %v1175, %v1253
      %v1270 = vsel %vm1238, %v1180, %v1254
      %v1271 = vsel %vm1239, %v1185, %v1255
      %v1272 = vsel %vm1240, %v1190, %v1256
      %v1273 = vsel %vm1241, %v1195, %v1257
      %v1274 = vsel %vm1242, %v1200, %v1258
      %v1275 = vsel %vm1243, %v1205, %v1259
      %v1276 = vsel %vm1244, %v1210, %v1260
      %v1277 = vsel %vm1245, %v1215, %v1261
      %v1278 = vsel %vm1246, %v1220, %v1262
      %v1279 = vsel %vm1247, %v1225, %v1263
      %v1280 = vsel %vm1248, %v1230, %v1264
      %1281 = vst.msk [vmem:[#allocation2 + $0x100] sm:$0xff] %vm694, %v1265
      %1282 = vst.msk [vmem:[#allocation2 + $0x108] sm:$0xff] %vm694, %v1266
      %1283 = vst.msk [vmem:[#allocation2 + $0x110] sm:$0xff] %vm694, %v1267
      %1284 = vst.msk [vmem:[#allocation2 + $0x118] sm:$0xff] %vm694, %v1268
      %1285 = vst.msk [vmem:[#allocation2 + $0x120] sm:$0xff] %vm694, %v1269
      %1286 = vst.msk [vmem:[#allocation2 + $0x128] sm:$0xff] %vm694, %v1270
      %1287 = vst.msk [vmem:[#allocation2 + $0x130] sm:$0xff] %vm694, %v1271
      %1288 = vst.msk [vmem:[#allocation2 + $0x138] sm:$0xff] %vm694, %v1272
      %1289 = vst.msk [vmem:[#allocation2 + $0x140] sm:$0xff] %vm694, %v1273
      %1290 = vst.msk [vmem:[#allocation2 + $0x148] sm:$0xff] %vm694, %v1274
      %1291 = vst.msk [vmem:[#allocation2 + $0x150] sm:$0xff] %vm694, %v1275
      %1292 = vst.msk [vmem:[#allocation2 + $0x158] sm:$0xff] %vm694, %v1276
      %1293 = vst.msk [vmem:[#allocation2 + $0x160] sm:$0xff] %vm694, %v1277
      %1294 = vst.msk [vmem:[#allocation2 + $0x168] sm:$0xff] %vm694, %v1278
      %1295 = vst.msk [vmem:[#allocation2 + $0x170] sm:$0xff] %vm694, %v1279
      %1296 = vst.msk [vmem:[#allocation2 + $0x178] sm:$0xff] %vm694, %v1280
      %v1297 = vld [vmem:[%s396 + $0x180] sm:$0xff]
      %v1298 = vld [vmem:[%s396 + $0x188] sm:$0xff]
      %v1299 = vld [vmem:[%s396 + $0x190] sm:$0xff]
      %v1300 = vld [vmem:[%s396 + $0x198] sm:$0xff]
      %v1301 = vld [vmem:[%s396 + $0x1a0] sm:$0xff]
      %v1302 = vld [vmem:[%s396 + $0x1a8] sm:$0xff]
      %v1303 = vld [vmem:[%s396 + $0x1b0] sm:$0xff]
      %v1304 = vld [vmem:[%s396 + $0x1b8] sm:$0xff]
      %v1305 = vld [vmem:[%s396 + $0x1c0] sm:$0xff]
      %v1306 = vld [vmem:[%s396 + $0x1c8] sm:$0xff]
      %v1307 = vld [vmem:[%s396 + $0x1d0] sm:$0xff]
      %v1308 = vld [vmem:[%s396 + $0x1d8] sm:$0xff]
      %v1309 = vld [vmem:[%s396 + $0x1e0] sm:$0xff]
      %v1310 = vld [vmem:[%s396 + $0x1e8] sm:$0xff]
      %v1311 = vld [vmem:[%s396 + $0x1f0] sm:$0xff]
      %v1312 = vld [vmem:[%s396 + $0x1f8] sm:$0xff]
      %v1313 = vld [vmem:[%s1] sm:$0xff]
      %v1314 = vld [vmem:[%s1 + $0x8] sm:$0xff]
      %v1315 = vld [vmem:[%s1 + $0x10] sm:$0xff]
      %v1316 = vld [vmem:[%s1 + $0x18] sm:$0xff]
      %v1317 = vld [vmem:[%s1 + $0x20] sm:$0xff]
      %v1318 = vld [vmem:[%s1 + $0x28] sm:$0xff]
      %v1319 = vld [vmem:[%s1 + $0x30] sm:$0xff]
      %v1320 = vld [vmem:[%s1 + $0x38] sm:$0xff]
      %v1321 = vld [vmem:[%s1 + $0x40] sm:$0xff]
      %v1322 = vld [vmem:[%s1 + $0x48] sm:$0x7]
      %v1323 = vld [vmem:[%s2] sm:$0x1]
      %v1325 = vlaneseq
      %v1326 = vshrl.u32 %v1325, 7
      %v1327 = vsub.s32 0, %v1326
      %v1328 = vrot.slane %v1323, %v1327
      %v1331 = vsel %vm448, %v1297, 0
      %v1334 = vsel %vm448, %v1298, 0
      %v1337 = vsel %vm448, %v1299, 0
      %v1340 = vsel %vm448, %v1300, 0
      %v1343 = vsel %vm448, %v1301, 0
      %v1346 = vsel %vm448, %v1302, 0
      %v1349 = vsel %vm448, %v1303, 0
      %v1352 = vsel %vm448, %v1304, 0
      %v1355 = vsel %vm448, %v1305, 0
      %v1358 = vsel %vm448, %v1306, 0
      %v1361 = vsel %vm448, %v1307, 0
      %v1364 = vsel %vm448, %v1308, 0
      %v1367 = vsel %vm448, %v1309, 0
      %v1370 = vsel %vm448, %v1310, 0
      %v1373 = vsel %vm448, %v1311, 0
      %v1376 = vsel %vm448, %v1312, 0
      %v1379 = vsel %vm497, %v1322, 0
      %1381 = vmatprep.subr.mxu0 0.0
      %1382 = vmatpush1.msra.mxu0 %v1313
      %1383 = vmatprep.subr.mxu0 0.0
      %1384 = vmatpush1.msra.mxu0 %v1314
      %1385 = vmatprep.subr.mxu0 0.0
      %1386 = vmatpush1.msra.mxu0 %v1315
      %1387 = vmatprep.subr.mxu0 0.0
      %1388 = vmatpush1.msra.mxu0 %v1316
      %1389 = vmatprep.subr.mxu0 0.0
      %1390 = vmatpush1.msra.mxu0 %v1317
      %1391 = vmatprep.subr.mxu0 0.0
      %1392 = vmatpush1.msra.mxu0 %v1318
      %1393 = vmatprep.subr.mxu0 0.0
      %1394 = vmatpush1.msra.mxu0 %v1319
      %1395 = vmatprep.subr.mxu0 0.0
      %1396 = vmatpush1.msra.mxu0 %v1320
      %1397 = vmatprep.subr.mxu0 0.0
      %1398 = vmatpush1.msra.mxu0 %v1321
      %1399 = vmatprep.subr.mxu0 0.0
      %1400 = vmatpush1.msra.mxu0 %v1379
      %1401 = vmatprep.subr.mxu0 0.0
      %1402 = vmatpush1.msra.mxu0 0.0
      %1403 = vmatprep.subr.mxu0 0.0
      %1404 = vmatpush1.msra.mxu0 0.0
      %1405 = vmatprep.subr.mxu0 0.0
      %1406 = vmatpush1.msra.mxu0 0.0
      %1407 = vmatprep.subr.mxu0 0.0
      %1408 = vmatpush1.msra.mxu0 0.0
      %1409 = vmatprep.subr.mxu0 0.0
      %1410 = vmatpush1.msra.mxu0 0.0
      %1411 = vmatprep.subr.mxu0 0.0
      %1412 = vmatpush1.msra.mxu0 0.0
      %1413 = vmatprep.subr.mxu0 0.0
      %1414 = vmatpush1.msra.mxu0 0.0
      %1415 = vmatprep.subr.mxu0 0.0
      %1416 = vmatpush1.msra.mxu0 0.0
      %1417 = vmatprep.subr.mxu0 0.0
      %1418 = vmatpush1.msra.mxu0 0.0
      %1419 = vmatprep.subr.mxu0 0.0
      %1420 = vmatpush1.msra.mxu0 0.0
      %1421 = vmatprep.subr.mxu0 0.0
      %1422 = vmatpush1.msra.mxu0 0.0
      %1423 = vmatprep.subr.mxu0 0.0
      %1424 = vmatpush1.msra.mxu0 0.0
      %1425 = vmatprep.subr.mxu0 0.0
      %1426 = vmatpush1.msra.mxu0 0.0
      %1427 = vmatprep.subr.mxu0 0.0
      %1428 = vmatpush1.msra.mxu0 0.0
      %1429 = vmatprep.subr.mxu0 0.0
      %1430 = vmatpush1.msra.mxu0 0.0
      %1431 = vmatprep.subr.mxu0 0.0
      %1432 = vmatpush1.msra.mxu0 0.0
      %1433 = vmatprep.subr.mxu0 0.0
      %1434 = vmatpush1.msra.mxu0 0.0
      %1435 = vmatprep.subr.mxu0 0.0
      %1436 = vmatpush1.msra.mxu0 0.0
      %1437 = vmatprep.subr.mxu0 0.0
      %1438 = vmatpush1.msra.mxu0 0.0
      %1439 = vmatprep.subr.mxu0 0.0
      %1440 = vmatpush1.msra.mxu0 0.0
      %1441 = vmatprep.subr.mxu0 0.0
      %1442 = vmatpush1.msra.mxu0 0.0
      %1443 = vmatprep.subr.mxu0 0.0
      %1444 = vmatpush1.msra.mxu0 0.0
      %1445 = vmatprep.mubr.f32.mxu0 0.0
      %1446 = vmatmul.mubr.f32.gmra.mrb[0].mxu0 %v1331
      %v1447 = vpop.f32.mrb[0].mxu0
      %v1448 = vadd.f32 %v1328, %v1447
      %v1449 = vpop.f32.mrb[0].mxu0
      %1450 = vmatprep.mubr.f32.mxu0 0.0
      %1451 = vmatmul.mubr.f32.gmra.mrb[0].mxu0 %v1334
      %v1452 = vpop.f32.mrb[0].mxu0
      %v1453 = vadd.f32 %v1328, %v1452
      %v1454 = vpop.f32.mrb[0].mxu0
      %1455 = vmatprep.mubr.f32.mxu0 0.0
      %1456 = vmatmul.mubr.f32.gmra.mrb[0].mxu0 %v1337
      %v1457 = vpop.f32.mrb[0].mxu0
      %v1458 = vadd.f32 %v1328, %v1457
      %v1459 = vpop.f32.mrb[0].mxu0
      %1460 = vmatprep.mubr.f32.mxu0 0.0
      %1461 = vmatmul.mubr.f32.gmra.mrb[0].mxu0 %v1340
      %v1462 = vpop.f32.mrb[0].mxu0
      %v1463 = vadd.f32 %v1328, %v1462
      %v1464 = vpop.f32.mrb[0].mxu0
      %1465 = vmatprep.mubr.f32.mxu0 0.0
      %1466 = vmatmul.mubr.f32.gmra.mrb[0].mxu0 %v1343
      %v1467 = vpop.f32.mrb[0].mxu0
      %v1468 = vadd.f32 %v1328, %v1467
      %v1469 = vpop.f32.mrb[0].mxu0
      %1470 = vmatprep.mubr.f32.mxu0 0.0
      %1471 = vmatmul.mubr.f32.gmra.mrb[0].mxu0 %v1346
      %v1472 = vpop.f32.mrb[0].mxu0
      %v1473 = vadd.f32 %v1328, %v1472
      %v1474 = vpop.f32.mrb[0].mxu0
      %1475 = vmatprep.mubr.f32.mxu0 0.0
      %1476 = vmatmul.mubr.f32.gmra.mrb[0].mxu0 %v1349
      %v1477 = vpop.f32.mrb[0].mxu0
      %v1478 = vadd.f32 %v1328, %v1477
      %v1479 = vpop.f32.mrb[0].mxu0
      %1480 = vmatprep.mubr.f32.mxu0 0.0
      %1481 = vmatmul.mubr.f32.gmra.mrb[0].mxu0 %v1352
      %v1482 = vpop.f32.mrb[0].mxu0
      %v1483 = vadd.f32 %v1328, %v1482
      %v1484 = vpop.f32.mrb[0].mxu0
      %1485 = vmatprep.mubr.f32.mxu0 0.0
      %1486 = vmatmul.mubr.f32.gmra.mrb[0].mxu0 %v1355
      %v1487 = vpop.f32.mrb[0].mxu0
      %v1488 = vadd.f32 %v1328, %v1487
      %v1489 = vpop.f32.mrb[0].mxu0
      %1490 = vmatprep.mubr.f32.mxu0 0.0
      %1491 = vmatmul.mubr.f32.gmra.mrb[0].mxu0 %v1358
      %v1492 = vpop.f32.mrb[0].mxu0
      %v1493 = vadd.f32 %v1328, %v1492
      %v1494 = vpop.f32.mrb[0].mxu0
      %1495 = vmatprep.mubr.f32.mxu0 0.0
      %1496 = vmatmul.mubr.f32.gmra.mrb[0].mxu0 %v1361
      %v1497 = vpop.f32.mrb[0].mxu0
      %v1498 = vadd.f32 %v1328, %v1497
      %v1499 = vpop.f32.mrb[0].mxu0
      %1500 = vmatprep.mubr.f32.mxu0 0.0
      %1501 = vmatmul.mubr.f32.gmra.mrb[0].mxu0 %v1364
      %v1502 = vpop.f32.mrb[0].mxu0
      %v1503 = vadd.f32 %v1328, %v1502
      %v1504 = vpop.f32.mrb[0].mxu0
      %1505 = vmatprep.mubr.f32.mxu0 0.0
      %1506 = vmatmul.mubr.f32.gmra.mrb[0].mxu0 %v1367
      %v1507 = vpop.f32.mrb[0].mxu0
      %v1508 = vadd.f32 %v1328, %v1507
      %v1509 = vpop.f32.mrb[0].mxu0
      %1510 = vmatprep.mubr.f32.mxu0 0.0
      %1511 = vmatmul.mubr.f32.gmra.mrb[0].mxu0 %v1370
      %v1512 = vpop.f32.mrb[0].mxu0
      %v1513 = vadd.f32 %v1328, %v1512
      %v1514 = vpop.f32.mrb[0].mxu0
      %1515 = vmatprep.mubr.f32.mxu0 0.0
      %1516 = vmatmul.mubr.f32.gmra.mrb[0].mxu0 %v1373
      %v1517 = vpop.f32.mrb[0].mxu0
      %v1518 = vadd.f32 %v1328, %v1517
      %v1519 = vpop.f32.mrb[0].mxu0
      %1520 = vmatprep.mubr.f32.mxu0 0.0
      %1521 = vmatmul.mubr.f32.gmra.mrb[0].mxu0 %v1376
      %v1522 = vpop.f32.mrb[0].mxu0
      %v1523 = vadd.f32 %v1328, %v1522
      %v1524 = vpop.f32.mrb[0].mxu0
      %1525 = vdwg.mxu0
      %vm1526 = vcmp.ge.f32.partialorder %v1448, 0.0
      %vm1527 = vcmp.ge.f32.partialorder %v1453, 0.0
      %vm1528 = vcmp.ge.f32.partialorder %v1458, 0.0
      %vm1529 = vcmp.ge.f32.partialorder %v1463, 0.0
      %vm1530 = vcmp.ge.f32.partialorder %v1468, 0.0
      %vm1531 = vcmp.ge.f32.partialorder %v1473, 0.0
      %vm1532 = vcmp.ge.f32.partialorder %v1478, 0.0
      %vm1533 = vcmp.ge.f32.partialorder %v1483, 0.0
      %vm1534 = vcmp.ge.f32.partialorder %v1488, 0.0
      %vm1535 = vcmp.ge.f32.partialorder %v1493, 0.0
      %vm1536 = vcmp.ge.f32.partialorder %v1498, 0.0
      %vm1537 = vcmp.ge.f32.partialorder %v1503, 0.0
      %vm1538 = vcmp.ge.f32.partialorder %v1508, 0.0
      %vm1539 = vcmp.ge.f32.partialorder %v1513, 0.0
      %vm1540 = vcmp.ge.f32.partialorder %v1518, 0.0
      %vm1541 = vcmp.ge.f32.partialorder %v1523, 0.0
      %v1542 = vmul.f32 %v1448, 0.01
      %v1543 = vmul.f32 %v1453, 0.01
      %v1544 = vmul.f32 %v1458, 0.01
      %v1545 = vmul.f32 %v1463, 0.01
      %v1546 = vmul.f32 %v1468, 0.01
      %v1547 = vmul.f32 %v1473, 0.01
      %v1548 = vmul.f32 %v1478, 0.01
      %v1549 = vmul.f32 %v1483, 0.01
      %v1550 = vmul.f32 %v1488, 0.01
      %v1551 = vmul.f32 %v1493, 0.01
      %v1552 = vmul.f32 %v1498, 0.01
      %v1553 = vmul.f32 %v1503, 0.01
      %v1554 = vmul.f32 %v1508, 0.01
      %v1555 = vmul.f32 %v1513, 0.01
      %v1556 = vmul.f32 %v1518, 0.01
      %v1557 = vmul.f32 %v1523, 0.01
      %v1558 = vsel %vm1526, %v1448, %v1542
      %v1559 = vsel %vm1527, %v1453, %v1543
      %v1560 = vsel %vm1528, %v1458, %v1544
      %v1561 = vsel %vm1529, %v1463, %v1545
      %v1562 = vsel %vm1530, %v1468, %v1546
      %v1563 = vsel %vm1531, %v1473, %v1547
      %v1564 = vsel %vm1532, %v1478, %v1548
      %v1565 = vsel %vm1533, %v1483, %v1549
      %v1566 = vsel %vm1534, %v1488, %v1550
      %v1567 = vsel %vm1535, %v1493, %v1551
      %v1568 = vsel %vm1536, %v1498, %v1552
      %v1569 = vsel %vm1537, %v1503, %v1553
      %v1570 = vsel %vm1538, %v1508, %v1554
      %v1571 = vsel %vm1539, %v1513, %v1555
      %v1572 = vsel %vm1540, %v1518, %v1556
      %v1573 = vsel %vm1541, %v1523, %v1557
      %1574 = vst.msk [vmem:[#allocation2 + $0x180] sm:$0xff] %vm694, %v1558
      %1575 = vst.msk [vmem:[#allocation2 + $0x188] sm:$0xff] %vm694, %v1559
      %1576 = vst.msk [vmem:[#allocation2 + $0x190] sm:$0xff] %vm694, %v1560
      %1577 = vst.msk [vmem:[#allocation2 + $0x198] sm:$0xff] %vm694, %v1561
      %1578 = vst.msk [vmem:[#allocation2 + $0x1a0] sm:$0xff] %vm694, %v1562
      %1579 = vst.msk [vmem:[#allocation2 + $0x1a8] sm:$0xff] %vm694, %v1563
      %1580 = vst.msk [vmem:[#allocation2 + $0x1b0] sm:$0xff] %vm694, %v1564
      %1581 = vst.msk [vmem:[#allocation2 + $0x1b8] sm:$0xff] %vm694, %v1565
      %1582 = vst.msk [vmem:[#allocation2 + $0x1c0] sm:$0xff] %vm694, %v1566
      %1583 = vst.msk [vmem:[#allocation2 + $0x1c8] sm:$0xff] %vm694, %v1567
      %1584 = vst.msk [vmem:[#allocation2 + $0x1d0] sm:$0xff] %vm694, %v1568
      %1585 = vst.msk [vmem:[#allocation2 + $0x1d8] sm:$0xff] %vm694, %v1569
      %1586 = vst.msk [vmem:[#allocation2 + $0x1e0] sm:$0xff] %vm694, %v1570
      %1587 = vst.msk [vmem:[#allocation2 + $0x1e8] sm:$0xff] %vm694, %v1571
      %1588 = vst.msk [vmem:[#allocation2 + $0x1f0] sm:$0xff] %vm694, %v1572
      %1589 = vst.msk [vmem:[#allocation2 + $0x1f8] sm:$0xff] %vm694, %v1573
      %1590 = vst.msk [vmem:[#allocation4] sm:$0xff] %vm694, 0.0
      %vm1591 = vcmask 256000
      %1592 = vst.msk [vmem:[#allocation4 + $0x8] sm:$0x7] %vm1591, 0.0
      %vm1593 = vcmask 254976
      %1594 = vst.msk [vmem:[#allocation4 + $0x13] sm:$0x3] %vm1593, 0.0
      %1595 = vst.msk [vmem:[#allocation4 + $0x1d] sm:$0x3] %vm1593, 0.0
      %1596 = vst.msk [vmem:[#allocation4 + $0x27] sm:$0x3] %vm1593, 0.0
      %1597 = vst.msk [vmem:[#allocation4 + $0x31] sm:$0x3] %vm1593, 0.0
      %1598 = vst.msk [vmem:[#allocation4 + $0x3b] sm:$0x3] %vm1593, 0.0
      %1599 = vst.msk [vmem:[#allocation4 + $0x45] sm:$0x3] %vm1593, 0.0
      %1600 = vst.msk [vmem:[#allocation4 + $0x4f] sm:$0x3] %vm1593, 0.0
      %1601 = vst.msk [vmem:[#allocation4 + $0x59] sm:$0xff] %vm694, 0.0
      %1602 = vst.msk [vmem:[#allocation4 + $0x61] sm:$0xff] %vm694, 0.0
      %vm1603 = vcmask 259072
      %1604 = vst.msk [vmem:[#allocation4 + $0x69] sm:$0x3f] %vm1603, 0.0
      %1605 = vst.msk [vmem:[#allocation4 + $0x77] sm:$0x3] %vm1593, 0.0
      %1606 = vst.msk [vmem:[#allocation4 + $0x81] sm:$0x3] %vm1593, 0.0
      %1607 = vst.msk [vmem:[#allocation4 + $0x8b] sm:$0x3] %vm1593, 0.0
      %1608 = vst.msk [vmem:[#allocation4 + $0x95] sm:$0x3] %vm1593, 0.0
      %1609 = vst.msk [vmem:[#allocation4 + $0x9f] sm:$0x3] %vm1593, 0.0
      %1610 = vst.msk [vmem:[#allocation4 + $0xa9] sm:$0x3] %vm1593, 0.0
      %1611 = vst.msk [vmem:[#allocation4 + $0xb3] sm:$0x3] %vm1593, 0.0
      %1612 = vst.msk [vmem:[#allocation4 + $0xbd] sm:$0xff] %vm694, 0.0
      %1613 = vst.msk [vmem:[#allocation4 + $0xc5] sm:$0xff] %vm694, 0.0
      %1614 = vst.msk [vmem:[#allocation4 + $0xcd] sm:$0xff] %vm694, 0.0
      %1615 = vst.msk [vmem:[#allocation4 + $0xd5] sm:$0xff] %vm694, 0.0
      %vm1616 = vcmask 253952
      %1617 = vst.msk [vmem:[#allocation4 + $0xdd] sm:$0x1] %vm1616, 0.0
      %vm1618 = vcmask 522240
      %1619 = vst.msk [vmem:[#allocation7] sm:$0x7f] %vm1618, 0.0
      %vm1620 = vcmask 517120
      %1621 = vst.msk [vmem:[#allocation7 + $0xb] sm:$0x3] %vm1620, 0.0
      %1622 = vst.msk [vmem:[#allocation7 + $0x11] sm:$0x3] %vm1620, 0.0
      %1623 = vst.msk [vmem:[#allocation7 + $0x17] sm:$0x3] %vm1620, 0.0
      %vm1624 = vcmask 523264
      %1625 = vst.msk [vmem:[#allocation7 + $0x1d] sm:$0xff] %vm1624, 0.0
      %vm1626 = vcmask 521216
      %1627 = vst.msk [vmem:[#allocation7 + $0x25] sm:$0x3f] %vm1626, 0.0
      %1628 = vst.msk [vmem:[#allocation7 + $0x2f] sm:$0x3] %vm1620, 0.0
      %1629 = vst.msk [vmem:[#allocation7 + $0x35] sm:$0x3] %vm1620, 0.0
      %1630 = vst.msk [vmem:[#allocation7 + $0x3b] sm:$0x3] %vm1620, 0.0
      %1631 = vst.msk [vmem:[#allocation7 + $0x41] sm:$0xff] %vm1624, 0.0
      %1632 = vst.msk [vmem:[#allocation7 + $0x49] sm:$0xff] %vm1624, 0.0
      %vm1633 = vcmask 520192
      %1634 = vst.msk [vmem:[#allocation7 + $0x51] sm:$0x1f] %vm1633, 0.0
      %v1635 = vld [vmem:[#allocation2] ss:$2 sm:$0xff]
      %s1636 = scalar_lea.vmem [#allocation2], 16
      %v1637 = vld [vmem:[%s1636] ss:$2 sm:$0xff]
      %s1638 = scalar_lea.vmem [#allocation2], 32
      %v1639 = vld [vmem:[%s1638] ss:$2 sm:$0xff]
      %s1640 = scalar_lea.vmem [#allocation2], 48
      %v1641 = vld [vmem:[%s1640] ss:$2 sm:$0xff]
      %s1642 = scalar_lea.vmem [#allocation2], 64
      %v1643 = vld [vmem:[%s1642] ss:$2 sm:$0xff]
      %s1644 = scalar_lea.vmem [#allocation2], 80
      %v1645 = vld [vmem:[%s1644] ss:$2 sm:$0xff]
      %s1646 = scalar_lea.vmem [#allocation2], 96
      %v1647 = vld [vmem:[%s1646] ss:$2 sm:$0xff]
      %s1648 = scalar_lea.vmem [#allocation2], 112
      %v1649 = vld [vmem:[%s1648] ss:$2 sm:$0xff]
      %s1650 = scalar_lea.vmem [#allocation2], 128
      %v1651 = vld [vmem:[%s1650] ss:$2 sm:$0xff]
      %s1652 = scalar_lea.vmem [#allocation2], 144
      %v1653 = vld [vmem:[%s1652] ss:$2 sm:$0xff]
      %s1654 = scalar_lea.vmem [#allocation2], 160
      %v1655 = vld [vmem:[%s1654] ss:$2 sm:$0xff]
      %s1656 = scalar_lea.vmem [#allocation2], 176
      %v1657 = vld [vmem:[%s1656] ss:$2 sm:$0xff]
      %s1658 = scalar_lea.vmem [#allocation2], 192
      %v1659 = vld [vmem:[%s1658] ss:$2 sm:$0xff]
      %s1660 = scalar_lea.vmem [#allocation2], 208
      %v1661 = vld [vmem:[%s1660] ss:$2 sm:$0xff]
      %s1662 = scalar_lea.vmem [#allocation2], 224
      %v1663 = vld [vmem:[%s1662] ss:$2 sm:$0xff]
      %s1664 = scalar_lea.vmem [#allocation2], 240
      %v1665 = vld [vmem:[%s1664] ss:$2 sm:$0xff]
      %s1666 = scalar_lea.vmem [#allocation2], 256
      %v1667 = vld [vmem:[%s1666] ss:$2 sm:$0xff]
      %s1668 = scalar_lea.vmem [#allocation2], 272
      %v1669 = vld [vmem:[%s1668] ss:$2 sm:$0xff]
      %s1670 = scalar_lea.vmem [#allocation2], 288
      %v1671 = vld [vmem:[%s1670] ss:$2 sm:$0xff]
      %s1672 = scalar_lea.vmem [#allocation2], 304
      %v1673 = vld [vmem:[%s1672] ss:$2 sm:$0xff]
      %s1674 = scalar_lea.vmem [#allocation2], 320
      %v1675 = vld [vmem:[%s1674] ss:$2 sm:$0xff]
      %s1676 = scalar_lea.vmem [#allocation2], 336
      %v1677 = vld [vmem:[%s1676] ss:$2 sm:$0xff]
      %s1678 = scalar_lea.vmem [#allocation2], 352
      %v1679 = vld [vmem:[%s1678] ss:$2 sm:$0xff]
      %s1680 = scalar_lea.vmem [#allocation2], 368
      %v1681 = vld [vmem:[%s1680] ss:$2 sm:$0xff]
      %s1682 = scalar_lea.vmem [#allocation2], 384
      %v1683 = vld [vmem:[%s1682] ss:$2 sm:$0xff]
      %s1684 = scalar_lea.vmem [#allocation2], 400
      %v1685 = vld [vmem:[%s1684] ss:$2 sm:$0xff]
      %s1686 = scalar_lea.vmem [#allocation2], 416
      %v1687 = vld [vmem:[%s1686] ss:$2 sm:$0xff]
      %s1688 = scalar_lea.vmem [#allocation2], 432
      %v1689 = vld [vmem:[%s1688] ss:$2 sm:$0xff]
      %s1690 = scalar_lea.vmem [#allocation2], 448
      %v1691 = vld [vmem:[%s1690] ss:$2 sm:$0xff]
      %s1692 = scalar_lea.vmem [#allocation2], 464
      %v1693 = vld [vmem:[%s1692] ss:$2 sm:$0xff]
      %s1694 = scalar_lea.vmem [#allocation2], 480
      %v1695 = vld [vmem:[%s1694] ss:$2 sm:$0xff]
      %s1696 = scalar_lea.vmem [#allocation2], 496
      %v1697 = vld [vmem:[%s1696] ss:$2 sm:$0xff]
      %s1698 = scalar_lea.vmem [#allocation2], 1
      %v1699 = vld [vmem:[%s1698] ss:$2 sm:$0xff]
      %s1700 = scalar_lea.vmem [#allocation2], 17
      %v1701 = vld [vmem:[%s1700] ss:$2 sm:$0xff]
      %s1702 = scalar_lea.vmem [#allocation2], 33
      %v1703 = vld [vmem:[%s1702] ss:$2 sm:$0xff]
      %s1704 = scalar_lea.vmem [#allocation2], 49
      %v1705 = vld [vmem:[%s1704] ss:$2 sm:$0xff]
      %s1706 = scalar_lea.vmem [#allocation2], 65
      %v1707 = vld [vmem:[%s1706] ss:$2 sm:$0xff]
      %s1708 = scalar_lea.vmem [#allocation2], 81
      %v1709 = vld [vmem:[%s1708] ss:$2 sm:$0xff]
      %s1710 = scalar_lea.vmem [#allocation2], 97
      %v1711 = vld [vmem:[%s1710] ss:$2 sm:$0xff]
      %s1712 = scalar_lea.vmem [#allocation2], 113
      %v1713 = vld [vmem:[%s1712] ss:$2 sm:$0xff]
      %s1714 = scalar_lea.vmem [#allocation2], 129
      %v1715 = vld [vmem:[%s1714] ss:$2 sm:$0xff]
      %s1716 = scalar_lea.vmem [#allocation2], 145
      %v1717 = vld [vmem:[%s1716] ss:$2 sm:$0xff]
      %s1718 = scalar_lea.vmem [#allocation2], 161
      %v1719 = vld [vmem:[%s1718] ss:$2 sm:$0xff]
      %s1720 = scalar_lea.vmem [#allocation2], 177
      %v1721 = vld [vmem:[%s1720] ss:$2 sm:$0xff]
      %s1722 = scalar_lea.vmem [#allocation2], 193
      %v1723 = vld [vmem:[%s1722] ss:$2 sm:$0xff]
      %s1724 = scalar_lea.vmem [#allocation2], 209
      %v1725 = vld [vmem:[%s1724] ss:$2 sm:$0xff]
      %s1726 = scalar_lea.vmem [#allocation2], 225
      %v1727 = vld [vmem:[%s1726] ss:$2 sm:$0xff]
      %s1728 = scalar_lea.vmem [#allocation2], 241
      %v1729 = vld [vmem:[%s1728] ss:$2 sm:$0xff]
      %s1730 = scalar_lea.vmem [#allocation2], 257
      %v1731 = vld [vmem:[%s1730] ss:$2 sm:$0xff]
      %s1732 = scalar_lea.vmem [#allocation2], 273
      %v1733 = vld [vmem:[%s1732] ss:$2 sm:$0xff]
      %s1734 = scalar_lea.vmem [#allocation2], 289
      %v1735 = vld [vmem:[%s1734] ss:$2 sm:$0xff]
      %s1736 = scalar_lea.vmem [#allocation2], 305
      %v1737 = vld [vmem:[%s1736] ss:$2 sm:$0xff]
      %s1738 = scalar_lea.vmem [#allocation2], 321
      %v1739 = vld [vmem:[%s1738] ss:$2 sm:$0xff]
      %s1740 = scalar_lea.vmem [#allocation2], 337
      %v1741 = vld [vmem:[%s1740] ss:$2 sm:$0xff]
      %s1742 = scalar_lea.vmem [#allocation2], 353
      %v1743 = vld [vmem:[%s1742] ss:$2 sm:$0xff]
      %s1744 = scalar_lea.vmem [#allocation2], 369
      %v1745 = vld [vmem:[%s1744] ss:$2 sm:$0xff]
      %s1746 = scalar_lea.vmem [#allocation2], 385
      %v1747 = vld [vmem:[%s1746] ss:$2 sm:$0xff]
      %s1748 = scalar_lea.vmem [#allocation2], 401
      %v1749 = vld [vmem:[%s1748] ss:$2 sm:$0xff]
      %s1750 = scalar_lea.vmem [#allocation2], 417
      %v1751 = vld [vmem:[%s1750] ss:$2 sm:$0xff]
      %s1752 = scalar_lea.vmem [#allocation2], 433
      %v1753 = vld [vmem:[%s1752] ss:$2 sm:$0xff]
      %s1754 = scalar_lea.vmem [#allocation2], 449
      %v1755 = vld [vmem:[%s1754] ss:$2 sm:$0xff]
      %s1756 = scalar_lea.vmem [#allocation2], 465
      %v1757 = vld [vmem:[%s1756] ss:$2 sm:$0xff]
      %s1758 = scalar_lea.vmem [#allocation2], 481
      %v1759 = vld [vmem:[%s1758] ss:$2 sm:$0xff]
      %s1760 = scalar_lea.vmem [#allocation2], 497
      %v1761 = vld [vmem:[%s1760] ss:$2 sm:$0xff]
      %v1762 = vmax.f32 %v1635, %v1699
      %v1763 = vmax.f32 %v1637, %v1701
      %v1764 = vmax.f32 %v1639, %v1703
      %v1765 = vmax.f32 %v1641, %v1705
      %v1766 = vmax.f32 %v1643, %v1707
      %v1767 = vmax.f32 %v1645, %v1709
      %v1768 = vmax.f32 %v1647, %v1711
      %v1769 = vmax.f32 %v1649, %v1713
      %v1770 = vmax.f32 %v1651, %v1715
      %v1771 = vmax.f32 %v1653, %v1717
      %v1772 = vmax.f32 %v1655, %v1719
      %v1773 = vmax.f32 %v1657, %v1721
      %v1774 = vmax.f32 %v1659, %v1723
      %v1775 = vmax.f32 %v1661, %v1725
      %v1776 = vmax.f32 %v1663, %v1727
      %v1777 = vmax.f32 %v1665, %v1729
      %v1778 = vmax.f32 %v1667, %v1731
      %v1779 = vmax.f32 %v1669, %v1733
      %v1780 = vmax.f32 %v1671, %v1735
      %v1781 = vmax.f32 %v1673, %v1737
      %v1782 = vmax.f32 %v1675, %v1739
      %v1783 = vmax.f32 %v1677, %v1741
      %v1784 = vmax.f32 %v1679, %v1743
      %v1785 = vmax.f32 %v1681, %v1745
      %v1786 = vmax.f32 %v1683, %v1747
      %v1787 = vmax.f32 %v1685, %v1749
      %v1788 = vmax.f32 %v1687, %v1751
      %v1789 = vmax.f32 %v1689, %v1753
      %v1790 = vmax.f32 %v1691, %v1755
      %v1791 = vmax.f32 %v1693, %v1757
      %v1792 = vmax.f32 %v1695, %v1759
      %v1793 = vmax.f32 %v1697, %v1761
      %1794 = vst.msk [vmem:[#allocation3] sm:$0xff] %vm694, %v1762
      %1795 = vst.msk [vmem:[#allocation3 + $0x8] sm:$0xff] %vm694, %v1763
      %1796 = vst.msk [vmem:[#allocation3 + $0x10] sm:$0xff] %vm694, %v1764
      %1797 = vst.msk [vmem:[#allocation3 + $0x18] sm:$0xff] %vm694, %v1765
      %1798 = vst.msk [vmem:[#allocation3 + $0x20] sm:$0xff] %vm694, %v1766
      %1799 = vst.msk [vmem:[#allocation3 + $0x28] sm:$0xff] %vm694, %v1767
      %1800 = vst.msk [vmem:[#allocation3 + $0x30] sm:$0xff] %vm694, %v1768
      %1801 = vst.msk [vmem:[#allocation3 + $0x38] sm:$0xff] %vm694, %v1769
      %1802 = vst.msk [vmem:[#allocation3 + $0x40] sm:$0xff] %vm694, %v1770
      %1803 = vst.msk [vmem:[#allocation3 + $0x48] sm:$0xff] %vm694, %v1771
      %1804 = vst.msk [vmem:[#allocation3 + $0x50] sm:$0xff] %vm694, %v1772
      %1805 = vst.msk [vmem:[#allocation3 + $0x58] sm:$0xff] %vm694, %v1773
      %1806 = vst.msk [vmem:[#allocation3 + $0x60] sm:$0xff] %vm694, %v1774
      %1807 = vst.msk [vmem:[#allocation3 + $0x68] sm:$0xff] %vm694, %v1775
      %1808 = vst.msk [vmem:[#allocation3 + $0x70] sm:$0xff] %vm694, %v1776
      %1809 = vst.msk [vmem:[#allocation3 + $0x78] sm:$0xff] %vm694, %v1777
      %1810 = vst.msk [vmem:[#allocation3 + $0x80] sm:$0xff] %vm694, %v1778
      %1811 = vst.msk [vmem:[#allocation3 + $0x88] sm:$0xff] %vm694, %v1779
      %1812 = vst.msk [vmem:[#allocation3 + $0x90] sm:$0xff] %vm694, %v1780
      %1813 = vst.msk [vmem:[#allocation3 + $0x98] sm:$0xff] %vm694, %v1781
      %1814 = vst.msk [vmem:[#allocation3 + $0xa0] sm:$0xff] %vm694, %v1782
      %1815 = vst.msk [vmem:[#allocation3 + $0xa8] sm:$0xff] %vm694, %v1783
      %1816 = vst.msk [vmem:[#allocation3 + $0xb0] sm:$0xff] %vm694, %v1784
      %1817 = vst.msk [vmem:[#allocation3 + $0xb8] sm:$0xff] %vm694, %v1785
      %1818 = vst.msk [vmem:[#allocation3 + $0xc0] sm:$0xff] %vm694, %v1786
      %1819 = vst.msk [vmem:[#allocation3 + $0xc8] sm:$0xff] %vm694, %v1787
      %1820 = vst.msk [vmem:[#allocation3 + $0xd0] sm:$0xff] %vm694, %v1788
      %1821 = vst.msk [vmem:[#allocation3 + $0xd8] sm:$0xff] %vm694, %v1789
      %1822 = vst.msk [vmem:[#allocation3 + $0xe0] sm:$0xff] %vm694, %v1790
      %1823 = vst.msk [vmem:[#allocation3 + $0xe8] sm:$0xff] %vm694, %v1791
      %1824 = vst.msk [vmem:[#allocation3 + $0xf0] sm:$0xff] %vm694, %v1792
      %1825 = vst.msk [vmem:[#allocation3 + $0xf8] sm:$0xff] %vm694, %v1793
      %v1826 = vld [vmem:[#allocation3] sm:$0xff]
      %v1827 = vld [vmem:[#allocation3 + $0x8] sm:$0xff]
      %v1828 = vmax.f32 %v1826, %v1827
      %1829 = vst.msk [vmem:[#allocation4 + $0xb] sm:$0xff] %vm694, %v1828
      %v1830 = vld [vmem:[#allocation3 + $0x10] sm:$0xff]
      %v1831 = vld [vmem:[#allocation3 + $0x18] sm:$0xff]
      %v1832 = vmax.f32 %v1830, %v1831
      %1833 = vst.msk [vmem:[#allocation4 + $0x15] sm:$0xff] %vm694, %v1832
      %v1834 = vld [vmem:[#allocation3 + $0x20] sm:$0xff]
      %v1835 = vld [vmem:[#allocation3 + $0x28] sm:$0xff]
      %v1836 = vmax.f32 %v1834, %v1835
      %1837 = vst.msk [vmem:[#allocation4 + $0x1f] sm:$0xff] %vm694, %v1836
      %v1838 = vld [vmem:[#allocation3 + $0x30] sm:$0xff]
      %v1839 = vld [vmem:[#allocation3 + $0x38] sm:$0xff]
      %v1840 = vmax.f32 %v1838, %v1839
      %1841 = vst.msk [vmem:[#allocation4 + $0x29] sm:$0xff] %vm694, %v1840
      %v1842 = vld [vmem:[#allocation3 + $0x40] sm:$0xff]
      %v1843 = vld [vmem:[#allocation3 + $0x48] sm:$0xff]
      %v1844 = vmax.f32 %v1842, %v1843
      %1845 = vst.msk [vmem:[#allocation4 + $0x33] sm:$0xff] %vm694, %v1844
      %v1846 = vld [vmem:[#allocation3 + $0x50] sm:$0xff]
      %v1847 = vld [vmem:[#allocation3 + $0x58] sm:$0xff]
      %v1848 = vmax.f32 %v1846, %v1847
      %1849 = vst.msk [vmem:[#allocation4 + $0x3d] sm:$0xff] %vm694, %v1848
      %v1850 = vld [vmem:[#allocation3 + $0x60] sm:$0xff]
      %v1851 = vld [vmem:[#allocation3 + $0x68] sm:$0xff]
      %v1852 = vmax.f32 %v1850, %v1851
      %1853 = vst.msk [vmem:[#allocation4 + $0x47] sm:$0xff] %vm694, %v1852
      %v1854 = vld [vmem:[#allocation3 + $0x70] sm:$0xff]
      %v1855 = vld [vmem:[#allocation3 + $0x78] sm:$0xff]
      %v1856 = vmax.f32 %v1854, %v1855
      %1857 = vst.msk [vmem:[#allocation4 + $0x51] sm:$0xff] %vm694, %v1856
      %v1858 = vld [vmem:[#allocation3 + $0x80] sm:$0xff]
      %v1859 = vld [vmem:[#allocation3 + $0x88] sm:$0xff]
      %v1860 = vmax.f32 %v1858, %v1859
      %1861 = vst.msk [vmem:[#allocation4 + $0x6f] sm:$0xff] %vm694, %v1860
      %v1862 = vld [vmem:[#allocation3 + $0x90] sm:$0xff]
      %v1863 = vld [vmem:[#allocation3 + $0x98] sm:$0xff]
      %v1864 = vmax.f32 %v1862, %v1863
      %1865 = vst.msk [vmem:[#allocation4 + $0x79] sm:$0xff] %vm694, %v1864
      %v1866 = vld [vmem:[#allocation3 + $0xa0] sm:$0xff]
      %v1867 = vld [vmem:[#allocation3 + $0xa8] sm:$0xff]
      %v1868 = vmax.f32 %v1866, %v1867
      %1869 = vst.msk [vmem:[#allocation4 + $0x83] sm:$0xff] %vm694, %v1868
      %v1870 = vld [vmem:[#allocation3 + $0xb0] sm:$0xff]
      %v1871 = vld [vmem:[#allocation3 + $0xb8] sm:$0xff]
      %v1872 = vmax.f32 %v1870, %v1871
      %1873 = vst.msk [vmem:[#allocation4 + $0x8d] sm:$0xff] %vm694, %v1872
      %v1874 = vld [vmem:[#allocation3 + $0xc0] sm:$0xff]
      %v1875 = vld [vmem:[#allocation3 + $0xc8] sm:$0xff]
      %v1876 = vmax.f32 %v1874, %v1875
      %1877 = vst.msk [vmem:[#allocation4 + $0x97] sm:$0xff] %vm694, %v1876
      %v1878 = vld [vmem:[#allocation3 + $0xd0] sm:$0xff]
      %v1879 = vld [vmem:[#allocation3 + $0xd8] sm:$0xff]
      %v1880 = vmax.f32 %v1878, %v1879
      %1881 = vst.msk [vmem:[#allocation4 + $0xa1] sm:$0xff] %vm694, %v1880
      %v1882 = vld [vmem:[#allocation3 + $0xe0] sm:$0xff]
      %v1883 = vld [vmem:[#allocation3 + $0xe8] sm:$0xff]
      %v1884 = vmax.f32 %v1882, %v1883
      %1885 = vst.msk [vmem:[#allocation4 + $0xab] sm:$0xff] %vm694, %v1884
      %v1886 = vld [vmem:[#allocation3 + $0xf0] sm:$0xff]
      %v1887 = vld [vmem:[#allocation3 + $0xf8] sm:$0xff]
      %v1888 = vmax.f32 %v1886, %v1887
      %1889 = vst.msk [vmem:[#allocation4 + $0xb5] sm:$0xff] %vm694, %v1888
      %v1890 = vld [vmem:[#allocation4] sm:$0xff]
      %v1891 = vld [vmem:[#allocation4 + $0x8] sm:$0xff]
      %v1892 = vld [vmem:[#allocation4 + $0x10] sm:$0xff]
      %v1893 = vld [vmem:[#allocation4 + $0x18] sm:$0xff]
      %v1894 = vld [vmem:[#allocation4 + $0x20] sm:$0xff]
      %v1895 = vld [vmem:[#allocation4 + $0x28] sm:$0xff]
      %v1896 = vld [vmem:[#allocation4 + $0x30] sm:$0xff]
      %v1897 = vld [vmem:[#allocation4 + $0x38] sm:$0xff]
      %v1898 = vld [vmem:[#allocation4 + $0x40] sm:$0xff]
      %v1899 = vld [vmem:[#allocation4 + $0x48] sm:$0xff]
      %v1900 = vld [vmem:[#allocation4 + $0x50] sm:$0xff]
      %v1901 = vld [vmem:[#allocation4 + $0x58] sm:$0xff]
      %v1902 = vld [vmem:[#allocation4 + $0x60] sm:$0xff]
      %v1903 = vld [vmem:[#allocation4 + $0x68] sm:$0xff]
      %v1904 = vld [vmem:[#allocation4 + $0x70] sm:$0xff]
      %v1905 = vld [vmem:[#allocation4 + $0x78] sm:$0xff]
      %v1906 = vld [vmem:[#allocation4 + $0x80] sm:$0xff]
      %v1907 = vld [vmem:[#allocation4 + $0x88] sm:$0xff]
      %v1908 = vld [vmem:[#allocation4 + $0x90] sm:$0xff]
      %v1909 = vld [vmem:[#allocation4 + $0x98] sm:$0xff]
      %v1910 = vld [vmem:[#allocation4 + $0xa0] sm:$0xff]
      %v1911 = vld [vmem:[#allocation4 + $0xa8] sm:$0xff]
      %v1912 = vld [vmem:[#allocation4 + $0xb0] sm:$0xff]
      %v1913 = vld [vmem:[#allocation4 + $0xb8] sm:$0xff]
      %v1914 = vld [vmem:[#allocation4 + $0xc0] sm:$0xff]
      %v1915 = vld [vmem:[%s3] sm:$0xff]
      %v1916 = vld [vmem:[%s3 + $0x8] sm:$0xff]
      %v1917 = vld [vmem:[%s3 + $0x10] sm:$0xff]
      %v1918 = vld [vmem:[%s3 + $0x18] sm:$0xff]
      %v1919 = vld [vmem:[#allocation4 + $0x1] sm:$0xff]
      %v1920 = vld [vmem:[#allocation4 + $0x9] sm:$0xff]
      %v1921 = vld [vmem:[#allocation4 + $0x11] sm:$0xff]
      %v1922 = vld [vmem:[#allocation4 + $0x19] sm:$0xff]
      %v1923 = vld [vmem:[#allocation4 + $0x21] sm:$0xff]
      %v1924 = vld [vmem:[#allocation4 + $0x29] sm:$0xff]
      %v1925 = vld [vmem:[#allocation4 + $0x31] sm:$0xff]
      %v1926 = vld [vmem:[#allocation4 + $0x39] sm:$0xff]
      %v1927 = vld [vmem:[#allocation4 + $0x41] sm:$0xff]
      %v1928 = vld [vmem:[#allocation4 + $0x49] sm:$0xff]
      %v1929 = vld [vmem:[#allocation4 + $0x51] sm:$0xff]
      %v1930 = vld [vmem:[#allocation4 + $0x59] sm:$0xff]
      %v1931 = vld [vmem:[#allocation4 + $0x61] sm:$0xff]
      %v1932 = vld [vmem:[#allocation4 + $0x69] sm:$0xff]
      %v1933 = vld [vmem:[#allocation4 + $0x71] sm:$0xff]
      %v1934 = vld [vmem:[#allocation4 + $0x79] sm:$0xff]
      %v1935 = vld [vmem:[#allocation4 + $0x81] sm:$0xff]
      %v1936 = vld [vmem:[#allocation4 + $0x89] sm:$0xff]
      %v1937 = vld [vmem:[#allocation4 + $0x91] sm:$0xff]
      %v1938 = vld [vmem:[#allocation4 + $0x99] sm:$0xff]
      %v1939 = vld [vmem:[#allocation4 + $0xa1] sm:$0xff]
      %v1940 = vld [vmem:[#allocation4 + $0xa9] sm:$0xff]
      %v1941 = vld [vmem:[#allocation4 + $0xb1] sm:$0xff]
      %v1942 = vld [vmem:[#allocation4 + $0xb9] sm:$0xff]
      %v1943 = vld [vmem:[#allocation4 + $0xc1] sm:$0xff]
      %s1944 = scalar_lea.vmem %s3, 32
      %v1945 = vld [vmem:[%s1944] sm:$0xff]
      %v1946 = vld [vmem:[%s1944 + $0x8] sm:$0xff]
      %v1947 = vld [vmem:[%s1944 + $0x10] sm:$0xff]
      %v1948 = vld [vmem:[%s1944 + $0x18] sm:$0xff]
      %v1950 = vsel %vm694, %v1919, 0
      %v1953 = vsel %vm694, %v1920, 0
      %v1956 = vsel %vm694, %v1921, 0
      %v1959 = vsel %vm694, %v1922, 0
      %v1962 = vsel %vm694, %v1923, 0
      %v1965 = vsel %vm694, %v1924, 0
      %v1968 = vsel %vm694, %v1925, 0
      %v1971 = vsel %vm694, %v1926, 0
      %v1974 = vsel %vm694, %v1927, 0
      %v1977 = vsel %vm694, %v1928, 0
      %v1980 = vsel %vm694, %v1929, 0
      %v1983 = vsel %vm694, %v1930, 0
      %v1986 = vsel %vm694, %v1931, 0
      %v1989 = vsel %vm694, %v1932, 0
      %v1992 = vsel %vm694, %v1933, 0
      %v1995 = vsel %vm694, %v1934, 0
      %v1998 = vsel %vm694, %v1935, 0
      %v2001 = vsel %vm694, %v1936, 0
      %v2004 = vsel %vm694, %v1937, 0
      %v2007 = vsel %vm694, %v1938, 0
      %v2010 = vsel %vm694, %v1939, 0
      %v2013 = vsel %vm694, %v1940, 0
      %v2016 = vsel %vm694, %v1941, 0
      %v2019 = vsel %vm694, %v1942, 0
      %v2022 = vsel %vm694, %v1943, 0
      %2024 = vmatprep.subr.mxu0 0.0
      %2025 = vmatpush1.msra.mxu0 %v1945
      %2026 = vmatprep.subr.mxu0 0.0
      %2027 = vmatpush1.msra.mxu0 %v1946
      %2028 = vmatprep.subr.mxu0 0.0
      %2029 = vmatpush1.msra.mxu0 %v1947
      %2030 = vmatprep.subr.mxu0 0.0
      %2031 = vmatpush1.msra.mxu0 %v1948
      %2032 = vmatprep.subr.mxu0 0.0
      %2033 = vmatpush1.msra.mxu0 0.0
      %2034 = vmatprep.subr.mxu0 0.0
      %2035 = vmatpush1.msra.mxu0 0.0
      %2036 = vmatprep.subr.mxu0 0.0
      %2037 = vmatpush1.msra.mxu0 0.0
      %2038 = vmatprep.subr.mxu0 0.0
      %2039 = vmatpush1.msra.mxu0 0.0
      %2040 = vmatprep.subr.mxu0 0.0
      %2041 = vmatpush1.msra.mxu0 0.0
      %2042 = vmatprep.subr.mxu0 0.0
      %2043 = vmatpush1.msra.mxu0 0.0
      %2044 = vmatprep.subr.mxu0 0.0
      %2045 = vmatpush1.msra.mxu0 0.0
      %2046 = vmatprep.subr.mxu0 0.0
      %2047 = vmatpush1.msra.mxu0 0.0
      %2048 = vmatprep.subr.mxu0 0.0
      %2049 = vmatpush1.msra.mxu0 0.0
      %2050 = vmatprep.subr.mxu0 0.0
      %2051 = vmatpush1.msra.mxu0 0.0
      %2052 = vmatprep.subr.mxu0 0.0
      %2053 = vmatpush1.msra.mxu0 0.0
      %2054 = vmatprep.subr.mxu0 0.0
      %2055 = vmatpush1.msra.mxu0 0.0
      %2056 = vmatprep.subr.mxu0 0.0
      %2057 = vmatpush1.msra.mxu0 0.0
      %2058 = vmatprep.subr.mxu0 0.0
      %2059 = vmatpush1.msra.mxu0 0.0
      %2060 = vmatprep.subr.mxu0 0.0
      %2061 = vmatpush1.msra.mxu0 0.0
      %2062 = vmatprep.subr.mxu0 0.0
      %2063 = vmatpush1.msra.mxu0 0.0
      %2064 = vmatprep.subr.mxu0 0.0
      %2065 = vmatpush1.msra.mxu0 0.0
      %2066 = vmatprep.subr.mxu0 0.0
      %2067 = vmatpush1.msra.mxu0 0.0
      %2068 = vmatprep.subr.mxu0 0.0
      %2069 = vmatpush1.msra.mxu0 0.0
      %2070 = vmatprep.subr.mxu0 0.0
      %2071 = vmatpush1.msra.mxu0 0.0
      %2072 = vmatprep.subr.mxu0 0.0
      %2073 = vmatpush1.msra.mxu0 0.0
      %2074 = vmatprep.subr.mxu0 0.0
      %2075 = vmatpush1.msra.mxu0 0.0
      %2076 = vmatprep.subr.mxu0 0.0
      %2077 = vmatpush1.msra.mxu0 0.0
      %2078 = vmatprep.subr.mxu0 0.0
      %2079 = vmatpush1.msra.mxu0 0.0
      %2080 = vmatprep.subr.mxu0 0.0
      %2081 = vmatpush1.msra.mxu0 0.0
      %2082 = vmatprep.subr.mxu0 0.0
      %2083 = vmatpush1.msra.mxu0 0.0
      %2084 = vmatprep.subr.mxu0 0.0
      %2085 = vmatpush1.msra.mxu0 0.0
      %2086 = vmatprep.subr.mxu0 0.0
      %2087 = vmatpush1.msra.mxu0 0.0
      %2088 = vmatprep.mubr.f32.mxu0 0.0
      %2089 = vmatmul.mubr.f32.gmra.mrb[0].mxu0 %v1950
      %v2090 = vpop.f32.mrb[0].mxu0
      %v2091 = vadd.f32 0.0, %v2090
      %v2092 = vpop.f32.mrb[0].mxu0
      %2093 = vmatprep.mubr.f32.mxu0 0.0
      %2094 = vmatmul.mubr.f32.gmra.mrb[0].mxu0 %v1953
      %v2095 = vpop.f32.mrb[0].mxu0
      %v2096 = vadd.f32 0.0, %v2095
      %v2097 = vpop.f32.mrb[0].mxu0
      %2098 = vmatprep.mubr.f32.mxu0 0.0
      %2099 = vmatmul.mubr.f32.gmra.mrb[0].mxu0 %v1956
      %v2100 = vpop.f32.mrb[0].mxu0
      %v2101 = vadd.f32 0.0, %v2100
      %v2102 = vpop.f32.mrb[0].mxu0
      %2103 = vmatprep.mubr.f32.mxu0 0.0
      %2104 = vmatmul.mubr.f32.gmra.mrb[0].mxu0 %v1959
      %v2105 = vpop.f32.mrb[0].mxu0
      %v2106 = vadd.f32 0.0, %v2105
      %v2107 = vpop.f32.mrb[0].mxu0
      %2108 = vmatprep.mubr.f32.mxu0 0.0
      %2109 = vmatmul.mubr.f32.gmra.mrb[0].mxu0 %v1962
      %v2110 = vpop.f32.mrb[0].mxu0
      %v2111 = vadd.f32 0.0, %v2110
      %v2112 = vpop.f32.mrb[0].mxu0
      %2113 = vmatprep.mubr.f32.mxu0 0.0
      %2114 = vmatmul.mubr.f32.gmra.mrb[0].mxu0 %v1965
      %v2115 = vpop.f32.mrb[0].mxu0
      %v2116 = vadd.f32 0.0, %v2115
      %v2117 = vpop.f32.mrb[0].mxu0
      %2118 = vmatprep.mubr.f32.mxu0 0.0
      %2119 = vmatmul.mubr.f32.gmra.mrb[0].mxu0 %v1968
      %v2120 = vpop.f32.mrb[0].mxu0
      %v2121 = vadd.f32 0.0, %v2120
      %v2122 = vpop.f32.mrb[0].mxu0
      %2123 = vmatprep.mubr.f32.mxu0 0.0
      %2124 = vmatmul.mubr.f32.gmra.mrb[0].mxu0 %v1971
      %v2125 = vpop.f32.mrb[0].mxu0
      %v2126 = vadd.f32 0.0, %v2125
      %v2127 = vpop.f32.mrb[0].mxu0
      %2128 = vmatprep.mubr.f32.mxu0 0.0
      %2129 = vmatmul.mubr.f32.gmra.mrb[0].mxu0 %v1974
      %v2130 = vpop.f32.mrb[0].mxu0
      %v2131 = vadd.f32 0.0, %v2130
      %v2132 = vpop.f32.mrb[0].mxu0
      %2133 = vmatprep.mubr.f32.mxu0 0.0
      %2134 = vmatmul.mubr.f32.gmra.mrb[0].mxu0 %v1977
      %v2135 = vpop.f32.mrb[0].mxu0
      %v2136 = vadd.f32 0.0, %v2135
      %v2137 = vpop.f32.mrb[0].mxu0
      %2138 = vmatprep.mubr.f32.mxu0 0.0
      %2139 = vmatmul.mubr.f32.gmra.mrb[0].mxu0 %v1980
      %v2140 = vpop.f32.mrb[0].mxu0
      %v2141 = vadd.f32 0.0, %v2140
      %v2142 = vpop.f32.mrb[0].mxu0
      %2143 = vmatprep.mubr.f32.mxu0 0.0
      %2144 = vmatmul.mubr.f32.gmra.mrb[0].mxu0 %v1983
      %v2145 = vpop.f32.mrb[0].mxu0
      %v2146 = vadd.f32 0.0, %v2145
      %v2147 = vpop.f32.mrb[0].mxu0
      %2148 = vmatprep.mubr.f32.mxu0 0.0
      %2149 = vmatmul.mubr.f32.gmra.mrb[0].mxu0 %v1986
      %v2150 = vpop.f32.mrb[0].mxu0
      %v2151 = vadd.f32 0.0, %v2150
      %v2152 = vpop.f32.mrb[0].mxu0
      %2153 = vmatprep.mubr.f32.mxu0 0.0
      %2154 = vmatmul.mubr.f32.gmra.mrb[0].mxu0 %v1989
      %v2155 = vpop.f32.mrb[0].mxu0
      %v2156 = vadd.f32 0.0, %v2155
      %v2157 = vpop.f32.mrb[0].mxu0
      %2158 = vmatprep.mubr.f32.mxu0 0.0
      %2159 = vmatmul.mubr.f32.gmra.mrb[0].mxu0 %v1992
      %v2160 = vpop.f32.mrb[0].mxu0
      %v2161 = vadd.f32 0.0, %v2160
      %v2162 = vpop.f32.mrb[0].mxu0
      %2163 = vmatprep.mubr.f32.mxu0 0.0
      %2164 = vmatmul.mubr.f32.gmra.mrb[0].mxu0 %v1995
      %v2165 = vpop.f32.mrb[0].mxu0
      %v2166 = vadd.f32 0.0, %v2165
      %v2167 = vpop.f32.mrb[0].mxu0
      %2168 = vmatprep.mubr.f32.mxu0 0.0
      %2169 = vmatmul.mubr.f32.gmra.mrb[0].mxu0 %v1998
      %v2170 = vpop.f32.mrb[0].mxu0
      %v2171 = vadd.f32 0.0, %v2170
      %v2172 = vpop.f32.mrb[0].mxu0
      %2173 = vmatprep.mubr.f32.mxu0 0.0
      %2174 = vmatmul.mubr.f32.gmra.mrb[0].mxu0 %v2001
      %v2175 = vpop.f32.mrb[0].mxu0
      %v2176 = vadd.f32 0.0, %v2175
      %v2177 = vpop.f32.mrb[0].mxu0
      %2178 = vmatprep.mubr.f32.mxu0 0.0
      %2179 = vmatmul.mubr.f32.gmra.mrb[0].mxu0 %v2004
      %v2180 = vpop.f32.mrb[0].mxu0
      %v2181 = vadd.f32 0.0, %v2180
      %v2182 = vpop.f32.mrb[0].mxu0
      %2183 = vmatprep.mubr.f32.mxu0 0.0
      %2184 = vmatmul.mubr.f32.gmra.mrb[0].mxu0 %v2007
      %v2185 = vpop.f32.mrb[0].mxu0
      %v2186 = vadd.f32 0.0, %v2185
      %v2187 = vpop.f32.mrb[0].mxu0
      %2188 = vmatprep.mubr.f32.mxu0 0.0
      %2189 = vmatmul.mubr.f32.gmra.mrb[0].mxu0 %v2010
      %v2190 = vpop.f32.mrb[0].mxu0
      %v2191 = vadd.f32 0.0, %v2190
      %v2192 = vpop.f32.mrb[0].mxu0
      %2193 = vmatprep.mubr.f32.mxu0 0.0
      %2194 = vmatmul.mubr.f32.gmra.mrb[0].mxu0 %v2013
      %v2195 = vpop.f32.mrb[0].mxu0
      %v2196 = vadd.f32 0.0, %v2195
      %v2197 = vpop.f32.mrb[0].mxu0
      %2198 = vmatprep.mubr.f32.mxu0 0.0
      %2199 = vmatmul.mubr.f32.gmra.mrb[0].mxu0 %v2016
      %v2200 = vpop.f32.mrb[0].mxu0
      %v2201 = vadd.f32 0.0, %v2200
      %v2202 = vpop.f32.mrb[0].mxu0
      %2203 = vmatprep.mubr.f32.mxu0 0.0
      %2204 = vmatmul.mubr.f32.gmra.mrb[0].mxu0 %v2019
      %v2205 = vpop.f32.mrb[0].mxu0
      %v2206 = vadd.f32 0.0, %v2205
      %v2207 = vpop.f32.mrb[0].mxu0
      %2208 = vmatprep.mubr.f32.mxu0 0.0
      %2209 = vmatmul.mubr.f32.gmra.mrb[0].mxu0 %v2022
      %v2210 = vpop.f32.mrb[0].mxu0
      %v2211 = vadd.f32 0.0, %v2210
      %v2212 = vpop.f32.mrb[0].mxu0
      %2213 = vdwg.mxu0
      %v2215 = vsel %vm694, %v1890, 0
      %v2218 = vsel %vm694, %v1891, 0
      %v2221 = vsel %vm694, %v1892, 0
      %v2224 = vsel %vm694, %v1893, 0
      %v2227 = vsel %vm694, %v1894, 0
      %v2230 = vsel %vm694, %v1895, 0
      %v2233 = vsel %vm694, %v1896, 0
      %v2236 = vsel %vm694, %v1897, 0
      %v2239 = vsel %vm694, %v1898, 0
      %v2242 = vsel %vm694, %v1899, 0
      %v2245 = vsel %vm694, %v1900, 0
      %v2248 = vsel %vm694, %v1901, 0
      %v2251 = vsel %vm694, %v1902, 0
      %v2254 = vsel %vm694, %v1903, 0
      %v2257 = vsel %vm694, %v1904, 0
      %v2260 = vsel %vm694, %v1905, 0
      %v2263 = vsel %vm694, %v1906, 0
      %v2266 = vsel %vm694, %v1907, 0
      %v2269 = vsel %vm694, %v1908, 0
      %v2272 = vsel %vm694, %v1909, 0
      %v2275 = vsel %vm694, %v1910, 0
      %v2278 = vsel %vm694, %v1911, 0
      %v2281 = vsel %vm694, %v1912, 0
      %v2284 = vsel %vm694, %v1913, 0
      %v2287 = vsel %vm694, %v1914, 0
      %2289 = vmatprep.subr.mxu0 0.0
      %2290 = vmatpush1.msra.mxu0 %v1915
      %2291 = vmatprep.subr.mxu0 0.0
      %2292 = vmatpush1.msra.mxu0 %v1916
      %2293 = vmatprep.subr.mxu0 0.0
      %2294 = vmatpush1.msra.mxu0 %v1917
      %2295 = vmatprep.subr.mxu0 0.0
      %2296 = vmatpush1.msra.mxu0 %v1918
      %2297 = vmatprep.subr.mxu0 0.0
      %2298 = vmatpush1.msra.mxu0 0.0
      %2299 = vmatprep.subr.mxu0 0.0
      %2300 = vmatpush1.msra.mxu0 0.0
      %2301 = vmatprep.subr.mxu0 0.0
      %2302 = vmatpush1.msra.mxu0 0.0
      %2303 = vmatprep.subr.mxu0 0.0
      %2304 = vmatpush1.msra.mxu0 0.0
      %2305 = vmatprep.subr.mxu0 0.0
      %2306 = vmatpush1.msra.mxu0 0.0
      %2307 = vmatprep.subr.mxu0 0.0
      %2308 = vmatpush1.msra.mxu0 0.0
      %2309 = vmatprep.subr.mxu0 0.0
      %2310 = vmatpush1.msra.mxu0 0.0
      %2311 = vmatprep.subr.mxu0 0.0
      %2312 = vmatpush1.msra.mxu0 0.0
      %2313 = vmatprep.subr.mxu0 0.0
      %2314 = vmatpush1.msra.mxu0 0.0
      %2315 = vmatprep.subr.mxu0 0.0
      %2316 = vmatpush1.msra.mxu0 0.0
      %2317 = vmatprep.subr.mxu0 0.0
      %2318 = vmatpush1.msra.mxu0 0.0
      %2319 = vmatprep.subr.mxu0 0.0
      %2320 = vmatpush1.msra.mxu0 0.0
      %2321 = vmatprep.subr.mxu0 0.0
      %2322 = vmatpush1.msra.mxu0 0.0
      %2323 = vmatprep.subr.mxu0 0.0
      %2324 = vmatpush1.msra.mxu0 0.0
      %2325 = vmatprep.subr.mxu0 0.0
      %2326 = vmatpush1.msra.mxu0 0.0
      %2327 = vmatprep.subr.mxu0 0.0
      %2328 = vmatpush1.msra.mxu0 0.0
      %2329 = vmatprep.subr.mxu0 0.0
      %2330 = vmatpush1.msra.mxu0 0.0
      %2331 = vmatprep.subr.mxu0 0.0
      %2332 = vmatpush1.msra.mxu0 0.0
      %2333 = vmatprep.subr.mxu0 0.0
      %2334 = vmatpush1.msra.mxu0 0.0
      %2335 = vmatprep.subr.mxu0 0.0
      %2336 = vmatpush1.msra.mxu0 0.0
      %2337 = vmatprep.subr.mxu0 0.0
      %2338 = vmatpush1.msra.mxu0 0.0
      %2339 = vmatprep.subr.mxu0 0.0
      %2340 = vmatpush1.msra.mxu0 0.0
      %2341 = vmatprep.subr.mxu0 0.0
      %2342 = vmatpush1.msra.mxu0 0.0
      %2343 = vmatprep.subr.mxu0 0.0
      %2344 = vmatpush1.msra.mxu0 0.0
      %2345 = vmatprep.subr.mxu0 0.0
      %2346 = vmatpush1.msra.mxu0 0.0
      %2347 = vmatprep.subr.mxu0 0.0
      %2348 = vmatpush1.msra.mxu0 0.0
      %2349 = vmatprep.subr.mxu0 0.0
      %2350 = vmatpush1.msra.mxu0 0.0
      %2351 = vmatprep.subr.mxu0 0.0
      %2352 = vmatpush1.msra.mxu0 0.0
      %2353 = vmatprep.mubr.f32.mxu0 0.0
      %2354 = vmatmul.mubr.f32.gmra.mrb[0].mxu0 %v2215
      %v2355 = vpop.f32.mrb[0].mxu0
      %v2356 = vadd.f32 %v2091, %v2355
      %v2357 = vpop.f32.mrb[0].mxu0
      %2358 = vmatprep.mubr.f32.mxu0 0.0
      %2359 = vmatmul.mubr.f32.gmra.mrb[0].mxu0 %v2218
      %v2360 = vpop.f32.mrb[0].mxu0
      %v2361 = vadd.f32 %v2096, %v2360
      %v2362 = vpop.f32.mrb[0].mxu0
      %2363 = vmatprep.mubr.f32.mxu0 0.0
      %2364 = vmatmul.mubr.f32.gmra.mrb[0].mxu0 %v2221
      %v2365 = vpop.f32.mrb[0].mxu0
      %v2366 = vadd.f32 %v2101, %v2365
      %v2367 = vpop.f32.mrb[0].mxu0
      %2368 = vmatprep.mubr.f32.mxu0 0.0
      %2369 = vmatmul.mubr.f32.gmra.mrb[0].mxu0 %v2224
      %v2370 = vpop.f32.mrb[0].mxu0
      %v2371 = vadd.f32 %v2106, %v2370
      %v2372 = vpop.f32.mrb[0].mxu0
      %2373 = vmatprep.mubr.f32.mxu0 0.0
      %2374 = vmatmul.mubr.f32.gmra.mrb[0].mxu0 %v2227
      %v2375 = vpop.f32.mrb[0].mxu0
      %v2376 = vadd.f32 %v2111, %v2375
      %v2377 = vpop.f32.mrb[0].mxu0
      %2378 = vmatprep.mubr.f32.mxu0 0.0
      %2379 = vmatmul.mubr.f32.gmra.mrb[0].mxu0 %v2230
      %v2380 = vpop.f32.mrb[0].mxu0
      %v2381 = vadd.f32 %v2116, %v2380
      %v2382 = vpop.f32.mrb[0].mxu0
      %2383 = vmatprep.mubr.f32.mxu0 0.0
      %2384 = vmatmul.mubr.f32.gmra.mrb[0].mxu0 %v2233
      %v2385 = vpop.f32.mrb[0].mxu0
      %v2386 = vadd.f32 %v2121, %v2385
      %v2387 = vpop.f32.mrb[0].mxu0
      %2388 = vmatprep.mubr.f32.mxu0 0.0
      %2389 = vmatmul.mubr.f32.gmra.mrb[0].mxu0 %v2236
      %v2390 = vpop.f32.mrb[0].mxu0
      %v2391 = vadd.f32 %v2126, %v2390
      %v2392 = vpop.f32.mrb[0].mxu0
      %2393 = vmatprep.mubr.f32.mxu0 0.0
      %2394 = vmatmul.mubr.f32.gmra.mrb[0].mxu0 %v2239
      %v2395 = vpop.f32.mrb[0].mxu0
      %v2396 = vadd.f32 %v2131, %v2395
      %v2397 = vpop.f32.mrb[0].mxu0
      %2398 = vmatprep.mubr.f32.mxu0 0.0
      %2399 = vmatmul.mubr.f32.gmra.mrb[0].mxu0 %v2242
      %v2400 = vpop.f32.mrb[0].mxu0
      %v2401 = vadd.f32 %v2136, %v2400
      %v2402 = vpop.f32.mrb[0].mxu0
      %2403 = vmatprep.mubr.f32.mxu0 0.0
      %2404 = vmatmul.mubr.f32.gmra.mrb[0].mxu0 %v2245
      %v2405 = vpop.f32.mrb[0].mxu0
      %v2406 = vadd.f32 %v2141, %v2405
      %v2407 = vpop.f32.mrb[0].mxu0
      %2408 = vmatprep.mubr.f32.mxu0 0.0
      %2409 = vmatmul.mubr.f32.gmra.mrb[0].mxu0 %v2248
      %v2410 = vpop.f32.mrb[0].mxu0
      %v2411 = vadd.f32 %v2146, %v2410
      %v2412 = vpop.f32.mrb[0].mxu0
      %2413 = vmatprep.mubr.f32.mxu0 0.0
      %2414 = vmatmul.mubr.f32.gmra.mrb[0].mxu0 %v2251
      %v2415 = vpop.f32.mrb[0].mxu0
      %v2416 = vadd.f32 %v2151, %v2415
      %v2417 = vpop.f32.mrb[0].mxu0
      %2418 = vmatprep.mubr.f32.mxu0 0.0
      %2419 = vmatmul.mubr.f32.gmra.mrb[0].mxu0 %v2254
      %v2420 = vpop.f32.mrb[0].mxu0
      %v2421 = vadd.f32 %v2156, %v2420
      %v2422 = vpop.f32.mrb[0].mxu0
      %2423 = vmatprep.mubr.f32.mxu0 0.0
      %2424 = vmatmul.mubr.f32.gmra.mrb[0].mxu0 %v2257
      %v2425 = vpop.f32.mrb[0].mxu0
      %v2426 = vadd.f32 %v2161, %v2425
      %v2427 = vpop.f32.mrb[0].mxu0
      %2428 = vmatprep.mubr.f32.mxu0 0.0
      %2429 = vmatmul.mubr.f32.gmra.mrb[0].mxu0 %v2260
      %v2430 = vpop.f32.mrb[0].mxu0
      %v2431 = vadd.f32 %v2166, %v2430
      %v2432 = vpop.f32.mrb[0].mxu0
      %2433 = vmatprep.mubr.f32.mxu0 0.0
      %2434 = vmatmul.mubr.f32.gmra.mrb[0].mxu0 %v2263
      %v2435 = vpop.f32.mrb[0].mxu0
      %v2436 = vadd.f32 %v2171, %v2435
      %v2437 = vpop.f32.mrb[0].mxu0
      %2438 = vmatprep.mubr.f32.mxu0 0.0
      %2439 = vmatmul.mubr.f32.gmra.mrb[0].mxu0 %v2266
      %v2440 = vpop.f32.mrb[0].mxu0
      %v2441 = vadd.f32 %v2176, %v2440
      %v2442 = vpop.f32.mrb[0].mxu0
      %2443 = vmatprep.mubr.f32.mxu0 0.0
      %2444 = vmatmul.mubr.f32.gmra.mrb[0].mxu0 %v2269
      %v2445 = vpop.f32.mrb[0].mxu0
      %v2446 = vadd.f32 %v2181, %v2445
      %v2447 = vpop.f32.mrb[0].mxu0
      %2448 = vmatprep.mubr.f32.mxu0 0.0
      %2449 = vmatmul.mubr.f32.gmra.mrb[0].mxu0 %v2272
      %v2450 = vpop.f32.mrb[0].mxu0
      %v2451 = vadd.f32 %v2186, %v2450
      %v2452 = vpop.f32.mrb[0].mxu0
      %2453 = vmatprep.mubr.f32.mxu0 0.0
      %2454 = vmatmul.mubr.f32.gmra.mrb[0].mxu0 %v2275
      %v2455 = vpop.f32.mrb[0].mxu0
      %v2456 = vadd.f32 %v2191, %v2455
      %v2457 = vpop.f32.mrb[0].mxu0
      %2458 = vmatprep.mubr.f32.mxu0 0.0
      %2459 = vmatmul.mubr.f32.gmra.mrb[0].mxu0 %v2278
      %v2460 = vpop.f32.mrb[0].mxu0
      %v2461 = vadd.f32 %v2196, %v2460
      %v2462 = vpop.f32.mrb[0].mxu0
      %2463 = vmatprep.mubr.f32.mxu0 0.0
      %2464 = vmatmul.mubr.f32.gmra.mrb[0].mxu0 %v2281
      %v2465 = vpop.f32.mrb[0].mxu0
      %v2466 = vadd.f32 %v2201, %v2465
      %v2467 = vpop.f32.mrb[0].mxu0
      %2468 = vmatprep.mubr.f32.mxu0 0.0
      %2469 = vmatmul.mubr.f32.gmra.mrb[0].mxu0 %v2284
      %v2470 = vpop.f32.mrb[0].mxu0
      %v2471 = vadd.f32 %v2206, %v2470
      %v2472 = vpop.f32.mrb[0].mxu0
      %2473 = vmatprep.mubr.f32.mxu0 0.0
      %2474 = vmatmul.mubr.f32.gmra.mrb[0].mxu0 %v2287
      %v2475 = vpop.f32.mrb[0].mxu0
      %v2476 = vadd.f32 %v2211, %v2475
      %v2477 = vpop.f32.mrb[0].mxu0
      %2478 = vdwg.mxu0
      %v2479 = vld [vmem:[#allocation4 + $0x2] sm:$0xff]
      %v2480 = vld [vmem:[#allocation4 + $0xa] sm:$0xff]
      %v2481 = vld [vmem:[#allocation4 + $0x12] sm:$0xff]
      %v2482 = vld [vmem:[#allocation4 + $0x1a] sm:$0xff]
      %v2483 = vld [vmem:[#allocation4 + $0x22] sm:$0xff]
      %v2484 = vld [vmem:[#allocation4 + $0x2a] sm:$0xff]
      %v2485 = vld [vmem:[#allocation4 + $0x32] sm:$0xff]
      %v2486 = vld [vmem:[#allocation4 + $0x3a] sm:$0xff]
      %v2487 = vld [vmem:[#allocation4 + $0x42] sm:$0xff]
      %v2488 = vld [vmem:[#allocation4 + $0x4a] sm:$0xff]
      %v2489 = vld [vmem:[#allocation4 + $0x52] sm:$0xff]
      %v2490 = vld [vmem:[#allocation4 + $0x5a] sm:$0xff]
      %v2491 = vld [vmem:[#allocation4 + $0x62] sm:$0xff]
      %v2492 = vld [vmem:[#allocation4 + $0x6a] sm:$0xff]
      %v2493 = vld [vmem:[#allocation4 + $0x72] sm:$0xff]
      %v2494 = vld [vmem:[#allocation4 + $0x7a] sm:$0xff]
      %v2495 = vld [vmem:[#allocation4 + $0x82] sm:$0xff]
      %v2496 = vld [vmem:[#allocation4 + $0x8a] sm:$0xff]
      %v2497 = vld [vmem:[#allocation4 + $0x92] sm:$0xff]
      %v2498 = vld [vmem:[#allocation4 + $0x9a] sm:$0xff]
      %v2499 = vld [vmem:[#allocation4 + $0xa2] sm:$0xff]
      %v2500 = vld [vmem:[#allocation4 + $0xaa] sm:$0xff]
      %v2501 = vld [vmem:[#allocation4 + $0xb2] sm:$0xff]
      %v2502 = vld [vmem:[#allocation4 + $0xba] sm:$0xff]
      %v2503 = vld [vmem:[#allocation4 + $0xc2] sm:$0xff]
      %s2504 = scalar_lea.vmem %s3, 64
      %v2505 = vld [vmem:[%s2504] sm:$0xff]
      %v2506 = vld [vmem:[%s2504 + $0x8] sm:$0xff]
      %v2507 = vld [vmem:[%s2504 + $0x10] sm:$0xff]
      %v2508 = vld [vmem:[%s2504 + $0x18] sm:$0xff]
      %v2510 = vsel %vm694, %v2479, 0
      %v2513 = vsel %vm694, %v2480, 0
      %v2516 = vsel %vm694, %v2481, 0
      %v2519 = vsel %vm694, %v2482, 0
      %v2522 = vsel %vm694, %v2483, 0
      %v2525 = vsel %vm694, %v2484, 0
      %v2528 = vsel %vm694, %v2485, 0
      %v2531 = vsel %vm694, %v2486, 0
      %v2534 = vsel %vm694, %v2487, 0
      %v2537 = vsel %vm694, %v2488, 0
      %v2540 = vsel %vm694, %v2489, 0
      %v2543 = vsel %vm694, %v2490, 0
      %v2546 = vsel %vm694, %v2491, 0
      %v2549 = vsel %vm694, %v2492, 0
      %v2552 = vsel %vm694, %v2493, 0
      %v2555 = vsel %vm694, %v2494, 0
      %v2558 = vsel %vm694, %v2495, 0
      %v2561 = vsel %vm694, %v2496, 0
      %v2564 = vsel %vm694, %v2497, 0
      %v2567 = vsel %vm694, %v2498, 0
      %v2570 = vsel %vm694, %v2499, 0
      %v2573 = vsel %vm694, %v2500, 0
      %v2576 = vsel %vm694, %v2501, 0
      %v2579 = vsel %vm694, %v2502, 0
      %v2582 = vsel %vm694, %v2503, 0
      %2584 = vmatprep.subr.mxu0 0.0
      %2585 = vmatpush1.msra.mxu0 %v2505
      %2586 = vmatprep.subr.mxu0 0.0
      %2587 = vmatpush1.msra.mxu0 %v2506
      %2588 = vmatprep.subr.mxu0 0.0
      %2589 = vmatpush1.msra.mxu0 %v2507
      %2590 = vmatprep.subr.mxu0 0.0
      %2591 = vmatpush1.msra.mxu0 %v2508
      %2592 = vmatprep.subr.mxu0 0.0
      %2593 = vmatpush1.msra.mxu0 0.0
      %2594 = vmatprep.subr.mxu0 0.0
      %2595 = vmatpush1.msra.mxu0 0.0
      %2596 = vmatprep.subr.mxu0 0.0
      %2597 = vmatpush1.msra.mxu0 0.0
      %2598 = vmatprep.subr.mxu0 0.0
      %2599 = vmatpush1.msra.mxu0 0.0
      %2600 = vmatprep.subr.mxu0 0.0
      %2601 = vmatpush1.msra.mxu0 0.0
      %2602 = vmatprep.subr.mxu0 0.0
      %2603 = vmatpush1.msra.mxu0 0.0
      %2604 = vmatprep.subr.mxu0 0.0
      %2605 = vmatpush1.msra.mxu0 0.0
      %2606 = vmatprep.subr.mxu0 0.0
      %2607 = vmatpush1.msra.mxu0 0.0
      %2608 = vmatprep.subr.mxu0 0.0
      %2609 = vmatpush1.msra.mxu0 0.0
      %2610 = vmatprep.subr.mxu0 0.0
      %2611 = vmatpush1.msra.mxu0 0.0
      %2612 = vmatprep.subr.mxu0 0.0
      %2613 = vmatpush1.msra.mxu0 0.0
      %2614 = vmatprep.subr.mxu0 0.0
      %2615 = vmatpush1.msra.mxu0 0.0
      %2616 = vmatprep.subr.mxu0 0.0
      %2617 = vmatpush1.msra.mxu0 0.0
      %2618 = vmatprep.subr.mxu0 0.0
      %2619 = vmatpush1.msra.mxu0 0.0
      %2620 = vmatprep.subr.mxu0 0.0
      %2621 = vmatpush1.msra.mxu0 0.0
      %2622 = vmatprep.subr.mxu0 0.0
      %2623 = vmatpush1.msra.mxu0 0.0
      %2624 = vmatprep.subr.mxu0 0.0
      %2625 = vmatpush1.msra.mxu0 0.0
      %2626 = vmatprep.subr.mxu0 0.0
      %2627 = vmatpush1.msra.mxu0 0.0
      %2628 = vmatprep.subr.mxu0 0.0
      %2629 = vmatpush1.msra.mxu0 0.0
      %2630 = vmatprep.subr.mxu0 0.0
      %2631 = vmatpush1.msra.mxu0 0.0
      %2632 = vmatprep.subr.mxu0 0.0
      %2633 = vmatpush1.msra.mxu0 0.0
      %2634 = vmatprep.subr.mxu0 0.0
      %2635 = vmatpush1.msra.mxu0 0.0
      %2636 = vmatprep.subr.mxu0 0.0
      %2637 = vmatpush1.msra.mxu0 0.0
      %2638 = vmatprep.subr.mxu0 0.0
      %2639 = vmatpush1.msra.mxu0 0.0
      %2640 = vmatprep.subr.mxu0 0.0
      %2641 = vmatpush1.msra.mxu0 0.0
      %2642 = vmatprep.subr.mxu0 0.0
      %2643 = vmatpush1.msra.mxu0 0.0
      %2644 = vmatprep.subr.mxu0 0.0
      %2645 = vmatpush1.msra.mxu0 0.0
      %2646 = vmatprep.subr.mxu0 0.0
      %2647 = vmatpush1.msra.mxu0 0.0
      %2648 = vmatprep.mubr.f32.mxu0 0.0
      %2649 = vmatmul.mubr.f32.gmra.mrb[0].mxu0 %v2510
      %v2650 = vpop.f32.mrb[0].mxu0
      %v2651 = vadd.f32 0.0, %v2650
      %v2652 = vpop.f32.mrb[0].mxu0
      %2653 = vmatprep.mubr.f32.mxu0 0.0
      %2654 = vmatmul.mubr.f32.gmra.mrb[0].mxu0 %v2513
      %v2655 = vpop.f32.mrb[0].mxu0
      %v2656 = vadd.f32 0.0, %v2655
      %v2657 = vpop.f32.mrb[0].mxu0
      %2658 = vmatprep.mubr.f32.mxu0 0.0
      %2659 = vmatmul.mubr.f32.gmra.mrb[0].mxu0 %v2516
      %v2660 = vpop.f32.mrb[0].mxu0
      %v2661 = vadd.f32 0.0, %v2660
      %v2662 = vpop.f32.mrb[0].mxu0
      %2663 = vmatprep.mubr.f32.mxu0 0.0
      %2664 = vmatmul.mubr.f32.gmra.mrb[0].mxu0 %v2519
      %v2665 = vpop.f32.mrb[0].mxu0
      %v2666 = vadd.f32 0.0, %v2665
      %v2667 = vpop.f32.mrb[0].mxu0
      %2668 = vmatprep.mubr.f32.mxu0 0.0
      %2669 = vmatmul.mubr.f32.gmra.mrb[0].mxu0 %v2522
      %v2670 = vpop.f32.mrb[0].mxu0
      %v2671 = vadd.f32 0.0, %v2670
      %v2672 = vpop.f32.mrb[0].mxu0
      %2673 = vmatprep.mubr.f32.mxu0 0.0
      %2674 = vmatmul.mubr.f32.gmra.mrb[0].mxu0 %v2525
      %v2675 = vpop.f32.mrb[0].mxu0
      %v2676 = vadd.f32 0.0, %v2675
      %v2677 = vpop.f32.mrb[0].mxu0
      %2678 = vmatprep.mubr.f32.mxu0 0.0
      %2679 = vmatmul.mubr.f32.gmra.mrb[0].mxu0 %v2528
      %v2680 = vpop.f32.mrb[0].mxu0
      %v2681 = vadd.f32 0.0, %v2680
      %v2682 = vpop.f32.mrb[0].mxu0
      %2683 = vmatprep.mubr.f32.mxu0 0.0
      %2684 = vmatmul.mubr.f32.gmra.mrb[0].mxu0 %v2531
      %v2685 = vpop.f32.mrb[0].mxu0
      %v2686 = vadd.f32 0.0, %v2685
      %v2687 = vpop.f32.mrb[0].mxu0
      %2688 = vmatprep.mubr.f32.mxu0 0.0
      %2689 = vmatmul.mubr.f32.gmra.mrb[0].mxu0 %v2534
      %v2690 = vpop.f32.mrb[0].mxu0
      %v2691 = vadd.f32 0.0, %v2690
      %v2692 = vpop.f32.mrb[0].mxu0
      %2693 = vmatprep.mubr.f32.mxu0 0.0
      %2694 = vmatmul.mubr.f32.gmra.mrb[0].mxu0 %v2537
      %v2695 = vpop.f32.mrb[0].mxu0
      %v2696 = vadd.f32 0.0, %v2695
      %v2697 = vpop.f32.mrb[0].mxu0
      %2698 = vmatprep.mubr.f32.mxu0 0.0
      %2699 = vmatmul.mubr.f32.gmra.mrb[0].mxu0 %v2540
      %v2700 = vpop.f32.mrb[0].mxu0
      %v2701 = vadd.f32 0.0, %v2700
      %v2702 = vpop.f32.mrb[0].mxu0
      %2703 = vmatprep.mubr.f32.mxu0 0.0
      %2704 = vmatmul.mubr.f32.gmra.mrb[0].mxu0 %v2543
      %v2705 = vpop.f32.mrb[0].mxu0
      %v2706 = vadd.f32 0.0, %v2705
      %v2707 = vpop.f32.mrb[0].mxu0
      %2708 = vmatprep.mubr.f32.mxu0 0.0
      %2709 = vmatmul.mubr.f32.gmra.mrb[0].mxu0 %v2546
      %v2710 = vpop.f32.mrb[0].mxu0
      %v2711 = vadd.f32 0.0, %v2710
      %v2712 = vpop.f32.mrb[0].mxu0
      %2713 = vmatprep.mubr.f32.mxu0 0.0
      %2714 = vmatmul.mubr.f32.gmra.mrb[0].mxu0 %v2549
      %v2715 = vpop.f32.mrb[0].mxu0
      %v2716 = vadd.f32 0.0, %v2715
      %v2717 = vpop.f32.mrb[0].mxu0
      %2718 = vmatprep.mubr.f32.mxu0 0.0
      %2719 = vmatmul.mubr.f32.gmra.mrb[0].mxu0 %v2552
      %v2720 = vpop.f32.mrb[0].mxu0
      %v2721 = vadd.f32 0.0, %v2720
      %v2722 = vpop.f32.mrb[0].mxu0
      %2723 = vmatprep.mubr.f32.mxu0 0.0
      %2724 = vmatmul.mubr.f32.gmra.mrb[0].mxu0 %v2555
      %v2725 = vpop.f32.mrb[0].mxu0
      %v2726 = vadd.f32 0.0, %v2725
      %v2727 = vpop.f32.mrb[0].mxu0
      %2728 = vmatprep.mubr.f32.mxu0 0.0
      %2729 = vmatmul.mubr.f32.gmra.mrb[0].mxu0 %v2558
      %v2730 = vpop.f32.mrb[0].mxu0
      %v2731 = vadd.f32 0.0, %v2730
      %v2732 = vpop.f32.mrb[0].mxu0
      %2733 = vmatprep.mubr.f32.mxu0 0.0
      %2734 = vmatmul.mubr.f32.gmra.mrb[0].mxu0 %v2561
      %v2735 = vpop.f32.mrb[0].mxu0
      %v2736 = vadd.f32 0.0, %v2735
      %v2737 = vpop.f32.mrb[0].mxu0
      %2738 = vmatprep.mubr.f32.mxu0 0.0
      %2739 = vmatmul.mubr.f32.gmra.mrb[0].mxu0 %v2564
      %v2740 = vpop.f32.mrb[0].mxu0
      %v2741 = vadd.f32 0.0, %v2740
      %v2742 = vpop.f32.mrb[0].mxu0
      %2743 = vmatprep.mubr.f32.mxu0 0.0
      %2744 = vmatmul.mubr.f32.gmra.mrb[0].mxu0 %v2567
      %v2745 = vpop.f32.mrb[0].mxu0
      %v2746 = vadd.f32 0.0, %v2745
      %v2747 = vpop.f32.mrb[0].mxu0
      %2748 = vmatprep.mubr.f32.mxu0 0.0
      %2749 = vmatmul.mubr.f32.gmra.mrb[0].mxu0 %v2570
      %v2750 = vpop.f32.mrb[0].mxu0
      %v2751 = vadd.f32 0.0, %v2750
      %v2752 = vpop.f32.mrb[0].mxu0
      %2753 = vmatprep.mubr.f32.mxu0 0.0
      %2754 = vmatmul.mubr.f32.gmra.mrb[0].mxu0 %v2573
      %v2755 = vpop.f32.mrb[0].mxu0
      %v2756 = vadd.f32 0.0, %v2755
      %v2757 = vpop.f32.mrb[0].mxu0
      %2758 = vmatprep.mubr.f32.mxu0 0.0
      %2759 = vmatmul.mubr.f32.gmra.mrb[0].mxu0 %v2576
      %v2760 = vpop.f32.mrb[0].mxu0
      %v2761 = vadd.f32 0.0, %v2760
      %v2762 = vpop.f32.mrb[0].mxu0
      %2763 = vmatprep.mubr.f32.mxu0 0.0
      %2764 = vmatmul.mubr.f32.gmra.mrb[0].mxu0 %v2579
      %v2765 = vpop.f32.mrb[0].mxu0
      %v2766 = vadd.f32 0.0, %v2765
      %v2767 = vpop.f32.mrb[0].mxu0
      %2768 = vmatprep.mubr.f32.mxu0 0.0
      %2769 = vmatmul.mubr.f32.gmra.mrb[0].mxu0 %v2582
      %v2770 = vpop.f32.mrb[0].mxu0
      %v2771 = vadd.f32 0.0, %v2770
      %v2772 = vpop.f32.mrb[0].mxu0
      %2773 = vdwg.mxu0
      %v2774 = vadd.f32 %v2356, %v2651
      %v2775 = vadd.f32 %v2361, %v2656
      %v2776 = vadd.f32 %v2366, %v2661
      %v2777 = vadd.f32 %v2371, %v2666
      %v2778 = vadd.f32 %v2376, %v2671
      %v2779 = vadd.f32 %v2381, %v2676
      %v2780 = vadd.f32 %v2386, %v2681
      %v2781 = vadd.f32 %v2391, %v2686
      %v2782 = vadd.f32 %v2396, %v2691
      %v2783 = vadd.f32 %v2401, %v2696
      %v2784 = vadd.f32 %v2406, %v2701
      %v2785 = vadd.f32 %v2411, %v2706
      %v2786 = vadd.f32 %v2416, %v2711
      %v2787 = vadd.f32 %v2421, %v2716
      %v2788 = vadd.f32 %v2426, %v2721
      %v2789 = vadd.f32 %v2431, %v2726
      %v2790 = vadd.f32 %v2436, %v2731
      %v2791 = vadd.f32 %v2441, %v2736
      %v2792 = vadd.f32 %v2446, %v2741
      %v2793 = vadd.f32 %v2451, %v2746
      %v2794 = vadd.f32 %v2456, %v2751
      %v2795 = vadd.f32 %v2461, %v2756
      %v2796 = vadd.f32 %v2466, %v2761
      %v2797 = vadd.f32 %v2471, %v2766
      %v2798 = vadd.f32 %v2476, %v2771
      %v2799 = vld [vmem:[#allocation4 + $0xa] sm:$0xff]
      %v2800 = vld [vmem:[#allocation4 + $0x12] sm:$0xff]
      %v2801 = vld [vmem:[#allocation4 + $0x1a] sm:$0xff]
      %v2802 = vld [vmem:[#allocation4 + $0x22] sm:$0xff]
      %v2803 = vld [vmem:[#allocation4 + $0x2a] sm:$0xff]
      %v2804 = vld [vmem:[#allocation4 + $0x32] sm:$0xff]
      %v2805 = vld [vmem:[#allocation4 + $0x3a] sm:$0xff]
      %v2806 = vld [vmem:[#allocation4 + $0x42] sm:$0xff]
      %v2807 = vld [vmem:[#allocation4 + $0x4a] sm:$0xff]
      %v2808 = vld [vmem:[#allocation4 + $0x52] sm:$0xff]
      %v2809 = vld [vmem:[#allocation4 + $0x5a] sm:$0xff]
      %v2810 = vld [vmem:[#allocation4 + $0x62] sm:$0xff]
      %v2811 = vld [vmem:[#allocation4 + $0x6a] sm:$0xff]
      %v2812 = vld [vmem:[#allocation4 + $0x72] sm:$0xff]
      %v2813 = vld [vmem:[#allocation4 + $0x7a] sm:$0xff]
      %v2814 = vld [vmem:[#allocation4 + $0x82] sm:$0xff]
      %v2815 = vld [vmem:[#allocation4 + $0x8a] sm:$0xff]
      %v2816 = vld [vmem:[#allocation4 + $0x92] sm:$0xff]
      %v2817 = vld [vmem:[#allocation4 + $0x9a] sm:$0xff]
      %v2818 = vld [vmem:[#allocation4 + $0xa2] sm:$0xff]
      %v2819 = vld [vmem:[#allocation4 + $0xaa] sm:$0xff]
      %v2820 = vld [vmem:[#allocation4 + $0xb2] sm:$0xff]
      %v2821 = vld [vmem:[#allocation4 + $0xba] sm:$0xff]
      %v2822 = vld [vmem:[#allocation4 + $0xc2] sm:$0xff]
      %v2823 = vld [vmem:[#allocation4 + $0xca] sm:$0xff]
      %s2824 = scalar_lea.vmem %s3, 96
      %v2825 = vld [vmem:[%s2824] sm:$0xff]
      %v2826 = vld [vmem:[%s2824 + $0x8] sm:$0xff]
      %v2827 = vld [vmem:[%s2824 + $0x10] sm:$0xff]
      %v2828 = vld [vmem:[%s2824 + $0x18] sm:$0xff]
      %v2830 = vsel %vm694, %v2799, 0
      %v2833 = vsel %vm694, %v2800, 0
      %v2836 = vsel %vm694, %v2801, 0
      %v2839 = vsel %vm694, %v2802, 0
      %v2842 = vsel %vm694, %v2803, 0
      %v2845 = vsel %vm694, %v2804, 0
      %v2848 = vsel %vm694, %v2805, 0
      %v2851 = vsel %vm694, %v2806, 0
      %v2854 = vsel %vm694, %v2807, 0
      %v2857 = vsel %vm694, %v2808, 0
      %v2860 = vsel %vm694, %v2809, 0
      %v2863 = vsel %vm694, %v2810, 0
      %v2866 = vsel %vm694, %v2811, 0
      %v2869 = vsel %vm694, %v2812, 0
      %v2872 = vsel %vm694, %v2813, 0
      %v2875 = vsel %vm694, %v2814, 0
      %v2878 = vsel %vm694, %v2815, 0
      %v2881 = vsel %vm694, %v2816, 0
      %v2884 = vsel %vm694, %v2817, 0
      %v2887 = vsel %vm694, %v2818, 0
      %v2890 = vsel %vm694, %v2819, 0
      %v2893 = vsel %vm694, %v2820, 0
      %v2896 = vsel %vm694, %v2821, 0
      %v2899 = vsel %vm694, %v2822, 0
      %v2902 = vsel %vm694, %v2823, 0
      %2904 = vmatprep.subr.mxu0 0.0
      %2905 = vmatpush1.msra.mxu0 %v2825
      %2906 = vmatprep.subr.mxu0 0.0
      %2907 = vmatpush1.msra.mxu0 %v2826
      %2908 = vmatprep.subr.mxu0 0.0
      %2909 = vmatpush1.msra.mxu0 %v2827
      %2910 = vmatprep.subr.mxu0 0.0
      %2911 = vmatpush1.msra.mxu0 %v2828
      %2912 = vmatprep.subr.mxu0 0.0
      %2913 = vmatpush1.msra.mxu0 0.0
      %2914 = vmatprep.subr.mxu0 0.0
      %2915 = vmatpush1.msra.mxu0 0.0
      %2916 = vmatprep.subr.mxu0 0.0
      %2917 = vmatpush1.msra.mxu0 0.0
      %2918 = vmatprep.subr.mxu0 0.0
      %2919 = vmatpush1.msra.mxu0 0.0
      %2920 = vmatprep.subr.mxu0 0.0
      %2921 = vmatpush1.msra.mxu0 0.0
      %2922 = vmatprep.subr.mxu0 0.0
      %2923 = vmatpush1.msra.mxu0 0.0
      %2924 = vmatprep.subr.mxu0 0.0
      %2925 = vmatpush1.msra.mxu0 0.0
      %2926 = vmatprep.subr.mxu0 0.0
      %2927 = vmatpush1.msra.mxu0 0.0
      %2928 = vmatprep.subr.mxu0 0.0
      %2929 = vmatpush1.msra.mxu0 0.0
      %2930 = vmatprep.subr.mxu0 0.0
      %2931 = vmatpush1.msra.mxu0 0.0
      %2932 = vmatprep.subr.mxu0 0.0
      %2933 = vmatpush1.msra.mxu0 0.0
      %2934 = vmatprep.subr.mxu0 0.0
      %2935 = vmatpush1.msra.mxu0 0.0
      %2936 = vmatprep.subr.mxu0 0.0
      %2937 = vmatpush1.msra.mxu0 0.0
      %2938 = vmatprep.subr.mxu0 0.0
      %2939 = vmatpush1.msra.mxu0 0.0
      %2940 = vmatprep.subr.mxu0 0.0
      %2941 = vmatpush1.msra.mxu0 0.0
      %2942 = vmatprep.subr.mxu0 0.0
      %2943 = vmatpush1.msra.mxu0 0.0
      %2944 = vmatprep.subr.mxu0 0.0
      %2945 = vmatpush1.msra.mxu0 0.0
      %2946 = vmatprep.subr.mxu0 0.0
      %2947 = vmatpush1.msra.mxu0 0.0
      %2948 = vmatprep.subr.mxu0 0.0
      %2949 = vmatpush1.msra.mxu0 0.0
      %2950 = vmatprep.subr.mxu0 0.0
      %2951 = vmatpush1.msra.mxu0 0.0
      %2952 = vmatprep.subr.mxu0 0.0
      %2953 = vmatpush1.msra.mxu0 0.0
      %2954 = vmatprep.subr.mxu0 0.0
      %2955 = vmatpush1.msra.mxu0 0.0
      %2956 = vmatprep.subr.mxu0 0.0
      %2957 = vmatpush1.msra.mxu0 0.0
      %2958 = vmatprep.subr.mxu0 0.0
      %2959 = vmatpush1.msra.mxu0 0.0
      %2960 = vmatprep.subr.mxu0 0.0
      %2961 = vmatpush1.msra.mxu0 0.0
      %2962 = vmatprep.subr.mxu0 0.0
      %2963 = vmatpush1.msra.mxu0 0.0
      %2964 = vmatprep.subr.mxu0 0.0
      %2965 = vmatpush1.msra.mxu0 0.0
      %2966 = vmatprep.subr.mxu0 0.0
      %2967 = vmatpush1.msra.mxu0 0.0
      %2968 = vmatprep.mubr.f32.mxu0 0.0
      %2969 = vmatmul.mubr.f32.gmra.mrb[0].mxu0 %v2830
      %v2970 = vpop.f32.mrb[0].mxu0
      %v2971 = vadd.f32 0.0, %v2970
      %v2972 = vpop.f32.mrb[0].mxu0
      %2973 = vmatprep.mubr.f32.mxu0 0.0
      %2974 = vmatmul.mubr.f32.gmra.mrb[0].mxu0 %v2833
      %v2975 = vpop.f32.mrb[0].mxu0
      %v2976 = vadd.f32 0.0, %v2975
      %v2977 = vpop.f32.mrb[0].mxu0
      %2978 = vmatprep.mubr.f32.mxu0 0.0
      %2979 = vmatmul.mubr.f32.gmra.mrb[0].mxu0 %v2836
      %v2980 = vpop.f32.mrb[0].mxu0
      %v2981 = vadd.f32 0.0, %v2980
      %v2982 = vpop.f32.mrb[0].mxu0
      %2983 = vmatprep.mubr.f32.mxu0 0.0
      %2984 = vmatmul.mubr.f32.gmra.mrb[0].mxu0 %v2839
      %v2985 = vpop.f32.mrb[0].mxu0
      %v2986 = vadd.f32 0.0, %v2985
      %v2987 = vpop.f32.mrb[0].mxu0
      %2988 = vmatprep.mubr.f32.mxu0 0.0
      %2989 = vmatmul.mubr.f32.gmra.mrb[0].mxu0 %v2842
      %v2990 = vpop.f32.mrb[0].mxu0
      %v2991 = vadd.f32 0.0, %v2990
      %v2992 = vpop.f32.mrb[0].mxu0
      %2993 = vmatprep.mubr.f32.mxu0 0.0
      %2994 = vmatmul.mubr.f32.gmra.mrb[0].mxu0 %v2845
      %v2995 = vpop.f32.mrb[0].mxu0
      %v2996 = vadd.f32 0.0, %v2995
      %v2997 = vpop.f32.mrb[0].mxu0
      %2998 = vmatprep.mubr.f32.mxu0 0.0
      %2999 = vmatmul.mubr.f32.gmra.mrb[0].mxu0 %v2848
      %v3000 = vpop.f32.mrb[0].mxu0
      %v3001 = vadd.f32 0.0, %v3000
      %v3002 = vpop.f32.mrb[0].mxu0
      %3003 = vmatprep.mubr.f32.mxu0 0.0
      %3004 = vmatmul.mubr.f32.gmra.mrb[0].mxu0 %v2851
      %v3005 = vpop.f32.mrb[0].mxu0
      %v3006 = vadd.f32 0.0, %v3005
      %v3007 = vpop.f32.mrb[0].mxu0
      %3008 = vmatprep.mubr.f32.mxu0 0.0
      %3009 = vmatmul.mubr.f32.gmra.mrb[0].mxu0 %v2854
      %v3010 = vpop.f32.mrb[0].mxu0
      %v3011 = vadd.f32 0.0, %v3010
      %v3012 = vpop.f32.mrb[0].mxu0
      %3013 = vmatprep.mubr.f32.mxu0 0.0
      %3014 = vmatmul.mubr.f32.gmra.mrb[0].mxu0 %v2857
      %v3015 = vpop.f32.mrb[0].mxu0
      %v3016 = vadd.f32 0.0, %v3015
      %v3017 = vpop.f32.mrb[0].mxu0
      %3018 = vmatprep.mubr.f32.mxu0 0.0
      %3019 = vmatmul.mubr.f32.gmra.mrb[0].mxu0 %v2860
      %v3020 = vpop.f32.mrb[0].mxu0
      %v3021 = vadd.f32 0.0, %v3020
      %v3022 = vpop.f32.mrb[0].mxu0
      %3023 = vmatprep.mubr.f32.mxu0 0.0
      %3024 = vmatmul.mubr.f32.gmra.mrb[0].mxu0 %v2863
      %v3025 = vpop.f32.mrb[0].mxu0
      %v3026 = vadd.f32 0.0, %v3025
      %v3027 = vpop.f32.mrb[0].mxu0
      %3028 = vmatprep.mubr.f32.mxu0 0.0
      %3029 = vmatmul.mubr.f32.gmra.mrb[0].mxu0 %v2866
      %v3030 = vpop.f32.mrb[0].mxu0
      %v3031 = vadd.f32 0.0, %v3030
      %v3032 = vpop.f32.mrb[0].mxu0
      %3033 = vmatprep.mubr.f32.mxu0 0.0
      %3034 = vmatmul.mubr.f32.gmra.mrb[0].mxu0 %v2869
      %v3035 = vpop.f32.mrb[0].mxu0
      %v3036 = vadd.f32 0.0, %v3035
      %v3037 = vpop.f32.mrb[0].mxu0
      %3038 = vmatprep.mubr.f32.mxu0 0.0
      %3039 = vmatmul.mubr.f32.gmra.mrb[0].mxu0 %v2872
      %v3040 = vpop.f32.mrb[0].mxu0
      %v3041 = vadd.f32 0.0, %v3040
      %v3042 = vpop.f32.mrb[0].mxu0
      %3043 = vmatprep.mubr.f32.mxu0 0.0
      %3044 = vmatmul.mubr.f32.gmra.mrb[0].mxu0 %v2875
      %v3045 = vpop.f32.mrb[0].mxu0
      %v3046 = vadd.f32 0.0, %v3045
      %v3047 = vpop.f32.mrb[0].mxu0
      %3048 = vmatprep.mubr.f32.mxu0 0.0
      %3049 = vmatmul.mubr.f32.gmra.mrb[0].mxu0 %v2878
      %v3050 = vpop.f32.mrb[0].mxu0
      %v3051 = vadd.f32 0.0, %v3050
      %v3052 = vpop.f32.mrb[0].mxu0
      %3053 = vmatprep.mubr.f32.mxu0 0.0
      %3054 = vmatmul.mubr.f32.gmra.mrb[0].mxu0 %v2881
      %v3055 = vpop.f32.mrb[0].mxu0
      %v3056 = vadd.f32 0.0, %v3055
      %v3057 = vpop.f32.mrb[0].mxu0
      %3058 = vmatprep.mubr.f32.mxu0 0.0
      %3059 = vmatmul.mubr.f32.gmra.mrb[0].mxu0 %v2884
      %v3060 = vpop.f32.mrb[0].mxu0
      %v3061 = vadd.f32 0.0, %v3060
      %v3062 = vpop.f32.mrb[0].mxu0
      %3063 = vmatprep.mubr.f32.mxu0 0.0
      %3064 = vmatmul.mubr.f32.gmra.mrb[0].mxu0 %v2887
      %v3065 = vpop.f32.mrb[0].mxu0
      %v3066 = vadd.f32 0.0, %v3065
      %v3067 = vpop.f32.mrb[0].mxu0
      %3068 = vmatprep.mubr.f32.mxu0 0.0
      %3069 = vmatmul.mubr.f32.gmra.mrb[0].mxu0 %v2890
      %v3070 = vpop.f32.mrb[0].mxu0
      %v3071 = vadd.f32 0.0, %v3070
      %v3072 = vpop.f32.mrb[0].mxu0
      %3073 = vmatprep.mubr.f32.mxu0 0.0
      %3074 = vmatmul.mubr.f32.gmra.mrb[0].mxu0 %v2893
      %v3075 = vpop.f32.mrb[0].mxu0
      %v3076 = vadd.f32 0.0, %v3075
      %v3077 = vpop.f32.mrb[0].mxu0
      %3078 = vmatprep.mubr.f32.mxu0 0.0
      %3079 = vmatmul.mubr.f32.gmra.mrb[0].mxu0 %v2896
      %v3080 = vpop.f32.mrb[0].mxu0
      %v3081 = vadd.f32 0.0, %v3080
      %v3082 = vpop.f32.mrb[0].mxu0
      %3083 = vmatprep.mubr.f32.mxu0 0.0
      %3084 = vmatmul.mubr.f32.gmra.mrb[0].mxu0 %v2899
      %v3085 = vpop.f32.mrb[0].mxu0
      %v3086 = vadd.f32 0.0, %v3085
      %v3087 = vpop.f32.mrb[0].mxu0
      %3088 = vmatprep.mubr.f32.mxu0 0.0
      %3089 = vmatmul.mubr.f32.gmra.mrb[0].mxu0 %v2902
      %v3090 = vpop.f32.mrb[0].mxu0
      %v3091 = vadd.f32 0.0, %v3090
      %v3092 = vpop.f32.mrb[0].mxu0
      %3093 = vdwg.mxu0
      %v3094 = vadd.f32 %v2774, %v2971
      %v3095 = vadd.f32 %v2775, %v2976
      %v3096 = vadd.f32 %v2776, %v2981
      %v3097 = vadd.f32 %v2777, %v2986
      %v3098 = vadd.f32 %v2778, %v2991
      %v3099 = vadd.f32 %v2779, %v2996
      %v3100 = vadd.f32 %v2780, %v3001
      %v3101 = vadd.f32 %v2781, %v3006
      %v3102 = vadd.f32 %v2782, %v3011
      %v3103 = vadd.f32 %v2783, %v3016
      %v3104 = vadd.f32 %v2784, %v3021
      %v3105 = vadd.f32 %v2785, %v3026
      %v3106 = vadd.f32 %v2786, %v3031
      %v3107 = vadd.f32 %v2787, %v3036
      %v3108 = vadd.f32 %v2788, %v3041
      %v3109 = vadd.f32 %v2789, %v3046
      %v3110 = vadd.f32 %v2790, %v3051
      %v3111 = vadd.f32 %v2791, %v3056
      %v3112 = vadd.f32 %v2792, %v3061
      %v3113 = vadd.f32 %v2793, %v3066
      %v3114 = vadd.f32 %v2794, %v3071
      %v3115 = vadd.f32 %v2795, %v3076
      %v3116 = vadd.f32 %v2796, %v3081
      %v3117 = vadd.f32 %v2797, %v3086
      %v3118 = vadd.f32 %v2798, %v3091
      %v3119 = vld [vmem:[#allocation4 + $0xb] sm:$0xff]
      %v3120 = vld [vmem:[#allocation4 + $0x13] sm:$0xff]
      %v3121 = vld [vmem:[#allocation4 + $0x1b] sm:$0xff]
      %v3122 = vld [vmem:[#allocation4 + $0x23] sm:$0xff]
      %v3123 = vld [vmem:[#allocation4 + $0x2b] sm:$0xff]
      %v3124 = vld [vmem:[#allocation4 + $0x33] sm:$0xff]
      %v3125 = vld [vmem:[#allocation4 + $0x3b] sm:$0xff]
      %v3126 = vld [vmem:[#allocation4 + $0x43] sm:$0xff]
      %v3127 = vld [vmem:[#allocation4 + $0x4b] sm:$0xff]
      %v3128 = vld [vmem:[#allocation4 + $0x53] sm:$0xff]
      %v3129 = vld [vmem:[#allocation4 + $0x5b] sm:$0xff]
      %v3130 = vld [vmem:[#allocation4 + $0x63] sm:$0xff]
      %v3131 = vld [vmem:[#allocation4 + $0x6b] sm:$0xff]
      %v3132 = vld [vmem:[#allocation4 + $0x73] sm:$0xff]
      %v3133 = vld [vmem:[#allocation4 + $0x7b] sm:$0xff]
      %v3134 = vld [vmem:[#allocation4 + $0x83] sm:$0xff]
      %v3135 = vld [vmem:[#allocation4 + $0x8b] sm:$0xff]
      %v3136 = vld [vmem:[#allocation4 + $0x93] sm:$0xff]
      %v3137 = vld [vmem:[#allocation4 + $0x9b] sm:$0xff]
      %v3138 = vld [vmem:[#allocation4 + $0xa3] sm:$0xff]
      %v3139 = vld [vmem:[#allocation4 + $0xab] sm:$0xff]
      %v3140 = vld [vmem:[#allocation4 + $0xb3] sm:$0xff]
      %v3141 = vld [vmem:[#allocation4 + $0xbb] sm:$0xff]
      %v3142 = vld [vmem:[#allocation4 + $0xc3] sm:$0xff]
      %v3143 = vld [vmem:[#allocation4 + $0xcb] sm:$0xff]
      %s3144 = scalar_lea.vmem %s3, 128
      %v3145 = vld [vmem:[%s3144] sm:$0xff]
      %v3146 = vld [vmem:[%s3144 + $0x8] sm:$0xff]
      %v3147 = vld [vmem:[%s3144 + $0x10] sm:$0xff]
      %v3148 = vld [vmem:[%s3144 + $0x18] sm:$0xff]
      %v3150 = vsel %vm694, %v3119, 0
      %v3153 = vsel %vm694, %v3120, 0
      %v3156 = vsel %vm694, %v3121, 0
      %v3159 = vsel %vm694, %v3122, 0
      %v3162 = vsel %vm694, %v3123, 0
      %v3165 = vsel %vm694, %v3124, 0
      %v3168 = vsel %vm694, %v3125, 0
      %v3171 = vsel %vm694, %v3126, 0
      %v3174 = vsel %vm694, %v3127, 0
      %v3177 = vsel %vm694, %v3128, 0
      %v3180 = vsel %vm694, %v3129, 0
      %v3183 = vsel %vm694, %v3130, 0
      %v3186 = vsel %vm694, %v3131, 0
      %v3189 = vsel %vm694, %v3132, 0
      %v3192 = vsel %vm694, %v3133, 0
      %v3195 = vsel %vm694, %v3134, 0
      %v3198 = vsel %vm694, %v3135, 0
      %v3201 = vsel %vm694, %v3136, 0
      %v3204 = vsel %vm694, %v3137, 0
      %v3207 = vsel %vm694, %v3138, 0
      %v3210 = vsel %vm694, %v3139, 0
      %v3213 = vsel %vm694, %v3140, 0
      %v3216 = vsel %vm694, %v3141, 0
      %v3219 = vsel %vm694, %v3142, 0
      %v3222 = vsel %vm694, %v3143, 0
      %3224 = vmatprep.subr.mxu0 0.0
      %3225 = vmatpush1.msra.mxu0 %v3145
      %3226 = vmatprep.subr.mxu0 0.0
      %3227 = vmatpush1.msra.mxu0 %v3146
      %3228 = vmatprep.subr.mxu0 0.0
      %3229 = vmatpush1.msra.mxu0 %v3147
      %3230 = vmatprep.subr.mxu0 0.0
      %3231 = vmatpush1.msra.mxu0 %v3148
      %3232 = vmatprep.subr.mxu0 0.0
      %3233 = vmatpush1.msra.mxu0 0.0
      %3234 = vmatprep.subr.mxu0 0.0
      %3235 = vmatpush1.msra.mxu0 0.0
      %3236 = vmatprep.subr.mxu0 0.0
      %3237 = vmatpush1.msra.mxu0 0.0
      %3238 = vmatprep.subr.mxu0 0.0
      %3239 = vmatpush1.msra.mxu0 0.0
      %3240 = vmatprep.subr.mxu0 0.0
      %3241 = vmatpush1.msra.mxu0 0.0
      %3242 = vmatprep.subr.mxu0 0.0
      %3243 = vmatpush1.msra.mxu0 0.0
      %3244 = vmatprep.subr.mxu0 0.0
      %3245 = vmatpush1.msra.mxu0 0.0
      %3246 = vmatprep.subr.mxu0 0.0
      %3247 = vmatpush1.msra.mxu0 0.0
      %3248 = vmatprep.subr.mxu0 0.0
      %3249 = vmatpush1.msra.mxu0 0.0
      %3250 = vmatprep.subr.mxu0 0.0
      %3251 = vmatpush1.msra.mxu0 0.0
      %3252 = vmatprep.subr.mxu0 0.0
      %3253 = vmatpush1.msra.mxu0 0.0
      %3254 = vmatprep.subr.mxu0 0.0
      %3255 = vmatpush1.msra.mxu0 0.0
      %3256 = vmatprep.subr.mxu0 0.0
      %3257 = vmatpush1.msra.mxu0 0.0
      %3258 = vmatprep.subr.mxu0 0.0
      %3259 = vmatpush1.msra.mxu0 0.0
      %3260 = vmatprep.subr.mxu0 0.0
      %3261 = vmatpush1.msra.mxu0 0.0
      %3262 = vmatprep.subr.mxu0 0.0
      %3263 = vmatpush1.msra.mxu0 0.0
      %3264 = vmatprep.subr.mxu0 0.0
      %3265 = vmatpush1.msra.mxu0 0.0
      %3266 = vmatprep.subr.mxu0 0.0
      %3267 = vmatpush1.msra.mxu0 0.0
      %3268 = vmatprep.subr.mxu0 0.0
      %3269 = vmatpush1.msra.mxu0 0.0
      %3270 = vmatprep.subr.mxu0 0.0
      %3271 = vmatpush1.msra.mxu0 0.0
      %3272 = vmatprep.subr.mxu0 0.0
      %3273 = vmatpush1.msra.mxu0 0.0
      %3274 = vmatprep.subr.mxu0 0.0
      %3275 = vmatpush1.msra.mxu0 0.0
      %3276 = vmatprep.subr.mxu0 0.0
      %3277 = vmatpush1.msra.mxu0 0.0
      %3278 = vmatprep.subr.mxu0 0.0
      %3279 = vmatpush1.msra.mxu0 0.0
      %3280 = vmatprep.subr.mxu0 0.0
      %3281 = vmatpush1.msra.mxu0 0.0
      %3282 = vmatprep.subr.mxu0 0.0
      %3283 = vmatpush1.msra.mxu0 0.0
      %3284 = vmatprep.subr.mxu0 0.0
      %3285 = vmatpush1.msra.mxu0 0.0
      %3286 = vmatprep.subr.mxu0 0.0
      %3287 = vmatpush1.msra.mxu0 0.0
      %3288 = vmatprep.mubr.f32.mxu0 0.0
      %3289 = vmatmul.mubr.f32.gmra.mrb[0].mxu0 %v3150
      %v3290 = vpop.f32.mrb[0].mxu0
      %v3291 = vadd.f32 0.0, %v3290
      %v3292 = vpop.f32.mrb[0].mxu0
      %3293 = vmatprep.mubr.f32.mxu0 0.0
      %3294 = vmatmul.mubr.f32.gmra.mrb[0].mxu0 %v3153
      %v3295 = vpop.f32.mrb[0].mxu0
      %v3296 = vadd.f32 0.0, %v3295
      %v3297 = vpop.f32.mrb[0].mxu0
      %3298 = vmatprep.mubr.f32.mxu0 0.0
      %3299 = vmatmul.mubr.f32.gmra.mrb[0].mxu0 %v3156
      %v3300 = vpop.f32.mrb[0].mxu0
      %v3301 = vadd.f32 0.0, %v3300
      %v3302 = vpop.f32.mrb[0].mxu0
      %3303 = vmatprep.mubr.f32.mxu0 0.0
      %3304 = vmatmul.mubr.f32.gmra.mrb[0].mxu0 %v3159
      %v3305 = vpop.f32.mrb[0].mxu0
      %v3306 = vadd.f32 0.0, %v3305
      %v3307 = vpop.f32.mrb[0].mxu0
      %3308 = vmatprep.mubr.f32.mxu0 0.0
      %3309 = vmatmul.mubr.f32.gmra.mrb[0].mxu0 %v3162
      %v3310 = vpop.f32.mrb[0].mxu0
      %v3311 = vadd.f32 0.0, %v3310
      %v3312 = vpop.f32.mrb[0].mxu0
      %3313 = vmatprep.mubr.f32.mxu0 0.0
      %3314 = vmatmul.mubr.f32.gmra.mrb[0].mxu0 %v3165
      %v3315 = vpop.f32.mrb[0].mxu0
      %v3316 = vadd.f32 0.0, %v3315
      %v3317 = vpop.f32.mrb[0].mxu0
      %3318 = vmatprep.mubr.f32.mxu0 0.0
      %3319 = vmatmul.mubr.f32.gmra.mrb[0].mxu0 %v3168
      %v3320 = vpop.f32.mrb[0].mxu0
      %v3321 = vadd.f32 0.0, %v3320
      %v3322 = vpop.f32.mrb[0].mxu0
      %3323 = vmatprep.mubr.f32.mxu0 0.0
      %3324 = vmatmul.mubr.f32.gmra.mrb[0].mxu0 %v3171
      %v3325 = vpop.f32.mrb[0].mxu0
      %v3326 = vadd.f32 0.0, %v3325
      %v3327 = vpop.f32.mrb[0].mxu0
      %3328 = vmatprep.mubr.f32.mxu0 0.0
      %3329 = vmatmul.mubr.f32.gmra.mrb[0].mxu0 %v3174
      %v3330 = vpop.f32.mrb[0].mxu0
      %v3331 = vadd.f32 0.0, %v3330
      %v3332 = vpop.f32.mrb[0].mxu0
      %3333 = vmatprep.mubr.f32.mxu0 0.0
      %3334 = vmatmul.mubr.f32.gmra.mrb[0].mxu0 %v3177
      %v3335 = vpop.f32.mrb[0].mxu0
      %v3336 = vadd.f32 0.0, %v3335
      %v3337 = vpop.f32.mrb[0].mxu0
      %3338 = vmatprep.mubr.f32.mxu0 0.0
      %3339 = vmatmul.mubr.f32.gmra.mrb[0].mxu0 %v3180
      %v3340 = vpop.f32.mrb[0].mxu0
      %v3341 = vadd.f32 0.0, %v3340
      %v3342 = vpop.f32.mrb[0].mxu0
      %3343 = vmatprep.mubr.f32.mxu0 0.0
      %3344 = vmatmul.mubr.f32.gmra.mrb[0].mxu0 %v3183
      %v3345 = vpop.f32.mrb[0].mxu0
      %v3346 = vadd.f32 0.0, %v3345
      %v3347 = vpop.f32.mrb[0].mxu0
      %3348 = vmatprep.mubr.f32.mxu0 0.0
      %3349 = vmatmul.mubr.f32.gmra.mrb[0].mxu0 %v3186
      %v3350 = vpop.f32.mrb[0].mxu0
      %v3351 = vadd.f32 0.0, %v3350
      %v3352 = vpop.f32.mrb[0].mxu0
      %3353 = vmatprep.mubr.f32.mxu0 0.0
      %3354 = vmatmul.mubr.f32.gmra.mrb[0].mxu0 %v3189
      %v3355 = vpop.f32.mrb[0].mxu0
      %v3356 = vadd.f32 0.0, %v3355
      %v3357 = vpop.f32.mrb[0].mxu0
      %3358 = vmatprep.mubr.f32.mxu0 0.0
      %3359 = vmatmul.mubr.f32.gmra.mrb[0].mxu0 %v3192
      %v3360 = vpop.f32.mrb[0].mxu0
      %v3361 = vadd.f32 0.0, %v3360
      %v3362 = vpop.f32.mrb[0].mxu0
      %3363 = vmatprep.mubr.f32.mxu0 0.0
      %3364 = vmatmul.mubr.f32.gmra.mrb[0].mxu0 %v3195
      %v3365 = vpop.f32.mrb[0].mxu0
      %v3366 = vadd.f32 0.0, %v3365
      %v3367 = vpop.f32.mrb[0].mxu0
      %3368 = vmatprep.mubr.f32.mxu0 0.0
      %3369 = vmatmul.mubr.f32.gmra.mrb[0].mxu0 %v3198
      %v3370 = vpop.f32.mrb[0].mxu0
      %v3371 = vadd.f32 0.0, %v3370
      %v3372 = vpop.f32.mrb[0].mxu0
      %3373 = vmatprep.mubr.f32.mxu0 0.0
      %3374 = vmatmul.mubr.f32.gmra.mrb[0].mxu0 %v3201
      %v3375 = vpop.f32.mrb[0].mxu0
      %v3376 = vadd.f32 0.0, %v3375
      %v3377 = vpop.f32.mrb[0].mxu0
      %3378 = vmatprep.mubr.f32.mxu0 0.0
      %3379 = vmatmul.mubr.f32.gmra.mrb[0].mxu0 %v3204
      %v3380 = vpop.f32.mrb[0].mxu0
      %v3381 = vadd.f32 0.0, %v3380
      %v3382 = vpop.f32.mrb[0].mxu0
      %3383 = vmatprep.mubr.f32.mxu0 0.0
      %3384 = vmatmul.mubr.f32.gmra.mrb[0].mxu0 %v3207
      %v3385 = vpop.f32.mrb[0].mxu0
      %v3386 = vadd.f32 0.0, %v3385
      %v3387 = vpop.f32.mrb[0].mxu0
      %3388 = vmatprep.mubr.f32.mxu0 0.0
      %3389 = vmatmul.mubr.f32.gmra.mrb[0].mxu0 %v3210
      %v3390 = vpop.f32.mrb[0].mxu0
      %v3391 = vadd.f32 0.0, %v3390
      %v3392 = vpop.f32.mrb[0].mxu0
      %3393 = vmatprep.mubr.f32.mxu0 0.0
      %3394 = vmatmul.mubr.f32.gmra.mrb[0].mxu0 %v3213
      %v3395 = vpop.f32.mrb[0].mxu0
      %v3396 = vadd.f32 0.0, %v3395
      %v3397 = vpop.f32.mrb[0].mxu0
      %3398 = vmatprep.mubr.f32.mxu0 0.0
      %3399 = vmatmul.mubr.f32.gmra.mrb[0].mxu0 %v3216
      %v3400 = vpop.f32.mrb[0].mxu0
      %v3401 = vadd.f32 0.0, %v3400
      %v3402 = vpop.f32.mrb[0].mxu0
      %3403 = vmatprep.mubr.f32.mxu0 0.0
      %3404 = vmatmul.mubr.f32.gmra.mrb[0].mxu0 %v3219
      %v3405 = vpop.f32.mrb[0].mxu0
      %v3406 = vadd.f32 0.0, %v3405
      %v3407 = vpop.f32.mrb[0].mxu0
      %3408 = vmatprep.mubr.f32.mxu0 0.0
      %3409 = vmatmul.mubr.f32.gmra.mrb[0].mxu0 %v3222
      %v3410 = vpop.f32.mrb[0].mxu0
      %v3411 = vadd.f32 0.0, %v3410
      %v3412 = vpop.f32.mrb[0].mxu0
      %3413 = vdwg.mxu0
      %v3414 = vadd.f32 %v3094, %v3291
      %v3415 = vadd.f32 %v3095, %v3296
      %v3416 = vadd.f32 %v3096, %v3301
      %v3417 = vadd.f32 %v3097, %v3306
      %v3418 = vadd.f32 %v3098, %v3311
      %v3419 = vadd.f32 %v3099, %v3316
      %v3420 = vadd.f32 %v3100, %v3321
      %v3421 = vadd.f32 %v3101, %v3326
      %v3422 = vadd.f32 %v3102, %v3331
      %v3423 = vadd.f32 %v3103, %v3336
      %v3424 = vadd.f32 %v3104, %v3341
      %v3425 = vadd.f32 %v3105, %v3346
      %v3426 = vadd.f32 %v3106, %v3351
      %v3427 = vadd.f32 %v3107, %v3356
      %v3428 = vadd.f32 %v3108, %v3361
      %v3429 = vadd.f32 %v3109, %v3366
      %v3430 = vadd.f32 %v3110, %v3371
      %v3431 = vadd.f32 %v3111, %v3376
      %v3432 = vadd.f32 %v3112, %v3381
      %v3433 = vadd.f32 %v3113, %v3386
      %v3434 = vadd.f32 %v3114, %v3391
      %v3435 = vadd.f32 %v3115, %v3396
      %v3436 = vadd.f32 %v3116, %v3401
      %v3437 = vadd.f32 %v3117, %v3406
      %v3438 = vadd.f32 %v3118, %v3411
      %v3439 = vld [vmem:[#allocation4 + $0xc] sm:$0xff]
      %v3440 = vld [vmem:[#allocation4 + $0x14] sm:$0xff]
      %v3441 = vld [vmem:[#allocation4 + $0x1c] sm:$0xff]
      %v3442 = vld [vmem:[#allocation4 + $0x24] sm:$0xff]
      %v3443 = vld [vmem:[#allocation4 + $0x2c] sm:$0xff]
      %v3444 = vld [vmem:[#allocation4 + $0x34] sm:$0xff]
      %v3445 = vld [vmem:[#allocation4 + $0x3c] sm:$0xff]
      %v3446 = vld [vmem:[#allocation4 + $0x44] sm:$0xff]
      %v3447 = vld [vmem:[#allocation4 + $0x4c] sm:$0xff]
      %v3448 = vld [vmem:[#allocation4 + $0x54] sm:$0xff]
      %v3449 = vld [vmem:[#allocation4 + $0x5c] sm:$0xff]
      %v3450 = vld [vmem:[#allocation4 + $0x64] sm:$0xff]
      %v3451 = vld [vmem:[#allocation4 + $0x6c] sm:$0xff]
      %v3452 = vld [vmem:[#allocation4 + $0x74] sm:$0xff]
      %v3453 = vld [vmem:[#allocation4 + $0x7c] sm:$0xff]
      %v3454 = vld [vmem:[#allocation4 + $0x84] sm:$0xff]
      %v3455 = vld [vmem:[#allocation4 + $0x8c] sm:$0xff]
      %v3456 = vld [vmem:[#allocation4 + $0x94] sm:$0xff]
      %v3457 = vld [vmem:[#allocation4 + $0x9c] sm:$0xff]
      %v3458 = vld [vmem:[#allocation4 + $0xa4] sm:$0xff]
      %v3459 = vld [vmem:[#allocation4 + $0xac] sm:$0xff]
      %v3460 = vld [vmem:[#allocation4 + $0xb4] sm:$0xff]
      %v3461 = vld [vmem:[#allocation4 + $0xbc] sm:$0xff]
      %v3462 = vld [vmem:[#allocation4 + $0xc4] sm:$0xff]
      %v3463 = vld [vmem:[#allocation4 + $0xcc] sm:$0xff]
      %s3464 = scalar_lea.vmem %s3, 160
      %v3465 = vld [vmem:[%s3464] sm:$0xff]
      %v3466 = vld [vmem:[%s3464 + $0x8] sm:$0xff]
      %v3467 = vld [vmem:[%s3464 + $0x10] sm:$0xff]
      %v3468 = vld [vmem:[%s3464 + $0x18] sm:$0xff]
      %v3470 = vsel %vm694, %v3439, 0
      %v3473 = vsel %vm694, %v3440, 0
      %v3476 = vsel %vm694, %v3441, 0
      %v3479 = vsel %vm694, %v3442, 0
      %v3482 = vsel %vm694, %v3443, 0
      %v3485 = vsel %vm694, %v3444, 0
      %v3488 = vsel %vm694, %v3445, 0
      %v3491 = vsel %vm694, %v3446, 0
      %v3494 = vsel %vm694, %v3447, 0
      %v3497 = vsel %vm694, %v3448, 0
      %v3500 = vsel %vm694, %v3449, 0
      %v3503 = vsel %vm694, %v3450, 0
      %v3506 = vsel %vm694, %v3451, 0
      %v3509 = vsel %vm694, %v3452, 0
      %v3512 = vsel %vm694, %v3453, 0
      %v3515 = vsel %vm694, %v3454, 0
      %v3518 = vsel %vm694, %v3455, 0
      %v3521 = vsel %vm694, %v3456, 0
      %v3524 = vsel %vm694, %v3457, 0
      %v3527 = vsel %vm694, %v3458, 0
      %v3530 = vsel %vm694, %v3459, 0
      %v3533 = vsel %vm694, %v3460, 0
      %v3536 = vsel %vm694, %v3461, 0
      %v3539 = vsel %vm694, %v3462, 0
      %v3542 = vsel %vm694, %v3463, 0
      %3544 = vmatprep.subr.mxu0 0.0
      %3545 = vmatpush1.msra.mxu0 %v3465
      %3546 = vmatprep.subr.mxu0 0.0
      %3547 = vmatpush1.msra.mxu0 %v3466
      %3548 = vmatprep.subr.mxu0 0.0
      %3549 = vmatpush1.msra.mxu0 %v3467
      %3550 = vmatprep.subr.mxu0 0.0
      %3551 = vmatpush1.msra.mxu0 %v3468
      %3552 = vmatprep.subr.mxu0 0.0
      %3553 = vmatpush1.msra.mxu0 0.0
      %3554 = vmatprep.subr.mxu0 0.0
      %3555 = vmatpush1.msra.mxu0 0.0
      %3556 = vmatprep.subr.mxu0 0.0
      %3557 = vmatpush1.msra.mxu0 0.0
      %3558 = vmatprep.subr.mxu0 0.0
      %3559 = vmatpush1.msra.mxu0 0.0
      %3560 = vmatprep.subr.mxu0 0.0
      %3561 = vmatpush1.msra.mxu0 0.0
      %3562 = vmatprep.subr.mxu0 0.0
      %3563 = vmatpush1.msra.mxu0 0.0
      %3564 = vmatprep.subr.mxu0 0.0
      %3565 = vmatpush1.msra.mxu0 0.0
      %3566 = vmatprep.subr.mxu0 0.0
      %3567 = vmatpush1.msra.mxu0 0.0
      %3568 = vmatprep.subr.mxu0 0.0
      %3569 = vmatpush1.msra.mxu0 0.0
      %3570 = vmatprep.subr.mxu0 0.0
      %3571 = vmatpush1.msra.mxu0 0.0
      %3572 = vmatprep.subr.mxu0 0.0
      %3573 = vmatpush1.msra.mxu0 0.0
      %3574 = vmatprep.subr.mxu0 0.0
      %3575 = vmatpush1.msra.mxu0 0.0
      %3576 = vmatprep.subr.mxu0 0.0
      %3577 = vmatpush1.msra.mxu0 0.0
      %3578 = vmatprep.subr.mxu0 0.0
      %3579 = vmatpush1.msra.mxu0 0.0
      %3580 = vmatprep.subr.mxu0 0.0
      %3581 = vmatpush1.msra.mxu0 0.0
      %3582 = vmatprep.subr.mxu0 0.0
      %3583 = vmatpush1.msra.mxu0 0.0
      %3584 = vmatprep.subr.mxu0 0.0
      %3585 = vmatpush1.msra.mxu0 0.0
      %3586 = vmatprep.subr.mxu0 0.0
      %3587 = vmatpush1.msra.mxu0 0.0
      %3588 = vmatprep.subr.mxu0 0.0
      %3589 = vmatpush1.msra.mxu0 0.0
      %3590 = vmatprep.subr.mxu0 0.0
      %3591 = vmatpush1.msra.mxu0 0.0
      %3592 = vmatprep.subr.mxu0 0.0
      %3593 = vmatpush1.msra.mxu0 0.0
      %3594 = vmatprep.subr.mxu0 0.0
      %3595 = vmatpush1.msra.mxu0 0.0
      %3596 = vmatprep.subr.mxu0 0.0
      %3597 = vmatpush1.msra.mxu0 0.0
      %3598 = vmatprep.subr.mxu0 0.0
      %3599 = vmatpush1.msra.mxu0 0.0
      %3600 = vmatprep.subr.mxu0 0.0
      %3601 = vmatpush1.msra.mxu0 0.0
      %3602 = vmatprep.subr.mxu0 0.0
      %3603 = vmatpush1.msra.mxu0 0.0
      %3604 = vmatprep.subr.mxu0 0.0
      %3605 = vmatpush1.msra.mxu0 0.0
      %3606 = vmatprep.subr.mxu0 0.0
      %3607 = vmatpush1.msra.mxu0 0.0
      %3608 = vmatprep.mubr.f32.mxu0 0.0
      %3609 = vmatmul.mubr.f32.gmra.mrb[0].mxu0 %v3470
      %v3610 = vpop.f32.mrb[0].mxu0
      %v3611 = vadd.f32 0.0, %v3610
      %v3612 = vpop.f32.mrb[0].mxu0
      %3613 = vmatprep.mubr.f32.mxu0 0.0
      %3614 = vmatmul.mubr.f32.gmra.mrb[0].mxu0 %v3473
      %v3615 = vpop.f32.mrb[0].mxu0
      %v3616 = vadd.f32 0.0, %v3615
      %v3617 = vpop.f32.mrb[0].mxu0
      %3618 = vmatprep.mubr.f32.mxu0 0.0
      %3619 = vmatmul.mubr.f32.gmra.mrb[0].mxu0 %v3476
      %v3620 = vpop.f32.mrb[0].mxu0
      %v3621 = vadd.f32 0.0, %v3620
      %v3622 = vpop.f32.mrb[0].mxu0
      %3623 = vmatprep.mubr.f32.mxu0 0.0
      %3624 = vmatmul.mubr.f32.gmra.mrb[0].mxu0 %v3479
      %v3625 = vpop.f32.mrb[0].mxu0
      %v3626 = vadd.f32 0.0, %v3625
      %v3627 = vpop.f32.mrb[0].mxu0
      %3628 = vmatprep.mubr.f32.mxu0 0.0
      %3629 = vmatmul.mubr.f32.gmra.mrb[0].mxu0 %v3482
      %v3630 = vpop.f32.mrb[0].mxu0
      %v3631 = vadd.f32 0.0, %v3630
      %v3632 = vpop.f32.mrb[0].mxu0
      %3633 = vmatprep.mubr.f32.mxu0 0.0
      %3634 = vmatmul.mubr.f32.gmra.mrb[0].mxu0 %v3485
      %v3635 = vpop.f32.mrb[0].mxu0
      %v3636 = vadd.f32 0.0, %v3635
      %v3637 = vpop.f32.mrb[0].mxu0
      %3638 = vmatprep.mubr.f32.mxu0 0.0
      %3639 = vmatmul.mubr.f32.gmra.mrb[0].mxu0 %v3488
      %v3640 = vpop.f32.mrb[0].mxu0
      %v3641 = vadd.f32 0.0, %v3640
      %v3642 = vpop.f32.mrb[0].mxu0
      %3643 = vmatprep.mubr.f32.mxu0 0.0
      %3644 = vmatmul.mubr.f32.gmra.mrb[0].mxu0 %v3491
      %v3645 = vpop.f32.mrb[0].mxu0
      %v3646 = vadd.f32 0.0, %v3645
      %v3647 = vpop.f32.mrb[0].mxu0
      %3648 = vmatprep.mubr.f32.mxu0 0.0
      %3649 = vmatmul.mubr.f32.gmra.mrb[0].mxu0 %v3494
      %v3650 = vpop.f32.mrb[0].mxu0
      %v3651 = vadd.f32 0.0, %v3650
      %v3652 = vpop.f32.mrb[0].mxu0
      %3653 = vmatprep.mubr.f32.mxu0 0.0
      %3654 = vmatmul.mubr.f32.gmra.mrb[0].mxu0 %v3497
      %v3655 = vpop.f32.mrb[0].mxu0
      %v3656 = vadd.f32 0.0, %v3655
      %v3657 = vpop.f32.mrb[0].mxu0
      %3658 = vmatprep.mubr.f32.mxu0 0.0
      %3659 = vmatmul.mubr.f32.gmra.mrb[0].mxu0 %v3500
      %v3660 = vpop.f32.mrb[0].mxu0
      %v3661 = vadd.f32 0.0, %v3660
      %v3662 = vpop.f32.mrb[0].mxu0
      %3663 = vmatprep.mubr.f32.mxu0 0.0
      %3664 = vmatmul.mubr.f32.gmra.mrb[0].mxu0 %v3503
      %v3665 = vpop.f32.mrb[0].mxu0
      %v3666 = vadd.f32 0.0, %v3665
      %v3667 = vpop.f32.mrb[0].mxu0
      %3668 = vmatprep.mubr.f32.mxu0 0.0
      %3669 = vmatmul.mubr.f32.gmra.mrb[0].mxu0 %v3506
      %v3670 = vpop.f32.mrb[0].mxu0
      %v3671 = vadd.f32 0.0, %v3670
      %v3672 = vpop.f32.mrb[0].mxu0
      %3673 = vmatprep.mubr.f32.mxu0 0.0
      %3674 = vmatmul.mubr.f32.gmra.mrb[0].mxu0 %v3509
      %v3675 = vpop.f32.mrb[0].mxu0
      %v3676 = vadd.f32 0.0, %v3675
      %v3677 = vpop.f32.mrb[0].mxu0
      %3678 = vmatprep.mubr.f32.mxu0 0.0
      %3679 = vmatmul.mubr.f32.gmra.mrb[0].mxu0 %v3512
      %v3680 = vpop.f32.mrb[0].mxu0
      %v3681 = vadd.f32 0.0, %v3680
      %v3682 = vpop.f32.mrb[0].mxu0
      %3683 = vmatprep.mubr.f32.mxu0 0.0
      %3684 = vmatmul.mubr.f32.gmra.mrb[0].mxu0 %v3515
      %v3685 = vpop.f32.mrb[0].mxu0
      %v3686 = vadd.f32 0.0, %v3685
      %v3687 = vpop.f32.mrb[0].mxu0
      %3688 = vmatprep.mubr.f32.mxu0 0.0
      %3689 = vmatmul.mubr.f32.gmra.mrb[0].mxu0 %v3518
      %v3690 = vpop.f32.mrb[0].mxu0
      %v3691 = vadd.f32 0.0, %v3690
      %v3692 = vpop.f32.mrb[0].mxu0
      %3693 = vmatprep.mubr.f32.mxu0 0.0
      %3694 = vmatmul.mubr.f32.gmra.mrb[0].mxu0 %v3521
      %v3695 = vpop.f32.mrb[0].mxu0
      %v3696 = vadd.f32 0.0, %v3695
      %v3697 = vpop.f32.mrb[0].mxu0
      %3698 = vmatprep.mubr.f32.mxu0 0.0
      %3699 = vmatmul.mubr.f32.gmra.mrb[0].mxu0 %v3524
      %v3700 = vpop.f32.mrb[0].mxu0
      %v3701 = vadd.f32 0.0, %v3700
      %v3702 = vpop.f32.mrb[0].mxu0
      %3703 = vmatprep.mubr.f32.mxu0 0.0
      %3704 = vmatmul.mubr.f32.gmra.mrb[0].mxu0 %v3527
      %v3705 = vpop.f32.mrb[0].mxu0
      %v3706 = vadd.f32 0.0, %v3705
      %v3707 = vpop.f32.mrb[0].mxu0
      %3708 = vmatprep.mubr.f32.mxu0 0.0
      %3709 = vmatmul.mubr.f32.gmra.mrb[0].mxu0 %v3530
      %v3710 = vpop.f32.mrb[0].mxu0
      %v3711 = vadd.f32 0.0, %v3710
      %v3712 = vpop.f32.mrb[0].mxu0
      %3713 = vmatprep.mubr.f32.mxu0 0.0
      %3714 = vmatmul.mubr.f32.gmra.mrb[0].mxu0 %v3533
      %v3715 = vpop.f32.mrb[0].mxu0
      %v3716 = vadd.f32 0.0, %v3715
      %v3717 = vpop.f32.mrb[0].mxu0
      %3718 = vmatprep.mubr.f32.mxu0 0.0
      %3719 = vmatmul.mubr.f32.gmra.mrb[0].mxu0 %v3536
      %v3720 = vpop.f32.mrb[0].mxu0
      %v3721 = vadd.f32 0.0, %v3720
      %v3722 = vpop.f32.mrb[0].mxu0
      %3723 = vmatprep.mubr.f32.mxu0 0.0
      %3724 = vmatmul.mubr.f32.gmra.mrb[0].mxu0 %v3539
      %v3725 = vpop.f32.mrb[0].mxu0
      %v3726 = vadd.f32 0.0, %v3725
      %v3727 = vpop.f32.mrb[0].mxu0
      %3728 = vmatprep.mubr.f32.mxu0 0.0
      %3729 = vmatmul.mubr.f32.gmra.mrb[0].mxu0 %v3542
      %v3730 = vpop.f32.mrb[0].mxu0
      %v3731 = vadd.f32 0.0, %v3730
      %v3732 = vpop.f32.mrb[0].mxu0
      %3733 = vdwg.mxu0
      %v3734 = vadd.f32 %v3414, %v3611
      %v3735 = vadd.f32 %v3415, %v3616
      %v3736 = vadd.f32 %v3416, %v3621
      %v3737 = vadd.f32 %v3417, %v3626
      %v3738 = vadd.f32 %v3418, %v3631
      %v3739 = vadd.f32 %v3419, %v3636
      %v3740 = vadd.f32 %v3420, %v3641
      %v3741 = vadd.f32 %v3421, %v3646
      %v3742 = vadd.f32 %v3422, %v3651
      %v3743 = vadd.f32 %v3423, %v3656
      %v3744 = vadd.f32 %v3424, %v3661
      %v3745 = vadd.f32 %v3425, %v3666
      %v3746 = vadd.f32 %v3426, %v3671
      %v3747 = vadd.f32 %v3427, %v3676
      %v3748 = vadd.f32 %v3428, %v3681
      %v3749 = vadd.f32 %v3429, %v3686
      %v3750 = vadd.f32 %v3430, %v3691
      %v3751 = vadd.f32 %v3431, %v3696
      %v3752 = vadd.f32 %v3432, %v3701
      %v3753 = vadd.f32 %v3433, %v3706
      %v3754 = vadd.f32 %v3434, %v3711
      %v3755 = vadd.f32 %v3435, %v3716
      %v3756 = vadd.f32 %v3436, %v3721
      %v3757 = vadd.f32 %v3437, %v3726
      %v3758 = vadd.f32 %v3438, %v3731
      %v3759 = vld [vmem:[#allocation4 + $0x14] sm:$0xff]
      %v3760 = vld [vmem:[#allocation4 + $0x1c] sm:$0xff]
      %v3761 = vld [vmem:[#allocation4 + $0x24] sm:$0xff]
      %v3762 = vld [vmem:[#allocation4 + $0x2c] sm:$0xff]
      %v3763 = vld [vmem:[#allocation4 + $0x34] sm:$0xff]
      %v3764 = vld [vmem:[#allocation4 + $0x3c] sm:$0xff]
      %v3765 = vld [vmem:[#allocation4 + $0x44] sm:$0xff]
      %v3766 = vld [vmem:[#allocation4 + $0x4c] sm:$0xff]
      %v3767 = vld [vmem:[#allocation4 + $0x54] sm:$0xff]
      %v3768 = vld [vmem:[#allocation4 + $0x5c] sm:$0xff]
      %v3769 = vld [vmem:[#allocation4 + $0x64] sm:$0xff]
      %v3770 = vld [vmem:[#allocation4 + $0x6c] sm:$0xff]
      %v3771 = vld [vmem:[#allocation4 + $0x74] sm:$0xff]
      %v3772 = vld [vmem:[#allocation4 + $0x7c] sm:$0xff]
      %v3773 = vld [vmem:[#allocation4 + $0x84] sm:$0xff]
      %v3774 = vld [vmem:[#allocation4 + $0x8c] sm:$0xff]
      %v3775 = vld [vmem:[#allocation4 + $0x94] sm:$0xff]
      %v3776 = vld [vmem:[#allocation4 + $0x9c] sm:$0xff]
      %v3777 = vld [vmem:[#allocation4 + $0xa4] sm:$0xff]
      %v3778 = vld [vmem:[#allocation4 + $0xac] sm:$0xff]
      %v3779 = vld [vmem:[#allocation4 + $0xb4] sm:$0xff]
      %v3780 = vld [vmem:[#allocation4 + $0xbc] sm:$0xff]
      %v3781 = vld [vmem:[#allocation4 + $0xc4] sm:$0xff]
      %v3782 = vld [vmem:[#allocation4 + $0xcc] sm:$0xff]
      %v3783 = vld [vmem:[#allocation4 + $0xd4] sm:$0xff]
      %s3784 = scalar_lea.vmem %s3, 192
      %v3785 = vld [vmem:[%s3784] sm:$0xff]
      %v3786 = vld [vmem:[%s3784 + $0x8] sm:$0xff]
      %v3787 = vld [vmem:[%s3784 + $0x10] sm:$0xff]
      %v3788 = vld [vmem:[%s3784 + $0x18] sm:$0xff]
      %v3790 = vsel %vm694, %v3759, 0
      %v3793 = vsel %vm694, %v3760, 0
      %v3796 = vsel %vm694, %v3761, 0
      %v3799 = vsel %vm694, %v3762, 0
      %v3802 = vsel %vm694, %v3763, 0
      %v3805 = vsel %vm694, %v3764, 0
      %v3808 = vsel %vm694, %v3765, 0
      %v3811 = vsel %vm694, %v3766, 0
      %v3814 = vsel %vm694, %v3767, 0
      %v3817 = vsel %vm694, %v3768, 0
      %v3820 = vsel %vm694, %v3769, 0
      %v3823 = vsel %vm694, %v3770, 0
      %v3826 = vsel %vm694, %v3771, 0
      %v3829 = vsel %vm694, %v3772, 0
      %v3832 = vsel %vm694, %v3773, 0
      %v3835 = vsel %vm694, %v3774, 0
      %v3838 = vsel %vm694, %v3775, 0
      %v3841 = vsel %vm694, %v3776, 0
      %v3844 = vsel %vm694, %v3777, 0
      %v3847 = vsel %vm694, %v3778, 0
      %v3850 = vsel %vm694, %v3779, 0
      %v3853 = vsel %vm694, %v3780, 0
      %v3856 = vsel %vm694, %v3781, 0
      %v3859 = vsel %vm694, %v3782, 0
      %v3862 = vsel %vm694, %v3783, 0
      %3864 = vmatprep.subr.mxu0 0.0
      %3865 = vmatpush1.msra.mxu0 %v3785
      %3866 = vmatprep.subr.mxu0 0.0
      %3867 = vmatpush1.msra.mxu0 %v3786
      %3868 = vmatprep.subr.mxu0 0.0
      %3869 = vmatpush1.msra.mxu0 %v3787
      %3870 = vmatprep.subr.mxu0 0.0
      %3871 = vmatpush1.msra.mxu0 %v3788
      %3872 = vmatprep.subr.mxu0 0.0
      %3873 = vmatpush1.msra.mxu0 0.0
      %3874 = vmatprep.subr.mxu0 0.0
      %3875 = vmatpush1.msra.mxu0 0.0
      %3876 = vmatprep.subr.mxu0 0.0
      %3877 = vmatpush1.msra.mxu0 0.0
      %3878 = vmatprep.subr.mxu0 0.0
      %3879 = vmatpush1.msra.mxu0 0.0
      %3880 = vmatprep.subr.mxu0 0.0
      %3881 = vmatpush1.msra.mxu0 0.0
      %3882 = vmatprep.subr.mxu0 0.0
      %3883 = vmatpush1.msra.mxu0 0.0
      %3884 = vmatprep.subr.mxu0 0.0
      %3885 = vmatpush1.msra.mxu0 0.0
      %3886 = vmatprep.subr.mxu0 0.0
      %3887 = vmatpush1.msra.mxu0 0.0
      %3888 = vmatprep.subr.mxu0 0.0
      %3889 = vmatpush1.msra.mxu0 0.0
      %3890 = vmatprep.subr.mxu0 0.0
      %3891 = vmatpush1.msra.mxu0 0.0
      %3892 = vmatprep.subr.mxu0 0.0
      %3893 = vmatpush1.msra.mxu0 0.0
      %3894 = vmatprep.subr.mxu0 0.0
      %3895 = vmatpush1.msra.mxu0 0.0
      %3896 = vmatprep.subr.mxu0 0.0
      %3897 = vmatpush1.msra.mxu0 0.0
      %3898 = vmatprep.subr.mxu0 0.0
      %3899 = vmatpush1.msra.mxu0 0.0
      %3900 = vmatprep.subr.mxu0 0.0
      %3901 = vmatpush1.msra.mxu0 0.0
      %3902 = vmatprep.subr.mxu0 0.0
      %3903 = vmatpush1.msra.mxu0 0.0
      %3904 = vmatprep.subr.mxu0 0.0
      %3905 = vmatpush1.msra.mxu0 0.0
      %3906 = vmatprep.subr.mxu0 0.0
      %3907 = vmatpush1.msra.mxu0 0.0
      %3908 = vmatprep.subr.mxu0 0.0
      %3909 = vmatpush1.msra.mxu0 0.0
      %3910 = vmatprep.subr.mxu0 0.0
      %3911 = vmatpush1.msra.mxu0 0.0
      %3912 = vmatprep.subr.mxu0 0.0
      %3913 = vmatpush1.msra.mxu0 0.0
      %3914 = vmatprep.subr.mxu0 0.0
      %3915 = vmatpush1.msra.mxu0 0.0
      %3916 = vmatprep.subr.mxu0 0.0
      %3917 = vmatpush1.msra.mxu0 0.0
      %3918 = vmatprep.subr.mxu0 0.0
      %3919 = vmatpush1.msra.mxu0 0.0
      %3920 = vmatprep.subr.mxu0 0.0
      %3921 = vmatpush1.msra.mxu0 0.0
      %3922 = vmatprep.subr.mxu0 0.0
      %3923 = vmatpush1.msra.mxu0 0.0
      %3924 = vmatprep.subr.mxu0 0.0
      %3925 = vmatpush1.msra.mxu0 0.0
      %3926 = vmatprep.subr.mxu0 0.0
      %3927 = vmatpush1.msra.mxu0 0.0
      %3928 = vmatprep.mubr.f32.mxu0 0.0
      %3929 = vmatmul.mubr.f32.gmra.mrb[0].mxu0 %v3790
      %v3930 = vpop.f32.mrb[0].mxu0
      %v3931 = vadd.f32 0.0, %v3930
      %v3932 = vpop.f32.mrb[0].mxu0
      %3933 = vmatprep.mubr.f32.mxu0 0.0
      %3934 = vmatmul.mubr.f32.gmra.mrb[0].mxu0 %v3793
      %v3935 = vpop.f32.mrb[0].mxu0
      %v3936 = vadd.f32 0.0, %v3935
      %v3937 = vpop.f32.mrb[0].mxu0
      %3938 = vmatprep.mubr.f32.mxu0 0.0
      %3939 = vmatmul.mubr.f32.gmra.mrb[0].mxu0 %v3796
      %v3940 = vpop.f32.mrb[0].mxu0
      %v3941 = vadd.f32 0.0, %v3940
      %v3942 = vpop.f32.mrb[0].mxu0
      %3943 = vmatprep.mubr.f32.mxu0 0.0
      %3944 = vmatmul.mubr.f32.gmra.mrb[0].mxu0 %v3799
      %v3945 = vpop.f32.mrb[0].mxu0
      %v3946 = vadd.f32 0.0, %v3945
      %v3947 = vpop.f32.mrb[0].mxu0
      %3948 = vmatprep.mubr.f32.mxu0 0.0
      %3949 = vmatmul.mubr.f32.gmra.mrb[0].mxu0 %v3802
      %v3950 = vpop.f32.mrb[0].mxu0
      %v3951 = vadd.f32 0.0, %v3950
      %v3952 = vpop.f32.mrb[0].mxu0
      %3953 = vmatprep.mubr.f32.mxu0 0.0
      %3954 = vmatmul.mubr.f32.gmra.mrb[0].mxu0 %v3805
      %v3955 = vpop.f32.mrb[0].mxu0
      %v3956 = vadd.f32 0.0, %v3955
      %v3957 = vpop.f32.mrb[0].mxu0
      %3958 = vmatprep.mubr.f32.mxu0 0.0
      %3959 = vmatmul.mubr.f32.gmra.mrb[0].mxu0 %v3808
      %v3960 = vpop.f32.mrb[0].mxu0
      %v3961 = vadd.f32 0.0, %v3960
      %v3962 = vpop.f32.mrb[0].mxu0
      %3963 = vmatprep.mubr.f32.mxu0 0.0
      %3964 = vmatmul.mubr.f32.gmra.mrb[0].mxu0 %v3811
      %v3965 = vpop.f32.mrb[0].mxu0
      %v3966 = vadd.f32 0.0, %v3965
      %v3967 = vpop.f32.mrb[0].mxu0
      %3968 = vmatprep.mubr.f32.mxu0 0.0
      %3969 = vmatmul.mubr.f32.gmra.mrb[0].mxu0 %v3814
      %v3970 = vpop.f32.mrb[0].mxu0
      %v3971 = vadd.f32 0.0, %v3970
      %v3972 = vpop.f32.mrb[0].mxu0
      %3973 = vmatprep.mubr.f32.mxu0 0.0
      %3974 = vmatmul.mubr.f32.gmra.mrb[0].mxu0 %v3817
      %v3975 = vpop.f32.mrb[0].mxu0
      %v3976 = vadd.f32 0.0, %v3975
      %v3977 = vpop.f32.mrb[0].mxu0
      %3978 = vmatprep.mubr.f32.mxu0 0.0
      %3979 = vmatmul.mubr.f32.gmra.mrb[0].mxu0 %v3820
      %v3980 = vpop.f32.mrb[0].mxu0
      %v3981 = vadd.f32 0.0, %v3980
      %v3982 = vpop.f32.mrb[0].mxu0
      %3983 = vmatprep.mubr.f32.mxu0 0.0
      %3984 = vmatmul.mubr.f32.gmra.mrb[0].mxu0 %v3823
      %v3985 = vpop.f32.mrb[0].mxu0
      %v3986 = vadd.f32 0.0, %v3985
      %v3987 = vpop.f32.mrb[0].mxu0
      %3988 = vmatprep.mubr.f32.mxu0 0.0
      %3989 = vmatmul.mubr.f32.gmra.mrb[0].mxu0 %v3826
      %v3990 = vpop.f32.mrb[0].mxu0
      %v3991 = vadd.f32 0.0, %v3990
      %v3992 = vpop.f32.mrb[0].mxu0
      %3993 = vmatprep.mubr.f32.mxu0 0.0
      %3994 = vmatmul.mubr.f32.gmra.mrb[0].mxu0 %v3829
      %v3995 = vpop.f32.mrb[0].mxu0
      %v3996 = vadd.f32 0.0, %v3995
      %v3997 = vpop.f32.mrb[0].mxu0
      %3998 = vmatprep.mubr.f32.mxu0 0.0
      %3999 = vmatmul.mubr.f32.gmra.mrb[0].mxu0 %v3832
      %v4000 = vpop.f32.mrb[0].mxu0
      %v4001 = vadd.f32 0.0, %v4000
      %v4002 = vpop.f32.mrb[0].mxu0
      %4003 = vmatprep.mubr.f32.mxu0 0.0
      %4004 = vmatmul.mubr.f32.gmra.mrb[0].mxu0 %v3835
      %v4005 = vpop.f32.mrb[0].mxu0
      %v4006 = vadd.f32 0.0, %v4005
      %v4007 = vpop.f32.mrb[0].mxu0
      %4008 = vmatprep.mubr.f32.mxu0 0.0
      %4009 = vmatmul.mubr.f32.gmra.mrb[0].mxu0 %v3838
      %v4010 = vpop.f32.mrb[0].mxu0
      %v4011 = vadd.f32 0.0, %v4010
      %v4012 = vpop.f32.mrb[0].mxu0
      %4013 = vmatprep.mubr.f32.mxu0 0.0
      %4014 = vmatmul.mubr.f32.gmra.mrb[0].mxu0 %v3841
      %v4015 = vpop.f32.mrb[0].mxu0
      %v4016 = vadd.f32 0.0, %v4015
      %v4017 = vpop.f32.mrb[0].mxu0
      %4018 = vmatprep.mubr.f32.mxu0 0.0
      %4019 = vmatmul.mubr.f32.gmra.mrb[0].mxu0 %v3844
      %v4020 = vpop.f32.mrb[0].mxu0
      %v4021 = vadd.f32 0.0, %v4020
      %v4022 = vpop.f32.mrb[0].mxu0
      %4023 = vmatprep.mubr.f32.mxu0 0.0
      %4024 = vmatmul.mubr.f32.gmra.mrb[0].mxu0 %v3847
      %v4025 = vpop.f32.mrb[0].mxu0
      %v4026 = vadd.f32 0.0, %v4025
      %v4027 = vpop.f32.mrb[0].mxu0
      %4028 = vmatprep.mubr.f32.mxu0 0.0
      %4029 = vmatmul.mubr.f32.gmra.mrb[0].mxu0 %v3850
      %v4030 = vpop.f32.mrb[0].mxu0
      %v4031 = vadd.f32 0.0, %v4030
      %v4032 = vpop.f32.mrb[0].mxu0
      %4033 = vmatprep.mubr.f32.mxu0 0.0
      %4034 = vmatmul.mubr.f32.gmra.mrb[0].mxu0 %v3853
      %v4035 = vpop.f32.mrb[0].mxu0
      %v4036 = vadd.f32 0.0, %v4035
      %v4037 = vpop.f32.mrb[0].mxu0
      %4038 = vmatprep.mubr.f32.mxu0 0.0
      %4039 = vmatmul.mubr.f32.gmra.mrb[0].mxu0 %v3856
      %v4040 = vpop.f32.mrb[0].mxu0
      %v4041 = vadd.f32 0.0, %v4040
      %v4042 = vpop.f32.mrb[0].mxu0
      %4043 = vmatprep.mubr.f32.mxu0 0.0
      %4044 = vmatmul.mubr.f32.gmra.mrb[0].mxu0 %v3859
      %v4045 = vpop.f32.mrb[0].mxu0
      %v4046 = vadd.f32 0.0, %v4045
      %v4047 = vpop.f32.mrb[0].mxu0
      %4048 = vmatprep.mubr.f32.mxu0 0.0
      %4049 = vmatmul.mubr.f32.gmra.mrb[0].mxu0 %v3862
      %v4050 = vpop.f32.mrb[0].mxu0
      %v4051 = vadd.f32 0.0, %v4050
      %v4052 = vpop.f32.mrb[0].mxu0
      %4053 = vdwg.mxu0
      %v4054 = vadd.f32 %v3734, %v3931
      %v4055 = vadd.f32 %v3735, %v3936
      %v4056 = vadd.f32 %v3736, %v3941
      %v4057 = vadd.f32 %v3737, %v3946
      %v4058 = vadd.f32 %v3738, %v3951
      %v4059 = vadd.f32 %v3739, %v3956
      %v4060 = vadd.f32 %v3740, %v3961
      %v4061 = vadd.f32 %v3741, %v3966
      %v4062 = vadd.f32 %v3742, %v3971
      %v4063 = vadd.f32 %v3743, %v3976
      %v4064 = vadd.f32 %v3744, %v3981
      %v4065 = vadd.f32 %v3745, %v3986
      %v4066 = vadd.f32 %v3746, %v3991
      %v4067 = vadd.f32 %v3747, %v3996
      %v4068 = vadd.f32 %v3748, %v4001
      %v4069 = vadd.f32 %v3749, %v4006
      %v4070 = vadd.f32 %v3750, %v4011
      %v4071 = vadd.f32 %v3751, %v4016
      %v4072 = vadd.f32 %v3752, %v4021
      %v4073 = vadd.f32 %v3753, %v4026
      %v4074 = vadd.f32 %v3754, %v4031
      %v4075 = vadd.f32 %v3755, %v4036
      %v4076 = vadd.f32 %v3756, %v4041
      %v4077 = vadd.f32 %v3757, %v4046
      %v4078 = vadd.f32 %v3758, %v4051
      %v4079 = vld [vmem:[#allocation4 + $0x15] sm:$0xff]
      %v4080 = vld [vmem:[#allocation4 + $0x1d] sm:$0xff]
      %v4081 = vld [vmem:[#allocation4 + $0x25] sm:$0xff]
      %v4082 = vld [vmem:[#allocation4 + $0x2d] sm:$0xff]
      %v4083 = vld [vmem:[#allocation4 + $0x35] sm:$0xff]
      %v4084 = vld [vmem:[#allocation4 + $0x3d] sm:$0xff]
      %v4085 = vld [vmem:[#allocation4 + $0x45] sm:$0xff]
      %v4086 = vld [vmem:[#allocation4 + $0x4d] sm:$0xff]
      %v4087 = vld [vmem:[#allocation4 + $0x55] sm:$0xff]
      %v4088 = vld [vmem:[#allocation4 + $0x5d] sm:$0xff]
      %v4089 = vld [vmem:[#allocation4 + $0x65] sm:$0xff]
      %v4090 = vld [vmem:[#allocation4 + $0x6d] sm:$0xff]
      %v4091 = vld [vmem:[#allocation4 + $0x75] sm:$0xff]
      %v4092 = vld [vmem:[#allocation4 + $0x7d] sm:$0xff]
      %v4093 = vld [vmem:[#allocation4 + $0x85] sm:$0xff]
      %v4094 = vld [vmem:[#allocation4 + $0x8d] sm:$0xff]
      %v4095 = vld [vmem:[#allocation4 + $0x95] sm:$0xff]
      %v4096 = vld [vmem:[#allocation4 + $0x9d] sm:$0xff]
      %v4097 = vld [vmem:[#allocation4 + $0xa5] sm:$0xff]
      %v4098 = vld [vmem:[#allocation4 + $0xad] sm:$0xff]
      %v4099 = vld [vmem:[#allocation4 + $0xb5] sm:$0xff]
      %v4100 = vld [vmem:[#allocation4 + $0xbd] sm:$0xff]
      %v4101 = vld [vmem:[#allocation4 + $0xc5] sm:$0xff]
      %v4102 = vld [vmem:[#allocation4 + $0xcd] sm:$0xff]
      %v4103 = vld [vmem:[#allocation4 + $0xd5] sm:$0xff]
      %s4104 = scalar_lea.vmem %s3, 224
      %v4105 = vld [vmem:[%s4104] sm:$0xff]
      %v4106 = vld [vmem:[%s4104 + $0x8] sm:$0xff]
      %v4107 = vld [vmem:[%s4104 + $0x10] sm:$0xff]
      %v4108 = vld [vmem:[%s4104 + $0x18] sm:$0xff]
      %v4110 = vsel %vm694, %v4079, 0
      %v4113 = vsel %vm694, %v4080, 0
      %v4116 = vsel %vm694, %v4081, 0
      %v4119 = vsel %vm694, %v4082, 0
      %v4122 = vsel %vm694, %v4083, 0
      %v4125 = vsel %vm694, %v4084, 0
      %v4128 = vsel %vm694, %v4085, 0
      %v4131 = vsel %vm694, %v4086, 0
      %v4134 = vsel %vm694, %v4087, 0
      %v4137 = vsel %vm694, %v4088, 0
      %v4140 = vsel %vm694, %v4089, 0
      %v4143 = vsel %vm694, %v4090, 0
      %v4146 = vsel %vm694, %v4091, 0
      %v4149 = vsel %vm694, %v4092, 0
      %v4152 = vsel %vm694, %v4093, 0
      %v4155 = vsel %vm694, %v4094, 0
      %v4158 = vsel %vm694, %v4095, 0
      %v4161 = vsel %vm694, %v4096, 0
      %v4164 = vsel %vm694, %v4097, 0
      %v4167 = vsel %vm694, %v4098, 0
      %v4170 = vsel %vm694, %v4099, 0
      %v4173 = vsel %vm694, %v4100, 0
      %v4176 = vsel %vm694, %v4101, 0
      %v4179 = vsel %vm694, %v4102, 0
      %v4182 = vsel %vm694, %v4103, 0
      %4184 = vmatprep.subr.mxu0 0.0
      %4185 = vmatpush1.msra.mxu0 %v4105
      %4186 = vmatprep.subr.mxu0 0.0
      %4187 = vmatpush1.msra.mxu0 %v4106
      %4188 = vmatprep.subr.mxu0 0.0
      %4189 = vmatpush1.msra.mxu0 %v4107
      %4190 = vmatprep.subr.mxu0 0.0
      %4191 = vmatpush1.msra.mxu0 %v4108
      %4192 = vmatprep.subr.mxu0 0.0
      %4193 = vmatpush1.msra.mxu0 0.0
      %4194 = vmatprep.subr.mxu0 0.0
      %4195 = vmatpush1.msra.mxu0 0.0
      %4196 = vmatprep.subr.mxu0 0.0
      %4197 = vmatpush1.msra.mxu0 0.0
      %4198 = vmatprep.subr.mxu0 0.0
      %4199 = vmatpush1.msra.mxu0 0.0
      %4200 = vmatprep.subr.mxu0 0.0
      %4201 = vmatpush1.msra.mxu0 0.0
      %4202 = vmatprep.subr.mxu0 0.0
      %4203 = vmatpush1.msra.mxu0 0.0
      %4204 = vmatprep.subr.mxu0 0.0
      %4205 = vmatpush1.msra.mxu0 0.0
      %4206 = vmatprep.subr.mxu0 0.0
      %4207 = vmatpush1.msra.mxu0 0.0
      %4208 = vmatprep.subr.mxu0 0.0
      %4209 = vmatpush1.msra.mxu0 0.0
      %4210 = vmatprep.subr.mxu0 0.0
      %4211 = vmatpush1.msra.mxu0 0.0
      %4212 = vmatprep.subr.mxu0 0.0
      %4213 = vmatpush1.msra.mxu0 0.0
      %4214 = vmatprep.subr.mxu0 0.0
      %4215 = vmatpush1.msra.mxu0 0.0
      %4216 = vmatprep.subr.mxu0 0.0
      %4217 = vmatpush1.msra.mxu0 0.0
      %4218 = vmatprep.subr.mxu0 0.0
      %4219 = vmatpush1.msra.mxu0 0.0
      %4220 = vmatprep.subr.mxu0 0.0
      %4221 = vmatpush1.msra.mxu0 0.0
      %4222 = vmatprep.subr.mxu0 0.0
      %4223 = vmatpush1.msra.mxu0 0.0
      %4224 = vmatprep.subr.mxu0 0.0
      %4225 = vmatpush1.msra.mxu0 0.0
      %4226 = vmatprep.subr.mxu0 0.0
      %4227 = vmatpush1.msra.mxu0 0.0
      %4228 = vmatprep.subr.mxu0 0.0
      %4229 = vmatpush1.msra.mxu0 0.0
      %4230 = vmatprep.subr.mxu0 0.0
      %4231 = vmatpush1.msra.mxu0 0.0
      %4232 = vmatprep.subr.mxu0 0.0
      %4233 = vmatpush1.msra.mxu0 0.0
      %4234 = vmatprep.subr.mxu0 0.0
      %4235 = vmatpush1.msra.mxu0 0.0
      %4236 = vmatprep.subr.mxu0 0.0
      %4237 = vmatpush1.msra.mxu0 0.0
      %4238 = vmatprep.subr.mxu0 0.0
      %4239 = vmatpush1.msra.mxu0 0.0
      %4240 = vmatprep.subr.mxu0 0.0
      %4241 = vmatpush1.msra.mxu0 0.0
      %4242 = vmatprep.subr.mxu0 0.0
      %4243 = vmatpush1.msra.mxu0 0.0
      %4244 = vmatprep.subr.mxu0 0.0
      %4245 = vmatpush1.msra.mxu0 0.0
      %4246 = vmatprep.subr.mxu0 0.0
      %4247 = vmatpush1.msra.mxu0 0.0
      %4248 = vmatprep.mubr.f32.mxu0 0.0
      %4249 = vmatmul.mubr.f32.gmra.mrb[0].mxu0 %v4110
      %v4250 = vpop.f32.mrb[0].mxu0
      %v4251 = vadd.f32 0.0, %v4250
      %v4252 = vpop.f32.mrb[0].mxu0
      %4253 = vmatprep.mubr.f32.mxu0 0.0
      %4254 = vmatmul.mubr.f32.gmra.mrb[0].mxu0 %v4113
      %v4255 = vpop.f32.mrb[0].mxu0
      %v4256 = vadd.f32 0.0, %v4255
      %v4257 = vpop.f32.mrb[0].mxu0
      %4258 = vmatprep.mubr.f32.mxu0 0.0
      %4259 = vmatmul.mubr.f32.gmra.mrb[0].mxu0 %v4116
      %v4260 = vpop.f32.mrb[0].mxu0
      %v4261 = vadd.f32 0.0, %v4260
      %v4262 = vpop.f32.mrb[0].mxu0
      %4263 = vmatprep.mubr.f32.mxu0 0.0
      %4264 = vmatmul.mubr.f32.gmra.mrb[0].mxu0 %v4119
      %v4265 = vpop.f32.mrb[0].mxu0
      %v4266 = vadd.f32 0.0, %v4265
      %v4267 = vpop.f32.mrb[0].mxu0
      %4268 = vmatprep.mubr.f32.mxu0 0.0
      %4269 = vmatmul.mubr.f32.gmra.mrb[0].mxu0 %v4122
      %v4270 = vpop.f32.mrb[0].mxu0
      %v4271 = vadd.f32 0.0, %v4270
      %v4272 = vpop.f32.mrb[0].mxu0
      %4273 = vmatprep.mubr.f32.mxu0 0.0
      %4274 = vmatmul.mubr.f32.gmra.mrb[0].mxu0 %v4125
      %v4275 = vpop.f32.mrb[0].mxu0
      %v4276 = vadd.f32 0.0, %v4275
      %v4277 = vpop.f32.mrb[0].mxu0
      %4278 = vmatprep.mubr.f32.mxu0 0.0
      %4279 = vmatmul.mubr.f32.gmra.mrb[0].mxu0 %v4128
      %v4280 = vpop.f32.mrb[0].mxu0
      %v4281 = vadd.f32 0.0, %v4280
      %v4282 = vpop.f32.mrb[0].mxu0
      %4283 = vmatprep.mubr.f32.mxu0 0.0
      %4284 = vmatmul.mubr.f32.gmra.mrb[0].mxu0 %v4131
      %v4285 = vpop.f32.mrb[0].mxu0
      %v4286 = vadd.f32 0.0, %v4285
      %v4287 = vpop.f32.mrb[0].mxu0
      %4288 = vmatprep.mubr.f32.mxu0 0.0
      %4289 = vmatmul.mubr.f32.gmra.mrb[0].mxu0 %v4134
      %v4290 = vpop.f32.mrb[0].mxu0
      %v4291 = vadd.f32 0.0, %v4290
      %v4292 = vpop.f32.mrb[0].mxu0
      %4293 = vmatprep.mubr.f32.mxu0 0.0
      %4294 = vmatmul.mubr.f32.gmra.mrb[0].mxu0 %v4137
      %v4295 = vpop.f32.mrb[0].mxu0
      %v4296 = vadd.f32 0.0, %v4295
      %v4297 = vpop.f32.mrb[0].mxu0
      %4298 = vmatprep.mubr.f32.mxu0 0.0
      %4299 = vmatmul.mubr.f32.gmra.mrb[0].mxu0 %v4140
      %v4300 = vpop.f32.mrb[0].mxu0
      %v4301 = vadd.f32 0.0, %v4300
      %v4302 = vpop.f32.mrb[0].mxu0
      %4303 = vmatprep.mubr.f32.mxu0 0.0
      %4304 = vmatmul.mubr.f32.gmra.mrb[0].mxu0 %v4143
      %v4305 = vpop.f32.mrb[0].mxu0
      %v4306 = vadd.f32 0.0, %v4305
      %v4307 = vpop.f32.mrb[0].mxu0
      %4308 = vmatprep.mubr.f32.mxu0 0.0
      %4309 = vmatmul.mubr.f32.gmra.mrb[0].mxu0 %v4146
      %v4310 = vpop.f32.mrb[0].mxu0
      %v4311 = vadd.f32 0.0, %v4310
      %v4312 = vpop.f32.mrb[0].mxu0
      %4313 = vmatprep.mubr.f32.mxu0 0.0
      %4314 = vmatmul.mubr.f32.gmra.mrb[0].mxu0 %v4149
      %v4315 = vpop.f32.mrb[0].mxu0
      %v4316 = vadd.f32 0.0, %v4315
      %v4317 = vpop.f32.mrb[0].mxu0
      %4318 = vmatprep.mubr.f32.mxu0 0.0
      %4319 = vmatmul.mubr.f32.gmra.mrb[0].mxu0 %v4152
      %v4320 = vpop.f32.mrb[0].mxu0
      %v4321 = vadd.f32 0.0, %v4320
      %v4322 = vpop.f32.mrb[0].mxu0
      %4323 = vmatprep.mubr.f32.mxu0 0.0
      %4324 = vmatmul.mubr.f32.gmra.mrb[0].mxu0 %v4155
      %v4325 = vpop.f32.mrb[0].mxu0
      %v4326 = vadd.f32 0.0, %v4325
      %v4327 = vpop.f32.mrb[0].mxu0
      %4328 = vmatprep.mubr.f32.mxu0 0.0
      %4329 = vmatmul.mubr.f32.gmra.mrb[0].mxu0 %v4158
      %v4330 = vpop.f32.mrb[0].mxu0
      %v4331 = vadd.f32 0.0, %v4330
      %v4332 = vpop.f32.mrb[0].mxu0
      %4333 = vmatprep.mubr.f32.mxu0 0.0
      %4334 = vmatmul.mubr.f32.gmra.mrb[0].mxu0 %v4161
      %v4335 = vpop.f32.mrb[0].mxu0
      %v4336 = vadd.f32 0.0, %v4335
      %v4337 = vpop.f32.mrb[0].mxu0
      %4338 = vmatprep.mubr.f32.mxu0 0.0
      %4339 = vmatmul.mubr.f32.gmra.mrb[0].mxu0 %v4164
      %v4340 = vpop.f32.mrb[0].mxu0
      %v4341 = vadd.f32 0.0, %v4340
      %v4342 = vpop.f32.mrb[0].mxu0
      %4343 = vmatprep.mubr.f32.mxu0 0.0
      %4344 = vmatmul.mubr.f32.gmra.mrb[0].mxu0 %v4167
      %v4345 = vpop.f32.mrb[0].mxu0
      %v4346 = vadd.f32 0.0, %v4345
      %v4347 = vpop.f32.mrb[0].mxu0
      %4348 = vmatprep.mubr.f32.mxu0 0.0
      %4349 = vmatmul.mubr.f32.gmra.mrb[0].mxu0 %v4170
      %v4350 = vpop.f32.mrb[0].mxu0
      %v4351 = vadd.f32 0.0, %v4350
      %v4352 = vpop.f32.mrb[0].mxu0
      %4353 = vmatprep.mubr.f32.mxu0 0.0
      %4354 = vmatmul.mubr.f32.gmra.mrb[0].mxu0 %v4173
      %v4355 = vpop.f32.mrb[0].mxu0
      %v4356 = vadd.f32 0.0, %v4355
      %v4357 = vpop.f32.mrb[0].mxu0
      %4358 = vmatprep.mubr.f32.mxu0 0.0
      %4359 = vmatmul.mubr.f32.gmra.mrb[0].mxu0 %v4176
      %v4360 = vpop.f32.mrb[0].mxu0
      %v4361 = vadd.f32 0.0, %v4360
      %v4362 = vpop.f32.mrb[0].mxu0
      %4363 = vmatprep.mubr.f32.mxu0 0.0
      %4364 = vmatmul.mubr.f32.gmra.mrb[0].mxu0 %v4179
      %v4365 = vpop.f32.mrb[0].mxu0
      %v4366 = vadd.f32 0.0, %v4365
      %v4367 = vpop.f32.mrb[0].mxu0
      %4368 = vmatprep.mubr.f32.mxu0 0.0
      %4369 = vmatmul.mubr.f32.gmra.mrb[0].mxu0 %v4182
      %v4370 = vpop.f32.mrb[0].mxu0
      %v4371 = vadd.f32 0.0, %v4370
      %v4372 = vpop.f32.mrb[0].mxu0
      %4373 = vdwg.mxu0
      %v4374 = vadd.f32 %v4054, %v4251
      %v4375 = vadd.f32 %v4055, %v4256
      %v4376 = vadd.f32 %v4056, %v4261
      %v4377 = vadd.f32 %v4057, %v4266
      %v4378 = vadd.f32 %v4058, %v4271
      %v4379 = vadd.f32 %v4059, %v4276
      %v4380 = vadd.f32 %v4060, %v4281
      %v4381 = vadd.f32 %v4061, %v4286
      %v4382 = vadd.f32 %v4062, %v4291
      %v4383 = vadd.f32 %v4063, %v4296
      %v4384 = vadd.f32 %v4064, %v4301
      %v4385 = vadd.f32 %v4065, %v4306
      %v4386 = vadd.f32 %v4066, %v4311
      %v4387 = vadd.f32 %v4067, %v4316
      %v4388 = vadd.f32 %v4068, %v4321
      %v4389 = vadd.f32 %v4069, %v4326
      %v4390 = vadd.f32 %v4070, %v4331
      %v4391 = vadd.f32 %v4071, %v4336
      %v4392 = vadd.f32 %v4072, %v4341
      %v4393 = vadd.f32 %v4073, %v4346
      %v4394 = vadd.f32 %v4074, %v4351
      %v4395 = vadd.f32 %v4075, %v4356
      %v4396 = vadd.f32 %v4076, %v4361
      %v4397 = vadd.f32 %v4077, %v4366
      %v4398 = vadd.f32 %v4078, %v4371
      %v4399 = vld [vmem:[#allocation4 + $0x16] sm:$0xff]
      %v4400 = vld [vmem:[#allocation4 + $0x1e] sm:$0xff]
      %v4401 = vld [vmem:[#allocation4 + $0x26] sm:$0xff]
      %v4402 = vld [vmem:[#allocation4 + $0x2e] sm:$0xff]
      %v4403 = vld [vmem:[#allocation4 + $0x36] sm:$0xff]
      %v4404 = vld [vmem:[#allocation4 + $0x3e] sm:$0xff]
      %v4405 = vld [vmem:[#allocation4 + $0x46] sm:$0xff]
      %v4406 = vld [vmem:[#allocation4 + $0x4e] sm:$0xff]
      %v4407 = vld [vmem:[#allocation4 + $0x56] sm:$0xff]
      %v4408 = vld [vmem:[#allocation4 + $0x5e] sm:$0xff]
      %v4409 = vld [vmem:[#allocation4 + $0x66] sm:$0xff]
      %v4410 = vld [vmem:[#allocation4 + $0x6e] sm:$0xff]
      %v4411 = vld [vmem:[#allocation4 + $0x76] sm:$0xff]
      %v4412 = vld [vmem:[#allocation4 + $0x7e] sm:$0xff]
      %v4413 = vld [vmem:[#allocation4 + $0x86] sm:$0xff]
      %v4414 = vld [vmem:[#allocation4 + $0x8e] sm:$0xff]
      %v4415 = vld [vmem:[#allocation4 + $0x96] sm:$0xff]
      %v4416 = vld [vmem:[#allocation4 + $0x9e] sm:$0xff]
      %v4417 = vld [vmem:[#allocation4 + $0xa6] sm:$0xff]
      %v4418 = vld [vmem:[#allocation4 + $0xae] sm:$0xff]
      %v4419 = vld [vmem:[#allocation4 + $0xb6] sm:$0xff]
      %v4420 = vld [vmem:[#allocation4 + $0xbe] sm:$0xff]
      %v4421 = vld [vmem:[#allocation4 + $0xc6] sm:$0xff]
      %v4422 = vld [vmem:[#allocation4 + $0xce] sm:$0xff]
      %v4423 = vld [vmem:[#allocation4 + $0xd6] sm:$0xff]
      %s4424 = scalar_lea.vmem %s3, 256
      %v4425 = vld [vmem:[%s4424] sm:$0xff]
      %v4426 = vld [vmem:[%s4424 + $0x8] sm:$0xff]
      %v4427 = vld [vmem:[%s4424 + $0x10] sm:$0xff]
      %v4428 = vld [vmem:[%s4424 + $0x18] sm:$0xff]
      %v4430 = vsel %vm694, %v4399, 0
      %v4433 = vsel %vm694, %v4400, 0
      %v4436 = vsel %vm694, %v4401, 0
      %v4439 = vsel %vm694, %v4402, 0
      %v4442 = vsel %vm694, %v4403, 0
      %v4445 = vsel %vm694, %v4404, 0
      %v4448 = vsel %vm694, %v4405, 0
      %v4451 = vsel %vm694, %v4406, 0
      %v4454 = vsel %vm694, %v4407, 0
      %v4457 = vsel %vm694, %v4408, 0
      %v4460 = vsel %vm694, %v4409, 0
      %v4463 = vsel %vm694, %v4410, 0
      %v4466 = vsel %vm694, %v4411, 0
      %v4469 = vsel %vm694, %v4412, 0
      %v4472 = vsel %vm694, %v4413, 0
      %v4475 = vsel %vm694, %v4414, 0
      %v4478 = vsel %vm694, %v4415, 0
      %v4481 = vsel %vm694, %v4416, 0
      %v4484 = vsel %vm694, %v4417, 0
      %v4487 = vsel %vm694, %v4418, 0
      %v4490 = vsel %vm694, %v4419, 0
      %v4493 = vsel %vm694, %v4420, 0
      %v4496 = vsel %vm694, %v4421, 0
      %v4499 = vsel %vm694, %v4422, 0
      %v4502 = vsel %vm694, %v4423, 0
      %4504 = vmatprep.subr.mxu0 0.0
      %4505 = vmatpush1.msra.mxu0 %v4425
      %4506 = vmatprep.subr.mxu0 0.0
      %4507 = vmatpush1.msra.mxu0 %v4426
      %4508 = vmatprep.subr.mxu0 0.0
      %4509 = vmatpush1.msra.mxu0 %v4427
      %4510 = vmatprep.subr.mxu0 0.0
      %4511 = vmatpush1.msra.mxu0 %v4428
      %4512 = vmatprep.subr.mxu0 0.0
      %4513 = vmatpush1.msra.mxu0 0.0
      %4514 = vmatprep.subr.mxu0 0.0
      %4515 = vmatpush1.msra.mxu0 0.0
      %4516 = vmatprep.subr.mxu0 0.0
      %4517 = vmatpush1.msra.mxu0 0.0
      %4518 = vmatprep.subr.mxu0 0.0
      %4519 = vmatpush1.msra.mxu0 0.0
      %4520 = vmatprep.subr.mxu0 0.0
      %4521 = vmatpush1.msra.mxu0 0.0
      %4522 = vmatprep.subr.mxu0 0.0
      %4523 = vmatpush1.msra.mxu0 0.0
      %4524 = vmatprep.subr.mxu0 0.0
      %4525 = vmatpush1.msra.mxu0 0.0
      %4526 = vmatprep.subr.mxu0 0.0
      %4527 = vmatpush1.msra.mxu0 0.0
      %4528 = vmatprep.subr.mxu0 0.0
      %4529 = vmatpush1.msra.mxu0 0.0
      %4530 = vmatprep.subr.mxu0 0.0
      %4531 = vmatpush1.msra.mxu0 0.0
      %4532 = vmatprep.subr.mxu0 0.0
      %4533 = vmatpush1.msra.mxu0 0.0
      %4534 = vmatprep.subr.mxu0 0.0
      %4535 = vmatpush1.msra.mxu0 0.0
      %4536 = vmatprep.subr.mxu0 0.0
      %4537 = vmatpush1.msra.mxu0 0.0
      %4538 = vmatprep.subr.mxu0 0.0
      %4539 = vmatpush1.msra.mxu0 0.0
      %4540 = vmatprep.subr.mxu0 0.0
      %4541 = vmatpush1.msra.mxu0 0.0
      %4542 = vmatprep.subr.mxu0 0.0
      %4543 = vmatpush1.msra.mxu0 0.0
      %4544 = vmatprep.subr.mxu0 0.0
      %4545 = vmatpush1.msra.mxu0 0.0
      %4546 = vmatprep.subr.mxu0 0.0
      %4547 = vmatpush1.msra.mxu0 0.0
      %4548 = vmatprep.subr.mxu0 0.0
      %4549 = vmatpush1.msra.mxu0 0.0
      %4550 = vmatprep.subr.mxu0 0.0
      %4551 = vmatpush1.msra.mxu0 0.0
      %4552 = vmatprep.subr.mxu0 0.0
      %4553 = vmatpush1.msra.mxu0 0.0
      %4554 = vmatprep.subr.mxu0 0.0
      %4555 = vmatpush1.msra.mxu0 0.0
      %4556 = vmatprep.subr.mxu0 0.0
      %4557 = vmatpush1.msra.mxu0 0.0
      %4558 = vmatprep.subr.mxu0 0.0
      %4559 = vmatpush1.msra.mxu0 0.0
      %4560 = vmatprep.subr.mxu0 0.0
      %4561 = vmatpush1.msra.mxu0 0.0
      %4562 = vmatprep.subr.mxu0 0.0
      %4563 = vmatpush1.msra.mxu0 0.0
      %4564 = vmatprep.subr.mxu0 0.0
      %4565 = vmatpush1.msra.mxu0 0.0
      %4566 = vmatprep.subr.mxu0 0.0
      %4567 = vmatpush1.msra.mxu0 0.0
      %4568 = vmatprep.mubr.f32.mxu0 0.0
      %4569 = vmatmul.mubr.f32.gmra.mrb[0].mxu0 %v4430
      %v4570 = vpop.f32.mrb[0].mxu0
      %v4571 = vadd.f32 0.0, %v4570
      %v4572 = vpop.f32.mrb[0].mxu0
      %4573 = vmatprep.mubr.f32.mxu0 0.0
      %4574 = vmatmul.mubr.f32.gmra.mrb[0].mxu0 %v4433
      %v4575 = vpop.f32.mrb[0].mxu0
      %v4576 = vadd.f32 0.0, %v4575
      %v4577 = vpop.f32.mrb[0].mxu0
      %4578 = vmatprep.mubr.f32.mxu0 0.0
      %4579 = vmatmul.mubr.f32.gmra.mrb[0].mxu0 %v4436
      %v4580 = vpop.f32.mrb[0].mxu0
      %v4581 = vadd.f32 0.0, %v4580
      %v4582 = vpop.f32.mrb[0].mxu0
      %4583 = vmatprep.mubr.f32.mxu0 0.0
      %4584 = vmatmul.mubr.f32.gmra.mrb[0].mxu0 %v4439
      %v4585 = vpop.f32.mrb[0].mxu0
      %v4586 = vadd.f32 0.0, %v4585
      %v4587 = vpop.f32.mrb[0].mxu0
      %4588 = vmatprep.mubr.f32.mxu0 0.0
      %4589 = vmatmul.mubr.f32.gmra.mrb[0].mxu0 %v4442
      %v4590 = vpop.f32.mrb[0].mxu0
      %v4591 = vadd.f32 0.0, %v4590
      %v4592 = vpop.f32.mrb[0].mxu0
      %4593 = vmatprep.mubr.f32.mxu0 0.0
      %4594 = vmatmul.mubr.f32.gmra.mrb[0].mxu0 %v4445
      %v4595 = vpop.f32.mrb[0].mxu0
      %v4596 = vadd.f32 0.0, %v4595
      %v4597 = vpop.f32.mrb[0].mxu0
      %4598 = vmatprep.mubr.f32.mxu0 0.0
      %4599 = vmatmul.mubr.f32.gmra.mrb[0].mxu0 %v4448
      %v4600 = vpop.f32.mrb[0].mxu0
      %v4601 = vadd.f32 0.0, %v4600
      %v4602 = vpop.f32.mrb[0].mxu0
      %4603 = vmatprep.mubr.f32.mxu0 0.0
      %4604 = vmatmul.mubr.f32.gmra.mrb[0].mxu0 %v4451
      %v4605 = vpop.f32.mrb[0].mxu0
      %v4606 = vadd.f32 0.0, %v4605
      %v4607 = vpop.f32.mrb[0].mxu0
      %4608 = vmatprep.mubr.f32.mxu0 0.0
      %4609 = vmatmul.mubr.f32.gmra.mrb[0].mxu0 %v4454
      %v4610 = vpop.f32.mrb[0].mxu0
      %v4611 = vadd.f32 0.0, %v4610
      %v4612 = vpop.f32.mrb[0].mxu0
      %4613 = vmatprep.mubr.f32.mxu0 0.0
      %4614 = vmatmul.mubr.f32.gmra.mrb[0].mxu0 %v4457
      %v4615 = vpop.f32.mrb[0].mxu0
      %v4616 = vadd.f32 0.0, %v4615
      %v4617 = vpop.f32.mrb[0].mxu0
      %4618 = vmatprep.mubr.f32.mxu0 0.0
      %4619 = vmatmul.mubr.f32.gmra.mrb[0].mxu0 %v4460
      %v4620 = vpop.f32.mrb[0].mxu0
      %v4621 = vadd.f32 0.0, %v4620
      %v4622 = vpop.f32.mrb[0].mxu0
      %4623 = vmatprep.mubr.f32.mxu0 0.0
      %4624 = vmatmul.mubr.f32.gmra.mrb[0].mxu0 %v4463
      %v4625 = vpop.f32.mrb[0].mxu0
      %v4626 = vadd.f32 0.0, %v4625
      %v4627 = vpop.f32.mrb[0].mxu0
      %4628 = vmatprep.mubr.f32.mxu0 0.0
      %4629 = vmatmul.mubr.f32.gmra.mrb[0].mxu0 %v4466
      %v4630 = vpop.f32.mrb[0].mxu0
      %v4631 = vadd.f32 0.0, %v4630
      %v4632 = vpop.f32.mrb[0].mxu0
      %4633 = vmatprep.mubr.f32.mxu0 0.0
      %4634 = vmatmul.mubr.f32.gmra.mrb[0].mxu0 %v4469
      %v4635 = vpop.f32.mrb[0].mxu0
      %v4636 = vadd.f32 0.0, %v4635
      %v4637 = vpop.f32.mrb[0].mxu0
      %4638 = vmatprep.mubr.f32.mxu0 0.0
      %4639 = vmatmul.mubr.f32.gmra.mrb[0].mxu0 %v4472
      %v4640 = vpop.f32.mrb[0].mxu0
      %v4641 = vadd.f32 0.0, %v4640
      %v4642 = vpop.f32.mrb[0].mxu0
      %4643 = vmatprep.mubr.f32.mxu0 0.0
      %4644 = vmatmul.mubr.f32.gmra.mrb[0].mxu0 %v4475
      %v4645 = vpop.f32.mrb[0].mxu0
      %v4646 = vadd.f32 0.0, %v4645
      %v4647 = vpop.f32.mrb[0].mxu0
      %4648 = vmatprep.mubr.f32.mxu0 0.0
      %4649 = vmatmul.mubr.f32.gmra.mrb[0].mxu0 %v4478
      %v4650 = vpop.f32.mrb[0].mxu0
      %v4651 = vadd.f32 0.0, %v4650
      %v4652 = vpop.f32.mrb[0].mxu0
      %4653 = vmatprep.mubr.f32.mxu0 0.0
      %4654 = vmatmul.mubr.f32.gmra.mrb[0].mxu0 %v4481
      %v4655 = vpop.f32.mrb[0].mxu0
      %v4656 = vadd.f32 0.0, %v4655
      %v4657 = vpop.f32.mrb[0].mxu0
      %4658 = vmatprep.mubr.f32.mxu0 0.0
      %4659 = vmatmul.mubr.f32.gmra.mrb[0].mxu0 %v4484
      %v4660 = vpop.f32.mrb[0].mxu0
      %v4661 = vadd.f32 0.0, %v4660
      %v4662 = vpop.f32.mrb[0].mxu0
      %4663 = vmatprep.mubr.f32.mxu0 0.0
      %4664 = vmatmul.mubr.f32.gmra.mrb[0].mxu0 %v4487
      %v4665 = vpop.f32.mrb[0].mxu0
      %v4666 = vadd.f32 0.0, %v4665
      %v4667 = vpop.f32.mrb[0].mxu0
      %4668 = vmatprep.mubr.f32.mxu0 0.0
      %4669 = vmatmul.mubr.f32.gmra.mrb[0].mxu0 %v4490
      %v4670 = vpop.f32.mrb[0].mxu0
      %v4671 = vadd.f32 0.0, %v4670
      %v4672 = vpop.f32.mrb[0].mxu0
      %4673 = vmatprep.mubr.f32.mxu0 0.0
      %4674 = vmatmul.mubr.f32.gmra.mrb[0].mxu0 %v4493
      %v4675 = vpop.f32.mrb[0].mxu0
      %v4676 = vadd.f32 0.0, %v4675
      %v4677 = vpop.f32.mrb[0].mxu0
      %4678 = vmatprep.mubr.f32.mxu0 0.0
      %4679 = vmatmul.mubr.f32.gmra.mrb[0].mxu0 %v4496
      %v4680 = vpop.f32.mrb[0].mxu0
      %v4681 = vadd.f32 0.0, %v4680
      %v4682 = vpop.f32.mrb[0].mxu0
      %4683 = vmatprep.mubr.f32.mxu0 0.0
      %4684 = vmatmul.mubr.f32.gmra.mrb[0].mxu0 %v4499
      %v4685 = vpop.f32.mrb[0].mxu0
      %v4686 = vadd.f32 0.0, %v4685
      %v4687 = vpop.f32.mrb[0].mxu0
      %4688 = vmatprep.mubr.f32.mxu0 0.0
      %4689 = vmatmul.mubr.f32.gmra.mrb[0].mxu0 %v4502
      %v4690 = vpop.f32.mrb[0].mxu0
      %v4691 = vadd.f32 0.0, %v4690
      %v4692 = vpop.f32.mrb[0].mxu0
      %4693 = vdwg.mxu0
      %v4694 = vadd.f32 %v4374, %v4571
      %v4695 = vadd.f32 %v4375, %v4576
      %v4696 = vadd.f32 %v4376, %v4581
      %v4697 = vadd.f32 %v4377, %v4586
      %v4698 = vadd.f32 %v4378, %v4591
      %v4699 = vadd.f32 %v4379, %v4596
      %v4700 = vadd.f32 %v4380, %v4601
      %v4701 = vadd.f32 %v4381, %v4606
      %v4702 = vadd.f32 %v4382, %v4611
      %v4703 = vadd.f32 %v4383, %v4616
      %v4704 = vadd.f32 %v4384, %v4621
      %v4705 = vadd.f32 %v4385, %v4626
      %v4706 = vadd.f32 %v4386, %v4631
      %v4707 = vadd.f32 %v4387, %v4636
      %v4708 = vadd.f32 %v4388, %v4641
      %v4709 = vadd.f32 %v4389, %v4646
      %v4710 = vadd.f32 %v4390, %v4651
      %v4711 = vadd.f32 %v4391, %v4656
      %v4712 = vadd.f32 %v4392, %v4661
      %v4713 = vadd.f32 %v4393, %v4666
      %v4714 = vadd.f32 %v4394, %v4671
      %v4715 = vadd.f32 %v4395, %v4676
      %v4716 = vadd.f32 %v4396, %v4681
      %v4717 = vadd.f32 %v4397, %v4686
      %v4718 = vadd.f32 %v4398, %v4691
      %v4719 = vld [vmem:[%s4] sm:$0x1]
      %v4721 = vlaneseq
      %v4722 = vshrl.u32 %v4721, 7
      %v4723 = vsub.s32 0, %v4722
      %v4724 = vrot.slane %v4719, %v4723
      %v4726 = vadd.f32 %v4694, %v4724
      %v4727 = vadd.f32 %v4695, %v4724
      %v4728 = vadd.f32 %v4696, %v4724
      %v4729 = vadd.f32 %v4697, %v4724
      %v4730 = vadd.f32 %v4698, %v4724
      %v4731 = vadd.f32 %v4699, %v4724
      %v4732 = vadd.f32 %v4700, %v4724
      %v4733 = vadd.f32 %v4701, %v4724
      %v4734 = vadd.f32 %v4702, %v4724
      %v4735 = vadd.f32 %v4703, %v4724
      %v4736 = vadd.f32 %v4704, %v4724
      %v4737 = vadd.f32 %v4705, %v4724
      %v4738 = vadd.f32 %v4706, %v4724
      %v4739 = vadd.f32 %v4707, %v4724
      %v4740 = vadd.f32 %v4708, %v4724
      %v4741 = vadd.f32 %v4709, %v4724
      %v4742 = vadd.f32 %v4710, %v4724
      %v4743 = vadd.f32 %v4711, %v4724
      %v4744 = vadd.f32 %v4712, %v4724
      %v4745 = vadd.f32 %v4713, %v4724
      %v4746 = vadd.f32 %v4714, %v4724
      %v4747 = vadd.f32 %v4715, %v4724
      %v4748 = vadd.f32 %v4716, %v4724
      %v4749 = vadd.f32 %v4717, %v4724
      %v4750 = vadd.f32 %v4718, %v4724
      %vm4751 = vcmp.ge.f32.partialorder %v4726, 0.0
      %vm4752 = vcmp.ge.f32.partialorder %v4727, 0.0
      %vm4753 = vcmp.ge.f32.partialorder %v4728, 0.0
      %vm4754 = vcmp.ge.f32.partialorder %v4729, 0.0
      %vm4755 = vcmp.ge.f32.partialorder %v4730, 0.0
      %vm4756 = vcmp.ge.f32.partialorder %v4731, 0.0
      %vm4757 = vcmp.ge.f32.partialorder %v4732, 0.0
      %vm4758 = vcmp.ge.f32.partialorder %v4733, 0.0
      %vm4759 = vcmp.ge.f32.partialorder %v4734, 0.0
      %vm4760 = vcmp.ge.f32.partialorder %v4735, 0.0
      %vm4761 = vcmp.ge.f32.partialorder %v4736, 0.0
      %vm4762 = vcmp.ge.f32.partialorder %v4737, 0.0
      %vm4763 = vcmp.ge.f32.partialorder %v4738, 0.0
      %vm4764 = vcmp.ge.f32.partialorder %v4739, 0.0
      %vm4765 = vcmp.ge.f32.partialorder %v4740, 0.0
      %vm4766 = vcmp.ge.f32.partialorder %v4741, 0.0
      %vm4767 = vcmp.ge.f32.partialorder %v4742, 0.0
      %vm4768 = vcmp.ge.f32.partialorder %v4743, 0.0
      %vm4769 = vcmp.ge.f32.partialorder %v4744, 0.0
      %vm4770 = vcmp.ge.f32.partialorder %v4745, 0.0
      %vm4771 = vcmp.ge.f32.partialorder %v4746, 0.0
      %vm4772 = vcmp.ge.f32.partialorder %v4747, 0.0
      %vm4773 = vcmp.ge.f32.partialorder %v4748, 0.0
      %vm4774 = vcmp.ge.f32.partialorder %v4749, 0.0
      %vm4775 = vcmp.ge.f32.partialorder %v4750, 0.0
      %v4776 = vmul.f32 %v4726, 0.01
      %v4777 = vmul.f32 %v4727, 0.01
      %v4778 = vmul.f32 %v4728, 0.01
      %v4779 = vmul.f32 %v4729, 0.01
      %v4780 = vmul.f32 %v4730, 0.01
      %v4781 = vmul.f32 %v4731, 0.01
      %v4782 = vmul.f32 %v4732, 0.01
      %v4783 = vmul.f32 %v4733, 0.01
      %v4784 = vmul.f32 %v4734, 0.01
      %v4785 = vmul.f32 %v4735, 0.01
      %v4786 = vmul.f32 %v4736, 0.01
      %v4787 = vmul.f32 %v4737, 0.01
      %v4788 = vmul.f32 %v4738, 0.01
      %v4789 = vmul.f32 %v4739, 0.01
      %v4790 = vmul.f32 %v4740, 0.01
      %v4791 = vmul.f32 %v4741, 0.01
      %v4792 = vmul.f32 %v4742, 0.01
      %v4793 = vmul.f32 %v4743, 0.01
      %v4794 = vmul.f32 %v4744, 0.01
      %v4795 = vmul.f32 %v4745, 0.01
      %v4796 = vmul.f32 %v4746, 0.01
      %v4797 = vmul.f32 %v4747, 0.01
      %v4798 = vmul.f32 %v4748, 0.01
      %v4799 = vmul.f32 %v4749, 0.01
      %v4800 = vmul.f32 %v4750, 0.01
      %v4801 = vsel %vm4751, %v4726, %v4776
      %v4802 = vsel %vm4752, %v4727, %v4777
      %v4803 = vsel %vm4753, %v4728, %v4778
      %v4804 = vsel %vm4754, %v4729, %v4779
      %v4805 = vsel %vm4755, %v4730, %v4780
      %v4806 = vsel %vm4756, %v4731, %v4781
      %v4807 = vsel %vm4757, %v4732, %v4782
      %v4808 = vsel %vm4758, %v4733, %v4783
      %v4809 = vsel %vm4759, %v4734, %v4784
      %v4810 = vsel %vm4760, %v4735, %v4785
      %v4811 = vsel %vm4761, %v4736, %v4786
      %v4812 = vsel %vm4762, %v4737, %v4787
      %v4813 = vsel %vm4763, %v4738, %v4788
      %v4814 = vsel %vm4764, %v4739, %v4789
      %v4815 = vsel %vm4765, %v4740, %v4790
      %v4816 = vsel %vm4766, %v4741, %v4791
      %v4817 = vsel %vm4767, %v4742, %v4792
      %v4818 = vsel %vm4768, %v4743, %v4793
      %v4819 = vsel %vm4769, %v4744, %v4794
      %v4820 = vsel %vm4770, %v4745, %v4795
      %v4821 = vsel %vm4771, %v4746, %v4796
      %v4822 = vsel %vm4772, %v4747, %v4797
      %v4823 = vsel %vm4773, %v4748, %v4798
      %v4824 = vsel %vm4774, %v4749, %v4799
      %v4825 = vsel %vm4775, %v4750, %v4800
      %4826 = vst.msk [vmem:[#allocation5] sm:$0xff] %vm1624, %v4801
      %4827 = vst.msk [vmem:[#allocation5 + $0x8] sm:$0xff] %vm1624, %v4802
      %4828 = vst.msk [vmem:[#allocation5 + $0x10] sm:$0xff] %vm1624, %v4803
      %4829 = vst.msk [vmem:[#allocation5 + $0x18] sm:$0xff] %vm1624, %v4804
      %4830 = vst.msk [vmem:[#allocation5 + $0x20] sm:$0xff] %vm1624, %v4805
      %4831 = vst.msk [vmem:[#allocation5 + $0x28] sm:$0xff] %vm1624, %v4806
      %4832 = vst.msk [vmem:[#allocation5 + $0x30] sm:$0xff] %vm1624, %v4807
      %4833 = vst.msk [vmem:[#allocation5 + $0x38] sm:$0xff] %vm1624, %v4808
      %4834 = vst.msk [vmem:[#allocation5 + $0x40] sm:$0xff] %vm1624, %v4809
      %4835 = vst.msk [vmem:[#allocation5 + $0x48] sm:$0xff] %vm1624, %v4810
      %4836 = vst.msk [vmem:[#allocation5 + $0x50] sm:$0xff] %vm1624, %v4811
      %4837 = vst.msk [vmem:[#allocation5 + $0x58] sm:$0xff] %vm1624, %v4812
      %4838 = vst.msk [vmem:[#allocation5 + $0x60] sm:$0xff] %vm1624, %v4813
      %4839 = vst.msk [vmem:[#allocation5 + $0x68] sm:$0xff] %vm1624, %v4814
      %4840 = vst.msk [vmem:[#allocation5 + $0x70] sm:$0xff] %vm1624, %v4815
      %4841 = vst.msk [vmem:[#allocation5 + $0x78] sm:$0xff] %vm1624, %v4816
      %4842 = vst.msk [vmem:[#allocation5 + $0x80] sm:$0xff] %vm1624, %v4817
      %4843 = vst.msk [vmem:[#allocation5 + $0x88] sm:$0xff] %vm1624, %v4818
      %4844 = vst.msk [vmem:[#allocation5 + $0x90] sm:$0xff] %vm1624, %v4819
      %4845 = vst.msk [vmem:[#allocation5 + $0x98] sm:$0xff] %vm1624, %v4820
      %4846 = vst.msk [vmem:[#allocation5 + $0xa0] sm:$0xff] %vm1624, %v4821
      %4847 = vst.msk [vmem:[#allocation5 + $0xa8] sm:$0xff] %vm1624, %v4822
      %4848 = vst.msk [vmem:[#allocation5 + $0xb0] sm:$0xff] %vm1624, %v4823
      %4849 = vst.msk [vmem:[#allocation5 + $0xb8] sm:$0xff] %vm1624, %v4824
      %4850 = vst.msk [vmem:[#allocation5 + $0xc0] sm:$0xff] %vm1624, %v4825
      %v4851 = vld [vmem:[#allocation5] ss:$2 sm:$0xff]
      %s4852 = scalar_lea.vmem [#allocation5], 16
      %v4853 = vld [vmem:[%s4852] ss:$2 sm:$0xff]
      %s4854 = scalar_lea.vmem [#allocation5], 32
      %v4855 = vld [vmem:[%s4854] ss:$2 sm:$0xff]
      %s4856 = scalar_lea.vmem [#allocation5], 48
      %v4857 = vld [vmem:[%s4856] ss:$2 sm:$0xff]
      %s4858 = scalar_lea.vmem [#allocation5], 64
      %v4859 = vld [vmem:[%s4858] ss:$2 sm:$0xff]
      %s4860 = scalar_lea.vmem [#allocation5], 80
      %v4861 = vld [vmem:[%s4860] ss:$2 sm:$0xff]
      %s4862 = scalar_lea.vmem [#allocation5], 96
      %v4863 = vld [vmem:[%s4862] ss:$2 sm:$0xff]
      %s4864 = scalar_lea.vmem [#allocation5], 112
      %v4865 = vld [vmem:[%s4864] ss:$2 sm:$0xff]
      %s4866 = scalar_lea.vmem [#allocation5], 128
      %v4867 = vld [vmem:[%s4866] ss:$2 sm:$0xff]
      %s4868 = scalar_lea.vmem [#allocation5], 144
      %v4869 = vld [vmem:[%s4868] ss:$2 sm:$0xff]
      %s4870 = scalar_lea.vmem [#allocation5], 160
      %v4871 = vld [vmem:[%s4870] ss:$2 sm:$0xff]
      %s4872 = scalar_lea.vmem [#allocation5], 176
      %v4873 = vld [vmem:[%s4872] ss:$2 sm:$0xff]
      %s4874 = scalar_lea.vmem [#allocation5], 192
      %v4875 = vld [vmem:[%s4874] ss:$2 sm:$0xf]
      %s4876 = scalar_lea.vmem [#allocation5], 1
      %v4877 = vld [vmem:[%s4876] ss:$2 sm:$0xff]
      %s4878 = scalar_lea.vmem [#allocation5], 17
      %v4879 = vld [vmem:[%s4878] ss:$2 sm:$0xff]
      %s4880 = scalar_lea.vmem [#allocation5], 33
      %v4881 = vld [vmem:[%s4880] ss:$2 sm:$0xff]
      %s4882 = scalar_lea.vmem [#allocation5], 49
      %v4883 = vld [vmem:[%s4882] ss:$2 sm:$0xff]
      %s4884 = scalar_lea.vmem [#allocation5], 65
      %v4885 = vld [vmem:[%s4884] ss:$2 sm:$0xff]
      %s4886 = scalar_lea.vmem [#allocation5], 81
      %v4887 = vld [vmem:[%s4886] ss:$2 sm:$0xff]
      %s4888 = scalar_lea.vmem [#allocation5], 97
      %v4889 = vld [vmem:[%s4888] ss:$2 sm:$0xff]
      %s4890 = scalar_lea.vmem [#allocation5], 113
      %v4891 = vld [vmem:[%s4890] ss:$2 sm:$0xff]
      %s4892 = scalar_lea.vmem [#allocation5], 129
      %v4893 = vld [vmem:[%s4892] ss:$2 sm:$0xff]
      %s4894 = scalar_lea.vmem [#allocation5], 145
      %v4895 = vld [vmem:[%s4894] ss:$2 sm:$0xff]
      %s4896 = scalar_lea.vmem [#allocation5], 161
      %v4897 = vld [vmem:[%s4896] ss:$2 sm:$0xff]
      %s4898 = scalar_lea.vmem [#allocation5], 177
      %v4899 = vld [vmem:[%s4898] ss:$2 sm:$0xff]
      %s4900 = scalar_lea.vmem [#allocation5], 193
      %v4901 = vld [vmem:[%s4900] ss:$2 sm:$0xf]
      %v4902 = vmax.f32 %v4851, %v4877
      %v4903 = vmax.f32 %v4853, %v4879
      %v4904 = vmax.f32 %v4855, %v4881
      %v4905 = vmax.f32 %v4857, %v4883
      %v4906 = vmax.f32 %v4859, %v4885
      %v4907 = vmax.f32 %v4861, %v4887
      %v4908 = vmax.f32 %v4863, %v4889
      %v4909 = vmax.f32 %v4865, %v4891
      %v4910 = vmax.f32 %v4867, %v4893
      %v4911 = vmax.f32 %v4869, %v4895
      %v4912 = vmax.f32 %v4871, %v4897
      %v4913 = vmax.f32 %v4873, %v4899
      %v4914 = vmax.f32 %v4875, %v4901
      %4915 = vst.msk [vmem:[#allocation6] sm:$0xff] %vm1624, %v4902
      %4916 = vst.msk [vmem:[#allocation6 + $0x8] sm:$0xff] %vm1624, %v4903
      %4917 = vst.msk [vmem:[#allocation6 + $0x10] sm:$0xff] %vm1624, %v4904
      %4918 = vst.msk [vmem:[#allocation6 + $0x18] sm:$0xff] %vm1624, %v4905
      %4919 = vst.msk [vmem:[#allocation6 + $0x20] sm:$0xff] %vm1624, %v4906
      %4920 = vst.msk [vmem:[#allocation6 + $0x28] sm:$0xff] %vm1624, %v4907
      %4921 = vst.msk [vmem:[#allocation6 + $0x30] sm:$0xff] %vm1624, %v4908
      %4922 = vst.msk [vmem:[#allocation6 + $0x38] sm:$0xff] %vm1624, %v4909
      %4923 = vst.msk [vmem:[#allocation6 + $0x40] sm:$0xff] %vm1624, %v4910
      %4924 = vst.msk [vmem:[#allocation6 + $0x48] sm:$0xff] %vm1624, %v4911
      %4925 = vst.msk [vmem:[#allocation6 + $0x50] sm:$0xff] %vm1624, %v4912
      %4926 = vst.msk [vmem:[#allocation6 + $0x58] sm:$0xff] %vm1624, %v4913
      %vm4927 = vcmask 519168
      %4928 = vst.msk [vmem:[#allocation6 + $0x60] sm:$0xf] %vm4927, %v4914
      %v4929 = vld [vmem:[#allocation6] sm:$0xf]
      %v4930 = vld [vmem:[#allocation6 + $0x5] sm:$0xf]
      %v4931 = vmax.f32 %v4929, %v4930
      %4932 = vst.msk [vmem:[#allocation7 + $0x7] sm:$0xf] %vm4927, %v4931
      %v4933 = vld [vmem:[#allocation6 + $0xa] sm:$0xf]
      %v4934 = vld [vmem:[#allocation6 + $0xf] sm:$0xf]
      %v4935 = vmax.f32 %v4933, %v4934
      %4936 = vst.msk [vmem:[#allocation7 + $0xd] sm:$0xf] %vm4927, %v4935
      %v4937 = vld [vmem:[#allocation6 + $0x14] sm:$0xf]
      %v4938 = vld [vmem:[#allocation6 + $0x19] sm:$0xf]
      %v4939 = vmax.f32 %v4937, %v4938
      %4940 = vst.msk [vmem:[#allocation7 + $0x13] sm:$0xf] %vm4927, %v4939
      %v4941 = vld [vmem:[#allocation6 + $0x1e] sm:$0xf]
      %v4942 = vld [vmem:[#allocation6 + $0x23] sm:$0xf]
      %v4943 = vmax.f32 %v4941, %v4942
      %4944 = vst.msk [vmem:[#allocation7 + $0x19] sm:$0xf] %vm4927, %v4943
      %v4945 = vld [vmem:[#allocation6 + $0x32] sm:$0xf]
      %v4946 = vld [vmem:[#allocation6 + $0x37] sm:$0xf]
      %v4947 = vmax.f32 %v4945, %v4946
      %4948 = vst.msk [vmem:[#allocation7 + $0x2b] sm:$0xf] %vm4927, %v4947
      %v4949 = vld [vmem:[#allocation6 + $0x3c] sm:$0xf]
      %v4950 = vld [vmem:[#allocation6 + $0x41] sm:$0xf]
      %v4951 = vmax.f32 %v4949, %v4950
      %4952 = vst.msk [vmem:[#allocation7 + $0x31] sm:$0xf] %vm4927, %v4951
      %v4953 = vld [vmem:[#allocation6 + $0x46] sm:$0xf]
      %v4954 = vld [vmem:[#allocation6 + $0x4b] sm:$0xf]
      %v4955 = vmax.f32 %v4953, %v4954
      %4956 = vst.msk [vmem:[#allocation7 + $0x37] sm:$0xf] %vm4927, %v4955
      %v4957 = vld [vmem:[#allocation6 + $0x50] sm:$0xf]
      %v4958 = vld [vmem:[#allocation6 + $0x55] sm:$0xf]
      %v4959 = vmax.f32 %v4957, %v4958
      %4960 = vst.msk [vmem:[#allocation7 + $0x3d] sm:$0xf] %vm4927, %v4959
      %v4961 = vld [vmem:[#allocation7] sm:$0xff]
      %v4962 = vld [vmem:[#allocation7 + $0x8] sm:$0xff]
      %v4963 = vld [vmem:[#allocation7 + $0x10] sm:$0xff]
      %v4964 = vld [vmem:[#allocation7 + $0x18] sm:$0xff]
      %v4965 = vld [vmem:[#allocation7 + $0x20] sm:$0xff]
      %v4966 = vld [vmem:[#allocation7 + $0x28] sm:$0xff]
      %v4967 = vld [vmem:[#allocation7 + $0x30] sm:$0xff]
      %v4968 = vld [vmem:[#allocation7 + $0x38] sm:$0xff]
      %v4969 = vld [vmem:[#allocation7 + $0x40] sm:$0xff]
      %v4970 = vld [vmem:[%s5] sm:$0xff]
      %v4971 = vld [vmem:[%s5 + $0x8] sm:$0xff]
      %v4972 = vld [vmem:[%s5 + $0x10] sm:$0xff]
      %v4973 = vld [vmem:[%s5 + $0x18] sm:$0xff]
      %v4974 = vld [vmem:[%s5 + $0x20] sm:$0xff]
      %v4975 = vld [vmem:[%s5 + $0x28] sm:$0xff]
      %v4976 = vld [vmem:[%s5 + $0x30] sm:$0xff]
      %v4977 = vld [vmem:[%s5 + $0x38] sm:$0xff]
      %v4978 = vld [vmem:[#allocation7 + $0x1] sm:$0xff]
      %v4979 = vld [vmem:[#allocation7 + $0x9] sm:$0xff]
      %v4980 = vld [vmem:[#allocation7 + $0x11] sm:$0xff]
      %v4981 = vld [vmem:[#allocation7 + $0x19] sm:$0xff]
      %v4982 = vld [vmem:[#allocation7 + $0x21] sm:$0xff]
      %v4983 = vld [vmem:[#allocation7 + $0x29] sm:$0xff]
      %v4984 = vld [vmem:[#allocation7 + $0x31] sm:$0xff]
      %v4985 = vld [vmem:[#allocation7 + $0x39] sm:$0xff]
      %v4986 = vld [vmem:[#allocation7 + $0x41] sm:$0xff]
      %s4987 = scalar_lea.vmem %s5, 64
      %v4988 = vld [vmem:[%s4987] sm:$0xff]
      %v4989 = vld [vmem:[%s4987 + $0x8] sm:$0xff]
      %v4990 = vld [vmem:[%s4987 + $0x10] sm:$0xff]
      %v4991 = vld [vmem:[%s4987 + $0x18] sm:$0xff]
      %v4992 = vld [vmem:[%s4987 + $0x20] sm:$0xff]
      %v4993 = vld [vmem:[%s4987 + $0x28] sm:$0xff]
      %v4994 = vld [vmem:[%s4987 + $0x30] sm:$0xff]
      %v4995 = vld [vmem:[%s4987 + $0x38] sm:$0xff]
      %v4997 = vsel %vm1624, %v4978, 0
      %v5000 = vsel %vm1624, %v4979, 0
      %v5003 = vsel %vm1624, %v4980, 0
      %v5006 = vsel %vm1624, %v4981, 0
      %v5009 = vsel %vm1624, %v4982, 0
      %v5012 = vsel %vm1624, %v4983, 0
      %v5015 = vsel %vm1624, %v4984, 0
      %v5018 = vsel %vm1624, %v4985, 0
      %v5021 = vsel %vm1624, %v4986, 0
      %5023 = vmatprep.subr.mxu0 0.0
      %5024 = vmatpush1.msra.mxu0 %v4988
      %5025 = vmatprep.subr.mxu0 0.0
      %5026 = vmatpush1.msra.mxu0 %v4989
      %5027 = vmatprep.subr.mxu0 0.0
      %5028 = vmatpush1.msra.mxu0 %v4990
      %5029 = vmatprep.subr.mxu0 0.0
      %5030 = vmatpush1.msra.mxu0 %v4991
      %5031 = vmatprep.subr.mxu0 0.0
      %5032 = vmatpush1.msra.mxu0 %v4992
      %5033 = vmatprep.subr.mxu0 0.0
      %5034 = vmatpush1.msra.mxu0 %v4993
      %5035 = vmatprep.subr.mxu0 0.0
      %5036 = vmatpush1.msra.mxu0 %v4994
      %5037 = vmatprep.subr.mxu0 0.0
      %5038 = vmatpush1.msra.mxu0 %v4995
      %5039 = vmatprep.subr.mxu0 0.0
      %5040 = vmatpush1.msra.mxu0 0.0
      %5041 = vmatprep.subr.mxu0 0.0
      %5042 = vmatpush1.msra.mxu0 0.0
      %5043 = vmatprep.subr.mxu0 0.0
      %5044 = vmatpush1.msra.mxu0 0.0
      %5045 = vmatprep.subr.mxu0 0.0
      %5046 = vmatpush1.msra.mxu0 0.0
      %5047 = vmatprep.subr.mxu0 0.0
      %5048 = vmatpush1.msra.mxu0 0.0
      %5049 = vmatprep.subr.mxu0 0.0
      %5050 = vmatpush1.msra.mxu0 0.0
      %5051 = vmatprep.subr.mxu0 0.0
      %5052 = vmatpush1.msra.mxu0 0.0
      %5053 = vmatprep.subr.mxu0 0.0
      %5054 = vmatpush1.msra.mxu0 0.0
      %5055 = vmatprep.subr.mxu0 0.0
      %5056 = vmatpush1.msra.mxu0 0.0
      %5057 = vmatprep.subr.mxu0 0.0
      %5058 = vmatpush1.msra.mxu0 0.0
      %5059 = vmatprep.subr.mxu0 0.0
      %5060 = vmatpush1.msra.mxu0 0.0
      %5061 = vmatprep.subr.mxu0 0.0
      %5062 = vmatpush1.msra.mxu0 0.0
      %5063 = vmatprep.subr.mxu0 0.0
      %5064 = vmatpush1.msra.mxu0 0.0
      %5065 = vmatprep.subr.mxu0 0.0
      %5066 = vmatpush1.msra.mxu0 0.0
      %5067 = vmatprep.subr.mxu0 0.0
      %5068 = vmatpush1.msra.mxu0 0.0
      %5069 = vmatprep.subr.mxu0 0.0
      %5070 = vmatpush1.msra.mxu0 0.0
      %5071 = vmatprep.subr.mxu0 0.0
      %5072 = vmatpush1.msra.mxu0 0.0
      %5073 = vmatprep.subr.mxu0 0.0
      %5074 = vmatpush1.msra.mxu0 0.0
      %5075 = vmatprep.subr.mxu0 0.0
      %5076 = vmatpush1.msra.mxu0 0.0
      %5077 = vmatprep.subr.mxu0 0.0
      %5078 = vmatpush1.msra.mxu0 0.0
      %5079 = vmatprep.subr.mxu0 0.0
      %5080 = vmatpush1.msra.mxu0 0.0
      %5081 = vmatprep.subr.mxu0 0.0
      %5082 = vmatpush1.msra.mxu0 0.0
      %5083 = vmatprep.subr.mxu0 0.0
      %5084 = vmatpush1.msra.mxu0 0.0
      %5085 = vmatprep.subr.mxu0 0.0
      %5086 = vmatpush1.msra.mxu0 0.0
      %5087 = vmatprep.mubr.f32.mxu0 0.0
      %5088 = vmatmul.mubr.f32.gmra.mrb[0].mxu0 %v4997
      %v5089 = vpop.f32.mrb[0].mxu0
      %v5090 = vadd.f32 0.0, %v5089
      %v5091 = vpop.f32.mrb[0].mxu0
      %5092 = vmatprep.mubr.f32.mxu0 0.0
      %5093 = vmatmul.mubr.f32.gmra.mrb[0].mxu0 %v5000
      %v5094 = vpop.f32.mrb[0].mxu0
      %v5095 = vadd.f32 0.0, %v5094
      %v5096 = vpop.f32.mrb[0].mxu0
      %5097 = vmatprep.mubr.f32.mxu0 0.0
      %5098 = vmatmul.mubr.f32.gmra.mrb[0].mxu0 %v5003
      %v5099 = vpop.f32.mrb[0].mxu0
      %v5100 = vadd.f32 0.0, %v5099
      %v5101 = vpop.f32.mrb[0].mxu0
      %5102 = vmatprep.mubr.f32.mxu0 0.0
      %5103 = vmatmul.mubr.f32.gmra.mrb[0].mxu0 %v5006
      %v5104 = vpop.f32.mrb[0].mxu0
      %v5105 = vadd.f32 0.0, %v5104
      %v5106 = vpop.f32.mrb[0].mxu0
      %5107 = vmatprep.mubr.f32.mxu0 0.0
      %5108 = vmatmul.mubr.f32.gmra.mrb[0].mxu0 %v5009
      %v5109 = vpop.f32.mrb[0].mxu0
      %v5110 = vadd.f32 0.0, %v5109
      %v5111 = vpop.f32.mrb[0].mxu0
      %5112 = vmatprep.mubr.f32.mxu0 0.0
      %5113 = vmatmul.mubr.f32.gmra.mrb[0].mxu0 %v5012
      %v5114 = vpop.f32.mrb[0].mxu0
      %v5115 = vadd.f32 0.0, %v5114
      %v5116 = vpop.f32.mrb[0].mxu0
      %5117 = vmatprep.mubr.f32.mxu0 0.0
      %5118 = vmatmul.mubr.f32.gmra.mrb[0].mxu0 %v5015
      %v5119 = vpop.f32.mrb[0].mxu0
      %v5120 = vadd.f32 0.0, %v5119
      %v5121 = vpop.f32.mrb[0].mxu0
      %5122 = vmatprep.mubr.f32.mxu0 0.0
      %5123 = vmatmul.mubr.f32.gmra.mrb[0].mxu0 %v5018
      %v5124 = vpop.f32.mrb[0].mxu0
      %v5125 = vadd.f32 0.0, %v5124
      %v5126 = vpop.f32.mrb[0].mxu0
      %5127 = vmatprep.mubr.f32.mxu0 0.0
      %5128 = vmatmul.mubr.f32.gmra.mrb[0].mxu0 %v5021
      %v5129 = vpop.f32.mrb[0].mxu0
      %v5130 = vadd.f32 0.0, %v5129
      %v5131 = vpop.f32.mrb[0].mxu0
      %5132 = vdwg.mxu0
      %v5134 = vsel %vm1624, %v4961, 0
      %v5137 = vsel %vm1624, %v4962, 0
      %v5140 = vsel %vm1624, %v4963, 0
      %v5143 = vsel %vm1624, %v4964, 0
      %v5146 = vsel %vm1624, %v4965, 0
      %v5149 = vsel %vm1624, %v4966, 0
      %v5152 = vsel %vm1624, %v4967, 0
      %v5155 = vsel %vm1624, %v4968, 0
      %v5158 = vsel %vm1624, %v4969, 0
      %5160 = vmatprep.subr.mxu0 0.0
      %5161 = vmatpush1.msra.mxu0 %v4970
      %5162 = vmatprep.subr.mxu0 0.0
      %5163 = vmatpush1.msra.mxu0 %v4971
      %5164 = vmatprep.subr.mxu0 0.0
      %5165 = vmatpush1.msra.mxu0 %v4972
      %5166 = vmatprep.subr.mxu0 0.0
      %5167 = vmatpush1.msra.mxu0 %v4973
      %5168 = vmatprep.subr.mxu0 0.0
      %5169 = vmatpush1.msra.mxu0 %v4974
      %5170 = vmatprep.subr.mxu0 0.0
      %5171 = vmatpush1.msra.mxu0 %v4975
      %5172 = vmatprep.subr.mxu0 0.0
      %5173 = vmatpush1.msra.mxu0 %v4976
      %5174 = vmatprep.subr.mxu0 0.0
      %5175 = vmatpush1.msra.mxu0 %v4977
      %5176 = vmatprep.subr.mxu0 0.0
      %5177 = vmatpush1.msra.mxu0 0.0
      %5178 = vmatprep.subr.mxu0 0.0
      %5179 = vmatpush1.msra.mxu0 0.0
      %5180 = vmatprep.subr.mxu0 0.0
      %5181 = vmatpush1.msra.mxu0 0.0
      %5182 = vmatprep.subr.mxu0 0.0
      %5183 = vmatpush1.msra.mxu0 0.0
      %5184 = vmatprep.subr.mxu0 0.0
      %5185 = vmatpush1.msra.mxu0 0.0
      %5186 = vmatprep.subr.mxu0 0.0
      %5187 = vmatpush1.msra.mxu0 0.0
      %5188 = vmatprep.subr.mxu0 0.0
      %5189 = vmatpush1.msra.mxu0 0.0
      %5190 = vmatprep.subr.mxu0 0.0
      %5191 = vmatpush1.msra.mxu0 0.0
      %5192 = vmatprep.subr.mxu0 0.0
      %5193 = vmatpush1.msra.mxu0 0.0
      %5194 = vmatprep.subr.mxu0 0.0
      %5195 = vmatpush1.msra.mxu0 0.0
      %5196 = vmatprep.subr.mxu0 0.0
      %5197 = vmatpush1.msra.mxu0 0.0
      %5198 = vmatprep.subr.mxu0 0.0
      %5199 = vmatpush1.msra.mxu0 0.0
      %5200 = vmatprep.subr.mxu0 0.0
      %5201 = vmatpush1.msra.mxu0 0.0
      %5202 = vmatprep.subr.mxu0 0.0
      %5203 = vmatpush1.msra.mxu0 0.0
      %5204 = vmatprep.subr.mxu0 0.0
      %5205 = vmatpush1.msra.mxu0 0.0
      %5206 = vmatprep.subr.mxu0 0.0
      %5207 = vmatpush1.msra.mxu0 0.0
      %5208 = vmatprep.subr.mxu0 0.0
      %5209 = vmatpush1.msra.mxu0 0.0
      %5210 = vmatprep.subr.mxu0 0.0
      %5211 = vmatpush1.msra.mxu0 0.0
      %5212 = vmatprep.subr.mxu0 0.0
      %5213 = vmatpush1.msra.mxu0 0.0
      %5214 = vmatprep.subr.mxu0 0.0
      %5215 = vmatpush1.msra.mxu0 0.0
      %5216 = vmatprep.subr.mxu0 0.0
      %5217 = vmatpush1.msra.mxu0 0.0
      %5218 = vmatprep.subr.mxu0 0.0
      %5219 = vmatpush1.msra.mxu0 0.0
      %5220 = vmatprep.subr.mxu0 0.0
      %5221 = vmatpush1.msra.mxu0 0.0
      %5222 = vmatprep.subr.mxu0 0.0
      %5223 = vmatpush1.msra.mxu0 0.0
      %5224 = vmatprep.mubr.f32.mxu0 0.0
      %5225 = vmatmul.mubr.f32.gmra.mrb[0].mxu0 %v5134
      %v5226 = vpop.f32.mrb[0].mxu0
      %v5227 = vadd.f32 %v5090, %v5226
      %v5228 = vpop.f32.mrb[0].mxu0
      %5229 = vmatprep.mubr.f32.mxu0 0.0
      %5230 = vmatmul.mubr.f32.gmra.mrb[0].mxu0 %v5137
      %v5231 = vpop.f32.mrb[0].mxu0
      %v5232 = vadd.f32 %v5095, %v5231
      %v5233 = vpop.f32.mrb[0].mxu0
      %5234 = vmatprep.mubr.f32.mxu0 0.0
      %5235 = vmatmul.mubr.f32.gmra.mrb[0].mxu0 %v5140
      %v5236 = vpop.f32.mrb[0].mxu0
      %v5237 = vadd.f32 %v5100, %v5236
      %v5238 = vpop.f32.mrb[0].mxu0
      %5239 = vmatprep.mubr.f32.mxu0 0.0
      %5240 = vmatmul.mubr.f32.gmra.mrb[0].mxu0 %v5143
      %v5241 = vpop.f32.mrb[0].mxu0
      %v5242 = vadd.f32 %v5105, %v5241
      %v5243 = vpop.f32.mrb[0].mxu0
      %5244 = vmatprep.mubr.f32.mxu0 0.0
      %5245 = vmatmul.mubr.f32.gmra.mrb[0].mxu0 %v5146
      %v5246 = vpop.f32.mrb[0].mxu0
      %v5247 = vadd.f32 %v5110, %v5246
      %v5248 = vpop.f32.mrb[0].mxu0
      %5249 = vmatprep.mubr.f32.mxu0 0.0
      %5250 = vmatmul.mubr.f32.gmra.mrb[0].mxu0 %v5149
      %v5251 = vpop.f32.mrb[0].mxu0
      %v5252 = vadd.f32 %v5115, %v5251
      %v5253 = vpop.f32.mrb[0].mxu0
      %5254 = vmatprep.mubr.f32.mxu0 0.0
      %5255 = vmatmul.mubr.f32.gmra.mrb[0].mxu0 %v5152
      %v5256 = vpop.f32.mrb[0].mxu0
      %v5257 = vadd.f32 %v5120, %v5256
      %v5258 = vpop.f32.mrb[0].mxu0
      %5259 = vmatprep.mubr.f32.mxu0 0.0
      %5260 = vmatmul.mubr.f32.gmra.mrb[0].mxu0 %v5155
      %v5261 = vpop.f32.mrb[0].mxu0
      %v5262 = vadd.f32 %v5125, %v5261
      %v5263 = vpop.f32.mrb[0].mxu0
      %5264 = vmatprep.mubr.f32.mxu0 0.0
      %5265 = vmatmul.mubr.f32.gmra.mrb[0].mxu0 %v5158
      %v5266 = vpop.f32.mrb[0].mxu0
      %v5267 = vadd.f32 %v5130, %v5266
      %v5268 = vpop.f32.mrb[0].mxu0
      %5269 = vdwg.mxu0
      %v5270 = vld [vmem:[#allocation7 + $0x2] sm:$0xff]
      %v5271 = vld [vmem:[#allocation7 + $0xa] sm:$0xff]
      %v5272 = vld [vmem:[#allocation7 + $0x12] sm:$0xff]
      %v5273 = vld [vmem:[#allocation7 + $0x1a] sm:$0xff]
      %v5274 = vld [vmem:[#allocation7 + $0x22] sm:$0xff]
      %v5275 = vld [vmem:[#allocation7 + $0x2a] sm:$0xff]
      %v5276 = vld [vmem:[#allocation7 + $0x32] sm:$0xff]
      %v5277 = vld [vmem:[#allocation7 + $0x3a] sm:$0xff]
      %v5278 = vld [vmem:[#allocation7 + $0x42] sm:$0xff]
      %s5279 = scalar_lea.vmem %s5, 128
      %v5280 = vld [vmem:[%s5279] sm:$0xff]
      %v5281 = vld [vmem:[%s5279 + $0x8] sm:$0xff]
      %v5282 = vld [vmem:[%s5279 + $0x10] sm:$0xff]
      %v5283 = vld [vmem:[%s5279 + $0x18] sm:$0xff]
      %v5284 = vld [vmem:[%s5279 + $0x20] sm:$0xff]
      %v5285 = vld [vmem:[%s5279 + $0x28] sm:$0xff]
      %v5286 = vld [vmem:[%s5279 + $0x30] sm:$0xff]
      %v5287 = vld [vmem:[%s5279 + $0x38] sm:$0xff]
      %v5289 = vsel %vm1624, %v5270, 0
      %v5292 = vsel %vm1624, %v5271, 0
      %v5295 = vsel %vm1624, %v5272, 0
      %v5298 = vsel %vm1624, %v5273, 0
      %v5301 = vsel %vm1624, %v5274, 0
      %v5304 = vsel %vm1624, %v5275, 0
      %v5307 = vsel %vm1624, %v5276, 0
      %v5310 = vsel %vm1624, %v5277, 0
      %v5313 = vsel %vm1624, %v5278, 0
      %5315 = vmatprep.subr.mxu0 0.0
      %5316 = vmatpush1.msra.mxu0 %v5280
      %5317 = vmatprep.subr.mxu0 0.0
      %5318 = vmatpush1.msra.mxu0 %v5281
      %5319 = vmatprep.subr.mxu0 0.0
      %5320 = vmatpush1.msra.mxu0 %v5282
      %5321 = vmatprep.subr.mxu0 0.0
      %5322 = vmatpush1.msra.mxu0 %v5283
      %5323 = vmatprep.subr.mxu0 0.0
      %5324 = vmatpush1.msra.mxu0 %v5284
      %5325 = vmatprep.subr.mxu0 0.0
      %5326 = vmatpush1.msra.mxu0 %v5285
      %5327 = vmatprep.subr.mxu0 0.0
      %5328 = vmatpush1.msra.mxu0 %v5286
      %5329 = vmatprep.subr.mxu0 0.0
      %5330 = vmatpush1.msra.mxu0 %v5287
      %5331 = vmatprep.subr.mxu0 0.0
      %5332 = vmatpush1.msra.mxu0 0.0
      %5333 = vmatprep.subr.mxu0 0.0
      %5334 = vmatpush1.msra.mxu0 0.0
      %5335 = vmatprep.subr.mxu0 0.0
      %5336 = vmatpush1.msra.mxu0 0.0
      %5337 = vmatprep.subr.mxu0 0.0
      %5338 = vmatpush1.msra.mxu0 0.0
      %5339 = vmatprep.subr.mxu0 0.0
      %5340 = vmatpush1.msra.mxu0 0.0
      %5341 = vmatprep.subr.mxu0 0.0
      %5342 = vmatpush1.msra.mxu0 0.0
      %5343 = vmatprep.subr.mxu0 0.0
      %5344 = vmatpush1.msra.mxu0 0.0
      %5345 = vmatprep.subr.mxu0 0.0
      %5346 = vmatpush1.msra.mxu0 0.0
      %5347 = vmatprep.subr.mxu0 0.0
      %5348 = vmatpush1.msra.mxu0 0.0
      %5349 = vmatprep.subr.mxu0 0.0
      %5350 = vmatpush1.msra.mxu0 0.0
      %5351 = vmatprep.subr.mxu0 0.0
      %5352 = vmatpush1.msra.mxu0 0.0
      %5353 = vmatprep.subr.mxu0 0.0
      %5354 = vmatpush1.msra.mxu0 0.0
      %5355 = vmatprep.subr.mxu0 0.0
      %5356 = vmatpush1.msra.mxu0 0.0
      %5357 = vmatprep.subr.mxu0 0.0
      %5358 = vmatpush1.msra.mxu0 0.0
      %5359 = vmatprep.subr.mxu0 0.0
      %5360 = vmatpush1.msra.mxu0 0.0
      %5361 = vmatprep.subr.mxu0 0.0
      %5362 = vmatpush1.msra.mxu0 0.0
      %5363 = vmatprep.subr.mxu0 0.0
      %5364 = vmatpush1.msra.mxu0 0.0
      %5365 = vmatprep.subr.mxu0 0.0
      %5366 = vmatpush1.msra.mxu0 0.0
      %5367 = vmatprep.subr.mxu0 0.0
      %5368 = vmatpush1.msra.mxu0 0.0
      %5369 = vmatprep.subr.mxu0 0.0
      %5370 = vmatpush1.msra.mxu0 0.0
      %5371 = vmatprep.subr.mxu0 0.0
      %5372 = vmatpush1.msra.mxu0 0.0
      %5373 = vmatprep.subr.mxu0 0.0
      %5374 = vmatpush1.msra.mxu0 0.0
      %5375 = vmatprep.subr.mxu0 0.0
      %5376 = vmatpush1.msra.mxu0 0.0
      %5377 = vmatprep.subr.mxu0 0.0
      %5378 = vmatpush1.msra.mxu0 0.0
      %5379 = vmatprep.mubr.f32.mxu0 0.0
      %5380 = vmatmul.mubr.f32.gmra.mrb[0].mxu0 %v5289
      %v5381 = vpop.f32.mrb[0].mxu0
      %v5382 = vadd.f32 0.0, %v5381
      %v5383 = vpop.f32.mrb[0].mxu0
      %5384 = vmatprep.mubr.f32.mxu0 0.0
      %5385 = vmatmul.mubr.f32.gmra.mrb[0].mxu0 %v5292
      %v5386 = vpop.f32.mrb[0].mxu0
      %v5387 = vadd.f32 0.0, %v5386
      %v5388 = vpop.f32.mrb[0].mxu0
      %5389 = vmatprep.mubr.f32.mxu0 0.0
      %5390 = vmatmul.mubr.f32.gmra.mrb[0].mxu0 %v5295
      %v5391 = vpop.f32.mrb[0].mxu0
      %v5392 = vadd.f32 0.0, %v5391
      %v5393 = vpop.f32.mrb[0].mxu0
      %5394 = vmatprep.mubr.f32.mxu0 0.0
      %5395 = vmatmul.mubr.f32.gmra.mrb[0].mxu0 %v5298
      %v5396 = vpop.f32.mrb[0].mxu0
      %v5397 = vadd.f32 0.0, %v5396
      %v5398 = vpop.f32.mrb[0].mxu0
      %5399 = vmatprep.mubr.f32.mxu0 0.0
      %5400 = vmatmul.mubr.f32.gmra.mrb[0].mxu0 %v5301
      %v5401 = vpop.f32.mrb[0].mxu0
      %v5402 = vadd.f32 0.0, %v5401
      %v5403 = vpop.f32.mrb[0].mxu0
      %5404 = vmatprep.mubr.f32.mxu0 0.0
      %5405 = vmatmul.mubr.f32.gmra.mrb[0].mxu0 %v5304
      %v5406 = vpop.f32.mrb[0].mxu0
      %v5407 = vadd.f32 0.0, %v5406
      %v5408 = vpop.f32.mrb[0].mxu0
      %5409 = vmatprep.mubr.f32.mxu0 0.0
      %5410 = vmatmul.mubr.f32.gmra.mrb[0].mxu0 %v5307
      %v5411 = vpop.f32.mrb[0].mxu0
      %v5412 = vadd.f32 0.0, %v5411
      %v5413 = vpop.f32.mrb[0].mxu0
      %5414 = vmatprep.mubr.f32.mxu0 0.0
      %5415 = vmatmul.mubr.f32.gmra.mrb[0].mxu0 %v5310
      %v5416 = vpop.f32.mrb[0].mxu0
      %v5417 = vadd.f32 0.0, %v5416
      %v5418 = vpop.f32.mrb[0].mxu0
      %5419 = vmatprep.mubr.f32.mxu0 0.0
      %5420 = vmatmul.mubr.f32.gmra.mrb[0].mxu0 %v5313
      %v5421 = vpop.f32.mrb[0].mxu0
      %v5422 = vadd.f32 0.0, %v5421
      %v5423 = vpop.f32.mrb[0].mxu0
      %5424 = vdwg.mxu0
      %v5425 = vadd.f32 %v5227, %v5382
      %v5426 = vadd.f32 %v5232, %v5387
      %v5427 = vadd.f32 %v5237, %v5392
      %v5428 = vadd.f32 %v5242, %v5397
      %v5429 = vadd.f32 %v5247, %v5402
      %v5430 = vadd.f32 %v5252, %v5407
      %v5431 = vadd.f32 %v5257, %v5412
      %v5432 = vadd.f32 %v5262, %v5417
      %v5433 = vadd.f32 %v5267, %v5422
      %v5434 = vld [vmem:[#allocation7 + $0x6] sm:$0xff]
      %v5435 = vld [vmem:[#allocation7 + $0xe] sm:$0xff]
      %v5436 = vld [vmem:[#allocation7 + $0x16] sm:$0xff]
      %v5437 = vld [vmem:[#allocation7 + $0x1e] sm:$0xff]
      %v5438 = vld [vmem:[#allocation7 + $0x26] sm:$0xff]
      %v5439 = vld [vmem:[#allocation7 + $0x2e] sm:$0xff]
      %v5440 = vld [vmem:[#allocation7 + $0x36] sm:$0xff]
      %v5441 = vld [vmem:[#allocation7 + $0x3e] sm:$0xff]
      %v5442 = vld [vmem:[#allocation7 + $0x46] sm:$0xff]
      %s5443 = scalar_lea.vmem %s5, 192
      %v5444 = vld [vmem:[%s5443] sm:$0xff]
      %v5445 = vld [vmem:[%s5443 + $0x8] sm:$0xff]
      %v5446 = vld [vmem:[%s5443 + $0x10] sm:$0xff]
      %v5447 = vld [vmem:[%s5443 + $0x18] sm:$0xff]
      %v5448 = vld [vmem:[%s5443 + $0x20] sm:$0xff]
      %v5449 = vld [vmem:[%s5443 + $0x28] sm:$0xff]
      %v5450 = vld [vmem:[%s5443 + $0x30] sm:$0xff]
      %v5451 = vld [vmem:[%s5443 + $0x38] sm:$0xff]
      %v5453 = vsel %vm1624, %v5434, 0
      %v5456 = vsel %vm1624, %v5435, 0
      %v5459 = vsel %vm1624, %v5436, 0
      %v5462 = vsel %vm1624, %v5437, 0
      %v5465 = vsel %vm1624, %v5438, 0
      %v5468 = vsel %vm1624, %v5439, 0
      %v5471 = vsel %vm1624, %v5440, 0
      %v5474 = vsel %vm1624, %v5441, 0
      %v5477 = vsel %vm1624, %v5442, 0
      %5479 = vmatprep.subr.mxu0 0.0
      %5480 = vmatpush1.msra.mxu0 %v5444
      %5481 = vmatprep.subr.mxu0 0.0
      %5482 = vmatpush1.msra.mxu0 %v5445
      %5483 = vmatprep.subr.mxu0 0.0
      %5484 = vmatpush1.msra.mxu0 %v5446
      %5485 = vmatprep.subr.mxu0 0.0
      %5486 = vmatpush1.msra.mxu0 %v5447
      %5487 = vmatprep.subr.mxu0 0.0
      %5488 = vmatpush1.msra.mxu0 %v5448
      %5489 = vmatprep.subr.mxu0 0.0
      %5490 = vmatpush1.msra.mxu0 %v5449
      %5491 = vmatprep.subr.mxu0 0.0
      %5492 = vmatpush1.msra.mxu0 %v5450
      %5493 = vmatprep.subr.mxu0 0.0
      %5494 = vmatpush1.msra.mxu0 %v5451
      %5495 = vmatprep.subr.mxu0 0.0
      %5496 = vmatpush1.msra.mxu0 0.0
      %5497 = vmatprep.subr.mxu0 0.0
      %5498 = vmatpush1.msra.mxu0 0.0
      %5499 = vmatprep.subr.mxu0 0.0
      %5500 = vmatpush1.msra.mxu0 0.0
      %5501 = vmatprep.subr.mxu0 0.0
      %5502 = vmatpush1.msra.mxu0 0.0
      %5503 = vmatprep.subr.mxu0 0.0
      %5504 = vmatpush1.msra.mxu0 0.0
      %5505 = vmatprep.subr.mxu0 0.0
      %5506 = vmatpush1.msra.mxu0 0.0
      %5507 = vmatprep.subr.mxu0 0.0
      %5508 = vmatpush1.msra.mxu0 0.0
      %5509 = vmatprep.subr.mxu0 0.0
      %5510 = vmatpush1.msra.mxu0 0.0
      %5511 = vmatprep.subr.mxu0 0.0
      %5512 = vmatpush1.msra.mxu0 0.0
      %5513 = vmatprep.subr.mxu0 0.0
      %5514 = vmatpush1.msra.mxu0 0.0
      %5515 = vmatprep.subr.mxu0 0.0
      %5516 = vmatpush1.msra.mxu0 0.0
      %5517 = vmatprep.subr.mxu0 0.0
      %5518 = vmatpush1.msra.mxu0 0.0
      %5519 = vmatprep.subr.mxu0 0.0
      %5520 = vmatpush1.msra.mxu0 0.0
      %5521 = vmatprep.subr.mxu0 0.0
      %5522 = vmatpush1.msra.mxu0 0.0
      %5523 = vmatprep.subr.mxu0 0.0
      %5524 = vmatpush1.msra.mxu0 0.0
      %5525 = vmatprep.subr.mxu0 0.0
      %5526 = vmatpush1.msra.mxu0 0.0
      %5527 = vmatprep.subr.mxu0 0.0
      %5528 = vmatpush1.msra.mxu0 0.0
      %5529 = vmatprep.subr.mxu0 0.0
      %5530 = vmatpush1.msra.mxu0 0.0
      %5531 = vmatprep.subr.mxu0 0.0
      %5532 = vmatpush1.msra.mxu0 0.0
      %5533 = vmatprep.subr.mxu0 0.0
      %5534 = vmatpush1.msra.mxu0 0.0
      %5535 = vmatprep.subr.mxu0 0.0
      %5536 = vmatpush1.msra.mxu0 0.0
      %5537 = vmatprep.subr.mxu0 0.0
      %5538 = vmatpush1.msra.mxu0 0.0
      %5539 = vmatprep.subr.mxu0 0.0
      %5540 = vmatpush1.msra.mxu0 0.0
      %5541 = vmatprep.subr.mxu0 0.0
      %5542 = vmatpush1.msra.mxu0 0.0
      %5543 = vmatprep.mubr.f32.mxu0 0.0
      %5544 = vmatmul.mubr.f32.gmra.mrb[0].mxu0 %v5453
      %v5545 = vpop.f32.mrb[0].mxu0
      %v5546 = vadd.f32 0.0, %v5545
      %v5547 = vpop.f32.mrb[0].mxu0
      %5548 = vmatprep.mubr.f32.mxu0 0.0
      %5549 = vmatmul.mubr.f32.gmra.mrb[0].mxu0 %v5456
      %v5550 = vpop.f32.mrb[0].mxu0
      %v5551 = vadd.f32 0.0, %v5550
      %v5552 = vpop.f32.mrb[0].mxu0
      %5553 = vmatprep.mubr.f32.mxu0 0.0
      %5554 = vmatmul.mubr.f32.gmra.mrb[0].mxu0 %v5459
      %v5555 = vpop.f32.mrb[0].mxu0
      %v5556 = vadd.f32 0.0, %v5555
      %v5557 = vpop.f32.mrb[0].mxu0
      %5558 = vmatprep.mubr.f32.mxu0 0.0
      %5559 = vmatmul.mubr.f32.gmra.mrb[0].mxu0 %v5462
      %v5560 = vpop.f32.mrb[0].mxu0
      %v5561 = vadd.f32 0.0, %v5560
      %v5562 = vpop.f32.mrb[0].mxu0
      %5563 = vmatprep.mubr.f32.mxu0 0.0
      %5564 = vmatmul.mubr.f32.gmra.mrb[0].mxu0 %v5465
      %v5565 = vpop.f32.mrb[0].mxu0
      %v5566 = vadd.f32 0.0, %v5565
      %v5567 = vpop.f32.mrb[0].mxu0
      %5568 = vmatprep.mubr.f32.mxu0 0.0
      %5569 = vmatmul.mubr.f32.gmra.mrb[0].mxu0 %v5468
      %v5570 = vpop.f32.mrb[0].mxu0
      %v5571 = vadd.f32 0.0, %v5570
      %v5572 = vpop.f32.mrb[0].mxu0
      %5573 = vmatprep.mubr.f32.mxu0 0.0
      %5574 = vmatmul.mubr.f32.gmra.mrb[0].mxu0 %v5471
      %v5575 = vpop.f32.mrb[0].mxu0
      %v5576 = vadd.f32 0.0, %v5575
      %v5577 = vpop.f32.mrb[0].mxu0
      %5578 = vmatprep.mubr.f32.mxu0 0.0
      %5579 = vmatmul.mubr.f32.gmra.mrb[0].mxu0 %v5474
      %v5580 = vpop.f32.mrb[0].mxu0
      %v5581 = vadd.f32 0.0, %v5580
      %v5582 = vpop.f32.mrb[0].mxu0
      %5583 = vmatprep.mubr.f32.mxu0 0.0
      %5584 = vmatmul.mubr.f32.gmra.mrb[0].mxu0 %v5477
      %v5585 = vpop.f32.mrb[0].mxu0
      %v5586 = vadd.f32 0.0, %v5585
      %v5587 = vpop.f32.mrb[0].mxu0
      %5588 = vdwg.mxu0
      %v5589 = vadd.f32 %v5425, %v5546
      %v5590 = vadd.f32 %v5426, %v5551
      %v5591 = vadd.f32 %v5427, %v5556
      %v5592 = vadd.f32 %v5428, %v5561
      %v5593 = vadd.f32 %v5429, %v5566
      %v5594 = vadd.f32 %v5430, %v5571
      %v5595 = vadd.f32 %v5431, %v5576
      %v5596 = vadd.f32 %v5432, %v5581
      %v5597 = vadd.f32 %v5433, %v5586
      %v5598 = vld [vmem:[#allocation7 + $0x7] sm:$0xff]
      %v5599 = vld [vmem:[#allocation7 + $0xf] sm:$0xff]
      %v5600 = vld [vmem:[#allocation7 + $0x17] sm:$0xff]
      %v5601 = vld [vmem:[#allocation7 + $0x1f] sm:$0xff]
      %v5602 = vld [vmem:[#allocation7 + $0x27] sm:$0xff]
      %v5603 = vld [vmem:[#allocation7 + $0x2f] sm:$0xff]
      %v5604 = vld [vmem:[#allocation7 + $0x37] sm:$0xff]
      %v5605 = vld [vmem:[#allocation7 + $0x3f] sm:$0xff]
      %v5606 = vld [vmem:[#allocation7 + $0x47] sm:$0xff]
      %s5607 = scalar_lea.vmem %s5, 256
      %v5608 = vld [vmem:[%s5607] sm:$0xff]
      %v5609 = vld [vmem:[%s5607 + $0x8] sm:$0xff]
      %v5610 = vld [vmem:[%s5607 + $0x10] sm:$0xff]
      %v5611 = vld [vmem:[%s5607 + $0x18] sm:$0xff]
      %v5612 = vld [vmem:[%s5607 + $0x20] sm:$0xff]
      %v5613 = vld [vmem:[%s5607 + $0x28] sm:$0xff]
      %v5614 = vld [vmem:[%s5607 + $0x30] sm:$0xff]
      %v5615 = vld [vmem:[%s5607 + $0x38] sm:$0xff]
      %v5617 = vsel %vm1624, %v5598, 0
      %v5620 = vsel %vm1624, %v5599, 0
      %v5623 = vsel %vm1624, %v5600, 0
      %v5626 = vsel %vm1624, %v5601, 0
      %v5629 = vsel %vm1624, %v5602, 0
      %v5632 = vsel %vm1624, %v5603, 0
      %v5635 = vsel %vm1624, %v5604, 0
      %v5638 = vsel %vm1624, %v5605, 0
      %v5641 = vsel %vm1624, %v5606, 0
      %5643 = vmatprep.subr.mxu0 0.0
      %5644 = vmatpush1.msra.mxu0 %v5608
      %5645 = vmatprep.subr.mxu0 0.0
      %5646 = vmatpush1.msra.mxu0 %v5609
      %5647 = vmatprep.subr.mxu0 0.0
      %5648 = vmatpush1.msra.mxu0 %v5610
      %5649 = vmatprep.subr.mxu0 0.0
      %5650 = vmatpush1.msra.mxu0 %v5611
      %5651 = vmatprep.subr.mxu0 0.0
      %5652 = vmatpush1.msra.mxu0 %v5612
      %5653 = vmatprep.subr.mxu0 0.0
      %5654 = vmatpush1.msra.mxu0 %v5613
      %5655 = vmatprep.subr.mxu0 0.0
      %5656 = vmatpush1.msra.mxu0 %v5614
      %5657 = vmatprep.subr.mxu0 0.0
      %5658 = vmatpush1.msra.mxu0 %v5615
      %5659 = vmatprep.subr.mxu0 0.0
      %5660 = vmatpush1.msra.mxu0 0.0
      %5661 = vmatprep.subr.mxu0 0.0
      %5662 = vmatpush1.msra.mxu0 0.0
      %5663 = vmatprep.subr.mxu0 0.0
      %5664 = vmatpush1.msra.mxu0 0.0
      %5665 = vmatprep.subr.mxu0 0.0
      %5666 = vmatpush1.msra.mxu0 0.0
      %5667 = vmatprep.subr.mxu0 0.0
      %5668 = vmatpush1.msra.mxu0 0.0
      %5669 = vmatprep.subr.mxu0 0.0
      %5670 = vmatpush1.msra.mxu0 0.0
      %5671 = vmatprep.subr.mxu0 0.0
      %5672 = vmatpush1.msra.mxu0 0.0
      %5673 = vmatprep.subr.mxu0 0.0
      %5674 = vmatpush1.msra.mxu0 0.0
      %5675 = vmatprep.subr.mxu0 0.0
      %5676 = vmatpush1.msra.mxu0 0.0
      %5677 = vmatprep.subr.mxu0 0.0
      %5678 = vmatpush1.msra.mxu0 0.0
      %5679 = vmatprep.subr.mxu0 0.0
      %5680 = vmatpush1.msra.mxu0 0.0
      %5681 = vmatprep.subr.mxu0 0.0
      %5682 = vmatpush1.msra.mxu0 0.0
      %5683 = vmatprep.subr.mxu0 0.0
      %5684 = vmatpush1.msra.mxu0 0.0
      %5685 = vmatprep.subr.mxu0 0.0
      %5686 = vmatpush1.msra.mxu0 0.0
      %5687 = vmatprep.subr.mxu0 0.0
      %5688 = vmatpush1.msra.mxu0 0.0
      %5689 = vmatprep.subr.mxu0 0.0
      %5690 = vmatpush1.msra.mxu0 0.0
      %5691 = vmatprep.subr.mxu0 0.0
      %5692 = vmatpush1.msra.mxu0 0.0
      %5693 = vmatprep.subr.mxu0 0.0
      %5694 = vmatpush1.msra.mxu0 0.0
      %5695 = vmatprep.subr.mxu0 0.0
      %5696 = vmatpush1.msra.mxu0 0.0
      %5697 = vmatprep.subr.mxu0 0.0
      %5698 = vmatpush1.msra.mxu0 0.0
      %5699 = vmatprep.subr.mxu0 0.0
      %5700 = vmatpush1.msra.mxu0 0.0
      %5701 = vmatprep.subr.mxu0 0.0
      %5702 = vmatpush1.msra.mxu0 0.0
      %5703 = vmatprep.subr.mxu0 0.0
      %5704 = vmatpush1.msra.mxu0 0.0
      %5705 = vmatprep.subr.mxu0 0.0
      %5706 = vmatpush1.msra.mxu0 0.0
      %5707 = vmatprep.mubr.f32.mxu0 0.0
      %5708 = vmatmul.mubr.f32.gmra.mrb[0].mxu0 %v5617
      %v5709 = vpop.f32.mrb[0].mxu0
      %v5710 = vadd.f32 0.0, %v5709
      %v5711 = vpop.f32.mrb[0].mxu0
      %5712 = vmatprep.mubr.f32.mxu0 0.0
      %5713 = vmatmul.mubr.f32.gmra.mrb[0].mxu0 %v5620
      %v5714 = vpop.f32.mrb[0].mxu0
      %v5715 = vadd.f32 0.0, %v5714
      %v5716 = vpop.f32.mrb[0].mxu0
      %5717 = vmatprep.mubr.f32.mxu0 0.0
      %5718 = vmatmul.mubr.f32.gmra.mrb[0].mxu0 %v5623
      %v5719 = vpop.f32.mrb[0].mxu0
      %v5720 = vadd.f32 0.0, %v5719
      %v5721 = vpop.f32.mrb[0].mxu0
      %5722 = vmatprep.mubr.f32.mxu0 0.0
      %5723 = vmatmul.mubr.f32.gmra.mrb[0].mxu0 %v5626
      %v5724 = vpop.f32.mrb[0].mxu0
      %v5725 = vadd.f32 0.0, %v5724
      %v5726 = vpop.f32.mrb[0].mxu0
      %5727 = vmatprep.mubr.f32.mxu0 0.0
      %5728 = vmatmul.mubr.f32.gmra.mrb[0].mxu0 %v5629
      %v5729 = vpop.f32.mrb[0].mxu0
      %v5730 = vadd.f32 0.0, %v5729
      %v5731 = vpop.f32.mrb[0].mxu0
      %5732 = vmatprep.mubr.f32.mxu0 0.0
      %5733 = vmatmul.mubr.f32.gmra.mrb[0].mxu0 %v5632
      %v5734 = vpop.f32.mrb[0].mxu0
      %v5735 = vadd.f32 0.0, %v5734
      %v5736 = vpop.f32.mrb[0].mxu0
      %5737 = vmatprep.mubr.f32.mxu0 0.0
      %5738 = vmatmul.mubr.f32.gmra.mrb[0].mxu0 %v5635
      %v5739 = vpop.f32.mrb[0].mxu0
      %v5740 = vadd.f32 0.0, %v5739
      %v5741 = vpop.f32.mrb[0].mxu0
      %5742 = vmatprep.mubr.f32.mxu0 0.0
      %5743 = vmatmul.mubr.f32.gmra.mrb[0].mxu0 %v5638
      %v5744 = vpop.f32.mrb[0].mxu0
      %v5745 = vadd.f32 0.0, %v5744
      %v5746 = vpop.f32.mrb[0].mxu0
      %5747 = vmatprep.mubr.f32.mxu0 0.0
      %5748 = vmatmul.mubr.f32.gmra.mrb[0].mxu0 %v5641
      %v5749 = vpop.f32.mrb[0].mxu0
      %v5750 = vadd.f32 0.0, %v5749
      %v5751 = vpop.f32.mrb[0].mxu0
      %5752 = vdwg.mxu0
      %v5753 = vadd.f32 %v5589, %v5710
      %v5754 = vadd.f32 %v5590, %v5715
      %v5755 = vadd.f32 %v5591, %v5720
      %v5756 = vadd.f32 %v5592, %v5725
      %v5757 = vadd.f32 %v5593, %v5730
      %v5758 = vadd.f32 %v5594, %v5735
      %v5759 = vadd.f32 %v5595, %v5740
      %v5760 = vadd.f32 %v5596, %v5745
      %v5761 = vadd.f32 %v5597, %v5750
      %v5762 = vld [vmem:[#allocation7 + $0x8] sm:$0xff]
      %v5763 = vld [vmem:[#allocation7 + $0x10] sm:$0xff]
      %v5764 = vld [vmem:[#allocation7 + $0x18] sm:$0xff]
      %v5765 = vld [vmem:[#allocation7 + $0x20] sm:$0xff]
      %v5766 = vld [vmem:[#allocation7 + $0x28] sm:$0xff]
      %v5767 = vld [vmem:[#allocation7 + $0x30] sm:$0xff]
      %v5768 = vld [vmem:[#allocation7 + $0x38] sm:$0xff]
      %v5769 = vld [vmem:[#allocation7 + $0x40] sm:$0xff]
      %v5770 = vld [vmem:[#allocation7 + $0x48] sm:$0xff]
      %s5771 = scalar_lea.vmem %s5, 320
      %v5772 = vld [vmem:[%s5771] sm:$0xff]
      %v5773 = vld [vmem:[%s5771 + $0x8] sm:$0xff]
      %v5774 = vld [vmem:[%s5771 + $0x10] sm:$0xff]
      %v5775 = vld [vmem:[%s5771 + $0x18] sm:$0xff]
      %v5776 = vld [vmem:[%s5771 + $0x20] sm:$0xff]
      %v5777 = vld [vmem:[%s5771 + $0x28] sm:$0xff]
      %v5778 = vld [vmem:[%s5771 + $0x30] sm:$0xff]
      %v5779 = vld [vmem:[%s5771 + $0x38] sm:$0xff]
      %v5781 = vsel %vm1624, %v5762, 0
      %v5784 = vsel %vm1624, %v5763, 0
      %v5787 = vsel %vm1624, %v5764, 0
      %v5790 = vsel %vm1624, %v5765, 0
      %v5793 = vsel %vm1624, %v5766, 0
      %v5796 = vsel %vm1624, %v5767, 0
      %v5799 = vsel %vm1624, %v5768, 0
      %v5802 = vsel %vm1624, %v5769, 0
      %v5805 = vsel %vm1624, %v5770, 0
      %5807 = vmatprep.subr.mxu0 0.0
      %5808 = vmatpush1.msra.mxu0 %v5772
      %5809 = vmatprep.subr.mxu0 0.0
      %5810 = vmatpush1.msra.mxu0 %v5773
      %5811 = vmatprep.subr.mxu0 0.0
      %5812 = vmatpush1.msra.mxu0 %v5774
      %5813 = vmatprep.subr.mxu0 0.0
      %5814 = vmatpush1.msra.mxu0 %v5775
      %5815 = vmatprep.subr.mxu0 0.0
      %5816 = vmatpush1.msra.mxu0 %v5776
      %5817 = vmatprep.subr.mxu0 0.0
      %5818 = vmatpush1.msra.mxu0 %v5777
      %5819 = vmatprep.subr.mxu0 0.0
      %5820 = vmatpush1.msra.mxu0 %v5778
      %5821 = vmatprep.subr.mxu0 0.0
      %5822 = vmatpush1.msra.mxu0 %v5779
      %5823 = vmatprep.subr.mxu0 0.0
      %5824 = vmatpush1.msra.mxu0 0.0
      %5825 = vmatprep.subr.mxu0 0.0
      %5826 = vmatpush1.msra.mxu0 0.0
      %5827 = vmatprep.subr.mxu0 0.0
      %5828 = vmatpush1.msra.mxu0 0.0
      %5829 = vmatprep.subr.mxu0 0.0
      %5830 = vmatpush1.msra.mxu0 0.0
      %5831 = vmatprep.subr.mxu0 0.0
      %5832 = vmatpush1.msra.mxu0 0.0
      %5833 = vmatprep.subr.mxu0 0.0
      %5834 = vmatpush1.msra.mxu0 0.0
      %5835 = vmatprep.subr.mxu0 0.0
      %5836 = vmatpush1.msra.mxu0 0.0
      %5837 = vmatprep.subr.mxu0 0.0
      %5838 = vmatpush1.msra.mxu0 0.0
      %5839 = vmatprep.subr.mxu0 0.0
      %5840 = vmatpush1.msra.mxu0 0.0
      %5841 = vmatprep.subr.mxu0 0.0
      %5842 = vmatpush1.msra.mxu0 0.0
      %5843 = vmatprep.subr.mxu0 0.0
      %5844 = vmatpush1.msra.mxu0 0.0
      %5845 = vmatprep.subr.mxu0 0.0
      %5846 = vmatpush1.msra.mxu0 0.0
      %5847 = vmatprep.subr.mxu0 0.0
      %5848 = vmatpush1.msra.mxu0 0.0
      %5849 = vmatprep.subr.mxu0 0.0
      %5850 = vmatpush1.msra.mxu0 0.0
      %5851 = vmatprep.subr.mxu0 0.0
      %5852 = vmatpush1.msra.mxu0 0.0
      %5853 = vmatprep.subr.mxu0 0.0
      %5854 = vmatpush1.msra.mxu0 0.0
      %5855 = vmatprep.subr.mxu0 0.0
      %5856 = vmatpush1.msra.mxu0 0.0
      %5857 = vmatprep.subr.mxu0 0.0
      %5858 = vmatpush1.msra.mxu0 0.0
      %5859 = vmatprep.subr.mxu0 0.0
      %5860 = vmatpush1.msra.mxu0 0.0
      %5861 = vmatprep.subr.mxu0 0.0
      %5862 = vmatpush1.msra.mxu0 0.0
      %5863 = vmatprep.subr.mxu0 0.0
      %5864 = vmatpush1.msra.mxu0 0.0
      %5865 = vmatprep.subr.mxu0 0.0
      %5866 = vmatpush1.msra.mxu0 0.0
      %5867 = vmatprep.subr.mxu0 0.0
      %5868 = vmatpush1.msra.mxu0 0.0
      %5869 = vmatprep.subr.mxu0 0.0
      %5870 = vmatpush1.msra.mxu0 0.0
      %5871 = vmatprep.mubr.f32.mxu0 0.0
      %5872 = vmatmul.mubr.f32.gmra.mrb[0].mxu0 %v5781
      %v5873 = vpop.f32.mrb[0].mxu0
      %v5874 = vadd.f32 0.0, %v5873
      %v5875 = vpop.f32.mrb[0].mxu0
      %5876 = vmatprep.mubr.f32.mxu0 0.0
      %5877 = vmatmul.mubr.f32.gmra.mrb[0].mxu0 %v5784
      %v5878 = vpop.f32.mrb[0].mxu0
      %v5879 = vadd.f32 0.0, %v5878
      %v5880 = vpop.f32.mrb[0].mxu0
      %5881 = vmatprep.mubr.f32.mxu0 0.0
      %5882 = vmatmul.mubr.f32.gmra.mrb[0].mxu0 %v5787
      %v5883 = vpop.f32.mrb[0].mxu0
      %v5884 = vadd.f32 0.0, %v5883
      %v5885 = vpop.f32.mrb[0].mxu0
      %5886 = vmatprep.mubr.f32.mxu0 0.0
      %5887 = vmatmul.mubr.f32.gmra.mrb[0].mxu0 %v5790
      %v5888 = vpop.f32.mrb[0].mxu0
      %v5889 = vadd.f32 0.0, %v5888
      %v5890 = vpop.f32.mrb[0].mxu0
      %5891 = vmatprep.mubr.f32.mxu0 0.0
      %5892 = vmatmul.mubr.f32.gmra.mrb[0].mxu0 %v5793
      %v5893 = vpop.f32.mrb[0].mxu0
      %v5894 = vadd.f32 0.0, %v5893
      %v5895 = vpop.f32.mrb[0].mxu0
      %5896 = vmatprep.mubr.f32.mxu0 0.0
      %5897 = vmatmul.mubr.f32.gmra.mrb[0].mxu0 %v5796
      %v5898 = vpop.f32.mrb[0].mxu0
      %v5899 = vadd.f32 0.0, %v5898
      %v5900 = vpop.f32.mrb[0].mxu0
      %5901 = vmatprep.mubr.f32.mxu0 0.0
      %5902 = vmatmul.mubr.f32.gmra.mrb[0].mxu0 %v5799
      %v5903 = vpop.f32.mrb[0].mxu0
      %v5904 = vadd.f32 0.0, %v5903
      %v5905 = vpop.f32.mrb[0].mxu0
      %5906 = vmatprep.mubr.f32.mxu0 0.0
      %5907 = vmatmul.mubr.f32.gmra.mrb[0].mxu0 %v5802
      %v5908 = vpop.f32.mrb[0].mxu0
      %v5909 = vadd.f32 0.0, %v5908
      %v5910 = vpop.f32.mrb[0].mxu0
      %5911 = vmatprep.mubr.f32.mxu0 0.0
      %5912 = vmatmul.mubr.f32.gmra.mrb[0].mxu0 %v5805
      %v5913 = vpop.f32.mrb[0].mxu0
      %v5914 = vadd.f32 0.0, %v5913
      %v5915 = vpop.f32.mrb[0].mxu0
      %5916 = vdwg.mxu0
      %v5917 = vadd.f32 %v5753, %v5874
      %v5918 = vadd.f32 %v5754, %v5879
      %v5919 = vadd.f32 %v5755, %v5884
      %v5920 = vadd.f32 %v5756, %v5889
      %v5921 = vadd.f32 %v5757, %v5894
      %v5922 = vadd.f32 %v5758, %v5899
      %v5923 = vadd.f32 %v5759, %v5904
      %v5924 = vadd.f32 %v5760, %v5909
      %v5925 = vadd.f32 %v5761, %v5914
      %v5926 = vld [vmem:[#allocation7 + $0xc] sm:$0xff]
      %v5927 = vld [vmem:[#allocation7 + $0x14] sm:$0xff]
      %v5928 = vld [vmem:[#allocation7 + $0x1c] sm:$0xff]
      %v5929 = vld [vmem:[#allocation7 + $0x24] sm:$0xff]
      %v5930 = vld [vmem:[#allocation7 + $0x2c] sm:$0xff]
      %v5931 = vld [vmem:[#allocation7 + $0x34] sm:$0xff]
      %v5932 = vld [vmem:[#allocation7 + $0x3c] sm:$0xff]
      %v5933 = vld [vmem:[#allocation7 + $0x44] sm:$0xff]
      %v5934 = vld [vmem:[#allocation7 + $0x4c] sm:$0xff]
      %s5935 = scalar_lea.vmem %s5, 384
      %v5936 = vld [vmem:[%s5935] sm:$0xff]
      %v5937 = vld [vmem:[%s5935 + $0x8] sm:$0xff]
      %v5938 = vld [vmem:[%s5935 + $0x10] sm:$0xff]
      %v5939 = vld [vmem:[%s5935 + $0x18] sm:$0xff]
      %v5940 = vld [vmem:[%s5935 + $0x20] sm:$0xff]
      %v5941 = vld [vmem:[%s5935 + $0x28] sm:$0xff]
      %v5942 = vld [vmem:[%s5935 + $0x30] sm:$0xff]
      %v5943 = vld [vmem:[%s5935 + $0x38] sm:$0xff]
      %v5945 = vsel %vm1624, %v5926, 0
      %v5948 = vsel %vm1624, %v5927, 0
      %v5951 = vsel %vm1624, %v5928, 0
      %v5954 = vsel %vm1624, %v5929, 0
      %v5957 = vsel %vm1624, %v5930, 0
      %v5960 = vsel %vm1624, %v5931, 0
      %v5963 = vsel %vm1624, %v5932, 0
      %v5966 = vsel %vm1624, %v5933, 0
      %v5969 = vsel %vm1624, %v5934, 0
      %5971 = vmatprep.subr.mxu0 0.0
      %5972 = vmatpush1.msra.mxu0 %v5936
      %5973 = vmatprep.subr.mxu0 0.0
      %5974 = vmatpush1.msra.mxu0 %v5937
      %5975 = vmatprep.subr.mxu0 0.0
      %5976 = vmatpush1.msra.mxu0 %v5938
      %5977 = vmatprep.subr.mxu0 0.0
      %5978 = vmatpush1.msra.mxu0 %v5939
      %5979 = vmatprep.subr.mxu0 0.0
      %5980 = vmatpush1.msra.mxu0 %v5940
      %5981 = vmatprep.subr.mxu0 0.0
      %5982 = vmatpush1.msra.mxu0 %v5941
      %5983 = vmatprep.subr.mxu0 0.0
      %5984 = vmatpush1.msra.mxu0 %v5942
      %5985 = vmatprep.subr.mxu0 0.0
      %5986 = vmatpush1.msra.mxu0 %v5943
      %5987 = vmatprep.subr.mxu0 0.0
      %5988 = vmatpush1.msra.mxu0 0.0
      %5989 = vmatprep.subr.mxu0 0.0
      %5990 = vmatpush1.msra.mxu0 0.0
      %5991 = vmatprep.subr.mxu0 0.0
      %5992 = vmatpush1.msra.mxu0 0.0
      %5993 = vmatprep.subr.mxu0 0.0
      %5994 = vmatpush1.msra.mxu0 0.0
      %5995 = vmatprep.subr.mxu0 0.0
      %5996 = vmatpush1.msra.mxu0 0.0
      %5997 = vmatprep.subr.mxu0 0.0
      %5998 = vmatpush1.msra.mxu0 0.0
      %5999 = vmatprep.subr.mxu0 0.0
      %6000 = vmatpush1.msra.mxu0 0.0
      %6001 = vmatprep.subr.mxu0 0.0
      %6002 = vmatpush1.msra.mxu0 0.0
      %6003 = vmatprep.subr.mxu0 0.0
      %6004 = vmatpush1.msra.mxu0 0.0
      %6005 = vmatprep.subr.mxu0 0.0
      %6006 = vmatpush1.msra.mxu0 0.0
      %6007 = vmatprep.subr.mxu0 0.0
      %6008 = vmatpush1.msra.mxu0 0.0
      %6009 = vmatprep.subr.mxu0 0.0
      %6010 = vmatpush1.msra.mxu0 0.0
      %6011 = vmatprep.subr.mxu0 0.0
      %6012 = vmatpush1.msra.mxu0 0.0
      %6013 = vmatprep.subr.mxu0 0.0
      %6014 = vmatpush1.msra.mxu0 0.0
      %6015 = vmatprep.subr.mxu0 0.0
      %6016 = vmatpush1.msra.mxu0 0.0
      %6017 = vmatprep.subr.mxu0 0.0
      %6018 = vmatpush1.msra.mxu0 0.0
      %6019 = vmatprep.subr.mxu0 0.0
      %6020 = vmatpush1.msra.mxu0 0.0
      %6021 = vmatprep.subr.mxu0 0.0
      %6022 = vmatpush1.msra.mxu0 0.0
      %6023 = vmatprep.subr.mxu0 0.0
      %6024 = vmatpush1.msra.mxu0 0.0
      %6025 = vmatprep.subr.mxu0 0.0
      %6026 = vmatpush1.msra.mxu0 0.0
      %6027 = vmatprep.subr.mxu0 0.0
      %6028 = vmatpush1.msra.mxu0 0.0
      %6029 = vmatprep.subr.mxu0 0.0
      %6030 = vmatpush1.msra.mxu0 0.0
      %6031 = vmatprep.subr.mxu0 0.0
      %6032 = vmatpush1.msra.mxu0 0.0
      %6033 = vmatprep.subr.mxu0 0.0
      %6034 = vmatpush1.msra.mxu0 0.0
      %6035 = vmatprep.mubr.f32.mxu0 0.0
      %6036 = vmatmul.mubr.f32.gmra.mrb[0].mxu0 %v5945
      %v6037 = vpop.f32.mrb[0].mxu0
      %v6038 = vadd.f32 0.0, %v6037
      %v6039 = vpop.f32.mrb[0].mxu0
      %6040 = vmatprep.mubr.f32.mxu0 0.0
      %6041 = vmatmul.mubr.f32.gmra.mrb[0].mxu0 %v5948
      %v6042 = vpop.f32.mrb[0].mxu0
      %v6043 = vadd.f32 0.0, %v6042
      %v6044 = vpop.f32.mrb[0].mxu0
      %6045 = vmatprep.mubr.f32.mxu0 0.0
      %6046 = vmatmul.mubr.f32.gmra.mrb[0].mxu0 %v5951
      %v6047 = vpop.f32.mrb[0].mxu0
      %v6048 = vadd.f32 0.0, %v6047
      %v6049 = vpop.f32.mrb[0].mxu0
      %6050 = vmatprep.mubr.f32.mxu0 0.0
      %6051 = vmatmul.mubr.f32.gmra.mrb[0].mxu0 %v5954
      %v6052 = vpop.f32.mrb[0].mxu0
      %v6053 = vadd.f32 0.0, %v6052
      %v6054 = vpop.f32.mrb[0].mxu0
      %6055 = vmatprep.mubr.f32.mxu0 0.0
      %6056 = vmatmul.mubr.f32.gmra.mrb[0].mxu0 %v5957
      %v6057 = vpop.f32.mrb[0].mxu0
      %v6058 = vadd.f32 0.0, %v6057
      %v6059 = vpop.f32.mrb[0].mxu0
      %6060 = vmatprep.mubr.f32.mxu0 0.0
      %6061 = vmatmul.mubr.f32.gmra.mrb[0].mxu0 %v5960
      %v6062 = vpop.f32.mrb[0].mxu0
      %v6063 = vadd.f32 0.0, %v6062
      %v6064 = vpop.f32.mrb[0].mxu0
      %6065 = vmatprep.mubr.f32.mxu0 0.0
      %6066 = vmatmul.mubr.f32.gmra.mrb[0].mxu0 %v5963
      %v6067 = vpop.f32.mrb[0].mxu0
      %v6068 = vadd.f32 0.0, %v6067
      %v6069 = vpop.f32.mrb[0].mxu0
      %6070 = vmatprep.mubr.f32.mxu0 0.0
      %6071 = vmatmul.mubr.f32.gmra.mrb[0].mxu0 %v5966
      %v6072 = vpop.f32.mrb[0].mxu0
      %v6073 = vadd.f32 0.0, %v6072
      %v6074 = vpop.f32.mrb[0].mxu0
      %6075 = vmatprep.mubr.f32.mxu0 0.0
      %6076 = vmatmul.mubr.f32.gmra.mrb[0].mxu0 %v5969
      %v6077 = vpop.f32.mrb[0].mxu0
      %v6078 = vadd.f32 0.0, %v6077
      %v6079 = vpop.f32.mrb[0].mxu0
      %6080 = vdwg.mxu0
      %v6081 = vadd.f32 %v5917, %v6038
      %v6082 = vadd.f32 %v5918, %v6043
      %v6083 = vadd.f32 %v5919, %v6048
      %v6084 = vadd.f32 %v5920, %v6053
      %v6085 = vadd.f32 %v5921, %v6058
      %v6086 = vadd.f32 %v5922, %v6063
      %v6087 = vadd.f32 %v5923, %v6068
      %v6088 = vadd.f32 %v5924, %v6073
      %v6089 = vadd.f32 %v5925, %v6078
      %v6090 = vld [vmem:[#allocation7 + $0xd] sm:$0xff]
      %v6091 = vld [vmem:[#allocation7 + $0x15] sm:$0xff]
      %v6092 = vld [vmem:[#allocation7 + $0x1d] sm:$0xff]
      %v6093 = vld [vmem:[#allocation7 + $0x25] sm:$0xff]
      %v6094 = vld [vmem:[#allocation7 + $0x2d] sm:$0xff]
      %v6095 = vld [vmem:[#allocation7 + $0x35] sm:$0xff]
      %v6096 = vld [vmem:[#allocation7 + $0x3d] sm:$0xff]
      %v6097 = vld [vmem:[#allocation7 + $0x45] sm:$0xff]
      %v6098 = vld [vmem:[#allocation7 + $0x4d] sm:$0xff]
      %s6099 = scalar_lea.vmem %s5, 448
      %v6100 = vld [vmem:[%s6099] sm:$0xff]
      %v6101 = vld [vmem:[%s6099 + $0x8] sm:$0xff]
      %v6102 = vld [vmem:[%s6099 + $0x10] sm:$0xff]
      %v6103 = vld [vmem:[%s6099 + $0x18] sm:$0xff]
      %v6104 = vld [vmem:[%s6099 + $0x20] sm:$0xff]
      %v6105 = vld [vmem:[%s6099 + $0x28] sm:$0xff]
      %v6106 = vld [vmem:[%s6099 + $0x30] sm:$0xff]
      %v6107 = vld [vmem:[%s6099 + $0x38] sm:$0xff]
      %v6109 = vsel %vm1624, %v6090, 0
      %v6112 = vsel %vm1624, %v6091, 0
      %v6115 = vsel %vm1624, %v6092, 0
      %v6118 = vsel %vm1624, %v6093, 0
      %v6121 = vsel %vm1624, %v6094, 0
      %v6124 = vsel %vm1624, %v6095, 0
      %v6127 = vsel %vm1624, %v6096, 0
      %v6130 = vsel %vm1624, %v6097, 0
      %v6133 = vsel %vm1624, %v6098, 0
      %6135 = vmatprep.subr.mxu0 0.0
      %6136 = vmatpush1.msra.mxu0 %v6100
      %6137 = vmatprep.subr.mxu0 0.0
      %6138 = vmatpush1.msra.mxu0 %v6101
      %6139 = vmatprep.subr.mxu0 0.0
      %6140 = vmatpush1.msra.mxu0 %v6102
      %6141 = vmatprep.subr.mxu0 0.0
      %6142 = vmatpush1.msra.mxu0 %v6103
      %6143 = vmatprep.subr.mxu0 0.0
      %6144 = vmatpush1.msra.mxu0 %v6104
      %6145 = vmatprep.subr.mxu0 0.0
      %6146 = vmatpush1.msra.mxu0 %v6105
      %6147 = vmatprep.subr.mxu0 0.0
      %6148 = vmatpush1.msra.mxu0 %v6106
      %6149 = vmatprep.subr.mxu0 0.0
      %6150 = vmatpush1.msra.mxu0 %v6107
      %6151 = vmatprep.subr.mxu0 0.0
      %6152 = vmatpush1.msra.mxu0 0.0
      %6153 = vmatprep.subr.mxu0 0.0
      %6154 = vmatpush1.msra.mxu0 0.0
      %6155 = vmatprep.subr.mxu0 0.0
      %6156 = vmatpush1.msra.mxu0 0.0
      %6157 = vmatprep.subr.mxu0 0.0
      %6158 = vmatpush1.msra.mxu0 0.0
      %6159 = vmatprep.subr.mxu0 0.0
      %6160 = vmatpush1.msra.mxu0 0.0
      %6161 = vmatprep.subr.mxu0 0.0
      %6162 = vmatpush1.msra.mxu0 0.0
      %6163 = vmatprep.subr.mxu0 0.0
      %6164 = vmatpush1.msra.mxu0 0.0
      %6165 = vmatprep.subr.mxu0 0.0
      %6166 = vmatpush1.msra.mxu0 0.0
      %6167 = vmatprep.subr.mxu0 0.0
      %6168 = vmatpush1.msra.mxu0 0.0
      %6169 = vmatprep.subr.mxu0 0.0
      %6170 = vmatpush1.msra.mxu0 0.0
      %6171 = vmatprep.subr.mxu0 0.0
      %6172 = vmatpush1.msra.mxu0 0.0
      %6173 = vmatprep.subr.mxu0 0.0
      %6174 = vmatpush1.msra.mxu0 0.0
      %6175 = vmatprep.subr.mxu0 0.0
      %6176 = vmatpush1.msra.mxu0 0.0
      %6177 = vmatprep.subr.mxu0 0.0
      %6178 = vmatpush1.msra.mxu0 0.0
      %6179 = vmatprep.subr.mxu0 0.0
      %6180 = vmatpush1.msra.mxu0 0.0
      %6181 = vmatprep.subr.mxu0 0.0
      %6182 = vmatpush1.msra.mxu0 0.0
      %6183 = vmatprep.subr.mxu0 0.0
      %6184 = vmatpush1.msra.mxu0 0.0
      %6185 = vmatprep.subr.mxu0 0.0
      %6186 = vmatpush1.msra.mxu0 0.0
      %6187 = vmatprep.subr.mxu0 0.0
      %6188 = vmatpush1.msra.mxu0 0.0
      %6189 = vmatprep.subr.mxu0 0.0
      %6190 = vmatpush1.msra.mxu0 0.0
      %6191 = vmatprep.subr.mxu0 0.0
      %6192 = vmatpush1.msra.mxu0 0.0
      %6193 = vmatprep.subr.mxu0 0.0
      %6194 = vmatpush1.msra.mxu0 0.0
      %6195 = vmatprep.subr.mxu0 0.0
      %6196 = vmatpush1.msra.mxu0 0.0
      %6197 = vmatprep.subr.mxu0 0.0
      %6198 = vmatpush1.msra.mxu0 0.0
      %6199 = vmatprep.mubr.f32.mxu0 0.0
      %6200 = vmatmul.mubr.f32.gmra.mrb[0].mxu0 %v6109
      %v6201 = vpop.f32.mrb[0].mxu0
      %v6202 = vadd.f32 0.0, %v6201
      %v6203 = vpop.f32.mrb[0].mxu0
      %6204 = vmatprep.mubr.f32.mxu0 0.0
      %6205 = vmatmul.mubr.f32.gmra.mrb[0].mxu0 %v6112
      %v6206 = vpop.f32.mrb[0].mxu0
      %v6207 = vadd.f32 0.0, %v6206
      %v6208 = vpop.f32.mrb[0].mxu0
      %6209 = vmatprep.mubr.f32.mxu0 0.0
      %6210 = vmatmul.mubr.f32.gmra.mrb[0].mxu0 %v6115
      %v6211 = vpop.f32.mrb[0].mxu0
      %v6212 = vadd.f32 0.0, %v6211
      %v6213 = vpop.f32.mrb[0].mxu0
      %6214 = vmatprep.mubr.f32.mxu0 0.0
      %6215 = vmatmul.mubr.f32.gmra.mrb[0].mxu0 %v6118
      %v6216 = vpop.f32.mrb[0].mxu0
      %v6217 = vadd.f32 0.0, %v6216
      %v6218 = vpop.f32.mrb[0].mxu0
      %6219 = vmatprep.mubr.f32.mxu0 0.0
      %6220 = vmatmul.mubr.f32.gmra.mrb[0].mxu0 %v6121
      %v6221 = vpop.f32.mrb[0].mxu0
      %v6222 = vadd.f32 0.0, %v6221
      %v6223 = vpop.f32.mrb[0].mxu0
      %6224 = vmatprep.mubr.f32.mxu0 0.0
      %6225 = vmatmul.mubr.f32.gmra.mrb[0].mxu0 %v6124
      %v6226 = vpop.f32.mrb[0].mxu0
      %v6227 = vadd.f32 0.0, %v6226
      %v6228 = vpop.f32.mrb[0].mxu0
      %6229 = vmatprep.mubr.f32.mxu0 0.0
      %6230 = vmatmul.mubr.f32.gmra.mrb[0].mxu0 %v6127
      %v6231 = vpop.f32.mrb[0].mxu0
      %v6232 = vadd.f32 0.0, %v6231
      %v6233 = vpop.f32.mrb[0].mxu0
      %6234 = vmatprep.mubr.f32.mxu0 0.0
      %6235 = vmatmul.mubr.f32.gmra.mrb[0].mxu0 %v6130
      %v6236 = vpop.f32.mrb[0].mxu0
      %v6237 = vadd.f32 0.0, %v6236
      %v6238 = vpop.f32.mrb[0].mxu0
      %6239 = vmatprep.mubr.f32.mxu0 0.0
      %6240 = vmatmul.mubr.f32.gmra.mrb[0].mxu0 %v6133
      %v6241 = vpop.f32.mrb[0].mxu0
      %v6242 = vadd.f32 0.0, %v6241
      %v6243 = vpop.f32.mrb[0].mxu0
      %6244 = vdwg.mxu0
      %v6245 = vadd.f32 %v6081, %v6202
      %v6246 = vadd.f32 %v6082, %v6207
      %v6247 = vadd.f32 %v6083, %v6212
      %v6248 = vadd.f32 %v6084, %v6217
      %v6249 = vadd.f32 %v6085, %v6222
      %v6250 = vadd.f32 %v6086, %v6227
      %v6251 = vadd.f32 %v6087, %v6232
      %v6252 = vadd.f32 %v6088, %v6237
      %v6253 = vadd.f32 %v6089, %v6242
      %v6254 = vld [vmem:[#allocation7 + $0xe] sm:$0xff]
      %v6255 = vld [vmem:[#allocation7 + $0x16] sm:$0xff]
      %v6256 = vld [vmem:[#allocation7 + $0x1e] sm:$0xff]
      %v6257 = vld [vmem:[#allocation7 + $0x26] sm:$0xff]
      %v6258 = vld [vmem:[#allocation7 + $0x2e] sm:$0xff]
      %v6259 = vld [vmem:[#allocation7 + $0x36] sm:$0xff]
      %v6260 = vld [vmem:[#allocation7 + $0x3e] sm:$0xff]
      %v6261 = vld [vmem:[#allocation7 + $0x46] sm:$0xff]
      %v6262 = vld [vmem:[#allocation7 + $0x4e] sm:$0xff]
      %s6263 = scalar_lea.vmem %s5, 512
      %v6264 = vld [vmem:[%s6263] sm:$0xff]
      %v6265 = vld [vmem:[%s6263 + $0x8] sm:$0xff]
      %v6266 = vld [vmem:[%s6263 + $0x10] sm:$0xff]
      %v6267 = vld [vmem:[%s6263 + $0x18] sm:$0xff]
      %v6268 = vld [vmem:[%s6263 + $0x20] sm:$0xff]
      %v6269 = vld [vmem:[%s6263 + $0x28] sm:$0xff]
      %v6270 = vld [vmem:[%s6263 + $0x30] sm:$0xff]
      %v6271 = vld [vmem:[%s6263 + $0x38] sm:$0xff]
      %v6273 = vsel %vm1624, %v6254, 0
      %v6276 = vsel %vm1624, %v6255, 0
      %v6279 = vsel %vm1624, %v6256, 0
      %v6282 = vsel %vm1624, %v6257, 0
      %v6285 = vsel %vm1624, %v6258, 0
      %v6288 = vsel %vm1624, %v6259, 0
      %v6291 = vsel %vm1624, %v6260, 0
      %v6294 = vsel %vm1624, %v6261, 0
      %v6297 = vsel %vm1624, %v6262, 0
      %6299 = vmatprep.subr.mxu0 0.0
      %6300 = vmatpush1.msra.mxu0 %v6264
      %6301 = vmatprep.subr.mxu0 0.0
      %6302 = vmatpush1.msra.mxu0 %v6265
      %6303 = vmatprep.subr.mxu0 0.0
      %6304 = vmatpush1.msra.mxu0 %v6266
      %6305 = vmatprep.subr.mxu0 0.0
      %6306 = vmatpush1.msra.mxu0 %v6267
      %6307 = vmatprep.subr.mxu0 0.0
      %6308 = vmatpush1.msra.mxu0 %v6268
      %6309 = vmatprep.subr.mxu0 0.0
      %6310 = vmatpush1.msra.mxu0 %v6269
      %6311 = vmatprep.subr.mxu0 0.0
      %6312 = vmatpush1.msra.mxu0 %v6270
      %6313 = vmatprep.subr.mxu0 0.0
      %6314 = vmatpush1.msra.mxu0 %v6271
      %6315 = vmatprep.subr.mxu0 0.0
      %6316 = vmatpush1.msra.mxu0 0.0
      %6317 = vmatprep.subr.mxu0 0.0
      %6318 = vmatpush1.msra.mxu0 0.0
      %6319 = vmatprep.subr.mxu0 0.0
      %6320 = vmatpush1.msra.mxu0 0.0
      %6321 = vmatprep.subr.mxu0 0.0
      %6322 = vmatpush1.msra.mxu0 0.0
      %6323 = vmatprep.subr.mxu0 0.0
      %6324 = vmatpush1.msra.mxu0 0.0
      %6325 = vmatprep.subr.mxu0 0.0
      %6326 = vmatpush1.msra.mxu0 0.0
      %6327 = vmatprep.subr.mxu0 0.0
      %6328 = vmatpush1.msra.mxu0 0.0
      %6329 = vmatprep.subr.mxu0 0.0
      %6330 = vmatpush1.msra.mxu0 0.0
      %6331 = vmatprep.subr.mxu0 0.0
      %6332 = vmatpush1.msra.mxu0 0.0
      %6333 = vmatprep.subr.mxu0 0.0
      %6334 = vmatpush1.msra.mxu0 0.0
      %6335 = vmatprep.subr.mxu0 0.0
      %6336 = vmatpush1.msra.mxu0 0.0
      %6337 = vmatprep.subr.mxu0 0.0
      %6338 = vmatpush1.msra.mxu0 0.0
      %6339 = vmatprep.subr.mxu0 0.0
      %6340 = vmatpush1.msra.mxu0 0.0
      %6341 = vmatprep.subr.mxu0 0.0
      %6342 = vmatpush1.msra.mxu0 0.0
      %6343 = vmatprep.subr.mxu0 0.0
      %6344 = vmatpush1.msra.mxu0 0.0
      %6345 = vmatprep.subr.mxu0 0.0
      %6346 = vmatpush1.msra.mxu0 0.0
      %6347 = vmatprep.subr.mxu0 0.0
      %6348 = vmatpush1.msra.mxu0 0.0
      %6349 = vmatprep.subr.mxu0 0.0
      %6350 = vmatpush1.msra.mxu0 0.0
      %6351 = vmatprep.subr.mxu0 0.0
      %6352 = vmatpush1.msra.mxu0 0.0
      %6353 = vmatprep.subr.mxu0 0.0
      %6354 = vmatpush1.msra.mxu0 0.0
      %6355 = vmatprep.subr.mxu0 0.0
      %6356 = vmatpush1.msra.mxu0 0.0
      %6357 = vmatprep.subr.mxu0 0.0
      %6358 = vmatpush1.msra.mxu0 0.0
      %6359 = vmatprep.subr.mxu0 0.0
      %6360 = vmatpush1.msra.mxu0 0.0
      %6361 = vmatprep.subr.mxu0 0.0
      %6362 = vmatpush1.msra.mxu0 0.0
      %6363 = vmatprep.mubr.f32.mxu0 0.0
      %6364 = vmatmul.mubr.f32.gmra.mrb[0].mxu0 %v6273
      %v6365 = vpop.f32.mrb[0].mxu0
      %v6366 = vadd.f32 0.0, %v6365
      %v6367 = vpop.f32.mrb[0].mxu0
      %6368 = vmatprep.mubr.f32.mxu0 0.0
      %6369 = vmatmul.mubr.f32.gmra.mrb[0].mxu0 %v6276
      %v6370 = vpop.f32.mrb[0].mxu0
      %v6371 = vadd.f32 0.0, %v6370
      %v6372 = vpop.f32.mrb[0].mxu0
      %6373 = vmatprep.mubr.f32.mxu0 0.0
      %6374 = vmatmul.mubr.f32.gmra.mrb[0].mxu0 %v6279
      %v6375 = vpop.f32.mrb[0].mxu0
      %v6376 = vadd.f32 0.0, %v6375
      %v6377 = vpop.f32.mrb[0].mxu0
      %6378 = vmatprep.mubr.f32.mxu0 0.0
      %6379 = vmatmul.mubr.f32.gmra.mrb[0].mxu0 %v6282
      %v6380 = vpop.f32.mrb[0].mxu0
      %v6381 = vadd.f32 0.0, %v6380
      %v6382 = vpop.f32.mrb[0].mxu0
      %6383 = vmatprep.mubr.f32.mxu0 0.0
      %6384 = vmatmul.mubr.f32.gmra.mrb[0].mxu0 %v6285
      %v6385 = vpop.f32.mrb[0].mxu0
      %v6386 = vadd.f32 0.0, %v6385
      %v6387 = vpop.f32.mrb[0].mxu0
      %6388 = vmatprep.mubr.f32.mxu0 0.0
      %6389 = vmatmul.mubr.f32.gmra.mrb[0].mxu0 %v6288
      %v6390 = vpop.f32.mrb[0].mxu0
      %v6391 = vadd.f32 0.0, %v6390
      %v6392 = vpop.f32.mrb[0].mxu0
      %6393 = vmatprep.mubr.f32.mxu0 0.0
      %6394 = vmatmul.mubr.f32.gmra.mrb[0].mxu0 %v6291
      %v6395 = vpop.f32.mrb[0].mxu0
      %v6396 = vadd.f32 0.0, %v6395
      %v6397 = vpop.f32.mrb[0].mxu0
      %6398 = vmatprep.mubr.f32.mxu0 0.0
      %6399 = vmatmul.mubr.f32.gmra.mrb[0].mxu0 %v6294
      %v6400 = vpop.f32.mrb[0].mxu0
      %v6401 = vadd.f32 0.0, %v6400
      %v6402 = vpop.f32.mrb[0].mxu0
      %6403 = vmatprep.mubr.f32.mxu0 0.0
      %6404 = vmatmul.mubr.f32.gmra.mrb[0].mxu0 %v6297
      %v6405 = vpop.f32.mrb[0].mxu0
      %v6406 = vadd.f32 0.0, %v6405
      %v6407 = vpop.f32.mrb[0].mxu0
      %6408 = vdwg.mxu0
      %v6409 = vadd.f32 %v6245, %v6366
      %v6410 = vadd.f32 %v6246, %v6371
      %v6411 = vadd.f32 %v6247, %v6376
      %v6412 = vadd.f32 %v6248, %v6381
      %v6413 = vadd.f32 %v6249, %v6386
      %v6414 = vadd.f32 %v6250, %v6391
      %v6415 = vadd.f32 %v6251, %v6396
      %v6416 = vadd.f32 %v6252, %v6401
      %v6417 = vadd.f32 %v6253, %v6406
      %v6418 = vld [vmem:[%s6] sm:$0x1]
      %v6420 = vlaneseq
      %v6421 = vshrl.u32 %v6420, 7
      %v6422 = vsub.s32 0, %v6421
      %v6423 = vrot.slane %v6418, %v6422
      %v6425 = vadd.f32 %v6409, %v6423
      %v6426 = vadd.f32 %v6410, %v6423
      %v6427 = vadd.f32 %v6411, %v6423
      %v6428 = vadd.f32 %v6412, %v6423
      %v6429 = vadd.f32 %v6413, %v6423
      %v6430 = vadd.f32 %v6414, %v6423
      %v6431 = vadd.f32 %v6415, %v6423
      %v6432 = vadd.f32 %v6416, %v6423
      %v6433 = vadd.f32 %v6417, %v6423
      %vm6434 = vcmp.ge.f32.partialorder %v6425, 0.0
      %vm6435 = vcmp.ge.f32.partialorder %v6426, 0.0
      %vm6436 = vcmp.ge.f32.partialorder %v6427, 0.0
      %vm6437 = vcmp.ge.f32.partialorder %v6428, 0.0
      %vm6438 = vcmp.ge.f32.partialorder %v6429, 0.0
      %vm6439 = vcmp.ge.f32.partialorder %v6430, 0.0
      %vm6440 = vcmp.ge.f32.partialorder %v6431, 0.0
      %vm6441 = vcmp.ge.f32.partialorder %v6432, 0.0
      %vm6442 = vcmp.ge.f32.partialorder %v6433, 0.0
      %v6443 = vmul.f32 %v6425, 0.01
      %v6444 = vmul.f32 %v6426, 0.01
      %v6445 = vmul.f32 %v6427, 0.01
      %v6446 = vmul.f32 %v6428, 0.01
      %v6447 = vmul.f32 %v6429, 0.01
      %v6448 = vmul.f32 %v6430, 0.01
      %v6449 = vmul.f32 %v6431, 0.01
      %v6450 = vmul.f32 %v6432, 0.01
      %v6451 = vmul.f32 %v6433, 0.01
      %v6452 = vsel %vm6434, %v6425, %v6443
      %v6453 = vsel %vm6435, %v6426, %v6444
      %v6454 = vsel %vm6436, %v6427, %v6445
      %v6455 = vsel %vm6437, %v6428, %v6446
      %v6456 = vsel %vm6438, %v6429, %v6447
      %v6457 = vsel %vm6439, %v6430, %v6448
      %v6458 = vsel %vm6440, %v6431, %v6449
      %v6459 = vsel %vm6441, %v6432, %v6450
      %v6460 = vsel %vm6442, %v6433, %v6451
      %6461 = vst.msk [vmem:[%s402] sm:$0xff] %vm1624, %v6452
      %6462 = vst.msk [vmem:[%s402 + $0x8] sm:$0xff] %vm1624, %v6453
      %6463 = vst.msk [vmem:[%s402 + $0x10] sm:$0xff] %vm1624, %v6454
      %6464 = vst.msk [vmem:[%s402 + $0x18] sm:$0xff] %vm1624, %v6455
      %6465 = vst.msk [vmem:[%s402 + $0x20] sm:$0xff] %vm1624, %v6456
      %6466 = vst.msk [vmem:[%s402 + $0x28] sm:$0xff] %vm1624, %v6457
      %6467 = vst.msk [vmem:[%s402 + $0x30] sm:$0xff] %vm1624, %v6458
      %6468 = vst.msk [vmem:[%s402 + $0x38] sm:$0xff] %vm1624, %v6459
      %6469 = vst.msk [vmem:[%s402 + $0x40] sm:$0xff] %vm1624, %v6460
      %v6470 = vlaneseq
      %v6471 = vshrl.u32 %v6470, 7
      %v6472 = vld [vmem:[%s402] sm:$0xff]
      %v6473 = vld [vmem:[%s402 + $0x8] sm:$0xff]
      %v6474 = vld [vmem:[%s402 + $0x10] sm:$0xff]
      %v6475 = vld [vmem:[%s402 + $0x18] sm:$0xff]
      %v6476 = vld [vmem:[%s402 + $0x20] sm:$0xf]
      %v6477 = vld [vmem:[%s8] sm:$0x7]
      %v6478 = vld [vmem:[%s7] sm:$0xff]
      %v6479 = vld [vmem:[%s7 + $0x8] sm:$0xff]
      %v6480 = vld [vmem:[%s7 + $0x10] sm:$0xff]
      %v6481 = vld [vmem:[%s7 + $0x18] sm:$0xff]
      %v6482 = vld [vmem:[%s7 + $0x20] sm:$0xf]
      %v6483 = vmul.f32 %v6472, %v6478
      %v6484 = vmul.f32 %v6473, %v6479
      %v6485 = vmul.f32 %v6474, %v6480
      %v6486 = vmul.f32 %v6475, %v6481
      %v6487 = vmul.f32 %v6476, %v6482
      %v6488 = vsel %vm1624, %v6483, 0.0
      %v6489 = vsel %vm1624, %v6484, 0.0
      %v6490 = vadd.f32 %v6488, %v6489
      %v6491 = vsel %vm1624, %v6485, 0.0
      %v6492 = vadd.f32 %v6490, %v6491
      %v6493 = vsel %vm1624, %v6486, 0.0
      %v6494 = vadd.f32 %v6492, %v6493
      %v6495 = vsel %vm4927, %v6487, 0.0
      %v6496 = vadd.f32 %v6494, %v6495
      %v6497 = vrot.slane %v6496, 4
      %v6498 = vadd.f32 %v6496, %v6497
      %v6499 = vrot.slane %v6498, 2
      %v6500 = vadd.f32 %v6498, %v6499
      %v6501 = vrot.slane %v6500, 1
      %v6502 = vadd.f32 %v6500, %v6501
      %v6503 = vsel %vm1624, %v6502, 0.0
      %6504 = vadd.xlane.f32.xlu0 %v6503
      %v6505 = vpop.xlane.xlu0 %6504
      %vm6506 = vcmp.eq.s32.totalorder %v6471, 0
      %v6507 = vsel %vm6506, %v6505, 0.0
      %v6508 = vadd.f32 %v6477, %v6507
      %s6509 = scalar_lea.vmem %s7, 40
      %v6510 = vld [vmem:[%s6509] sm:$0xff]
      %v6511 = vld [vmem:[%s6509 + $0x8] sm:$0xff]
      %v6512 = vld [vmem:[%s6509 + $0x10] sm:$0xff]
      %v6513 = vld [vmem:[%s6509 + $0x18] sm:$0xff]
      %v6514 = vld [vmem:[%s6509 + $0x20] sm:$0xf]
      %v6515 = vmul.f32 %v6472, %v6510
      %v6516 = vmul.f32 %v6473, %v6511
      %v6517 = vmul.f32 %v6474, %v6512
      %v6518 = vmul.f32 %v6475, %v6513
      %v6519 = vmul.f32 %v6476, %v6514
      %v6520 = vsel %vm1624, %v6515, 0.0
      %v6521 = vsel %vm1624, %v6516, 0.0
      %v6522 = vadd.f32 %v6520, %v6521
      %v6523 = vsel %vm1624, %v6517, 0.0
      %v6524 = vadd.f32 %v6522, %v6523
      %v6525 = vsel %vm1624, %v6518, 0.0
      %v6526 = vadd.f32 %v6524, %v6525
      %v6527 = vsel %vm4927, %v6519, 0.0
      %v6528 = vadd.f32 %v6526, %v6527
      %v6529 = vrot.slane %v6528, 4
      %v6530 = vadd.f32 %v6528, %v6529
      %v6531 = vrot.slane %v6530, 2
      %v6532 = vadd.f32 %v6530, %v6531
      %v6533 = vrot.slane %v6532, 1
      %v6534 = vadd.f32 %v6532, %v6533
      %v6535 = vsel %vm1624, %v6534, 0.0
      %6536 = vadd.xlane.f32.xlu0 %v6535
      %v6537 = vpop.xlane.xlu0 %6536
      %vm6538 = vcmp.eq.s32.totalorder %v6471, 1
      %v6539 = vsel %vm6538, %v6537, 0.0
      %v6540 = vadd.f32 %v6508, %v6539
      %s6541 = scalar_lea.vmem %s7, 80
      %v6542 = vld [vmem:[%s6541] sm:$0xff]
      %v6543 = vld [vmem:[%s6541 + $0x8] sm:$0xff]
      %v6544 = vld [vmem:[%s6541 + $0x10] sm:$0xff]
      %v6545 = vld [vmem:[%s6541 + $0x18] sm:$0xff]
      %v6546 = vld [vmem:[%s6541 + $0x20] sm:$0xf]
      %v6547 = vmul.f32 %v6472, %v6542
      %v6548 = vmul.f32 %v6473, %v6543
      %v6549 = vmul.f32 %v6474, %v6544
      %v6550 = vmul.f32 %v6475, %v6545
      %v6551 = vmul.f32 %v6476, %v6546
      %v6552 = vsel %vm1624, %v6547, 0.0
      %v6553 = vsel %vm1624, %v6548, 0.0
      %v6554 = vadd.f32 %v6552, %v6553
      %v6555 = vsel %vm1624, %v6549, 0.0
      %v6556 = vadd.f32 %v6554, %v6555
      %v6557 = vsel %vm1624, %v6550, 0.0
      %v6558 = vadd.f32 %v6556, %v6557
      %v6559 = vsel %vm4927, %v6551, 0.0
      %v6560 = vadd.f32 %v6558, %v6559
      %v6561 = vrot.slane %v6560, 4
      %v6562 = vadd.f32 %v6560, %v6561
      %v6563 = vrot.slane %v6562, 2
      %v6564 = vadd.f32 %v6562, %v6563
      %v6565 = vrot.slane %v6564, 1
      %v6566 = vadd.f32 %v6564, %v6565
      %v6567 = vsel %vm1624, %v6566, 0.0
      %6568 = vadd.xlane.f32.xlu0 %v6567
      %v6569 = vpop.xlane.xlu0 %6568
      %vm6570 = vcmp.eq.s32.totalorder %v6471, 2
      %v6571 = vsel %vm6570, %v6569, 0.0
      %v6572 = vadd.f32 %v6540, %v6571
      %vm6573 = vcmask 2048
      %6574 = vst.msk [vmem:[%s408] sm:$0x7] %vm6573, %v6572
      %v6575 = vsel %vm6573, %v6572, -inf
      %v6576 = vrot.slane %v6575, 4
      %v6577 = vmax.f32 %v6575, %v6576
      %v6578 = vrot.slane %v6577, 2
      %v6579 = vmax.f32 %v6577, %v6578
      %v6580 = vrot.slane %v6579, 1
      %v6581 = vmax.f32 %v6579, %v6580
      %vm6582 = vcmp.eq.f32.partialorder %v6572, %v6581
      %v6583 = vsel %vm6582, %v6471, 3
      %v6584 = vsel %vm6573, %v6583, 2147483647
      %v6585 = vrot.slane %v6584, 4
      %vm6586 = vcmp.lt.s32.totalorder %v6584, %v6585
      %v6587 = vsel %vm6586, %v6584, %v6585
      %v6588 = vrot.slane %v6587, 2
      %vm6589 = vcmp.lt.s32.totalorder %v6587, %v6588
      %v6590 = vsel %vm6589, %v6587, %v6588
      %v6591 = vrot.slane %v6590, 1
      %vm6592 = vcmp.lt.s32.totalorder %v6590, %v6591
      %v6593 = vsel %vm6592, %v6590, %v6591
      %vm6594 = vcmask 0
      %6595 = vst.msk [vmem:[%s413] sm:$0x1] %vm6594, %v6593
      %v6596 = vld [vmem:[%s402 + $0x24] sm:$0xff]
      %v6597 = vld [vmem:[%s402 + $0x2c] sm:$0xff]
      %v6598 = vld [vmem:[%s402 + $0x34] sm:$0xff]
      %v6599 = vld [vmem:[%s402 + $0x3c] sm:$0xff]
      %v6600 = vld [vmem:[%s402 + $0x44] sm:$0xf]
      %v6601 = vld [vmem:[%s8] sm:$0x7]
      %v6602 = vld [vmem:[%s7] sm:$0xff]
      %v6603 = vld [vmem:[%s7 + $0x8] sm:$0xff]
      %v6604 = vld [vmem:[%s7 + $0x10] sm:$0xff]
      %v6605 = vld [vmem:[%s7 + $0x18] sm:$0xff]
      %v6606 = vld [vmem:[%s7 + $0x20] sm:$0xf]
      %v6607 = vmul.f32 %v6596, %v6602
      %v6608 = vmul.f32 %v6597, %v6603
      %v6609 = vmul.f32 %v6598, %v6604
      %v6610 = vmul.f32 %v6599, %v6605
      %v6611 = vmul.f32 %v6600, %v6606
      %v6612 = vsel %vm1624, %v6607, 0.0
      %v6613 = vsel %vm1624, %v6608, 0.0
      %v6614 = vadd.f32 %v6612, %v6613
      %v6615 = vsel %vm1624, %v6609, 0.0
      %v6616 = vadd.f32 %v6614, %v6615
      %v6617 = vsel %vm1624, %v6610, 0.0
      %v6618 = vadd.f32 %v6616, %v6617
      %v6619 = vsel %vm4927, %v6611, 0.0
      %v6620 = vadd.f32 %v6618, %v6619
      %v6621 = vrot.slane %v6620, 4
      %v6622 = vadd.f32 %v6620, %v6621
      %v6623 = vrot.slane %v6622, 2
      %v6624 = vadd.f32 %v6622, %v6623
      %v6625 = vrot.slane %v6624, 1
      %v6626 = vadd.f32 %v6624, %v6625
      %v6627 = vsel %vm1624, %v6626, 0.0
      %6628 = vadd.xlane.f32.xlu0 %v6627
      %v6629 = vpop.xlane.xlu0 %6628
      %v6630 = vsel %vm6506, %v6629, 0.0
      %v6631 = vadd.f32 %v6601, %v6630
      %v6632 = vld [vmem:[%s6509] sm:$0xff]
      %v6633 = vld [vmem:[%s6509 + $0x8] sm:$0xff]
      %v6634 = vld [vmem:[%s6509 + $0x10] sm:$0xff]
      %v6635 = vld [vmem:[%s6509 + $0x18] sm:$0xff]
      %v6636 = vld [vmem:[%s6509 + $0x20] sm:$0xf]
      %v6637 = vmul.f32 %v6596, %v6632
      %v6638 = vmul.f32 %v6597, %v6633
      %v6639 = vmul.f32 %v6598, %v6634
      %v6640 = vmul.f32 %v6599, %v6635
      %v6641 = vmul.f32 %v6600, %v6636
      %v6642 = vsel %vm1624, %v6637, 0.0
      %v6643 = vsel %vm1624, %v6638, 0.0
      %v6644 = vadd.f32 %v6642, %v6643
      %v6645 = vsel %vm1624, %v6639, 0.0
      %v6646 = vadd.f32 %v6644, %v6645
      %v6647 = vsel %vm1624, %v6640, 0.0
      %v6648 = vadd.f32 %v6646, %v6647
      %v6649 = vsel %vm4927, %v6641, 0.0
      %v6650 = vadd.f32 %v6648, %v6649
      %v6651 = vrot.slane %v6650, 4
      %v6652 = vadd.f32 %v6650, %v6651
      %v6653 = vrot.slane %v6652, 2
      %v6654 = vadd.f32 %v6652, %v6653
      %v6655 = vrot.slane %v6654, 1
      %v6656 = vadd.f32 %v6654, %v6655
      %v6657 = vsel %vm1624, %v6656, 0.0
      %6658 = vadd.xlane.f32.xlu0 %v6657
      %v6659 = vpop.xlane.xlu0 %6658
      %v6660 = vsel %vm6538, %v6659, 0.0
      %v6661 = vadd.f32 %v6631, %v6660
      %v6662 = vld [vmem:[%s6541] sm:$0xff]
      %v6663 = vld [vmem:[%s6541 + $0x8] sm:$0xff]
      %v6664 = vld [vmem:[%s6541 + $0x10] sm:$0xff]
      %v6665 = vld [vmem:[%s6541 + $0x18] sm:$0xff]
      %v6666 = vld [vmem:[%s6541 + $0x20] sm:$0xf]
      %v6667 = vmul.f32 %v6596, %v6662
      %v6668 = vmul.f32 %v6597, %v6663
      %v6669 = vmul.f32 %v6598, %v6664
      %v6670 = vmul.f32 %v6599, %v6665
      %v6671 = vmul.f32 %v6600, %v6666
      %v6672 = vsel %vm1624, %v6667, 0.0
      %v6673 = vsel %vm1624, %v6668, 0.0
      %v6674 = vadd.f32 %v6672, %v6673
      %v6675 = vsel %vm1624, %v6669, 0.0
      %v6676 = vadd.f32 %v6674, %v6675
      %v6677 = vsel %vm1624, %v6670, 0.0
      %v6678 = vadd.f32 %v6676, %v6677
      %v6679 = vsel %vm4927, %v6671, 0.0
      %v6680 = vadd.f32 %v6678, %v6679
      %v6681 = vrot.slane %v6680, 4
      %v6682 = vadd.f32 %v6680, %v6681
      %v6683 = vrot.slane %v6682, 2
      %v6684 = vadd.f32 %v6682, %v6683
      %v6685 = vrot.slane %v6684, 1
      %v6686 = vadd.f32 %v6684, %v6685
      %v6687 = vsel %vm1624, %v6686, 0.0
      %6688 = vadd.xlane.f32.xlu0 %v6687
      %v6689 = vpop.xlane.xlu0 %6688
      %v6690 = vsel %vm6570, %v6689, 0.0
      %v6691 = vadd.f32 %v6661, %v6690
      %s6692 = scalar_lea.vmem %s408, 4
      %6693 = vst.msk [vmem:[%s6692] sm:$0x7] %vm6573, %v6691
      %v6694 = vsel %vm6573, %v6691, -inf
      %v6695 = vrot.slane %v6694, 4
      %v6696 = vmax.f32 %v6694, %v6695
      %v6697 = vrot.slane %v6696, 2
      %v6698 = vmax.f32 %v6696, %v6697
      %v6699 = vrot.slane %v6698, 1
      %v6700 = vmax.f32 %v6698, %v6699
      %vm6701 = vcmp.eq.f32.partialorder %v6691, %v6700
      %v6702 = vsel %vm6701, %v6471, 3
      %v6703 = vsel %vm6573, %v6702, 2147483647
      %v6704 = vrot.slane %v6703, 4
      %vm6705 = vcmp.lt.s32.totalorder %v6703, %v6704
      %v6706 = vsel %vm6705, %v6703, %v6704
      %v6707 = vrot.slane %v6706, 2
      %vm6708 = vcmp.lt.s32.totalorder %v6706, %v6707
      %v6709 = vsel %vm6708, %v6706, %v6707
      %v6710 = vrot.slane %v6709, 1
      %vm6711 = vcmp.lt.s32.totalorder %v6709, %v6710
      %v6712 = vsel %vm6711, %v6709, %v6710
      %s6713 = scalar_lea.vmem %s413, 1
      %6714 = vst.msk [vmem:[%s6713] sm:$0x1] %vm6594, %v6712
      %s6715 = smul.u32 9, %s23
      %p6716 = scmp.lt.s32.totalorder %s6715, 17
      %s6717 = scalar_select %p6716, %s6715, 17
      %s6718 = smul.addr %s6717, 8
      %s6719 = scalar_lea.vmem %s9, %s6718
      %s6720 = smul.u32 2, %s23
      %p6721 = scmp.lt.s32.totalorder %s6720, 3
      %s6722 = scalar_select %p6721, %s6720, 3
      %s6723 = smul.addr %s6722, 4
      %s6724 = scalar_lea.vmem %s10, %s6723
      %s6725 = smul.u32 2, %s23
      %p6726 = scmp.lt.s32.totalorder %s6725, 3
      %s6727 = scalar_select %p6726, %s6725, 3
      %s6728 = scalar_lea.vmem %s11, %s6727
      // Predicated region
      $region57: #{mixture_of_experts_forward.1} parent=55 // pred_check
        %p6729 = pneg %p235
      $region58: #{mixture_of_experts_forward.1} parent=55 // pred_check_branch
        %6731 = sbr.rel (%p6729) target = $region60
      $region59: #{mixture_of_experts_forward.1} parent=55 // pred_region
        %s6732 = smul.u32 9, %s23
      $region60: #{mixture_of_experts_forward.1} parent=55 // pred_fallthru
        _
      // Predicated region
      $region61: #{mixture_of_experts_forward.1} parent=55 // pred_check
        %p6733 = pneg %p261
      $region62: #{mixture_of_experts_forward.1} parent=55 // pred_check_branch
        %6735 = sbr.rel (%p6733) target = $region64
      $region63: #{mixture_of_experts_forward.1} parent=55 // pred_region
        %s6736 = smul.u32 2, %s23
      $region64: #{mixture_of_experts_forward.1} parent=55 // pred_fallthru
        _
      // Predicated region
      $region65: #{mixture_of_experts_forward.1} parent=55 // pred_check
        %p6737 = pneg %p287
      $region66: #{mixture_of_experts_forward.1} parent=55 // pred_check_branch
        %6739 = sbr.rel (%p6737) target = $region68
      $region67: #{mixture_of_experts_forward.1} parent=55 // pred_region
        %s6740 = smul.u32 2, %s23
      $region68: #{mixture_of_experts_forward.1} parent=55 // pred_fallthru
        _
    $region56: #{mixture_of_experts_forward.1} parent=5 // pred_fallthru
      _
    %p6741 = scmp.le.s32.totalorder 2, %s18
    // Predicated region
    $region69: #{mixture_of_experts_forward.1} parent=5 // pred_check
      %p6742 = pneg %p6741
    $region70: #{mixture_of_experts_forward.1} parent=5 // pred_check_branch
      %6744 = sbr.rel (%p6742) target = $region72
    $region71: #{mixture_of_experts_forward.1} parent=5 // pred_region
      %s6745 = ssub.s32 %s18, 2
      // Predicated region
      $region73: #{mixture_of_experts_forward.1} parent=71 // pred_check
        %p6746 = pneg %p241
      $region74: #{mixture_of_experts_forward.1} parent=71 // pred_check_branch
        %6748 = sbr.rel (%p6746) target = $region76
      $region75: #{mixture_of_experts_forward.1} parent=71 // pred_region
        %s6749 = smul.u32 9, %s24
        %p6750 = scmp.lt.s32.totalorder %s6749, 17
        %s6751 = scalar_select %p6750, %s6749, 17
        %s6752 = smul.addr %s6751, 8
        %s6753 = scalar_lea.vmem %s9, %s6752
      $region76: #{mixture_of_experts_forward.1} parent=71 // pred_fallthru
        _
      // Predicated region
      $region77: #{mixture_of_experts_forward.1} parent=71 // pred_check
        %p6754 = pneg %p267
      $region78: #{mixture_of_experts_forward.1} parent=71 // pred_check_branch
        %6756 = sbr.rel (%p6754) target = $region80
      $region79: #{mixture_of_experts_forward.1} parent=71 // pred_region
        %s6757 = smul.u32 2, %s24
        %p6758 = scmp.lt.s32.totalorder %s6757, 3
        %s6759 = scalar_select %p6758, %s6757, 3
        %s6760 = smul.addr %s6759, 4
        %s6761 = scalar_lea.vmem %s10, %s6760
      $region80: #{mixture_of_experts_forward.1} parent=71 // pred_fallthru
        _
      // Predicated region
      $region81: #{mixture_of_experts_forward.1} parent=71 // pred_check
        %p6762 = pneg %p293
      $region82: #{mixture_of_experts_forward.1} parent=71 // pred_check_branch
        %6764 = sbr.rel (%p6762) target = $region84
      $region83: #{mixture_of_experts_forward.1} parent=71 // pred_region
        %s6765 = smul.u32 2, %s24
        %p6766 = scmp.lt.s32.totalorder %s6765, 3
        %s6767 = scalar_select %p6766, %s6765, 3
        %s6768 = scalar_lea.vmem %s11, %s6767
      $region84: #{mixture_of_experts_forward.1} parent=71 // pred_fallthru
        _
    $region72: #{mixture_of_experts_forward.1} parent=5 // pred_fallthru
      _
  $region6: #{mixture_of_experts_forward.1} parent=0 // loop_footer
    %s22 = sadd.s32 1, %s18
  $region7: #{mixture_of_experts_forward.1} parent=0 // loop_footer_branch
    %17 = sbr.rel target = $region3
  $region8: #{mixture_of_experts_forward.1} parent=0 // loop_exit
    _

</llo_original>
